<compile_context>
chip_gen: v7x
topology: tpu7x:2x2x1
jax: 0.10.0
libtpu: 0.0.40
codegen_flags: <defaults>
</compile_context>

<pallas_src>
import jax
import jax.numpy as jnp
from jax.experimental import pallas as pl
from jax.experimental.pallas import tpu as pltpu

EPS = 1e-5
LANE = 128        # vreg lane width -> channel padding target (lane-dense)
MXU_BF16 = False  # set True on v6e/v7x to feed the MXU bf16 (f32 accum);
                  # kept False so numerics match the f32 PyTorch reference.


def _round_up(n, m):
    return (n + m - 1) // m * m


def _mxu_dot(lhs, rhs):
    if MXU_BF16:
        lhs = lhs.astype(jnp.bfloat16)
        rhs = rhs.astype(jnp.bfloat16)
    return jnp.dot(lhs, rhs, preferred_element_type=jnp.float32)


def _bn_train(acc, gamma, beta, rows):
    """BatchNorm2d (training mode) over the row axis of a (rows, C) slab.

    Single pass over `acc` for sum / sum-of-squares, then a fused per-channel
    affine y = acc * scale + shift.  rsqrt goes to the EUP.
    Padded (all-zero) channels come out exactly zero because gamma/beta are
    zero-padded.
    """
    inv_n = 1.0 / rows
    s = jnp.sum(acc, axis=0, keepdims=True)
    ss = jnp.sum(acc * acc, axis=0, keepdims=True)
    mean = s * inv_n
    var = jnp.maximum(ss * inv_n - mean * mean, 0.0)   # biased variance
    scale = gamma * jax.lax.rsqrt(var + EPS)
    shift = beta - mean * scale
    return acc * scale + shift


def _residual_block_kernel(x_ref, w1_ref, g1_ref, be1_ref, w2_ref, g2_ref,
                           be2_ref, out_ref, xp_ref, h1p_ref):
    """Fused: pad -> conv1 -> bn1 -> pad -> conv2 -> bn2 -> relu -> +x -> relu.

    The intermediate activation h1 stays in VMEM; the only HBM traffic is the
    kernel inputs and the final output.  Each 3x3 conv is 9 shifted-slab MXU
    matmuls (contraction K = C_padded) accumulated in f32.
    """
    N, H, W, Cp = x_ref.shape
    Cmp = w1_ref.shape[-1]
    Cop = w2_ref.shape[-1]
    rows = N * H * W

    x = x_ref[...]

    # ---- conv1: in-kernel halo padding + 9 shifted matmuls ----
    xp_ref[...] = jnp.zeros(xp_ref.shape, xp_ref.dtype)
    xp_ref[:, 1:H + 1, 1:W + 1, :] = x
    xp = xp_ref[...]
    acc1 = jnp.zeros((rows, Cmp), jnp.float32)
    for kh in range(3):
        for kw in range(3):
            off = (kh * 3 + kw) * Cp            # static, 128-aligned
            slab = xp[:, kh:kh + H, kw:kw + W, :].reshape(rows, Cp)
            acc1 = acc1 + _mxu_dot(slab, w1_ref[off:off + Cp, :])
    # conv bias intentionally omitted: it cancels exactly under training BN.
    h1 = _bn_train(acc1, g1_ref[...], be1_ref[...], rows)

    # ---- conv2 (h1 never leaves VMEM) ----
    h1p_ref[...] = jnp.zeros(h1p_ref.shape, h1p_ref.dtype)
    h1p_ref[:, 1:H + 1, 1:W + 1, :] = h1.reshape(N, H, W, Cmp)
    h1p = h1p_ref[...]
    acc2 = jnp.zeros((rows, Cop), jnp.float32)
    for kh in range(3):
        for kw in range(3):
            off = (kh * 3 + kw) * Cmp           # static, 128-aligned
            slab = h1p[:, kh:kh + H, kw:kw + W, :].reshape(rows, Cmp)
            acc2 = acc2 + _mxu_dot(slab, w2_ref[off:off + Cmp, :])
    y = _bn_train(acc2, g2_ref[...], be2_ref[...], rows)

    y = jnp.maximum(y, 0.0)                 # ReLU inside nn.Sequential
    y = y.reshape(N, H, W, Cop) + x         # out + x   (Cop == Cp here)
    out_ref[...] = jnp.maximum(y, 0.0)      # F.relu(out + x)


def init_params(key, in_channels, out_channels, mid_channels=None):
    """Deterministic parameter init (shapes match the nn.Module __init__)."""
    if not mid_channels:
        mid_channels = out_channels
    k1, k2, k3, k4 = jax.random.split(key, 4)
    # Conv weights stored directly in HWIO (kernel layout).
    w1 = jax.random.normal(k1, (3, 3, in_channels, mid_channels),
                           jnp.float32) * 0.1
    b1 = jax.random.normal(k2, (1, mid_channels), jnp.float32) * 0.1
    w2 = jax.random.normal(k3, (3, 3, mid_channels, out_channels),
                           jnp.float32) * 0.1
    b2 = jax.random.normal(k4, (1, out_channels), jnp.float32) * 0.1
    # BatchNorm affine params (PyTorch default init: weight=1, bias=0).
    g1 = jnp.ones((1, mid_channels), jnp.float32)
    be1 = jnp.zeros((1, mid_channels), jnp.float32)
    g2 = jnp.ones((1, out_channels), jnp.float32)
    be2 = jnp.zeros((1, out_channels), jnp.float32)
    return dict(w1=w1, b1=b1, g1=g1, be1=be1,
                w2=w2, b2=b2, g2=g2, be2=be2)


@jax.jit
def residual_block_forward(x_nchw, params):
    """Forward pass of ResidualBlock (downsample=None, stride=1).

    Returns (x, out):
      x   -- what the PyTorch module actually returns (the input, unchanged)
      out -- relu(layer(x) + x), computed in the fused Pallas kernel.
    """
    x = jnp.transpose(x_nchw, (0, 2, 3, 1)).astype(jnp.float32)   # NHWC
    N, H, W, Cin = x.shape
    w1, w2 = params["w1"], params["w2"]
    Cmid, Cout = w1.shape[-1], w2.shape[-1]
    assert Cin == Cout, "residual add requires in_channels == out_channels"

    Cp = _round_up(Cin, LANE)
    Cmp = _round_up(Cmid, LANE)
    Cop = _round_up(Cout, LANE)

    # Channel-pad to a lane-dense (multiple of 128) layout; extra channels are
    # zero everywhere (zero weights / gamma / beta keep them exactly zero).
    xpd = jnp.pad(x, ((0, 0), (0, 0), (0, 0), (0, Cp - Cin)))
    w1p = jnp.pad(w1, ((0, 0), (0, 0), (0, Cp - Cin), (0, Cmp - Cmid))
                  ).reshape(9 * Cp, Cmp)          # (kh,kw,cin) flattened
    w2p = jnp.pad(w2, ((0, 0), (0, 0), (0, Cmp - Cmid), (0, Cop - Cout))
                  ).reshape(9 * Cmp, Cop)
    g1p = jnp.pad(params["g1"], ((0, 0), (0, Cmp - Cmid)))
    be1p = jnp.pad(params["be1"], ((0, 0), (0, Cmp - Cmid)))
    g2p = jnp.pad(params["g2"], ((0, 0), (0, Cop - Cout)))
    be2p = jnp.pad(params["be2"], ((0, 0), (0, Cop - Cout)))
    # NOTE: conv biases b1/b2 are not passed -- a per-channel constant added
    # before training-mode BatchNorm cancels exactly.

    out_p = pl.pallas_call(
        _residual_block_kernel,
        out_shape=jax.ShapeDtypeStruct((N, H, W, Cop), jnp.float32),
        in_specs=[pl.BlockSpec(memory_space=pltpu.MemorySpace.VMEM)
                  for _ in range(7)],
        out_specs=pl.BlockSpec(memory_space=pltpu.MemorySpace.VMEM),
        scratch_shapes=[
            pltpu.VMEM((N, H + 2, W + 2, Cp), jnp.float32),    # padded x
            pltpu.VMEM((N, H + 2, W + 2, Cmp), jnp.float32),   # padded h1
        ],
        compiler_params=pltpu.CompilerParams(
            vmem_limit_bytes=64 * 1024 * 1024),
    )(xpd, w1p, g1p, be1p, w2p, g2p, be2p)

    out_nhwc = out_p[..., :Cout]                    # drop padded channels
    out_nchw = jnp.transpose(out_nhwc, (0, 3, 1, 2))
    # The reference module returns x (not out) -- reproduce exactly.
    return x_nchw, out_nchw


def _reference_forward(x_nchw, params):
    """Pure-JAX/XLA reference of the same forward (for correctness check)."""
    x = jnp.transpose(x_nchw, (0, 2, 3, 1)).astype(jnp.float32)

    def conv_bn(h, w, b, g, be):
        y = jax.lax.conv_general_dilated(
            h, w, window_strides=(1, 1), padding="SAME",
            dimension_numbers=("NHWC", "HWIO", "NHWC"))
        y = y + b.reshape(1, 1, 1, -1)
        m = jnp.mean(y, axis=(0, 1, 2), keepdims=True)
        v = jnp.mean((y - m) ** 2, axis=(0, 1, 2), keepdims=True)
        return ((y - m) * jax.lax.rsqrt(v + EPS) * g.reshape(1, 1, 1, -1)
                + be.reshape(1, 1, 1, -1))

    h = conv_bn(x, params["w1"], params["b1"], params["g1"], params["be1"])
    h = conv_bn(h, params["w2"], params["b2"], params["g2"], params["be2"])
    h = jnp.maximum(h, 0.0)
    out = jnp.maximum(h + x, 0.0)
    return jnp.transpose(out, (0, 3, 1, 2))


if __name__ == "__main__":
    key = jax.random.PRNGKey(0)
    kx, kp = jax.random.split(key)

    N, C, Hs, Ws = 2, 4, 16, 16            # small shapes, in==out channels
    x = jax.random.normal(kx, (N, C, Hs, Ws), jnp.float32)
    params = init_params(kp, in_channels=C, out_channels=C)

    ret, out = residual_block_forward(x, params)
    jax.block_until_ready(ret)
    jax.block_until_ready(out)

    assert ret.shape == (N, C, Hs, Ws)
    assert out.shape == (N, C, Hs, Ws)

    ref = _reference_forward(x, params)
    err = float(jnp.max(jnp.abs(out - ref)))
    assert jnp.allclose(out, ref, atol=1e-3, rtol=1e-3), f"max err {err}"

    print("KERNEL_OK")
</pallas_src>

<mosaic_0001>
module attributes {stable_mosaic.version = 11 : i64} {
  func.func @_residual_block_kernel(%arg0: memref<2x16x16x128xf32, #tpu.memory_space<vmem>>, %arg1: memref<1152x128xf32, #tpu.memory_space<vmem>>, %arg2: memref<1x128xf32, #tpu.memory_space<vmem>>, %arg3: memref<1x128xf32, #tpu.memory_space<vmem>>, %arg4: memref<1152x128xf32, #tpu.memory_space<vmem>>, %arg5: memref<1x128xf32, #tpu.memory_space<vmem>>, %arg6: memref<1x128xf32, #tpu.memory_space<vmem>>, %arg7: memref<2x16x16x128xf32, #tpu.memory_space<vmem>>, %arg8: memref<2x18x18x128xf32, #tpu.memory_space<vmem>>, %arg9: memref<2x18x18x128xf32, #tpu.memory_space<vmem>>) attributes {dimension_semantics = [], scalar_prefetch = 0 : i64, scratch_operands = 2 : i64, tpu.core_type = #tpu.core_type<tc>} {
    %c0 = arith.constant 0 : index
    %c0_0 = arith.constant 0 : index
    %c0_1 = arith.constant 0 : index
    %c0_2 = arith.constant 0 : index
    %0 = vector.load %arg0[%c0, %c0_0, %c0_1, %c0_2] : memref<2x16x16x128xf32, #tpu.memory_space<vmem>>, vector<2x16x16x128xf32>
    %cst = arith.constant 0.000000e+00 : f32
    %1 = vector.broadcast %cst : f32 to vector<2x18x18x128xf32>
    %c0_3 = arith.constant 0 : index
    %c0_4 = arith.constant 0 : index
    %c0_5 = arith.constant 0 : index
    %c0_6 = arith.constant 0 : index
    %2 = vector.load %arg8[%c0_3, %c0_4, %c0_5, %c0_6] : memref<2x18x18x128xf32, #tpu.memory_space<vmem>>, vector<2x18x18x128xf32>
    tpu.vector_store %arg8[%c0_3, %c0_4, %c0_5, %c0_6], %1 {strides = array<i32>} : memref<2x18x18x128xf32, #tpu.memory_space<vmem>>, vector<2x18x18x128xf32>,
    %c0_7 = arith.constant 0 : index
    %c1 = arith.constant 1 : index
    %c1_8 = arith.constant 1 : index
    %c0_9 = arith.constant 0 : index
    %3 = vector.load %arg8[%c0_7, %c1, %c1_8, %c0_9] : memref<2x18x18x128xf32, #tpu.memory_space<vmem>>, vector<2x16x16x128xf32>
    tpu.vector_store %arg8[%c0_7, %c1, %c1_8, %c0_9], %0 {strides = array<i32>} : memref<2x18x18x128xf32, #tpu.memory_space<vmem>>, vector<2x16x16x128xf32>,
    %c0_10 = arith.constant 0 : index
    %c0_11 = arith.constant 0 : index
    %c0_12 = arith.constant 0 : index
    %c0_13 = arith.constant 0 : index
    %4 = vector.load %arg8[%c0_10, %c0_11, %c0_12, %c0_13] : memref<2x18x18x128xf32, #tpu.memory_space<vmem>>, vector<2x18x18x128xf32>
    %cst_14 = arith.constant 0.000000e+00 : f32
    %5 = vector.broadcast %cst_14 : f32 to vector<512x128xf32>
    %6 = vector.extract_strided_slice %4 {offsets = [0, 0, 0, 0], sizes = [2, 16, 16, 128], strides = [1, 1, 1, 1]} : vector<2x18x18x128xf32> to vector<2x16x16x128xf32>
    %7 = vector.shape_cast %6 : vector<2x16x16x128xf32> to vector<512x128xf32>
    %c0_15 = arith.constant 0 : index
    %c0_16 = arith.constant 0 : index
    %8 = vector.load %arg1[%c0_15, %c0_16] : memref<1152x128xf32, #tpu.memory_space<vmem>>, vector<128x128xf32>
    %cst_17 = arith.constant dense<0.000000e+00> : vector<512x128xf32>
    %9 = tpu.matmul %7, %8, %cst_17 {dimension_numbers = #tpu.dot_dimension_numbers<[1], [0], [0], [1], [0, 0, 1, 1], [], []>} : vector<512x128xf32>, vector<128x128xf32>, vector<512x128xf32> -> vector<512x128xf32>
    %10 = arith.addf %5, %9 : vector<512x128xf32>
    %11 = vector.extract_strided_slice %4 {offsets = [0, 0, 1, 0], sizes = [2, 16, 16, 128], strides = [1, 1, 1, 1]} : vector<2x18x18x128xf32> to vector<2x16x16x128xf32>
    %12 = vector.shape_cast %11 : vector<2x16x16x128xf32> to vector<512x128xf32>
    %c128 = arith.constant 128 : index
    %c0_18 = arith.constant 0 : index
    %13 = vector.load %arg1[%c128, %c0_18] : memref<1152x128xf32, #tpu.memory_space<vmem>>, vector<128x128xf32>
    %cst_19 = arith.constant dense<0.000000e+00> : vector<512x128xf32>
    %14 = tpu.matmul %12, %13, %cst_19 {dimension_numbers = #tpu.dot_dimension_numbers<[1], [0], [0], [1], [0, 0, 1, 1], [], []>} : vector<512x128xf32>, vector<128x128xf32>, vector<512x128xf32> -> vector<512x128xf32>
    %15 = arith.addf %10, %14 : vector<512x128xf32>
    %16 = vector.extract_strided_slice %4 {offsets = [0, 0, 2, 0], sizes = [2, 16, 16, 128], strides = [1, 1, 1, 1]} : vector<2x18x18x128xf32> to vector<2x16x16x128xf32>
    %17 = vector.shape_cast %16 : vector<2x16x16x128xf32> to vector<512x128xf32>
    %c256 = arith.constant 256 : index
    %c0_20 = arith.constant 0 : index
    %18 = vector.load %arg1[%c256, %c0_20] : memref<1152x128xf32, #tpu.memory_space<vmem>>, vector<128x128xf32>
    %cst_21 = arith.constant dense<0.000000e+00> : vector<512x128xf32>
    %19 = tpu.matmul %17, %18, %cst_21 {dimension_numbers = #tpu.dot_dimension_numbers<[1], [0], [0], [1], [0, 0, 1, 1], [], []>} : vector<512x128xf32>, vector<128x128xf32>, vector<512x128xf32> -> vector<512x128xf32>
    %20 = arith.addf %15, %19 : vector<512x128xf32>
    %21 = vector.extract_strided_slice %4 {offsets = [0, 1, 0, 0], sizes = [2, 16, 16, 128], strides = [1, 1, 1, 1]} : vector<2x18x18x128xf32> to vector<2x16x16x128xf32>
    %22 = vector.shape_cast %21 : vector<2x16x16x128xf32> to vector<512x128xf32>
    %c384 = arith.constant 384 : index
    %c0_22 = arith.constant 0 : index
    %23 = vector.load %arg1[%c384, %c0_22] : memref<1152x128xf32, #tpu.memory_space<vmem>>, vector<128x128xf32>
    %cst_23 = arith.constant dense<0.000000e+00> : vector<512x128xf32>
    %24 = tpu.matmul %22, %23, %cst_23 {dimension_numbers = #tpu.dot_dimension_numbers<[1], [0], [0], [1], [0, 0, 1, 1], [], []>} : vector<512x128xf32>, vector<128x128xf32>, vector<512x128xf32> -> vector<512x128xf32>
    %25 = arith.addf %20, %24 : vector<512x128xf32>
    %26 = vector.extract_strided_slice %4 {offsets = [0, 1, 1, 0], sizes = [2, 16, 16, 128], strides = [1, 1, 1, 1]} : vector<2x18x18x128xf32> to vector<2x16x16x128xf32>
    %27 = vector.shape_cast %26 : vector<2x16x16x128xf32> to vector<512x128xf32>
    %c512 = arith.constant 512 : index
    %c0_24 = arith.constant 0 : index
    %28 = vector.load %arg1[%c512, %c0_24] : memref<1152x128xf32, #tpu.memory_space<vmem>>, vector<128x128xf32>
    %cst_25 = arith.constant dense<0.000000e+00> : vector<512x128xf32>
    %29 = tpu.matmul %27, %28, %cst_25 {dimension_numbers = #tpu.dot_dimension_numbers<[1], [0], [0], [1], [0, 0, 1, 1], [], []>} : vector<512x128xf32>, vector<128x128xf32>, vector<512x128xf32> -> vector<512x128xf32>
    %30 = arith.addf %25, %29 : vector<512x128xf32>
    %31 = vector.extract_strided_slice %4 {offsets = [0, 1, 2, 0], sizes = [2, 16, 16, 128], strides = [1, 1, 1, 1]} : vector<2x18x18x128xf32> to vector<2x16x16x128xf32>
    %32 = vector.shape_cast %31 : vector<2x16x16x128xf32> to vector<512x128xf32>
    %c640 = arith.constant 640 : index
    %c0_26 = arith.constant 0 : index
    %33 = vector.load %arg1[%c640, %c0_26] : memref<1152x128xf32, #tpu.memory_space<vmem>>, vector<128x128xf32>
    %cst_27 = arith.constant dense<0.000000e+00> : vector<512x128xf32>
    %34 = tpu.matmul %32, %33, %cst_27 {dimension_numbers = #tpu.dot_dimension_numbers<[1], [0], [0], [1], [0, 0, 1, 1], [], []>} : vector<512x128xf32>, vector<128x128xf32>, vector<512x128xf32> -> vector<512x128xf32>
    %35 = arith.addf %30, %34 : vector<512x128xf32>
    %36 = vector.extract_strided_slice %4 {offsets = [0, 2, 0, 0], sizes = [2, 16, 16, 128], strides = [1, 1, 1, 1]} : vector<2x18x18x128xf32> to vector<2x16x16x128xf32>
    %37 = vector.shape_cast %36 : vector<2x16x16x128xf32> to vector<512x128xf32>
    %c768 = arith.constant 768 : index
    %c0_28 = arith.constant 0 : index
    %38 = vector.load %arg1[%c768, %c0_28] : memref<1152x128xf32, #tpu.memory_space<vmem>>, vector<128x128xf32>
    %cst_29 = arith.constant dense<0.000000e+00> : vector<512x128xf32>
    %39 = tpu.matmul %37, %38, %cst_29 {dimension_numbers = #tpu.dot_dimension_numbers<[1], [0], [0], [1], [0, 0, 1, 1], [], []>} : vector<512x128xf32>, vector<128x128xf32>, vector<512x128xf32> -> vector<512x128xf32>
    %40 = arith.addf %35, %39 : vector<512x128xf32>
    %41 = vector.extract_strided_slice %4 {offsets = [0, 2, 1, 0], sizes = [2, 16, 16, 128], strides = [1, 1, 1, 1]} : vector<2x18x18x128xf32> to vector<2x16x16x128xf32>
    %42 = vector.shape_cast %41 : vector<2x16x16x128xf32> to vector<512x128xf32>
    %c896 = arith.constant 896 : index
    %c0_30 = arith.constant 0 : index
    %43 = vector.load %arg1[%c896, %c0_30] : memref<1152x128xf32, #tpu.memory_space<vmem>>, vector<128x128xf32>
    %cst_31 = arith.constant dense<0.000000e+00> : vector<512x128xf32>
    %44 = tpu.matmul %42, %43, %cst_31 {dimension_numbers = #tpu.dot_dimension_numbers<[1], [0], [0], [1], [0, 0, 1, 1], [], []>} : vector<512x128xf32>, vector<128x128xf32>, vector<512x128xf32> -> vector<512x128xf32>
    %45 = arith.addf %40, %44 : vector<512x128xf32>
    %46 = vector.extract_strided_slice %4 {offsets = [0, 2, 2, 0], sizes = [2, 16, 16, 128], strides = [1, 1, 1, 1]} : vector<2x18x18x128xf32> to vector<2x16x16x128xf32>
    %47 = vector.shape_cast %46 : vector<2x16x16x128xf32> to vector<512x128xf32>
    %c1024 = arith.constant 1024 : index
    %c0_32 = arith.constant 0 : index
    %48 = vector.load %arg1[%c1024, %c0_32] : memref<1152x128xf32, #tpu.memory_space<vmem>>, vector<128x128xf32>
    %cst_33 = arith.constant dense<0.000000e+00> : vector<512x128xf32>
    %49 = tpu.matmul %47, %48, %cst_33 {dimension_numbers = #tpu.dot_dimension_numbers<[1], [0], [0], [1], [0, 0, 1, 1], [], []>} : vector<512x128xf32>, vector<128x128xf32>, vector<512x128xf32> -> vector<512x128xf32>
    %50 = arith.addf %45, %49 : vector<512x128xf32>
    %c0_34 = arith.constant 0 : index
    %c0_35 = arith.constant 0 : index
    %51 = vector.load %arg2[%c0_34, %c0_35] : memref<1x128xf32, #tpu.memory_space<vmem>>, vector<1x128xf32>
    %c0_36 = arith.constant 0 : index
    %c0_37 = arith.constant 0 : index
    %52 = vector.load %arg3[%c0_36, %c0_37] : memref<1x128xf32, #tpu.memory_space<vmem>>, vector<1x128xf32>
    %cst_38 = arith.constant dense<0.000000e+00> : vector<128xf32>
    %53 = vector.multi_reduction <add>, %50, %cst_38 [0] : vector<512x128xf32> to vector<128xf32>
    %54 = vector.shape_cast %53 : vector<128xf32> to vector<1x128xf32>
    %55 = arith.mulf %50, %50 : vector<512x128xf32>
    %cst_39 = arith.constant dense<0.000000e+00> : vector<128xf32>
    %56 = vector.multi_reduction <add>, %55, %cst_39 [0] : vector<512x128xf32> to vector<128xf32>
    %57 = vector.shape_cast %56 : vector<128xf32> to vector<1x128xf32>
    %cst_40 = arith.constant 0.001953125 : f32
    %58 = vector.broadcast %cst_40 : f32 to vector<1x128xf32>
    %59 = arith.mulf %54, %58 : vector<1x128xf32>
    %cst_41 = arith.constant 0.001953125 : f32
    %60 = vector.broadcast %cst_41 : f32 to vector<1x128xf32>
    %61 = arith.mulf %57, %60 : vector<1x128xf32>
    %62 = arith.mulf %59, %59 : vector<1x128xf32>
    %63 = arith.subf %61, %62 : vector<1x128xf32>
    %cst_42 = arith.constant 0.000000e+00 : f32
    %64 = vector.broadcast %cst_42 : f32 to vector<1x128xf32>
    %65 = arith.maximumf %63, %64 : vector<1x128xf32>
    %cst_43 = arith.constant 9.99999974E-6 : f32
    %66 = vector.broadcast %cst_43 : f32 to vector<1x128xf32>
    %67 = arith.addf %65, %66 : vector<1x128xf32>
    %68 = math.rsqrt %67 : vector<1x128xf32>
    %69 = arith.mulf %51, %68 : vector<1x128xf32>
    %70 = arith.mulf %59, %69 : vector<1x128xf32>
    %71 = arith.subf %52, %70 : vector<1x128xf32>
    %72 = vector.broadcast %69 : vector<1x128xf32> to vector<512x128xf32>
    %73 = arith.mulf %50, %72 : vector<512x128xf32>
    %74 = vector.broadcast %71 : vector<1x128xf32> to vector<512x128xf32>
    %75 = arith.addf %73, %74 : vector<512x128xf32>
    %cst_44 = arith.constant 0.000000e+00 : f32
    %76 = vector.broadcast %cst_44 : f32 to vector<2x18x18x128xf32>
    %c0_45 = arith.constant 0 : index
    %c0_46 = arith.constant 0 : index
    %c0_47 = arith.constant 0 : index
    %c0_48 = arith.constant 0 : index
    %77 = vector.load %arg9[%c0_45, %c0_46, %c0_47, %c0_48] : memref<2x18x18x128xf32, #tpu.memory_space<vmem>>, vector<2x18x18x128xf32>
    tpu.vector_store %arg9[%c0_45, %c0_46, %c0_47, %c0_48], %76 {strides = array<i32>} : memref<2x18x18x128xf32, #tpu.memory_space<vmem>>, vector<2x18x18x128xf32>,
    %78 = vector.shape_cast %75 : vector<512x128xf32> to vector<2x16x16x128xf32>
    %c0_49 = arith.constant 0 : index
    %c1_50 = arith.constant 1 : index
    %c1_51 = arith.constant 1 : index
    %c0_52 = arith.constant 0 : index
    %79 = vector.load %arg9[%c0_49, %c1_50, %c1_51, %c0_52] : memref<2x18x18x128xf32, #tpu.memory_space<vmem>>, vector<2x16x16x128xf32>
    tpu.vector_store %arg9[%c0_49, %c1_50, %c1_51, %c0_52], %78 {strides = array<i32>} : memref<2x18x18x128xf32, #tpu.memory_space<vmem>>, vector<2x16x16x128xf32>,
    %c0_53 = arith.constant 0 : index
    %c0_54 = arith.constant 0 : index
    %c0_55 = arith.constant 0 : index
    %c0_56 = arith.constant 0 : index
    %80 = vector.load %arg9[%c0_53, %c0_54, %c0_55, %c0_56] : memref<2x18x18x128xf32, #tpu.memory_space<vmem>>, vector<2x18x18x128xf32>
    %cst_57 = arith.constant 0.000000e+00 : f32
    %81 = vector.broadcast %cst_57 : f32 to vector<512x128xf32>
    %82 = vector.extract_strided_slice %80 {offsets = [0, 0, 0, 0], sizes = [2, 16, 16, 128], strides = [1, 1, 1, 1]} : vector<2x18x18x128xf32> to vector<2x16x16x128xf32>
    %83 = vector.shape_cast %82 : vector<2x16x16x128xf32> to vector<512x128xf32>
    %c0_58 = arith.constant 0 : index
    %c0_59 = arith.constant 0 : index
    %84 = vector.load %arg4[%c0_58, %c0_59] : memref<1152x128xf32, #tpu.memory_space<vmem>>, vector<128x128xf32>
    %cst_60 = arith.constant dense<0.000000e+00> : vector<512x128xf32>
    %85 = tpu.matmul %83, %84, %cst_60 {dimension_numbers = #tpu.dot_dimension_numbers<[1], [0], [0], [1], [0, 0, 1, 1], [], []>} : vector<512x128xf32>, vector<128x128xf32>, vector<512x128xf32> -> vector<512x128xf32>
    %86 = arith.addf %81, %85 : vector<512x128xf32>
    %87 = vector.extract_strided_slice %80 {offsets = [0, 0, 1, 0], sizes = [2, 16, 16, 128], strides = [1, 1, 1, 1]} : vector<2x18x18x128xf32> to vector<2x16x16x128xf32>
    %88 = vector.shape_cast %87 : vector<2x16x16x128xf32> to vector<512x128xf32>
    %c128_61 = arith.constant 128 : index
    %c0_62 = arith.constant 0 : index
    %89 = vector.load %arg4[%c128_61, %c0_62] : memref<1152x128xf32, #tpu.memory_space<vmem>>, vector<128x128xf32>
    %cst_63 = arith.constant dense<0.000000e+00> : vector<512x128xf32>
    %90 = tpu.matmul %88, %89, %cst_63 {dimension_numbers = #tpu.dot_dimension_numbers<[1], [0], [0], [1], [0, 0, 1, 1], [], []>} : vector<512x128xf32>, vector<128x128xf32>, vector<512x128xf32> -> vector<512x128xf32>
    %91 = arith.addf %86, %90 : vector<512x128xf32>
    %92 = vector.extract_strided_slice %80 {offsets = [0, 0, 2, 0], sizes = [2, 16, 16, 128], strides = [1, 1, 1, 1]} : vector<2x18x18x128xf32> to vector<2x16x16x128xf32>
    %93 = vector.shape_cast %92 : vector<2x16x16x128xf32> to vector<512x128xf32>
    %c256_64 = arith.constant 256 : index
    %c0_65 = arith.constant 0 : index
    %94 = vector.load %arg4[%c256_64, %c0_65] : memref<1152x128xf32, #tpu.memory_space<vmem>>, vector<128x128xf32>
    %cst_66 = arith.constant dense<0.000000e+00> : vector<512x128xf32>
    %95 = tpu.matmul %93, %94, %cst_66 {dimension_numbers = #tpu.dot_dimension_numbers<[1], [0], [0], [1], [0, 0, 1, 1], [], []>} : vector<512x128xf32>, vector<128x128xf32>, vector<512x128xf32> -> vector<512x128xf32>
    %96 = arith.addf %91, %95 : vector<512x128xf32>
    %97 = vector.extract_strided_slice %80 {offsets = [0, 1, 0, 0], sizes = [2, 16, 16, 128], strides = [1, 1, 1, 1]} : vector<2x18x18x128xf32> to vector<2x16x16x128xf32>
    %98 = vector.shape_cast %97 : vector<2x16x16x128xf32> to vector<512x128xf32>
    %c384_67 = arith.constant 384 : index
    %c0_68 = arith.constant 0 : index
    %99 = vector.load %arg4[%c384_67, %c0_68] : memref<1152x128xf32, #tpu.memory_space<vmem>>, vector<128x128xf32>
    %cst_69 = arith.constant dense<0.000000e+00> : vector<512x128xf32>
    %100 = tpu.matmul %98, %99, %cst_69 {dimension_numbers = #tpu.dot_dimension_numbers<[1], [0], [0], [1], [0, 0, 1, 1], [], []>} : vector<512x128xf32>, vector<128x128xf32>, vector<512x128xf32> -> vector<512x128xf32>
    %101 = arith.addf %96, %100 : vector<512x128xf32>
    %102 = vector.extract_strided_slice %80 {offsets = [0, 1, 1, 0], sizes = [2, 16, 16, 128], strides = [1, 1, 1, 1]} : vector<2x18x18x128xf32> to vector<2x16x16x128xf32>
    %103 = vector.shape_cast %102 : vector<2x16x16x128xf32> to vector<512x128xf32>
    %c512_70 = arith.constant 512 : index
    %c0_71 = arith.constant 0 : index
    %104 = vector.load %arg4[%c512_70, %c0_71] : memref<1152x128xf32, #tpu.memory_space<vmem>>, vector<128x128xf32>
    %cst_72 = arith.constant dense<0.000000e+00> : vector<512x128xf32>
    %105 = tpu.matmul %103, %104, %cst_72 {dimension_numbers = #tpu.dot_dimension_numbers<[1], [0], [0], [1], [0, 0, 1, 1], [], []>} : vector<512x128xf32>, vector<128x128xf32>, vector<512x128xf32> -> vector<512x128xf32>
    %106 = arith.addf %101, %105 : vector<512x128xf32>
    %107 = vector.extract_strided_slice %80 {offsets = [0, 1, 2, 0], sizes = [2, 16, 16, 128], strides = [1, 1, 1, 1]} : vector<2x18x18x128xf32> to vector<2x16x16x128xf32>
    %108 = vector.shape_cast %107 : vector<2x16x16x128xf32> to vector<512x128xf32>
    %c640_73 = arith.constant 640 : index
    %c0_74 = arith.constant 0 : index
    %109 = vector.load %arg4[%c640_73, %c0_74] : memref<1152x128xf32, #tpu.memory_space<vmem>>, vector<128x128xf32>
    %cst_75 = arith.constant dense<0.000000e+00> : vector<512x128xf32>
    %110 = tpu.matmul %108, %109, %cst_75 {dimension_numbers = #tpu.dot_dimension_numbers<[1], [0], [0], [1], [0, 0, 1, 1], [], []>} : vector<512x128xf32>, vector<128x128xf32>, vector<512x128xf32> -> vector<512x128xf32>
    %111 = arith.addf %106, %110 : vector<512x128xf32>
    %112 = vector.extract_strided_slice %80 {offsets = [0, 2, 0, 0], sizes = [2, 16, 16, 128], strides = [1, 1, 1, 1]} : vector<2x18x18x128xf32> to vector<2x16x16x128xf32>
    %113 = vector.shape_cast %112 : vector<2x16x16x128xf32> to vector<512x128xf32>
    %c768_76 = arith.constant 768 : index
    %c0_77 = arith.constant 0 : index
    %114 = vector.load %arg4[%c768_76, %c0_77] : memref<1152x128xf32, #tpu.memory_space<vmem>>, vector<128x128xf32>
    %cst_78 = arith.constant dense<0.000000e+00> : vector<512x128xf32>
    %115 = tpu.matmul %113, %114, %cst_78 {dimension_numbers = #tpu.dot_dimension_numbers<[1], [0], [0], [1], [0, 0, 1, 1], [], []>} : vector<512x128xf32>, vector<128x128xf32>, vector<512x128xf32> -> vector<512x128xf32>
    %116 = arith.addf %111, %115 : vector<512x128xf32>
    %117 = vector.extract_strided_slice %80 {offsets = [0, 2, 1, 0], sizes = [2, 16, 16, 128], strides = [1, 1, 1, 1]} : vector<2x18x18x128xf32> to vector<2x16x16x128xf32>
    %118 = vector.shape_cast %117 : vector<2x16x16x128xf32> to vector<512x128xf32>
    %c896_79 = arith.constant 896 : index
    %c0_80 = arith.constant 0 : index
    %119 = vector.load %arg4[%c896_79, %c0_80] : memref<1152x128xf32, #tpu.memory_space<vmem>>, vector<128x128xf32>
    %cst_81 = arith.constant dense<0.000000e+00> : vector<512x128xf32>
    %120 = tpu.matmul %118, %119, %cst_81 {dimension_numbers = #tpu.dot_dimension_numbers<[1], [0], [0], [1], [0, 0, 1, 1], [], []>} : vector<512x128xf32>, vector<128x128xf32>, vector<512x128xf32> -> vector<512x128xf32>
    %121 = arith.addf %116, %120 : vector<512x128xf32>
    %122 = vector.extract_strided_slice %80 {offsets = [0, 2, 2, 0], sizes = [2, 16, 16, 128], strides = [1, 1, 1, 1]} : vector<2x18x18x128xf32> to vector<2x16x16x128xf32>
    %123 = vector.shape_cast %122 : vector<2x16x16x128xf32> to vector<512x128xf32>
    %c1024_82 = arith.constant 1024 : index
    %c0_83 = arith.constant 0 : index
    %124 = vector.load %arg4[%c1024_82, %c0_83] : memref<1152x128xf32, #tpu.memory_space<vmem>>, vector<128x128xf32>
    %cst_84 = arith.constant dense<0.000000e+00> : vector<512x128xf32>
    %125 = tpu.matmul %123, %124, %cst_84 {dimension_numbers = #tpu.dot_dimension_numbers<[1], [0], [0], [1], [0, 0, 1, 1], [], []>} : vector<512x128xf32>, vector<128x128xf32>, vector<512x128xf32> -> vector<512x128xf32>
    %126 = arith.addf %121, %125 : vector<512x128xf32>
    %c0_85 = arith.constant 0 : index
    %c0_86 = arith.constant 0 : index
    %127 = vector.load %arg5[%c0_85, %c0_86] : memref<1x128xf32, #tpu.memory_space<vmem>>, vector<1x128xf32>
    %c0_87 = arith.constant 0 : index
    %c0_88 = arith.constant 0 : index
    %128 = vector.load %arg6[%c0_87, %c0_88] : memref<1x128xf32, #tpu.memory_space<vmem>>, vector<1x128xf32>
    %cst_89 = arith.constant dense<0.000000e+00> : vector<128xf32>
    %129 = vector.multi_reduction <add>, %126, %cst_89 [0] : vector<512x128xf32> to vector<128xf32>
    %130 = vector.shape_cast %129 : vector<128xf32> to vector<1x128xf32>
    %131 = arith.mulf %126, %126 : vector<512x128xf32>
    %cst_90 = arith.constant dense<0.000000e+00> : vector<128xf32>
    %132 = vector.multi_reduction <add>, %131, %cst_90 [0] : vector<512x128xf32> to vector<128xf32>
    %133 = vector.shape_cast %132 : vector<128xf32> to vector<1x128xf32>
    %cst_91 = arith.constant 0.001953125 : f32
    %134 = vector.broadcast %cst_91 : f32 to vector<1x128xf32>
    %135 = arith.mulf %130, %134 : vector<1x128xf32>
    %cst_92 = arith.constant 0.001953125 : f32
    %136 = vector.broadcast %cst_92 : f32 to vector<1x128xf32>
    %137 = arith.mulf %133, %136 : vector<1x128xf32>
    %138 = arith.mulf %135, %135 : vector<1x128xf32>
    %139 = arith.subf %137, %138 : vector<1x128xf32>
    %cst_93 = arith.constant 0.000000e+00 : f32
    %140 = vector.broadcast %cst_93 : f32 to vector<1x128xf32>
    %141 = arith.maximumf %139, %140 : vector<1x128xf32>
    %cst_94 = arith.constant 9.99999974E-6 : f32
    %142 = vector.broadcast %cst_94 : f32 to vector<1x128xf32>
    %143 = arith.addf %141, %142 : vector<1x128xf32>
    %144 = math.rsqrt %143 : vector<1x128xf32>
    %145 = arith.mulf %127, %144 : vector<1x128xf32>
    %146 = arith.mulf %135, %145 : vector<1x128xf32>
    %147 = arith.subf %128, %146 : vector<1x128xf32>
    %148 = vector.broadcast %145 : vector<1x128xf32> to vector<512x128xf32>
    %149 = arith.mulf %126, %148 : vector<512x128xf32>
    %150 = vector.broadcast %147 : vector<1x128xf32> to vector<512x128xf32>
    %151 = arith.addf %149, %150 : vector<512x128xf32>
    %cst_95 = arith.constant 0.000000e+00 : f32
    %152 = vector.broadcast %cst_95 : f32 to vector<512x128xf32>
    %153 = arith.maximumf %151, %152 : vector<512x128xf32>
    %154 = vector.shape_cast %153 : vector<512x128xf32> to vector<2x16x16x128xf32>
    %155 = arith.addf %154, %0 : vector<2x16x16x128xf32>
    %cst_96 = arith.constant 0.000000e+00 : f32
    %156 = vector.broadcast %cst_96 : f32 to vector<2x16x16x128xf32>
    %157 = arith.maximumf %155, %156 : vector<2x16x16x128xf32>
    %c0_97 = arith.constant 0 : index
    %c0_98 = arith.constant 0 : index
    %c0_99 = arith.constant 0 : index
    %c0_100 = arith.constant 0 : index
    %158 = vector.load %arg7[%c0_97, %c0_98, %c0_99, %c0_100] : memref<2x16x16x128xf32, #tpu.memory_space<vmem>>, vector<2x16x16x128xf32>
    tpu.vector_store %arg7[%c0_97, %c0_98, %c0_99, %c0_100], %157 {strides = array<i32>} : memref<2x16x16x128xf32, #tpu.memory_space<vmem>>, vector<2x16x16x128xf32>,
    return
  }
}

</mosaic_0001>

<llo_original>
// kernel: residual_block_forward.1
$region0: #{residual_block_forward.1}
  #allocation0 [shape = 'u32[]', space=smem, size = 0x4, offset = 0x4, fixed_abs, tag = 'smem constant byte address 0x4 - core index']
  #allocation1 [shape = 'u32[144,128]{1,0:T(1,128)}', space=vmem, size = 0x12000, scoped, tag = 'internal scratch']
  #allocation2 [shape = 'f32[2,18,18,128]{3,2,1,0:T(8,128)}', space=vmem, size = 0x6c000, scoped, tag = 'scratch operand']
  #allocation3 [shape = 'f32[2,18,18,128]{3,2,1,0:T(8,128)}', space=vmem, size = 0x6c000, scoped, tag = 'scratch operand']
  %s0 = inlined_call_operand.hbm [shape: f32[2,16,16,128], index: 0, kind: input, shape index: {}]
  %s1 = inlined_call_operand.hbm [shape: f32[1152,128], index: 1, kind: input, shape index: {}]
  %s2 = inlined_call_operand.hbm [shape: f32[1,128], index: 2, kind: input, shape index: {}]
  %s3 = inlined_call_operand.hbm [shape: f32[1,128], index: 3, kind: input, shape index: {}]
  %s4 = inlined_call_operand.hbm [shape: f32[1152,128], index: 4, kind: input, shape index: {}]
  %s5 = inlined_call_operand.hbm [shape: f32[1,128], index: 5, kind: input, shape index: {}]
  %s6 = inlined_call_operand.hbm [shape: f32[1,128], index: 6, kind: input, shape index: {}]
  %s7 = inlined_call_operand.hbm [shape: f32[2,16,16,128], index: 7, kind: output, shape index: {}]
  %s8 = sld [smem:[#allocation0]]
  $region66: #{residual_block_forward.1} parent=0
    _
  %s10 = ssub.s32 1, %s8
  %s11 = scalar_select 0, %s10, %s8
  $region1: #{residual_block_forward.1} parent=0
    #allocation4 [shape = 'u8[262144]{0}', space=vmem, size = 0x40000, scoped, tag = 'input window, operand 0, single buffered']
    #allocation5 [shape = 's32[1]{0}', space=sflag, size = 0x4, scoped, tag = 'scoped memory for residual_block_forward.1']
    #allocation6 [shape = 's32[1]{0}', space=sflag, size = 0x4, scoped, tag = 'scoped memory for residual_block_forward.1']
    #allocation7 [shape = 'u8[589824]{0}', space=vmem, size = 0x90000, scoped, tag = 'input window, operand 1, single buffered']
    #allocation8 [shape = 's32[1]{0}', space=sflag, size = 0x4, scoped, tag = 'scoped memory for residual_block_forward.1']
    #allocation9 [shape = 'u8[512]{0}', space=vmem, size = 0x400, scoped, tag = 'input window, operand 2, single buffered']
    #allocation10 [shape = 'u8[512]{0}', space=vmem, size = 0x400, scoped, tag = 'input window, operand 3, single buffered']
    #allocation11 [shape = 's32[1]{0}', space=sflag, size = 0x4, scoped, tag = 'scoped memory for residual_block_forward.1']
    #allocation12 [shape = 'u8[589824]{0}', space=vmem, size = 0x90000, scoped, tag = 'input window, operand 4, single buffered']
    #allocation13 [shape = 'u8[512]{0}', space=vmem, size = 0x400, scoped, tag = 'input window, operand 5, single buffered']
    #allocation14 [shape = 's32[1]{0}', space=sflag, size = 0x4, scoped, tag = 'scoped memory for residual_block_forward.1']
    #allocation15 [shape = 'u8[512]{0}', space=vmem, size = 0x400, scoped, tag = 'input window, operand 6, single buffered']
    #allocation16 [shape = 'u8[262144]{0}', space=vmem, size = 0x40000, scoped, tag = 'output window, operand 0, single buffered']
    %12 = vsyncpa [#allocation5], 0
    %13 = vsyncpa [#allocation8], 0
    %14 = vsyncpa [#allocation11], 0
    %15 = vsyncpa [#allocation14], 0
    %16 = vsyncpa [#allocation6], 0
    // Predicated region
    $region2: #{residual_block_forward.1} parent=1 // pred_check
      _
    $region3: #{residual_block_forward.1} parent=1 // pred_check_branch
      %18 = sbr.rel (0) target = $region5
    $region4: #{residual_block_forward.1} parent=1 // pred_region
      %s20 = ssub.s32 8192, 8192
      %21 = vsyncadd [#allocation5], %s20
      %s22 = sshll.u32 [#allocation4], 4
      %s23 = int_to_ptr.vmem [resolvable:$true] %s22
      %28 = dma.hbm_to_vmem [thread:$0]  %s0, 8192, %s23, [#allocation5], 128, 128, 8
    $region5: #{residual_block_forward.1} parent=1 // pred_fallthru
      _
    // Predicated region
    $region6: #{residual_block_forward.1} parent=1 // pred_check
      _
    $region7: #{residual_block_forward.1} parent=1 // pred_check_branch
      %30 = sbr.rel (0) target = $region9
    $region8: #{residual_block_forward.1} parent=1 // pred_region
      %s32 = ssub.s32 18432, 18432
      %33 = vsyncadd [#allocation8], %s32
      %s34 = sshll.u32 [#allocation7], 4
      %s35 = int_to_ptr.vmem [resolvable:$true] %s34
      %40 = dma.hbm_to_vmem [thread:$0]  %s1, 18432, %s35, [#allocation8], 128, 128, 8
    $region9: #{residual_block_forward.1} parent=1 // pred_fallthru
      _
    // Predicated region
    $region10: #{residual_block_forward.1} parent=1 // pred_check
      _
    $region11: #{residual_block_forward.1} parent=1 // pred_check_branch
      %42 = sbr.rel (0) target = $region13
    $region12: #{residual_block_forward.1} parent=1 // pred_region
      %s44 = ssub.s32 16, 16
      %45 = vsyncadd [#allocation8], %s44
      %s47 = sshll.u32 [#allocation9], 4
      %s48 = int_to_ptr.vmem [resolvable:$true] %s47
      %50 = dma.hbm_to_vmem [thread:$0]  %s2, 16, %s48, [#allocation8]
    $region13: #{residual_block_forward.1} parent=1 // pred_fallthru
      _
    // Predicated region
    $region14: #{residual_block_forward.1} parent=1 // pred_check
      _
    $region15: #{residual_block_forward.1} parent=1 // pred_check_branch
      %52 = sbr.rel (0) target = $region17
    $region16: #{residual_block_forward.1} parent=1 // pred_region
      %s54 = ssub.s32 16, 16
      %55 = vsyncadd [#allocation11], %s54
      %s57 = sshll.u32 [#allocation10], 4
      %s58 = int_to_ptr.vmem [resolvable:$true] %s57
      %60 = dma.hbm_to_vmem [thread:$0]  %s3, 16, %s58, [#allocation11]
    $region17: #{residual_block_forward.1} parent=1 // pred_fallthru
      _
    // Predicated region
    $region18: #{residual_block_forward.1} parent=1 // pred_check
      _
    $region19: #{residual_block_forward.1} parent=1 // pred_check_branch
      %62 = sbr.rel (0) target = $region21
    $region20: #{residual_block_forward.1} parent=1 // pred_region
      %s64 = ssub.s32 18432, 18432
      %65 = vsyncadd [#allocation11], %s64
      %s66 = sshll.u32 [#allocation12], 4
      %s67 = int_to_ptr.vmem [resolvable:$true] %s66
      %72 = dma.hbm_to_vmem [thread:$0]  %s4, 18432, %s67, [#allocation11], 128, 128, 8
    $region21: #{residual_block_forward.1} parent=1 // pred_fallthru
      _
    // Predicated region
    $region22: #{residual_block_forward.1} parent=1 // pred_check
      _
    $region23: #{residual_block_forward.1} parent=1 // pred_check_branch
      %74 = sbr.rel (0) target = $region25
    $region24: #{residual_block_forward.1} parent=1 // pred_region
      %s76 = ssub.s32 16, 16
      %77 = vsyncadd [#allocation14], %s76
      %s79 = sshll.u32 [#allocation13], 4
      %s80 = int_to_ptr.vmem [resolvable:$true] %s79
      %82 = dma.hbm_to_vmem [thread:$0]  %s5, 16, %s80, [#allocation14]
    $region25: #{residual_block_forward.1} parent=1 // pred_fallthru
      _
    // Predicated region
    $region26: #{residual_block_forward.1} parent=1 // pred_check
      _
    $region27: #{residual_block_forward.1} parent=1 // pred_check_branch
      %84 = sbr.rel (0) target = $region29
    $region28: #{residual_block_forward.1} parent=1 // pred_region
      %s86 = ssub.s32 16, 16
      %87 = vsyncadd [#allocation14], %s86
      %s89 = sshll.u32 [#allocation15], 4
      %s90 = int_to_ptr.vmem [resolvable:$true] %s89
      %92 = dma.hbm_to_vmem [thread:$0]  %s6, 16, %s90, [#allocation14]
    $region29: #{residual_block_forward.1} parent=1 // pred_fallthru
      _
    // Predicated region
    $region30: #{residual_block_forward.1} parent=1 // pred_check
      _
    $region31: #{residual_block_forward.1} parent=1 // pred_check_branch
      %94 = sbr.rel (0) target = $region33
    $region32: #{residual_block_forward.1} parent=1 // pred_region
      %95 = dma.done [#allocation5], 8192
    $region33: #{residual_block_forward.1} parent=1 // pred_fallthru
      _
    // Predicated region
    $region34: #{residual_block_forward.1} parent=1 // pred_check
      _
    $region35: #{residual_block_forward.1} parent=1 // pred_check_branch
      %97 = sbr.rel (0) target = $region37
    $region36: #{residual_block_forward.1} parent=1 // pred_region
      %98 = dma.done [#allocation8], 18432
    $region37: #{residual_block_forward.1} parent=1 // pred_fallthru
      _
    // Predicated region
    $region38: #{residual_block_forward.1} parent=1 // pred_check
      _
    $region39: #{residual_block_forward.1} parent=1 // pred_check_branch
      %100 = sbr.rel (0) target = $region41
    $region40: #{residual_block_forward.1} parent=1 // pred_region
      %101 = dma.done [#allocation8], 16
    $region41: #{residual_block_forward.1} parent=1 // pred_fallthru
      _
    // Predicated region
    $region42: #{residual_block_forward.1} parent=1 // pred_check
      _
    $region43: #{residual_block_forward.1} parent=1 // pred_check_branch
      %103 = sbr.rel (0) target = $region45
    $region44: #{residual_block_forward.1} parent=1 // pred_region
      %104 = dma.done [#allocation11], 16
    $region45: #{residual_block_forward.1} parent=1 // pred_fallthru
      _
    // Predicated region
    $region46: #{residual_block_forward.1} parent=1 // pred_check
      _
    $region47: #{residual_block_forward.1} parent=1 // pred_check_branch
      %106 = sbr.rel (0) target = $region49
    $region48: #{residual_block_forward.1} parent=1 // pred_region
      %107 = dma.done [#allocation11], 18432
    $region49: #{residual_block_forward.1} parent=1 // pred_fallthru
      _
    // Predicated region
    $region50: #{residual_block_forward.1} parent=1 // pred_check
      _
    $region51: #{residual_block_forward.1} parent=1 // pred_check_branch
      %109 = sbr.rel (0) target = $region53
    $region52: #{residual_block_forward.1} parent=1 // pred_region
      %110 = dma.done [#allocation14], 16
    $region53: #{residual_block_forward.1} parent=1 // pred_fallthru
      _
    // Predicated region
    $region54: #{residual_block_forward.1} parent=1 // pred_check
      _
    $region55: #{residual_block_forward.1} parent=1 // pred_check_branch
      %112 = sbr.rel (0) target = $region57
    $region56: #{residual_block_forward.1} parent=1 // pred_region
      %113 = dma.done [#allocation14], 16
    $region57: #{residual_block_forward.1} parent=1 // pred_fallthru
      _
    %v114 = vld [vmem:[#allocation4] sm:$0xff]
    %v115 = vld [vmem:[#allocation4 + $0x8] sm:$0xff]
    %v116 = vld [vmem:[#allocation4 + $0x10] sm:$0xff]
    %v117 = vld [vmem:[#allocation4 + $0x18] sm:$0xff]
    %v118 = vld [vmem:[#allocation4 + $0x20] sm:$0xff]
    %v119 = vld [vmem:[#allocation4 + $0x28] sm:$0xff]
    %v120 = vld [vmem:[#allocation4 + $0x30] sm:$0xff]
    %v121 = vld [vmem:[#allocation4 + $0x38] sm:$0xff]
    %v122 = vld [vmem:[#allocation4 + $0x40] sm:$0xff]
    %v123 = vld [vmem:[#allocation4 + $0x48] sm:$0xff]
    %v124 = vld [vmem:[#allocation4 + $0x50] sm:$0xff]
    %v125 = vld [vmem:[#allocation4 + $0x58] sm:$0xff]
    %v126 = vld [vmem:[#allocation4 + $0x60] sm:$0xff]
    %v127 = vld [vmem:[#allocation4 + $0x68] sm:$0xff]
    %v128 = vld [vmem:[#allocation4 + $0x70] sm:$0xff]
    %v129 = vld [vmem:[#allocation4 + $0x78] sm:$0xff]
    %v130 = vld [vmem:[#allocation4 + $0x80] sm:$0xff]
    %v131 = vld [vmem:[#allocation4 + $0x88] sm:$0xff]
    %v132 = vld [vmem:[#allocation4 + $0x90] sm:$0xff]
    %v133 = vld [vmem:[#allocation4 + $0x98] sm:$0xff]
    %v134 = vld [vmem:[#allocation4 + $0xa0] sm:$0xff]
    %v135 = vld [vmem:[#allocation4 + $0xa8] sm:$0xff]
    %v136 = vld [vmem:[#allocation4 + $0xb0] sm:$0xff]
    %v137 = vld [vmem:[#allocation4 + $0xb8] sm:$0xff]
    %v138 = vld [vmem:[#allocation4 + $0xc0] sm:$0xff]
    %v139 = vld [vmem:[#allocation4 + $0xc8] sm:$0xff]
    %v140 = vld [vmem:[#allocation4 + $0xd0] sm:$0xff]
    %v141 = vld [vmem:[#allocation4 + $0xd8] sm:$0xff]
    %v142 = vld [vmem:[#allocation4 + $0xe0] sm:$0xff]
    %v143 = vld [vmem:[#allocation4 + $0xe8] sm:$0xff]
    %v144 = vld [vmem:[#allocation4 + $0xf0] sm:$0xff]
    %v145 = vld [vmem:[#allocation4 + $0xf8] sm:$0xff]
    %v146 = vld [vmem:[#allocation4 + $0x100] sm:$0xff]
    %v147 = vld [vmem:[#allocation4 + $0x108] sm:$0xff]
    %v148 = vld [vmem:[#allocation4 + $0x110] sm:$0xff]
    %v149 = vld [vmem:[#allocation4 + $0x118] sm:$0xff]
    %v150 = vld [vmem:[#allocation4 + $0x120] sm:$0xff]
    %v151 = vld [vmem:[#allocation4 + $0x128] sm:$0xff]
    %v152 = vld [vmem:[#allocation4 + $0x130] sm:$0xff]
    %v153 = vld [vmem:[#allocation4 + $0x138] sm:$0xff]
    %v154 = vld [vmem:[#allocation4 + $0x140] sm:$0xff]
    %v155 = vld [vmem:[#allocation4 + $0x148] sm:$0xff]
    %v156 = vld [vmem:[#allocation4 + $0x150] sm:$0xff]
    %v157 = vld [vmem:[#allocation4 + $0x158] sm:$0xff]
    %v158 = vld [vmem:[#allocation4 + $0x160] sm:$0xff]
    %v159 = vld [vmem:[#allocation4 + $0x168] sm:$0xff]
    %v160 = vld [vmem:[#allocation4 + $0x170] sm:$0xff]
    %v161 = vld [vmem:[#allocation4 + $0x178] sm:$0xff]
    %v162 = vld [vmem:[#allocation4 + $0x180] sm:$0xff]
    %v163 = vld [vmem:[#allocation4 + $0x188] sm:$0xff]
    %v164 = vld [vmem:[#allocation4 + $0x190] sm:$0xff]
    %v165 = vld [vmem:[#allocation4 + $0x198] sm:$0xff]
    %v166 = vld [vmem:[#allocation4 + $0x1a0] sm:$0xff]
    %v167 = vld [vmem:[#allocation4 + $0x1a8] sm:$0xff]
    %v168 = vld [vmem:[#allocation4 + $0x1b0] sm:$0xff]
    %v169 = vld [vmem:[#allocation4 + $0x1b8] sm:$0xff]
    %v170 = vld [vmem:[#allocation4 + $0x1c0] sm:$0xff]
    %v171 = vld [vmem:[#allocation4 + $0x1c8] sm:$0xff]
    %v172 = vld [vmem:[#allocation4 + $0x1d0] sm:$0xff]
    %v173 = vld [vmem:[#allocation4 + $0x1d8] sm:$0xff]
    %v174 = vld [vmem:[#allocation4 + $0x1e0] sm:$0xff]
    %v175 = vld [vmem:[#allocation4 + $0x1e8] sm:$0xff]
    %v176 = vld [vmem:[#allocation4 + $0x1f0] sm:$0xff]
    %v177 = vld [vmem:[#allocation4 + $0x1f8] sm:$0xff]
    %178 = vst [vmem:[#allocation2] sm:$0xff] 0.0
    %179 = vst [vmem:[#allocation2 + $0x8] sm:$0xff] 0.0
    %180 = vst [vmem:[#allocation2 + $0x10] sm:$0x3] 0.0
    %181 = vst [vmem:[#allocation2 + $0x18] sm:$0xff] 0.0
    %182 = vst [vmem:[#allocation2 + $0x20] sm:$0xff] 0.0
    %183 = vst [vmem:[#allocation2 + $0x28] sm:$0x3] 0.0
    %184 = vst [vmem:[#allocation2 + $0x30] sm:$0xff] 0.0
    %185 = vst [vmem:[#allocation2 + $0x38] sm:$0xff] 0.0
    %186 = vst [vmem:[#allocation2 + $0x40] sm:$0x3] 0.0
    %187 = vst [vmem:[#allocation2 + $0x48] sm:$0xff] 0.0
    %188 = vst [vmem:[#allocation2 + $0x50] sm:$0xff] 0.0
    %189 = vst [vmem:[#allocation2 + $0x58] sm:$0x3] 0.0
    %190 = vst [vmem:[#allocation2 + $0x60] sm:$0xff] 0.0
    %191 = vst [vmem:[#allocation2 + $0x68] sm:$0xff] 0.0
    %192 = vst [vmem:[#allocation2 + $0x70] sm:$0x3] 0.0
    %193 = vst [vmem:[#allocation2 + $0x78] sm:$0xff] 0.0
    %194 = vst [vmem:[#allocation2 + $0x80] sm:$0xff] 0.0
    %195 = vst [vmem:[#allocation2 + $0x88] sm:$0x3] 0.0
    %196 = vst [vmem:[#allocation2 + $0x90] sm:$0xff] 0.0
    %197 = vst [vmem:[#allocation2 + $0x98] sm:$0xff] 0.0
    %198 = vst [vmem:[#allocation2 + $0xa0] sm:$0x3] 0.0
    %199 = vst [vmem:[#allocation2 + $0xa8] sm:$0xff] 0.0
    %200 = vst [vmem:[#allocation2 + $0xb0] sm:$0xff] 0.0
    %201 = vst [vmem:[#allocation2 + $0xb8] sm:$0x3] 0.0
    %202 = vst [vmem:[#allocation2 + $0xc0] sm:$0xff] 0.0
    %203 = vst [vmem:[#allocation2 + $0xc8] sm:$0xff] 0.0
    %204 = vst [vmem:[#allocation2 + $0xd0] sm:$0x3] 0.0
    %205 = vst [vmem:[#allocation2 + $0xd8] sm:$0xff] 0.0
    %206 = vst [vmem:[#allocation2 + $0xe0] sm:$0xff] 0.0
    %207 = vst [vmem:[#allocation2 + $0xe8] sm:$0x3] 0.0
    %208 = vst [vmem:[#allocation2 + $0xf0] sm:$0xff] 0.0
    %209 = vst [vmem:[#allocation2 + $0xf8] sm:$0xff] 0.0
    %210 = vst [vmem:[#allocation2 + $0x100] sm:$0x3] 0.0
    %211 = vst [vmem:[#allocation2 + $0x108] sm:$0xff] 0.0
    %212 = vst [vmem:[#allocation2 + $0x110] sm:$0xff] 0.0
    %213 = vst [vmem:[#allocation2 + $0x118] sm:$0x3] 0.0
    %214 = vst [vmem:[#allocation2 + $0x120] sm:$0xff] 0.0
    %215 = vst [vmem:[#allocation2 + $0x128] sm:$0xff] 0.0
    %216 = vst [vmem:[#allocation2 + $0x130] sm:$0x3] 0.0
    %217 = vst [vmem:[#allocation2 + $0x138] sm:$0xff] 0.0
    %218 = vst [vmem:[#allocation2 + $0x140] sm:$0xff] 0.0
    %219 = vst [vmem:[#allocation2 + $0x148] sm:$0x3] 0.0
    %220 = vst [vmem:[#allocation2 + $0x150] sm:$0xff] 0.0
    %221 = vst [vmem:[#allocation2 + $0x158] sm:$0xff] 0.0
    %222 = vst [vmem:[#allocation2 + $0x160] sm:$0x3] 0.0
    %223 = vst [vmem:[#allocation2 + $0x168] sm:$0xff] 0.0
    %224 = vst [vmem:[#allocation2 + $0x170] sm:$0xff] 0.0
    %225 = vst [vmem:[#allocation2 + $0x178] sm:$0x3] 0.0
    %226 = vst [vmem:[#allocation2 + $0x180] sm:$0xff] 0.0
    %227 = vst [vmem:[#allocation2 + $0x188] sm:$0xff] 0.0
    %228 = vst [vmem:[#allocation2 + $0x190] sm:$0x3] 0.0
    %229 = vst [vmem:[#allocation2 + $0x198] sm:$0xff] 0.0
    %230 = vst [vmem:[#allocation2 + $0x1a0] sm:$0xff] 0.0
    %231 = vst [vmem:[#allocation2 + $0x1a8] sm:$0x3] 0.0
    %232 = vst [vmem:[#allocation2 + $0x1b0] sm:$0xff] 0.0
    %233 = vst [vmem:[#allocation2 + $0x1b8] sm:$0xff] 0.0
    %234 = vst [vmem:[#allocation2 + $0x1c0] sm:$0x3] 0.0
    %235 = vst [vmem:[#allocation2 + $0x1c8] sm:$0xff] 0.0
    %236 = vst [vmem:[#allocation2 + $0x1d0] sm:$0xff] 0.0
    %237 = vst [vmem:[#allocation2 + $0x1d8] sm:$0x3] 0.0
    %238 = vst [vmem:[#allocation2 + $0x1e0] sm:$0xff] 0.0
    %239 = vst [vmem:[#allocation2 + $0x1e8] sm:$0xff] 0.0
    %240 = vst [vmem:[#allocation2 + $0x1f0] sm:$0x3] 0.0
    %241 = vst [vmem:[#allocation2 + $0x1f8] sm:$0xff] 0.0
    %242 = vst [vmem:[#allocation2 + $0x200] sm:$0xff] 0.0
    %243 = vst [vmem:[#allocation2 + $0x208] sm:$0x3] 0.0
    %244 = vst [vmem:[#allocation2 + $0x210] sm:$0xff] 0.0
    %245 = vst [vmem:[#allocation2 + $0x218] sm:$0xff] 0.0
    %246 = vst [vmem:[#allocation2 + $0x220] sm:$0x3] 0.0
    %247 = vst [vmem:[#allocation2 + $0x228] sm:$0xff] 0.0
    %248 = vst [vmem:[#allocation2 + $0x230] sm:$0xff] 0.0
    %249 = vst [vmem:[#allocation2 + $0x238] sm:$0x3] 0.0
    %250 = vst [vmem:[#allocation2 + $0x240] sm:$0xff] 0.0
    %251 = vst [vmem:[#allocation2 + $0x248] sm:$0xff] 0.0
    %252 = vst [vmem:[#allocation2 + $0x250] sm:$0x3] 0.0
    %253 = vst [vmem:[#allocation2 + $0x258] sm:$0xff] 0.0
    %254 = vst [vmem:[#allocation2 + $0x260] sm:$0xff] 0.0
    %255 = vst [vmem:[#allocation2 + $0x268] sm:$0x3] 0.0
    %256 = vst [vmem:[#allocation2 + $0x270] sm:$0xff] 0.0
    %257 = vst [vmem:[#allocation2 + $0x278] sm:$0xff] 0.0
    %258 = vst [vmem:[#allocation2 + $0x280] sm:$0x3] 0.0
    %259 = vst [vmem:[#allocation2 + $0x288] sm:$0xff] 0.0
    %260 = vst [vmem:[#allocation2 + $0x290] sm:$0xff] 0.0
    %261 = vst [vmem:[#allocation2 + $0x298] sm:$0x3] 0.0
    %262 = vst [vmem:[#allocation2 + $0x2a0] sm:$0xff] 0.0
    %263 = vst [vmem:[#allocation2 + $0x2a8] sm:$0xff] 0.0
    %264 = vst [vmem:[#allocation2 + $0x2b0] sm:$0x3] 0.0
    %265 = vst [vmem:[#allocation2 + $0x2b8] sm:$0xff] 0.0
    %266 = vst [vmem:[#allocation2 + $0x2c0] sm:$0xff] 0.0
    %267 = vst [vmem:[#allocation2 + $0x2c8] sm:$0x3] 0.0
    %268 = vst [vmem:[#allocation2 + $0x2d0] sm:$0xff] 0.0
    %269 = vst [vmem:[#allocation2 + $0x2d8] sm:$0xff] 0.0
    %270 = vst [vmem:[#allocation2 + $0x2e0] sm:$0x3] 0.0
    %271 = vst [vmem:[#allocation2 + $0x2e8] sm:$0xff] 0.0
    %272 = vst [vmem:[#allocation2 + $0x2f0] sm:$0xff] 0.0
    %273 = vst [vmem:[#allocation2 + $0x2f8] sm:$0x3] 0.0
    %274 = vst [vmem:[#allocation2 + $0x300] sm:$0xff] 0.0
    %275 = vst [vmem:[#allocation2 + $0x308] sm:$0xff] 0.0
    %276 = vst [vmem:[#allocation2 + $0x310] sm:$0x3] 0.0
    %277 = vst [vmem:[#allocation2 + $0x318] sm:$0xff] 0.0
    %278 = vst [vmem:[#allocation2 + $0x320] sm:$0xff] 0.0
    %279 = vst [vmem:[#allocation2 + $0x328] sm:$0x3] 0.0
    %280 = vst [vmem:[#allocation2 + $0x330] sm:$0xff] 0.0
    %281 = vst [vmem:[#allocation2 + $0x338] sm:$0xff] 0.0
    %282 = vst [vmem:[#allocation2 + $0x340] sm:$0x3] 0.0
    %283 = vst [vmem:[#allocation2 + $0x348] sm:$0xff] 0.0
    %284 = vst [vmem:[#allocation2 + $0x350] sm:$0xff] 0.0
    %285 = vst [vmem:[#allocation2 + $0x358] sm:$0x3] 0.0
    %s286 = scalar_lea.vmem [#allocation2], 24
    %287 = vst [vmem:[%s286 + $0x1] sm:$0xff] %v114
    %288 = vst [vmem:[%s286 + $0x9] sm:$0xff] %v115
    %289 = vst [vmem:[%s286 + $0x19] sm:$0xff] %v116
    %290 = vst [vmem:[%s286 + $0x21] sm:$0xff] %v117
    %291 = vst [vmem:[%s286 + $0x31] sm:$0xff] %v118
    %292 = vst [vmem:[%s286 + $0x39] sm:$0xff] %v119
    %293 = vst [vmem:[%s286 + $0x49] sm:$0xff] %v120
    %294 = vst [vmem:[%s286 + $0x51] sm:$0xff] %v121
    %295 = vst [vmem:[%s286 + $0x61] sm:$0xff] %v122
    %296 = vst [vmem:[%s286 + $0x69] sm:$0xff] %v123
    %297 = vst [vmem:[%s286 + $0x79] sm:$0xff] %v124
    %298 = vst [vmem:[%s286 + $0x81] sm:$0xff] %v125
    %299 = vst [vmem:[%s286 + $0x91] sm:$0xff] %v126
    %300 = vst [vmem:[%s286 + $0x99] sm:$0xff] %v127
    %301 = vst [vmem:[%s286 + $0xa9] sm:$0xff] %v128
    %302 = vst [vmem:[%s286 + $0xb1] sm:$0xff] %v129
    %303 = vst [vmem:[%s286 + $0xc1] sm:$0xff] %v130
    %304 = vst [vmem:[%s286 + $0xc9] sm:$0xff] %v131
    %305 = vst [vmem:[%s286 + $0xd9] sm:$0xff] %v132
    %306 = vst [vmem:[%s286 + $0xe1] sm:$0xff] %v133
    %307 = vst [vmem:[%s286 + $0xf1] sm:$0xff] %v134
    %308 = vst [vmem:[%s286 + $0xf9] sm:$0xff] %v135
    %309 = vst [vmem:[%s286 + $0x109] sm:$0xff] %v136
    %310 = vst [vmem:[%s286 + $0x111] sm:$0xff] %v137
    %311 = vst [vmem:[%s286 + $0x121] sm:$0xff] %v138
    %312 = vst [vmem:[%s286 + $0x129] sm:$0xff] %v139
    %313 = vst [vmem:[%s286 + $0x139] sm:$0xff] %v140
    %314 = vst [vmem:[%s286 + $0x141] sm:$0xff] %v141
    %315 = vst [vmem:[%s286 + $0x151] sm:$0xff] %v142
    %316 = vst [vmem:[%s286 + $0x159] sm:$0xff] %v143
    %317 = vst [vmem:[%s286 + $0x169] sm:$0xff] %v144
    %318 = vst [vmem:[%s286 + $0x171] sm:$0xff] %v145
    %319 = vst [vmem:[%s286 + $0x1b1] sm:$0xff] %v146
    %320 = vst [vmem:[%s286 + $0x1b9] sm:$0xff] %v147
    %321 = vst [vmem:[%s286 + $0x1c9] sm:$0xff] %v148
    %322 = vst [vmem:[%s286 + $0x1d1] sm:$0xff] %v149
    %323 = vst [vmem:[%s286 + $0x1e1] sm:$0xff] %v150
    %324 = vst [vmem:[%s286 + $0x1e9] sm:$0xff] %v151
    %325 = vst [vmem:[%s286 + $0x1f9] sm:$0xff] %v152
    %326 = vst [vmem:[%s286 + $0x201] sm:$0xff] %v153
    %327 = vst [vmem:[%s286 + $0x211] sm:$0xff] %v154
    %328 = vst [vmem:[%s286 + $0x219] sm:$0xff] %v155
    %329 = vst [vmem:[%s286 + $0x229] sm:$0xff] %v156
    %330 = vst [vmem:[%s286 + $0x231] sm:$0xff] %v157
    %331 = vst [vmem:[%s286 + $0x241] sm:$0xff] %v158
    %332 = vst [vmem:[%s286 + $0x249] sm:$0xff] %v159
    %333 = vst [vmem:[%s286 + $0x259] sm:$0xff] %v160
    %334 = vst [vmem:[%s286 + $0x261] sm:$0xff] %v161
    %335 = vst [vmem:[%s286 + $0x271] sm:$0xff] %v162
    %336 = vst [vmem:[%s286 + $0x279] sm:$0xff] %v163
    %337 = vst [vmem:[%s286 + $0x289] sm:$0xff] %v164
    %338 = vst [vmem:[%s286 + $0x291] sm:$0xff] %v165
    %339 = vst [vmem:[%s286 + $0x2a1] sm:$0xff] %v166
    %340 = vst [vmem:[%s286 + $0x2a9] sm:$0xff] %v167
    %341 = vst [vmem:[%s286 + $0x2b9] sm:$0xff] %v168
    %342 = vst [vmem:[%s286 + $0x2c1] sm:$0xff] %v169
    %343 = vst [vmem:[%s286 + $0x2d1] sm:$0xff] %v170
    %344 = vst [vmem:[%s286 + $0x2d9] sm:$0xff] %v171
    %345 = vst [vmem:[%s286 + $0x2e9] sm:$0xff] %v172
    %346 = vst [vmem:[%s286 + $0x2f1] sm:$0xff] %v173
    %347 = vst [vmem:[%s286 + $0x301] sm:$0xff] %v174
    %348 = vst [vmem:[%s286 + $0x309] sm:$0xff] %v175
    %349 = vst [vmem:[%s286 + $0x319] sm:$0xff] %v176
    %350 = vst [vmem:[%s286 + $0x321] sm:$0xff] %v177
    %v351 = vld [vmem:[#allocation2] sm:$0xff]
    %v352 = vld [vmem:[#allocation2 + $0x8] sm:$0xff]
    %v353 = vld [vmem:[#allocation2 + $0x10] sm:$0x3]
    %v354 = vld [vmem:[#allocation2 + $0x18] sm:$0xff]
    %v355 = vld [vmem:[#allocation2 + $0x20] sm:$0xff]
    %v356 = vld [vmem:[#allocation2 + $0x28] sm:$0x3]
    %v357 = vld [vmem:[#allocation2 + $0x30] sm:$0xff]
    %v358 = vld [vmem:[#allocation2 + $0x38] sm:$0xff]
    %v359 = vld [vmem:[#allocation2 + $0x40] sm:$0x3]
    %v360 = vld [vmem:[#allocation2 + $0x48] sm:$0xff]
    %v361 = vld [vmem:[#allocation2 + $0x50] sm:$0xff]
    %v362 = vld [vmem:[#allocation2 + $0x58] sm:$0x3]
    %v363 = vld [vmem:[#allocation2 + $0x60] sm:$0xff]
    %v364 = vld [vmem:[#allocation2 + $0x68] sm:$0xff]
    %v365 = vld [vmem:[#allocation2 + $0x70] sm:$0x3]
    %v366 = vld [vmem:[#allocation2 + $0x78] sm:$0xff]
    %v367 = vld [vmem:[#allocation2 + $0x80] sm:$0xff]
    %v368 = vld [vmem:[#allocation2 + $0x88] sm:$0x3]
    %v369 = vld [vmem:[#allocation2 + $0x90] sm:$0xff]
    %v370 = vld [vmem:[#allocation2 + $0x98] sm:$0xff]
    %v371 = vld [vmem:[#allocation2 + $0xa0] sm:$0x3]
    %v372 = vld [vmem:[#allocation2 + $0xa8] sm:$0xff]
    %v373 = vld [vmem:[#allocation2 + $0xb0] sm:$0xff]
    %v374 = vld [vmem:[#allocation2 + $0xb8] sm:$0x3]
    %v375 = vld [vmem:[#allocation2 + $0xc0] sm:$0xff]
    %v376 = vld [vmem:[#allocation2 + $0xc8] sm:$0xff]
    %v377 = vld [vmem:[#allocation2 + $0xd0] sm:$0x3]
    %v378 = vld [vmem:[#allocation2 + $0xd8] sm:$0xff]
    %v379 = vld [vmem:[#allocation2 + $0xe0] sm:$0xff]
    %v380 = vld [vmem:[#allocation2 + $0xe8] sm:$0x3]
    %v381 = vld [vmem:[#allocation2 + $0xf0] sm:$0xff]
    %v382 = vld [vmem:[#allocation2 + $0xf8] sm:$0xff]
    %v383 = vld [vmem:[#allocation2 + $0x100] sm:$0x3]
    %v384 = vld [vmem:[#allocation2 + $0x108] sm:$0xff]
    %v385 = vld [vmem:[#allocation2 + $0x110] sm:$0xff]
    %v386 = vld [vmem:[#allocation2 + $0x118] sm:$0x3]
    %v387 = vld [vmem:[#allocation2 + $0x120] sm:$0xff]
    %v388 = vld [vmem:[#allocation2 + $0x128] sm:$0xff]
    %v389 = vld [vmem:[#allocation2 + $0x130] sm:$0x3]
    %v390 = vld [vmem:[#allocation2 + $0x138] sm:$0xff]
    %v391 = vld [vmem:[#allocation2 + $0x140] sm:$0xff]
    %v392 = vld [vmem:[#allocation2 + $0x148] sm:$0x3]
    %v393 = vld [vmem:[#allocation2 + $0x150] sm:$0xff]
    %v394 = vld [vmem:[#allocation2 + $0x158] sm:$0xff]
    %v395 = vld [vmem:[#allocation2 + $0x160] sm:$0x3]
    %v396 = vld [vmem:[#allocation2 + $0x168] sm:$0xff]
    %v397 = vld [vmem:[#allocation2 + $0x170] sm:$0xff]
    %v398 = vld [vmem:[#allocation2 + $0x178] sm:$0x3]
    %v399 = vld [vmem:[#allocation2 + $0x180] sm:$0xff]
    %v400 = vld [vmem:[#allocation2 + $0x188] sm:$0xff]
    %v401 = vld [vmem:[#allocation2 + $0x190] sm:$0x3]
    %v402 = vld [vmem:[#allocation2 + $0x198] sm:$0xff]
    %v403 = vld [vmem:[#allocation2 + $0x1a0] sm:$0xff]
    %v404 = vld [vmem:[#allocation2 + $0x1a8] sm:$0x3]
    %v405 = vld [vmem:[#allocation2 + $0x1b0] sm:$0xff]
    %v406 = vld [vmem:[#allocation2 + $0x1b8] sm:$0xff]
    %v407 = vld [vmem:[#allocation2 + $0x1c0] sm:$0x3]
    %v408 = vld [vmem:[#allocation2 + $0x1c8] sm:$0xff]
    %v409 = vld [vmem:[#allocation2 + $0x1d0] sm:$0xff]
    %v410 = vld [vmem:[#allocation2 + $0x1d8] sm:$0x3]
    %v411 = vld [vmem:[#allocation2 + $0x1e0] sm:$0xff]
    %v412 = vld [vmem:[#allocation2 + $0x1e8] sm:$0xff]
    %v413 = vld [vmem:[#allocation2 + $0x1f0] sm:$0x3]
    %v414 = vld [vmem:[#allocation2 + $0x1f8] sm:$0xff]
    %v415 = vld [vmem:[#allocation2 + $0x200] sm:$0xff]
    %v416 = vld [vmem:[#allocation2 + $0x208] sm:$0x3]
    %v417 = vld [vmem:[#allocation2 + $0x210] sm:$0xff]
    %v418 = vld [vmem:[#allocation2 + $0x218] sm:$0xff]
    %v419 = vld [vmem:[#allocation2 + $0x220] sm:$0x3]
    %v420 = vld [vmem:[#allocation2 + $0x228] sm:$0xff]
    %v421 = vld [vmem:[#allocation2 + $0x230] sm:$0xff]
    %v422 = vld [vmem:[#allocation2 + $0x238] sm:$0x3]
    %v423 = vld [vmem:[#allocation2 + $0x240] sm:$0xff]
    %v424 = vld [vmem:[#allocation2 + $0x248] sm:$0xff]
    %v425 = vld [vmem:[#allocation2 + $0x250] sm:$0x3]
    %v426 = vld [vmem:[#allocation2 + $0x258] sm:$0xff]
    %v427 = vld [vmem:[#allocation2 + $0x260] sm:$0xff]
    %v428 = vld [vmem:[#allocation2 + $0x268] sm:$0x3]
    %v429 = vld [vmem:[#allocation2 + $0x270] sm:$0xff]
    %v430 = vld [vmem:[#allocation2 + $0x278] sm:$0xff]
    %v431 = vld [vmem:[#allocation2 + $0x280] sm:$0x3]
    %v432 = vld [vmem:[#allocation2 + $0x288] sm:$0xff]
    %v433 = vld [vmem:[#allocation2 + $0x290] sm:$0xff]
    %v434 = vld [vmem:[#allocation2 + $0x298] sm:$0x3]
    %v435 = vld [vmem:[#allocation2 + $0x2a0] sm:$0xff]
    %v436 = vld [vmem:[#allocation2 + $0x2a8] sm:$0xff]
    %v437 = vld [vmem:[#allocation2 + $0x2b0] sm:$0x3]
    %v438 = vld [vmem:[#allocation2 + $0x2b8] sm:$0xff]
    %v439 = vld [vmem:[#allocation2 + $0x2c0] sm:$0xff]
    %v440 = vld [vmem:[#allocation2 + $0x2c8] sm:$0x3]
    %v441 = vld [vmem:[#allocation2 + $0x2d0] sm:$0xff]
    %v442 = vld [vmem:[#allocation2 + $0x2d8] sm:$0xff]
    %v443 = vld [vmem:[#allocation2 + $0x2e0] sm:$0x3]
    %v444 = vld [vmem:[#allocation2 + $0x2e8] sm:$0xff]
    %v445 = vld [vmem:[#allocation2 + $0x2f0] sm:$0xff]
    %v446 = vld [vmem:[#allocation2 + $0x2f8] sm:$0x3]
    %v447 = vld [vmem:[#allocation2 + $0x300] sm:$0xff]
    %v448 = vld [vmem:[#allocation2 + $0x308] sm:$0xff]
    %v449 = vld [vmem:[#allocation2 + $0x310] sm:$0x3]
    %v450 = vld [vmem:[#allocation2 + $0x318] sm:$0xff]
    %v451 = vld [vmem:[#allocation2 + $0x320] sm:$0xff]
    %v452 = vld [vmem:[#allocation2 + $0x328] sm:$0x3]
    %v453 = vld [vmem:[#allocation2 + $0x330] sm:$0xff]
    %v454 = vld [vmem:[#allocation2 + $0x338] sm:$0xff]
    %v455 = vld [vmem:[#allocation2 + $0x340] sm:$0x3]
    %v456 = vld [vmem:[#allocation2 + $0x348] sm:$0xff]
    %v457 = vld [vmem:[#allocation2 + $0x350] sm:$0xff]
    %v458 = vld [vmem:[#allocation2 + $0x358] sm:$0x3]
    %v459 = vld [vmem:[#allocation7] sm:$0xff]
    %v460 = vld [vmem:[#allocation7 + $0x8] sm:$0xff]
    %v461 = vld [vmem:[#allocation7 + $0x10] sm:$0xff]
    %v462 = vld [vmem:[#allocation7 + $0x18] sm:$0xff]
    %v463 = vld [vmem:[#allocation7 + $0x20] sm:$0xff]
    %v464 = vld [vmem:[#allocation7 + $0x28] sm:$0xff]
    %v465 = vld [vmem:[#allocation7 + $0x30] sm:$0xff]
    %v466 = vld [vmem:[#allocation7 + $0x38] sm:$0xff]
    %v467 = vld [vmem:[#allocation7 + $0x40] sm:$0xff]
    %v468 = vld [vmem:[#allocation7 + $0x48] sm:$0xff]
    %v469 = vld [vmem:[#allocation7 + $0x50] sm:$0xff]
    %v470 = vld [vmem:[#allocation7 + $0x58] sm:$0xff]
    %v471 = vld [vmem:[#allocation7 + $0x60] sm:$0xff]
    %v472 = vld [vmem:[#allocation7 + $0x68] sm:$0xff]
    %v473 = vld [vmem:[#allocation7 + $0x70] sm:$0xff]
    %v474 = vld [vmem:[#allocation7 + $0x78] sm:$0xff]
    %vm571 = vcmask 1046528
    %v572 = vrot.slane %v351, 1
    %v573 = vrot.slane %v352, 1
    %v574 = vsel %vm571, %v572, %v573
    %v575 = vrot.slane %v353, 1
    %v576 = vsel %vm571, %v573, %v575
    %v577 = vrot.slane %v354, 1
    %v578 = vrot.slane %v355, 1
    %v579 = vsel %vm571, %v577, %v578
    %v580 = vrot.slane %v356, 1
    %v581 = vsel %vm571, %v578, %v580
    %v582 = vrot.slane %v357, 1
    %v583 = vrot.slane %v358, 1
    %v584 = vsel %vm571, %v582, %v583
    %v585 = vrot.slane %v359, 1
    %v586 = vsel %vm571, %v583, %v585
    %v587 = vrot.slane %v360, 1
    %v588 = vrot.slane %v361, 1
    %v589 = vsel %vm571, %v587, %v588
    %v590 = vrot.slane %v362, 1
    %v591 = vsel %vm571, %v588, %v590
    %v592 = vrot.slane %v363, 1
    %v593 = vrot.slane %v364, 1
    %v594 = vsel %vm571, %v592, %v593
    %v595 = vrot.slane %v365, 1
    %v596 = vsel %vm571, %v593, %v595
    %v597 = vrot.slane %v366, 1
    %v598 = vrot.slane %v367, 1
    %v599 = vsel %vm571, %v597, %v598
    %v600 = vrot.slane %v368, 1
    %v601 = vsel %vm571, %v598, %v600
    %v602 = vrot.slane %v369, 1
    %v603 = vrot.slane %v370, 1
    %v604 = vsel %vm571, %v602, %v603
    %v605 = vrot.slane %v371, 1
    %v606 = vsel %vm571, %v603, %v605
    %v607 = vrot.slane %v372, 1
    %v608 = vrot.slane %v373, 1
    %v609 = vsel %vm571, %v607, %v608
    %v610 = vrot.slane %v374, 1
    %v611 = vsel %vm571, %v608, %v610
    %v612 = vrot.slane %v375, 1
    %v613 = vrot.slane %v376, 1
    %v614 = vsel %vm571, %v612, %v613
    %v615 = vrot.slane %v377, 1
    %v616 = vsel %vm571, %v613, %v615
    %v617 = vrot.slane %v378, 1
    %v618 = vrot.slane %v379, 1
    %v619 = vsel %vm571, %v617, %v618
    %v620 = vrot.slane %v380, 1
    %v621 = vsel %vm571, %v618, %v620
    %v622 = vrot.slane %v381, 1
    %v623 = vrot.slane %v382, 1
    %v624 = vsel %vm571, %v622, %v623
    %v625 = vrot.slane %v383, 1
    %v626 = vsel %vm571, %v623, %v625
    %v627 = vrot.slane %v384, 1
    %v628 = vrot.slane %v385, 1
    %v629 = vsel %vm571, %v627, %v628
    %v630 = vrot.slane %v386, 1
    %v631 = vsel %vm571, %v628, %v630
    %v632 = vrot.slane %v387, 1
    %v633 = vrot.slane %v388, 1
    %v634 = vsel %vm571, %v632, %v633
    %v635 = vrot.slane %v389, 1
    %v636 = vsel %vm571, %v633, %v635
    %v637 = vrot.slane %v390, 1
    %v638 = vrot.slane %v391, 1
    %v639 = vsel %vm571, %v637, %v638
    %v640 = vrot.slane %v392, 1
    %v641 = vsel %vm571, %v638, %v640
    %v642 = vrot.slane %v393, 1
    %v643 = vrot.slane %v394, 1
    %v644 = vsel %vm571, %v642, %v643
    %v645 = vrot.slane %v395, 1
    %v646 = vsel %vm571, %v643, %v645
    %v647 = vrot.slane %v396, 1
    %v648 = vrot.slane %v397, 1
    %v649 = vsel %vm571, %v647, %v648
    %v650 = vrot.slane %v398, 1
    %v651 = vsel %vm571, %v648, %v650
    %v652 = vrot.slane %v405, 1
    %v653 = vrot.slane %v406, 1
    %v654 = vsel %vm571, %v652, %v653
    %v655 = vrot.slane %v407, 1
    %v656 = vsel %vm571, %v653, %v655
    %v657 = vrot.slane %v408, 1
    %v658 = vrot.slane %v409, 1
    %v659 = vsel %vm571, %v657, %v658
    %v660 = vrot.slane %v410, 1
    %v661 = vsel %vm571, %v658, %v660
    %v662 = vrot.slane %v411, 1
    %v663 = vrot.slane %v412, 1
    %v664 = vsel %vm571, %v662, %v663
    %v665 = vrot.slane %v413, 1
    %v666 = vsel %vm571, %v663, %v665
    %v667 = vrot.slane %v414, 1
    %v668 = vrot.slane %v415, 1
    %v669 = vsel %vm571, %v667, %v668
    %v670 = vrot.slane %v416, 1
    %v671 = vsel %vm571, %v668, %v670
    %v672 = vrot.slane %v417, 1
    %v673 = vrot.slane %v418, 1
    %v674 = vsel %vm571, %v672, %v673
    %v675 = vrot.slane %v419, 1
    %v676 = vsel %vm571, %v673, %v675
    %v677 = vrot.slane %v420, 1
    %v678 = vrot.slane %v421, 1
    %v679 = vsel %vm571, %v677, %v678
    %v680 = vrot.slane %v422, 1
    %v681 = vsel %vm571, %v678, %v680
    %v682 = vrot.slane %v423, 1
    %v683 = vrot.slane %v424, 1
    %v684 = vsel %vm571, %v682, %v683
    %v685 = vrot.slane %v425, 1
    %v686 = vsel %vm571, %v683, %v685
    %v687 = vrot.slane %v426, 1
    %v688 = vrot.slane %v427, 1
    %v689 = vsel %vm571, %v687, %v688
    %v690 = vrot.slane %v428, 1
    %v691 = vsel %vm571, %v688, %v690
    %v692 = vrot.slane %v429, 1
    %v693 = vrot.slane %v430, 1
    %v694 = vsel %vm571, %v692, %v693
    %v695 = vrot.slane %v431, 1
    %v696 = vsel %vm571, %v693, %v695
    %v697 = vrot.slane %v432, 1
    %v698 = vrot.slane %v433, 1
    %v699 = vsel %vm571, %v697, %v698
    %v700 = vrot.slane %v434, 1
    %v701 = vsel %vm571, %v698, %v700
    %v702 = vrot.slane %v435, 1
    %v703 = vrot.slane %v436, 1
    %v704 = vsel %vm571, %v702, %v703
    %v705 = vrot.slane %v437, 1
    %v706 = vsel %vm571, %v703, %v705
    %v707 = vrot.slane %v438, 1
    %v708 = vrot.slane %v439, 1
    %v709 = vsel %vm571, %v707, %v708
    %v710 = vrot.slane %v440, 1
    %v711 = vsel %vm571, %v708, %v710
    %v712 = vrot.slane %v441, 1
    %v713 = vrot.slane %v442, 1
    %v714 = vsel %vm571, %v712, %v713
    %v715 = vrot.slane %v443, 1
    %v716 = vsel %vm571, %v713, %v715
    %v717 = vrot.slane %v444, 1
    %v718 = vrot.slane %v445, 1
    %v719 = vsel %vm571, %v717, %v718
    %v720 = vrot.slane %v446, 1
    %v721 = vsel %vm571, %v718, %v720
    %v722 = vrot.slane %v447, 1
    %v723 = vrot.slane %v448, 1
    %v724 = vsel %vm571, %v722, %v723
    %v725 = vrot.slane %v449, 1
    %v726 = vsel %vm571, %v723, %v725
    %v727 = vrot.slane %v450, 1
    %v728 = vrot.slane %v451, 1
    %v729 = vsel %vm571, %v727, %v728
    %v730 = vrot.slane %v452, 1
    %v731 = vsel %vm571, %v728, %v730
    %v796 = vld [vmem:[#allocation7 + $0x80] sm:$0xff]
    %v797 = vld [vmem:[#allocation7 + $0x88] sm:$0xff]
    %v798 = vld [vmem:[#allocation7 + $0x90] sm:$0xff]
    %v799 = vld [vmem:[#allocation7 + $0x98] sm:$0xff]
    %v800 = vld [vmem:[#allocation7 + $0xa0] sm:$0xff]
    %v801 = vld [vmem:[#allocation7 + $0xa8] sm:$0xff]
    %v802 = vld [vmem:[#allocation7 + $0xb0] sm:$0xff]
    %v803 = vld [vmem:[#allocation7 + $0xb8] sm:$0xff]
    %v804 = vld [vmem:[#allocation7 + $0xc0] sm:$0xff]
    %v805 = vld [vmem:[#allocation7 + $0xc8] sm:$0xff]
    %v806 = vld [vmem:[#allocation7 + $0xd0] sm:$0xff]
    %v807 = vld [vmem:[#allocation7 + $0xd8] sm:$0xff]
    %v808 = vld [vmem:[#allocation7 + $0xe0] sm:$0xff]
    %v809 = vld [vmem:[#allocation7 + $0xe8] sm:$0xff]
    %v810 = vld [vmem:[#allocation7 + $0xf0] sm:$0xff]
    %v811 = vld [vmem:[#allocation7 + $0xf8] sm:$0xff]
    %812 = vmatprep.subr.mxu0 0.0
    %813 = vmatpush1.msra.mxu0 %v796
    %814 = vmatprep.subr.mxu0 0.0
    %815 = vmatpush1.msra.mxu0 %v797
    %816 = vmatprep.subr.mxu0 0.0
    %817 = vmatpush1.msra.mxu0 %v798
    %818 = vmatprep.subr.mxu0 0.0
    %819 = vmatpush1.msra.mxu0 %v799
    %820 = vmatprep.subr.mxu0 0.0
    %821 = vmatpush1.msra.mxu0 %v800
    %822 = vmatprep.subr.mxu0 0.0
    %823 = vmatpush1.msra.mxu0 %v801
    %824 = vmatprep.subr.mxu0 0.0
    %825 = vmatpush1.msra.mxu0 %v802
    %826 = vmatprep.subr.mxu0 0.0
    %827 = vmatpush1.msra.mxu0 %v803
    %828 = vmatprep.subr.mxu0 0.0
    %829 = vmatpush1.msra.mxu0 %v804
    %830 = vmatprep.subr.mxu0 0.0
    %831 = vmatpush1.msra.mxu0 %v805
    %832 = vmatprep.subr.mxu0 0.0
    %833 = vmatpush1.msra.mxu0 %v806
    %834 = vmatprep.subr.mxu0 0.0
    %835 = vmatpush1.msra.mxu0 %v807
    %836 = vmatprep.subr.mxu0 0.0
    %837 = vmatpush1.msra.mxu0 %v808
    %838 = vmatprep.subr.mxu0 0.0
    %839 = vmatpush1.msra.mxu0 %v809
    %840 = vmatprep.subr.mxu0 0.0
    %841 = vmatpush1.msra.mxu0 %v810
    %842 = vmatprep.subr.mxu0 0.0
    %843 = vmatpush1.msra.mxu0 %v811
    %844 = vmatprep.subr.mxu0 0.0
    %845 = vmatpush1.msra.mxu0 0.0
    %846 = vmatprep.subr.mxu0 0.0
    %847 = vmatpush1.msra.mxu0 0.0
    %848 = vmatprep.subr.mxu0 0.0
    %849 = vmatpush1.msra.mxu0 0.0
    %850 = vmatprep.subr.mxu0 0.0
    %851 = vmatpush1.msra.mxu0 0.0
    %852 = vmatprep.subr.mxu0 0.0
    %853 = vmatpush1.msra.mxu0 0.0
    %854 = vmatprep.subr.mxu0 0.0
    %855 = vmatpush1.msra.mxu0 0.0
    %856 = vmatprep.subr.mxu0 0.0
    %857 = vmatpush1.msra.mxu0 0.0
    %858 = vmatprep.subr.mxu0 0.0
    %859 = vmatpush1.msra.mxu0 0.0
    %860 = vmatprep.subr.mxu0 0.0
    %861 = vmatpush1.msra.mxu0 0.0
    %862 = vmatprep.subr.mxu0 0.0
    %863 = vmatpush1.msra.mxu0 0.0
    %864 = vmatprep.subr.mxu0 0.0
    %865 = vmatpush1.msra.mxu0 0.0
    %866 = vmatprep.subr.mxu0 0.0
    %867 = vmatpush1.msra.mxu0 0.0
    %868 = vmatprep.subr.mxu0 0.0
    %869 = vmatpush1.msra.mxu0 0.0
    %870 = vmatprep.subr.mxu0 0.0
    %871 = vmatpush1.msra.mxu0 0.0
    %872 = vmatprep.subr.mxu0 0.0
    %873 = vmatpush1.msra.mxu0 0.0
    %874 = vmatprep.subr.mxu0 0.0
    %875 = vmatpush1.msra.mxu0 0.0
    %876 = vmatprep.mubr.f32.mxu0 0.0
    %877 = vmatmul.mubr.f32.gmra.mrb[0].mxu0 %v574
    %v878 = vpop.f32.mrb[0].mxu0
    %v879 = vadd.f32 0.0, %v878
    %v880 = vpop.f32.mrb[0].mxu0
    %881 = vmatprep.mubr.f32.mxu0 0.0
    %882 = vmatmul.mubr.f32.gmra.mrb[0].mxu0 %v576
    %v883 = vpop.f32.mrb[0].mxu0
    %v884 = vadd.f32 0.0, %v883
    %v885 = vpop.f32.mrb[0].mxu0
    %886 = vmatprep.mubr.f32.mxu0 0.0
    %887 = vmatmul.mubr.f32.gmra.mrb[0].mxu0 %v579
    %v888 = vpop.f32.mrb[0].mxu0
    %v889 = vadd.f32 0.0, %v888
    %v890 = vpop.f32.mrb[0].mxu0
    %891 = vmatprep.mubr.f32.mxu0 0.0
    %892 = vmatmul.mubr.f32.gmra.mrb[0].mxu0 %v581
    %v893 = vpop.f32.mrb[0].mxu0
    %v894 = vadd.f32 0.0, %v893
    %v895 = vpop.f32.mrb[0].mxu0
    %896 = vmatprep.mubr.f32.mxu0 0.0
    %897 = vmatmul.mubr.f32.gmra.mrb[0].mxu0 %v584
    %v898 = vpop.f32.mrb[0].mxu0
    %v899 = vadd.f32 0.0, %v898
    %v900 = vpop.f32.mrb[0].mxu0
    %901 = vmatprep.mubr.f32.mxu0 0.0
    %902 = vmatmul.mubr.f32.gmra.mrb[0].mxu0 %v586
    %v903 = vpop.f32.mrb[0].mxu0
    %v904 = vadd.f32 0.0, %v903
    %v905 = vpop.f32.mrb[0].mxu0
    %906 = vmatprep.mubr.f32.mxu0 0.0
    %907 = vmatmul.mubr.f32.gmra.mrb[0].mxu0 %v589
    %v908 = vpop.f32.mrb[0].mxu0
    %v909 = vadd.f32 0.0, %v908
    %v910 = vpop.f32.mrb[0].mxu0
    %911 = vmatprep.mubr.f32.mxu0 0.0
    %912 = vmatmul.mubr.f32.gmra.mrb[0].mxu0 %v591
    %v913 = vpop.f32.mrb[0].mxu0
    %v914 = vadd.f32 0.0, %v913
    %v915 = vpop.f32.mrb[0].mxu0
    %916 = vmatprep.mubr.f32.mxu0 0.0
    %917 = vmatmul.mubr.f32.gmra.mrb[0].mxu0 %v594
    %v918 = vpop.f32.mrb[0].mxu0
    %v919 = vadd.f32 0.0, %v918
    %v920 = vpop.f32.mrb[0].mxu0
    %921 = vmatprep.mubr.f32.mxu0 0.0
    %922 = vmatmul.mubr.f32.gmra.mrb[0].mxu0 %v596
    %v923 = vpop.f32.mrb[0].mxu0
    %v924 = vadd.f32 0.0, %v923
    %v925 = vpop.f32.mrb[0].mxu0
    %926 = vmatprep.mubr.f32.mxu0 0.0
    %927 = vmatmul.mubr.f32.gmra.mrb[0].mxu0 %v599
    %v928 = vpop.f32.mrb[0].mxu0
    %v929 = vadd.f32 0.0, %v928
    %v930 = vpop.f32.mrb[0].mxu0
    %931 = vmatprep.mubr.f32.mxu0 0.0
    %932 = vmatmul.mubr.f32.gmra.mrb[0].mxu0 %v601
    %v933 = vpop.f32.mrb[0].mxu0
    %v934 = vadd.f32 0.0, %v933
    %v935 = vpop.f32.mrb[0].mxu0
    %936 = vmatprep.mubr.f32.mxu0 0.0
    %937 = vmatmul.mubr.f32.gmra.mrb[0].mxu0 %v604
    %v938 = vpop.f32.mrb[0].mxu0
    %v939 = vadd.f32 0.0, %v938
    %v940 = vpop.f32.mrb[0].mxu0
    %941 = vmatprep.mubr.f32.mxu0 0.0
    %942 = vmatmul.mubr.f32.gmra.mrb[0].mxu0 %v606
    %v943 = vpop.f32.mrb[0].mxu0
    %v944 = vadd.f32 0.0, %v943
    %v945 = vpop.f32.mrb[0].mxu0
    %946 = vmatprep.mubr.f32.mxu0 0.0
    %947 = vmatmul.mubr.f32.gmra.mrb[0].mxu0 %v609
    %v948 = vpop.f32.mrb[0].mxu0
    %v949 = vadd.f32 0.0, %v948
    %v950 = vpop.f32.mrb[0].mxu0
    %951 = vmatprep.mubr.f32.mxu0 0.0
    %952 = vmatmul.mubr.f32.gmra.mrb[0].mxu0 %v611
    %v953 = vpop.f32.mrb[0].mxu0
    %v954 = vadd.f32 0.0, %v953
    %v955 = vpop.f32.mrb[0].mxu0
    %956 = vmatprep.mubr.f32.mxu0 0.0
    %957 = vmatmul.mubr.f32.gmra.mrb[0].mxu0 %v614
    %v958 = vpop.f32.mrb[0].mxu0
    %v959 = vadd.f32 0.0, %v958
    %v960 = vpop.f32.mrb[0].mxu0
    %961 = vmatprep.mubr.f32.mxu0 0.0
    %962 = vmatmul.mubr.f32.gmra.mrb[0].mxu0 %v616
    %v963 = vpop.f32.mrb[0].mxu0
    %v964 = vadd.f32 0.0, %v963
    %v965 = vpop.f32.mrb[0].mxu0
    %966 = vmatprep.mubr.f32.mxu0 0.0
    %967 = vmatmul.mubr.f32.gmra.mrb[0].mxu0 %v619
    %v968 = vpop.f32.mrb[0].mxu0
    %v969 = vadd.f32 0.0, %v968
    %v970 = vpop.f32.mrb[0].mxu0
    %971 = vmatprep.mubr.f32.mxu0 0.0
    %972 = vmatmul.mubr.f32.gmra.mrb[0].mxu0 %v621
    %v973 = vpop.f32.mrb[0].mxu0
    %v974 = vadd.f32 0.0, %v973
    %v975 = vpop.f32.mrb[0].mxu0
    %976 = vmatprep.mubr.f32.mxu0 0.0
    %977 = vmatmul.mubr.f32.gmra.mrb[0].mxu0 %v624
    %v978 = vpop.f32.mrb[0].mxu0
    %v979 = vadd.f32 0.0, %v978
    %v980 = vpop.f32.mrb[0].mxu0
    %981 = vmatprep.mubr.f32.mxu0 0.0
    %982 = vmatmul.mubr.f32.gmra.mrb[0].mxu0 %v626
    %v983 = vpop.f32.mrb[0].mxu0
    %v984 = vadd.f32 0.0, %v983
    %v985 = vpop.f32.mrb[0].mxu0
    %986 = vmatprep.mubr.f32.mxu0 0.0
    %987 = vmatmul.mubr.f32.gmra.mrb[0].mxu0 %v629
    %v988 = vpop.f32.mrb[0].mxu0
    %v989 = vadd.f32 0.0, %v988
    %v990 = vpop.f32.mrb[0].mxu0
    %991 = vmatprep.mubr.f32.mxu0 0.0
    %992 = vmatmul.mubr.f32.gmra.mrb[0].mxu0 %v631
    %v993 = vpop.f32.mrb[0].mxu0
    %v994 = vadd.f32 0.0, %v993
    %v995 = vpop.f32.mrb[0].mxu0
    %996 = vmatprep.mubr.f32.mxu0 0.0
    %997 = vmatmul.mubr.f32.gmra.mrb[0].mxu0 %v634
    %v998 = vpop.f32.mrb[0].mxu0
    %v999 = vadd.f32 0.0, %v998
    %v1000 = vpop.f32.mrb[0].mxu0
    %1001 = vmatprep.mubr.f32.mxu0 0.0
    %1002 = vmatmul.mubr.f32.gmra.mrb[0].mxu0 %v636
    %v1003 = vpop.f32.mrb[0].mxu0
    %v1004 = vadd.f32 0.0, %v1003
    %v1005 = vpop.f32.mrb[0].mxu0
    %1006 = vmatprep.mubr.f32.mxu0 0.0
    %1007 = vmatmul.mubr.f32.gmra.mrb[0].mxu0 %v639
    %v1008 = vpop.f32.mrb[0].mxu0
    %v1009 = vadd.f32 0.0, %v1008
    %v1010 = vpop.f32.mrb[0].mxu0
    %1011 = vmatprep.mubr.f32.mxu0 0.0
    %1012 = vmatmul.mubr.f32.gmra.mrb[0].mxu0 %v641
    %v1013 = vpop.f32.mrb[0].mxu0
    %v1014 = vadd.f32 0.0, %v1013
    %v1015 = vpop.f32.mrb[0].mxu0
    %1016 = vmatprep.mubr.f32.mxu0 0.0
    %1017 = vmatmul.mubr.f32.gmra.mrb[0].mxu0 %v644
    %v1018 = vpop.f32.mrb[0].mxu0
    %v1019 = vadd.f32 0.0, %v1018
    %v1020 = vpop.f32.mrb[0].mxu0
    %1021 = vmatprep.mubr.f32.mxu0 0.0
    %1022 = vmatmul.mubr.f32.gmra.mrb[0].mxu0 %v646
    %v1023 = vpop.f32.mrb[0].mxu0
    %v1024 = vadd.f32 0.0, %v1023
    %v1025 = vpop.f32.mrb[0].mxu0
    %1026 = vmatprep.mubr.f32.mxu0 0.0
    %1027 = vmatmul.mubr.f32.gmra.mrb[0].mxu0 %v649
    %v1028 = vpop.f32.mrb[0].mxu0
    %v1029 = vadd.f32 0.0, %v1028
    %v1030 = vpop.f32.mrb[0].mxu0
    %1031 = vmatprep.mubr.f32.mxu0 0.0
    %1032 = vmatmul.mubr.f32.gmra.mrb[0].mxu0 %v651
    %v1033 = vpop.f32.mrb[0].mxu0
    %v1034 = vadd.f32 0.0, %v1033
    %v1035 = vpop.f32.mrb[0].mxu0
    %1036 = vmatprep.mubr.f32.mxu0 0.0
    %1037 = vmatmul.mubr.f32.gmra.mrb[0].mxu0 %v654
    %v1038 = vpop.f32.mrb[0].mxu0
    %v1039 = vadd.f32 0.0, %v1038
    %v1040 = vpop.f32.mrb[0].mxu0
    %1041 = vmatprep.mubr.f32.mxu0 0.0
    %1042 = vmatmul.mubr.f32.gmra.mrb[0].mxu0 %v656
    %v1043 = vpop.f32.mrb[0].mxu0
    %v1044 = vadd.f32 0.0, %v1043
    %v1045 = vpop.f32.mrb[0].mxu0
    %1046 = vmatprep.mubr.f32.mxu0 0.0
    %1047 = vmatmul.mubr.f32.gmra.mrb[0].mxu0 %v659
    %v1048 = vpop.f32.mrb[0].mxu0
    %v1049 = vadd.f32 0.0, %v1048
    %v1050 = vpop.f32.mrb[0].mxu0
    %1051 = vmatprep.mubr.f32.mxu0 0.0
    %1052 = vmatmul.mubr.f32.gmra.mrb[0].mxu0 %v661
    %v1053 = vpop.f32.mrb[0].mxu0
    %v1054 = vadd.f32 0.0, %v1053
    %v1055 = vpop.f32.mrb[0].mxu0
    %1056 = vmatprep.mubr.f32.mxu0 0.0
    %1057 = vmatmul.mubr.f32.gmra.mrb[0].mxu0 %v664
    %v1058 = vpop.f32.mrb[0].mxu0
    %v1059 = vadd.f32 0.0, %v1058
    %v1060 = vpop.f32.mrb[0].mxu0
    %1061 = vmatprep.mubr.f32.mxu0 0.0
    %1062 = vmatmul.mubr.f32.gmra.mrb[0].mxu0 %v666
    %v1063 = vpop.f32.mrb[0].mxu0
    %v1064 = vadd.f32 0.0, %v1063
    %v1065 = vpop.f32.mrb[0].mxu0
    %1066 = vmatprep.mubr.f32.mxu0 0.0
    %1067 = vmatmul.mubr.f32.gmra.mrb[0].mxu0 %v669
    %v1068 = vpop.f32.mrb[0].mxu0
    %v1069 = vadd.f32 0.0, %v1068
    %v1070 = vpop.f32.mrb[0].mxu0
    %1071 = vmatprep.mubr.f32.mxu0 0.0
    %1072 = vmatmul.mubr.f32.gmra.mrb[0].mxu0 %v671
    %v1073 = vpop.f32.mrb[0].mxu0
    %v1074 = vadd.f32 0.0, %v1073
    %v1075 = vpop.f32.mrb[0].mxu0
    %1076 = vmatprep.mubr.f32.mxu0 0.0
    %1077 = vmatmul.mubr.f32.gmra.mrb[0].mxu0 %v674
    %v1078 = vpop.f32.mrb[0].mxu0
    %v1079 = vadd.f32 0.0, %v1078
    %v1080 = vpop.f32.mrb[0].mxu0
    %1081 = vmatprep.mubr.f32.mxu0 0.0
    %1082 = vmatmul.mubr.f32.gmra.mrb[0].mxu0 %v676
    %v1083 = vpop.f32.mrb[0].mxu0
    %v1084 = vadd.f32 0.0, %v1083
    %v1085 = vpop.f32.mrb[0].mxu0
    %1086 = vmatprep.mubr.f32.mxu0 0.0
    %1087 = vmatmul.mubr.f32.gmra.mrb[0].mxu0 %v679
    %v1088 = vpop.f32.mrb[0].mxu0
    %v1089 = vadd.f32 0.0, %v1088
    %v1090 = vpop.f32.mrb[0].mxu0
    %1091 = vmatprep.mubr.f32.mxu0 0.0
    %1092 = vmatmul.mubr.f32.gmra.mrb[0].mxu0 %v681
    %v1093 = vpop.f32.mrb[0].mxu0
    %v1094 = vadd.f32 0.0, %v1093
    %v1095 = vpop.f32.mrb[0].mxu0
    %1096 = vmatprep.mubr.f32.mxu0 0.0
    %1097 = vmatmul.mubr.f32.gmra.mrb[0].mxu0 %v684
    %v1098 = vpop.f32.mrb[0].mxu0
    %v1099 = vadd.f32 0.0, %v1098
    %v1100 = vpop.f32.mrb[0].mxu0
    %1101 = vmatprep.mubr.f32.mxu0 0.0
    %1102 = vmatmul.mubr.f32.gmra.mrb[0].mxu0 %v686
    %v1103 = vpop.f32.mrb[0].mxu0
    %v1104 = vadd.f32 0.0, %v1103
    %v1105 = vpop.f32.mrb[0].mxu0
    %1106 = vmatprep.mubr.f32.mxu0 0.0
    %1107 = vmatmul.mubr.f32.gmra.mrb[0].mxu0 %v689
    %v1108 = vpop.f32.mrb[0].mxu0
    %v1109 = vadd.f32 0.0, %v1108
    %v1110 = vpop.f32.mrb[0].mxu0
    %1111 = vmatprep.mubr.f32.mxu0 0.0
    %1112 = vmatmul.mubr.f32.gmra.mrb[0].mxu0 %v691
    %v1113 = vpop.f32.mrb[0].mxu0
    %v1114 = vadd.f32 0.0, %v1113
    %v1115 = vpop.f32.mrb[0].mxu0
    %1116 = vmatprep.mubr.f32.mxu0 0.0
    %1117 = vmatmul.mubr.f32.gmra.mrb[0].mxu0 %v694
    %v1118 = vpop.f32.mrb[0].mxu0
    %v1119 = vadd.f32 0.0, %v1118
    %v1120 = vpop.f32.mrb[0].mxu0
    %1121 = vmatprep.mubr.f32.mxu0 0.0
    %1122 = vmatmul.mubr.f32.gmra.mrb[0].mxu0 %v696
    %v1123 = vpop.f32.mrb[0].mxu0
    %v1124 = vadd.f32 0.0, %v1123
    %v1125 = vpop.f32.mrb[0].mxu0
    %1126 = vmatprep.mubr.f32.mxu0 0.0
    %1127 = vmatmul.mubr.f32.gmra.mrb[0].mxu0 %v699
    %v1128 = vpop.f32.mrb[0].mxu0
    %v1129 = vadd.f32 0.0, %v1128
    %v1130 = vpop.f32.mrb[0].mxu0
    %1131 = vmatprep.mubr.f32.mxu0 0.0
    %1132 = vmatmul.mubr.f32.gmra.mrb[0].mxu0 %v701
    %v1133 = vpop.f32.mrb[0].mxu0
    %v1134 = vadd.f32 0.0, %v1133
    %v1135 = vpop.f32.mrb[0].mxu0
    %1136 = vmatprep.mubr.f32.mxu0 0.0
    %1137 = vmatmul.mubr.f32.gmra.mrb[0].mxu0 %v704
    %v1138 = vpop.f32.mrb[0].mxu0
    %v1139 = vadd.f32 0.0, %v1138
    %v1140 = vpop.f32.mrb[0].mxu0
    %1141 = vmatprep.mubr.f32.mxu0 0.0
    %1142 = vmatmul.mubr.f32.gmra.mrb[0].mxu0 %v706
    %v1143 = vpop.f32.mrb[0].mxu0
    %v1144 = vadd.f32 0.0, %v1143
    %v1145 = vpop.f32.mrb[0].mxu0
    %1146 = vmatprep.mubr.f32.mxu0 0.0
    %1147 = vmatmul.mubr.f32.gmra.mrb[0].mxu0 %v709
    %v1148 = vpop.f32.mrb[0].mxu0
    %v1149 = vadd.f32 0.0, %v1148
    %v1150 = vpop.f32.mrb[0].mxu0
    %1151 = vmatprep.mubr.f32.mxu0 0.0
    %1152 = vmatmul.mubr.f32.gmra.mrb[0].mxu0 %v711
    %v1153 = vpop.f32.mrb[0].mxu0
    %v1154 = vadd.f32 0.0, %v1153
    %v1155 = vpop.f32.mrb[0].mxu0
    %1156 = vmatprep.mubr.f32.mxu0 0.0
    %1157 = vmatmul.mubr.f32.gmra.mrb[0].mxu0 %v714
    %v1158 = vpop.f32.mrb[0].mxu0
    %v1159 = vadd.f32 0.0, %v1158
    %v1160 = vpop.f32.mrb[0].mxu0
    %1161 = vmatprep.mubr.f32.mxu0 0.0
    %1162 = vmatmul.mubr.f32.gmra.mrb[0].mxu0 %v716
    %v1163 = vpop.f32.mrb[0].mxu0
    %v1164 = vadd.f32 0.0, %v1163
    %v1165 = vpop.f32.mrb[0].mxu0
    %1166 = vmatprep.mubr.f32.mxu0 0.0
    %1167 = vmatmul.mubr.f32.gmra.mrb[0].mxu0 %v719
    %v1168 = vpop.f32.mrb[0].mxu0
    %v1169 = vadd.f32 0.0, %v1168
    %v1170 = vpop.f32.mrb[0].mxu0
    %1171 = vmatprep.mubr.f32.mxu0 0.0
    %1172 = vmatmul.mubr.f32.gmra.mrb[0].mxu0 %v721
    %v1173 = vpop.f32.mrb[0].mxu0
    %v1174 = vadd.f32 0.0, %v1173
    %v1175 = vpop.f32.mrb[0].mxu0
    %1176 = vmatprep.mubr.f32.mxu0 0.0
    %1177 = vmatmul.mubr.f32.gmra.mrb[0].mxu0 %v724
    %v1178 = vpop.f32.mrb[0].mxu0
    %v1179 = vadd.f32 0.0, %v1178
    %v1180 = vpop.f32.mrb[0].mxu0
    %1181 = vmatprep.mubr.f32.mxu0 0.0
    %1182 = vmatmul.mubr.f32.gmra.mrb[0].mxu0 %v726
    %v1183 = vpop.f32.mrb[0].mxu0
    %v1184 = vadd.f32 0.0, %v1183
    %v1185 = vpop.f32.mrb[0].mxu0
    %1186 = vmatprep.mubr.f32.mxu0 0.0
    %1187 = vmatmul.mubr.f32.gmra.mrb[0].mxu0 %v729
    %v1188 = vpop.f32.mrb[0].mxu0
    %v1189 = vadd.f32 0.0, %v1188
    %v1190 = vpop.f32.mrb[0].mxu0
    %1191 = vmatprep.mubr.f32.mxu0 0.0
    %1192 = vmatmul.mubr.f32.gmra.mrb[0].mxu0 %v731
    %v1193 = vpop.f32.mrb[0].mxu0
    %v1194 = vadd.f32 0.0, %v1193
    %v1195 = vpop.f32.mrb[0].mxu0
    %1196 = vdwg.mxu0
    %1197 = vmatprep.subr.mxu0 0.0
    %1198 = vmatpush1.msra.mxu0 %v459
    %1199 = vmatprep.subr.mxu0 0.0
    %1200 = vmatpush1.msra.mxu0 %v460
    %1201 = vmatprep.subr.mxu0 0.0
    %1202 = vmatpush1.msra.mxu0 %v461
    %1203 = vmatprep.subr.mxu0 0.0
    %1204 = vmatpush1.msra.mxu0 %v462
    %1205 = vmatprep.subr.mxu0 0.0
    %1206 = vmatpush1.msra.mxu0 %v463
    %1207 = vmatprep.subr.mxu0 0.0
    %1208 = vmatpush1.msra.mxu0 %v464
    %1209 = vmatprep.subr.mxu0 0.0
    %1210 = vmatpush1.msra.mxu0 %v465
    %1211 = vmatprep.subr.mxu0 0.0
    %1212 = vmatpush1.msra.mxu0 %v466
    %1213 = vmatprep.subr.mxu0 0.0
    %1214 = vmatpush1.msra.mxu0 %v467
    %1215 = vmatprep.subr.mxu0 0.0
    %1216 = vmatpush1.msra.mxu0 %v468
    %1217 = vmatprep.subr.mxu0 0.0
    %1218 = vmatpush1.msra.mxu0 %v469
    %1219 = vmatprep.subr.mxu0 0.0
    %1220 = vmatpush1.msra.mxu0 %v470
    %1221 = vmatprep.subr.mxu0 0.0
    %1222 = vmatpush1.msra.mxu0 %v471
    %1223 = vmatprep.subr.mxu0 0.0
    %1224 = vmatpush1.msra.mxu0 %v472
    %1225 = vmatprep.subr.mxu0 0.0
    %1226 = vmatpush1.msra.mxu0 %v473
    %1227 = vmatprep.subr.mxu0 0.0
    %1228 = vmatpush1.msra.mxu0 %v474
    %1229 = vmatprep.subr.mxu0 0.0
    %1230 = vmatpush1.msra.mxu0 0.0
    %1231 = vmatprep.subr.mxu0 0.0
    %1232 = vmatpush1.msra.mxu0 0.0
    %1233 = vmatprep.subr.mxu0 0.0
    %1234 = vmatpush1.msra.mxu0 0.0
    %1235 = vmatprep.subr.mxu0 0.0
    %1236 = vmatpush1.msra.mxu0 0.0
    %1237 = vmatprep.subr.mxu0 0.0
    %1238 = vmatpush1.msra.mxu0 0.0
    %1239 = vmatprep.subr.mxu0 0.0
    %1240 = vmatpush1.msra.mxu0 0.0
    %1241 = vmatprep.subr.mxu0 0.0
    %1242 = vmatpush1.msra.mxu0 0.0
    %1243 = vmatprep.subr.mxu0 0.0
    %1244 = vmatpush1.msra.mxu0 0.0
    %1245 = vmatprep.subr.mxu0 0.0
    %1246 = vmatpush1.msra.mxu0 0.0
    %1247 = vmatprep.subr.mxu0 0.0
    %1248 = vmatpush1.msra.mxu0 0.0
    %1249 = vmatprep.subr.mxu0 0.0
    %1250 = vmatpush1.msra.mxu0 0.0
    %1251 = vmatprep.subr.mxu0 0.0
    %1252 = vmatpush1.msra.mxu0 0.0
    %1253 = vmatprep.subr.mxu0 0.0
    %1254 = vmatpush1.msra.mxu0 0.0
    %1255 = vmatprep.subr.mxu0 0.0
    %1256 = vmatpush1.msra.mxu0 0.0
    %1257 = vmatprep.subr.mxu0 0.0
    %1258 = vmatpush1.msra.mxu0 0.0
    %1259 = vmatprep.subr.mxu0 0.0
    %1260 = vmatpush1.msra.mxu0 0.0
    %1261 = vmatprep.mubr.f32.mxu0 0.0
    %1262 = vmatmul.mubr.f32.gmra.mrb[0].mxu0 %v351
    %v1263 = vpop.f32.mrb[0].mxu0
    %v1264 = vadd.f32 %v879, %v1263
    %v1265 = vpop.f32.mrb[0].mxu0
    %1266 = vmatprep.mubr.f32.mxu0 0.0
    %1267 = vmatmul.mubr.f32.gmra.mrb[0].mxu0 %v352
    %v1268 = vpop.f32.mrb[0].mxu0
    %v1269 = vadd.f32 %v884, %v1268
    %v1270 = vpop.f32.mrb[0].mxu0
    %1271 = vmatprep.mubr.f32.mxu0 0.0
    %1272 = vmatmul.mubr.f32.gmra.mrb[0].mxu0 %v354
    %v1273 = vpop.f32.mrb[0].mxu0
    %v1274 = vadd.f32 %v889, %v1273
    %v1275 = vpop.f32.mrb[0].mxu0
    %1276 = vmatprep.mubr.f32.mxu0 0.0
    %1277 = vmatmul.mubr.f32.gmra.mrb[0].mxu0 %v355
    %v1278 = vpop.f32.mrb[0].mxu0
    %v1279 = vadd.f32 %v894, %v1278
    %v1280 = vpop.f32.mrb[0].mxu0
    %1281 = vmatprep.mubr.f32.mxu0 0.0
    %1282 = vmatmul.mubr.f32.gmra.mrb[0].mxu0 %v357
    %v1283 = vpop.f32.mrb[0].mxu0
    %v1284 = vadd.f32 %v899, %v1283
    %v1285 = vpop.f32.mrb[0].mxu0
    %1286 = vmatprep.mubr.f32.mxu0 0.0
    %1287 = vmatmul.mubr.f32.gmra.mrb[0].mxu0 %v358
    %v1288 = vpop.f32.mrb[0].mxu0
    %v1289 = vadd.f32 %v904, %v1288
    %v1290 = vpop.f32.mrb[0].mxu0
    %1291 = vmatprep.mubr.f32.mxu0 0.0
    %1292 = vmatmul.mubr.f32.gmra.mrb[0].mxu0 %v360
    %v1293 = vpop.f32.mrb[0].mxu0
    %v1294 = vadd.f32 %v909, %v1293
    %v1295 = vpop.f32.mrb[0].mxu0
    %1296 = vmatprep.mubr.f32.mxu0 0.0
    %1297 = vmatmul.mubr.f32.gmra.mrb[0].mxu0 %v361
    %v1298 = vpop.f32.mrb[0].mxu0
    %v1299 = vadd.f32 %v914, %v1298
    %v1300 = vpop.f32.mrb[0].mxu0
    %1301 = vmatprep.mubr.f32.mxu0 0.0
    %1302 = vmatmul.mubr.f32.gmra.mrb[0].mxu0 %v363
    %v1303 = vpop.f32.mrb[0].mxu0
    %v1304 = vadd.f32 %v919, %v1303
    %v1305 = vpop.f32.mrb[0].mxu0
    %1306 = vmatprep.mubr.f32.mxu0 0.0
    %1307 = vmatmul.mubr.f32.gmra.mrb[0].mxu0 %v364
    %v1308 = vpop.f32.mrb[0].mxu0
    %v1309 = vadd.f32 %v924, %v1308
    %v1310 = vpop.f32.mrb[0].mxu0
    %1311 = vmatprep.mubr.f32.mxu0 0.0
    %1312 = vmatmul.mubr.f32.gmra.mrb[0].mxu0 %v366
    %v1313 = vpop.f32.mrb[0].mxu0
    %v1314 = vadd.f32 %v929, %v1313
    %v1315 = vpop.f32.mrb[0].mxu0
    %1316 = vmatprep.mubr.f32.mxu0 0.0
    %1317 = vmatmul.mubr.f32.gmra.mrb[0].mxu0 %v367
    %v1318 = vpop.f32.mrb[0].mxu0
    %v1319 = vadd.f32 %v934, %v1318
    %v1320 = vpop.f32.mrb[0].mxu0
    %1321 = vmatprep.mubr.f32.mxu0 0.0
    %1322 = vmatmul.mubr.f32.gmra.mrb[0].mxu0 %v369
    %v1323 = vpop.f32.mrb[0].mxu0
    %v1324 = vadd.f32 %v939, %v1323
    %v1325 = vpop.f32.mrb[0].mxu0
    %1326 = vmatprep.mubr.f32.mxu0 0.0
    %1327 = vmatmul.mubr.f32.gmra.mrb[0].mxu0 %v370
    %v1328 = vpop.f32.mrb[0].mxu0
    %v1329 = vadd.f32 %v944, %v1328
    %v1330 = vpop.f32.mrb[0].mxu0
    %1331 = vmatprep.mubr.f32.mxu0 0.0
    %1332 = vmatmul.mubr.f32.gmra.mrb[0].mxu0 %v372
    %v1333 = vpop.f32.mrb[0].mxu0
    %v1334 = vadd.f32 %v949, %v1333
    %v1335 = vpop.f32.mrb[0].mxu0
    %1336 = vmatprep.mubr.f32.mxu0 0.0
    %1337 = vmatmul.mubr.f32.gmra.mrb[0].mxu0 %v373
    %v1338 = vpop.f32.mrb[0].mxu0
    %v1339 = vadd.f32 %v954, %v1338
    %v1340 = vpop.f32.mrb[0].mxu0
    %1341 = vmatprep.mubr.f32.mxu0 0.0
    %1342 = vmatmul.mubr.f32.gmra.mrb[0].mxu0 %v375
    %v1343 = vpop.f32.mrb[0].mxu0
    %v1344 = vadd.f32 %v959, %v1343
    %v1345 = vpop.f32.mrb[0].mxu0
    %1346 = vmatprep.mubr.f32.mxu0 0.0
    %1347 = vmatmul.mubr.f32.gmra.mrb[0].mxu0 %v376
    %v1348 = vpop.f32.mrb[0].mxu0
    %v1349 = vadd.f32 %v964, %v1348
    %v1350 = vpop.f32.mrb[0].mxu0
    %1351 = vmatprep.mubr.f32.mxu0 0.0
    %1352 = vmatmul.mubr.f32.gmra.mrb[0].mxu0 %v378
    %v1353 = vpop.f32.mrb[0].mxu0
    %v1354 = vadd.f32 %v969, %v1353
    %v1355 = vpop.f32.mrb[0].mxu0
    %1356 = vmatprep.mubr.f32.mxu0 0.0
    %1357 = vmatmul.mubr.f32.gmra.mrb[0].mxu0 %v379
    %v1358 = vpop.f32.mrb[0].mxu0
    %v1359 = vadd.f32 %v974, %v1358
    %v1360 = vpop.f32.mrb[0].mxu0
    %1361 = vmatprep.mubr.f32.mxu0 0.0
    %1362 = vmatmul.mubr.f32.gmra.mrb[0].mxu0 %v381
    %v1363 = vpop.f32.mrb[0].mxu0
    %v1364 = vadd.f32 %v979, %v1363
    %v1365 = vpop.f32.mrb[0].mxu0
    %1366 = vmatprep.mubr.f32.mxu0 0.0
    %1367 = vmatmul.mubr.f32.gmra.mrb[0].mxu0 %v382
    %v1368 = vpop.f32.mrb[0].mxu0
    %v1369 = vadd.f32 %v984, %v1368
    %v1370 = vpop.f32.mrb[0].mxu0
    %1371 = vmatprep.mubr.f32.mxu0 0.0
    %1372 = vmatmul.mubr.f32.gmra.mrb[0].mxu0 %v384
    %v1373 = vpop.f32.mrb[0].mxu0
    %v1374 = vadd.f32 %v989, %v1373
    %v1375 = vpop.f32.mrb[0].mxu0
    %1376 = vmatprep.mubr.f32.mxu0 0.0
    %1377 = vmatmul.mubr.f32.gmra.mrb[0].mxu0 %v385
    %v1378 = vpop.f32.mrb[0].mxu0
    %v1379 = vadd.f32 %v994, %v1378
    %v1380 = vpop.f32.mrb[0].mxu0
    %1381 = vmatprep.mubr.f32.mxu0 0.0
    %1382 = vmatmul.mubr.f32.gmra.mrb[0].mxu0 %v387
    %v1383 = vpop.f32.mrb[0].mxu0
    %v1384 = vadd.f32 %v999, %v1383
    %v1385 = vpop.f32.mrb[0].mxu0
    %1386 = vmatprep.mubr.f32.mxu0 0.0
    %1387 = vmatmul.mubr.f32.gmra.mrb[0].mxu0 %v388
    %v1388 = vpop.f32.mrb[0].mxu0
    %v1389 = vadd.f32 %v1004, %v1388
    %v1390 = vpop.f32.mrb[0].mxu0
    %1391 = vmatprep.mubr.f32.mxu0 0.0
    %1392 = vmatmul.mubr.f32.gmra.mrb[0].mxu0 %v390
    %v1393 = vpop.f32.mrb[0].mxu0
    %v1394 = vadd.f32 %v1009, %v1393
    %v1395 = vpop.f32.mrb[0].mxu0
    %1396 = vmatprep.mubr.f32.mxu0 0.0
    %1397 = vmatmul.mubr.f32.gmra.mrb[0].mxu0 %v391
    %v1398 = vpop.f32.mrb[0].mxu0
    %v1399 = vadd.f32 %v1014, %v1398
    %v1400 = vpop.f32.mrb[0].mxu0
    %1401 = vmatprep.mubr.f32.mxu0 0.0
    %1402 = vmatmul.mubr.f32.gmra.mrb[0].mxu0 %v393
    %v1403 = vpop.f32.mrb[0].mxu0
    %v1404 = vadd.f32 %v1019, %v1403
    %v1405 = vpop.f32.mrb[0].mxu0
    %1406 = vmatprep.mubr.f32.mxu0 0.0
    %1407 = vmatmul.mubr.f32.gmra.mrb[0].mxu0 %v394
    %v1408 = vpop.f32.mrb[0].mxu0
    %v1409 = vadd.f32 %v1024, %v1408
    %v1410 = vpop.f32.mrb[0].mxu0
    %1411 = vmatprep.mubr.f32.mxu0 0.0
    %1412 = vmatmul.mubr.f32.gmra.mrb[0].mxu0 %v396
    %v1413 = vpop.f32.mrb[0].mxu0
    %v1414 = vadd.f32 %v1029, %v1413
    %v1415 = vpop.f32.mrb[0].mxu0
    %1416 = vmatprep.mubr.f32.mxu0 0.0
    %1417 = vmatmul.mubr.f32.gmra.mrb[0].mxu0 %v397
    %v1418 = vpop.f32.mrb[0].mxu0
    %v1419 = vadd.f32 %v1034, %v1418
    %v1420 = vpop.f32.mrb[0].mxu0
    %1421 = vmatprep.mubr.f32.mxu0 0.0
    %1422 = vmatmul.mubr.f32.gmra.mrb[0].mxu0 %v405
    %v1423 = vpop.f32.mrb[0].mxu0
    %v1424 = vadd.f32 %v1039, %v1423
    %v1425 = vpop.f32.mrb[0].mxu0
    %1426 = vmatprep.mubr.f32.mxu0 0.0
    %1427 = vmatmul.mubr.f32.gmra.mrb[0].mxu0 %v406
    %v1428 = vpop.f32.mrb[0].mxu0
    %v1429 = vadd.f32 %v1044, %v1428
    %v1430 = vpop.f32.mrb[0].mxu0
    %1431 = vmatprep.mubr.f32.mxu0 0.0
    %1432 = vmatmul.mubr.f32.gmra.mrb[0].mxu0 %v408
    %v1433 = vpop.f32.mrb[0].mxu0
    %v1434 = vadd.f32 %v1049, %v1433
    %v1435 = vpop.f32.mrb[0].mxu0
    %1436 = vmatprep.mubr.f32.mxu0 0.0
    %1437 = vmatmul.mubr.f32.gmra.mrb[0].mxu0 %v409
    %v1438 = vpop.f32.mrb[0].mxu0
    %v1439 = vadd.f32 %v1054, %v1438
    %v1440 = vpop.f32.mrb[0].mxu0
    %1441 = vmatprep.mubr.f32.mxu0 0.0
    %1442 = vmatmul.mubr.f32.gmra.mrb[0].mxu0 %v411
    %v1443 = vpop.f32.mrb[0].mxu0
    %v1444 = vadd.f32 %v1059, %v1443
    %v1445 = vpop.f32.mrb[0].mxu0
    %1446 = vmatprep.mubr.f32.mxu0 0.0
    %1447 = vmatmul.mubr.f32.gmra.mrb[0].mxu0 %v412
    %v1448 = vpop.f32.mrb[0].mxu0
    %v1449 = vadd.f32 %v1064, %v1448
    %v1450 = vpop.f32.mrb[0].mxu0
    %1451 = vmatprep.mubr.f32.mxu0 0.0
    %1452 = vmatmul.mubr.f32.gmra.mrb[0].mxu0 %v414
    %v1453 = vpop.f32.mrb[0].mxu0
    %v1454 = vadd.f32 %v1069, %v1453
    %v1455 = vpop.f32.mrb[0].mxu0
    %1456 = vmatprep.mubr.f32.mxu0 0.0
    %1457 = vmatmul.mubr.f32.gmra.mrb[0].mxu0 %v415
    %v1458 = vpop.f32.mrb[0].mxu0
    %v1459 = vadd.f32 %v1074, %v1458
    %v1460 = vpop.f32.mrb[0].mxu0
    %1461 = vmatprep.mubr.f32.mxu0 0.0
    %1462 = vmatmul.mubr.f32.gmra.mrb[0].mxu0 %v417
    %v1463 = vpop.f32.mrb[0].mxu0
    %v1464 = vadd.f32 %v1079, %v1463
    %v1465 = vpop.f32.mrb[0].mxu0
    %1466 = vmatprep.mubr.f32.mxu0 0.0
    %1467 = vmatmul.mubr.f32.gmra.mrb[0].mxu0 %v418
    %v1468 = vpop.f32.mrb[0].mxu0
    %v1469 = vadd.f32 %v1084, %v1468
    %v1470 = vpop.f32.mrb[0].mxu0
    %1471 = vmatprep.mubr.f32.mxu0 0.0
    %1472 = vmatmul.mubr.f32.gmra.mrb[0].mxu0 %v420
    %v1473 = vpop.f32.mrb[0].mxu0
    %v1474 = vadd.f32 %v1089, %v1473
    %v1475 = vpop.f32.mrb[0].mxu0
    %1476 = vmatprep.mubr.f32.mxu0 0.0
    %1477 = vmatmul.mubr.f32.gmra.mrb[0].mxu0 %v421
    %v1478 = vpop.f32.mrb[0].mxu0
    %v1479 = vadd.f32 %v1094, %v1478
    %v1480 = vpop.f32.mrb[0].mxu0
    %1481 = vmatprep.mubr.f32.mxu0 0.0
    %1482 = vmatmul.mubr.f32.gmra.mrb[0].mxu0 %v423
    %v1483 = vpop.f32.mrb[0].mxu0
    %v1484 = vadd.f32 %v1099, %v1483
    %v1485 = vpop.f32.mrb[0].mxu0
    %1486 = vmatprep.mubr.f32.mxu0 0.0
    %1487 = vmatmul.mubr.f32.gmra.mrb[0].mxu0 %v424
    %v1488 = vpop.f32.mrb[0].mxu0
    %v1489 = vadd.f32 %v1104, %v1488
    %v1490 = vpop.f32.mrb[0].mxu0
    %1491 = vmatprep.mubr.f32.mxu0 0.0
    %1492 = vmatmul.mubr.f32.gmra.mrb[0].mxu0 %v426
    %v1493 = vpop.f32.mrb[0].mxu0
    %v1494 = vadd.f32 %v1109, %v1493
    %v1495 = vpop.f32.mrb[0].mxu0
    %1496 = vmatprep.mubr.f32.mxu0 0.0
    %1497 = vmatmul.mubr.f32.gmra.mrb[0].mxu0 %v427
    %v1498 = vpop.f32.mrb[0].mxu0
    %v1499 = vadd.f32 %v1114, %v1498
    %v1500 = vpop.f32.mrb[0].mxu0
    %1501 = vmatprep.mubr.f32.mxu0 0.0
    %1502 = vmatmul.mubr.f32.gmra.mrb[0].mxu0 %v429
    %v1503 = vpop.f32.mrb[0].mxu0
    %v1504 = vadd.f32 %v1119, %v1503
    %v1505 = vpop.f32.mrb[0].mxu0
    %1506 = vmatprep.mubr.f32.mxu0 0.0
    %1507 = vmatmul.mubr.f32.gmra.mrb[0].mxu0 %v430
    %v1508 = vpop.f32.mrb[0].mxu0
    %v1509 = vadd.f32 %v1124, %v1508
    %v1510 = vpop.f32.mrb[0].mxu0
    %1511 = vmatprep.mubr.f32.mxu0 0.0
    %1512 = vmatmul.mubr.f32.gmra.mrb[0].mxu0 %v432
    %v1513 = vpop.f32.mrb[0].mxu0
    %v1514 = vadd.f32 %v1129, %v1513
    %v1515 = vpop.f32.mrb[0].mxu0
    %1516 = vmatprep.mubr.f32.mxu0 0.0
    %1517 = vmatmul.mubr.f32.gmra.mrb[0].mxu0 %v433
    %v1518 = vpop.f32.mrb[0].mxu0
    %v1519 = vadd.f32 %v1134, %v1518
    %v1520 = vpop.f32.mrb[0].mxu0
    %1521 = vmatprep.mubr.f32.mxu0 0.0
    %1522 = vmatmul.mubr.f32.gmra.mrb[0].mxu0 %v435
    %v1523 = vpop.f32.mrb[0].mxu0
    %v1524 = vadd.f32 %v1139, %v1523
    %v1525 = vpop.f32.mrb[0].mxu0
    %1526 = vmatprep.mubr.f32.mxu0 0.0
    %1527 = vmatmul.mubr.f32.gmra.mrb[0].mxu0 %v436
    %v1528 = vpop.f32.mrb[0].mxu0
    %v1529 = vadd.f32 %v1144, %v1528
    %v1530 = vpop.f32.mrb[0].mxu0
    %1531 = vmatprep.mubr.f32.mxu0 0.0
    %1532 = vmatmul.mubr.f32.gmra.mrb[0].mxu0 %v438
    %v1533 = vpop.f32.mrb[0].mxu0
    %v1534 = vadd.f32 %v1149, %v1533
    %v1535 = vpop.f32.mrb[0].mxu0
    %1536 = vmatprep.mubr.f32.mxu0 0.0
    %1537 = vmatmul.mubr.f32.gmra.mrb[0].mxu0 %v439
    %v1538 = vpop.f32.mrb[0].mxu0
    %v1539 = vadd.f32 %v1154, %v1538
    %v1540 = vpop.f32.mrb[0].mxu0
    %1541 = vmatprep.mubr.f32.mxu0 0.0
    %1542 = vmatmul.mubr.f32.gmra.mrb[0].mxu0 %v441
    %v1543 = vpop.f32.mrb[0].mxu0
    %v1544 = vadd.f32 %v1159, %v1543
    %v1545 = vpop.f32.mrb[0].mxu0
    %1546 = vmatprep.mubr.f32.mxu0 0.0
    %1547 = vmatmul.mubr.f32.gmra.mrb[0].mxu0 %v442
    %v1548 = vpop.f32.mrb[0].mxu0
    %v1549 = vadd.f32 %v1164, %v1548
    %v1550 = vpop.f32.mrb[0].mxu0
    %1551 = vmatprep.mubr.f32.mxu0 0.0
    %1552 = vmatmul.mubr.f32.gmra.mrb[0].mxu0 %v444
    %v1553 = vpop.f32.mrb[0].mxu0
    %v1554 = vadd.f32 %v1169, %v1553
    %v1555 = vpop.f32.mrb[0].mxu0
    %1556 = vmatprep.mubr.f32.mxu0 0.0
    %1557 = vmatmul.mubr.f32.gmra.mrb[0].mxu0 %v445
    %v1558 = vpop.f32.mrb[0].mxu0
    %v1559 = vadd.f32 %v1174, %v1558
    %v1560 = vpop.f32.mrb[0].mxu0
    %1561 = vmatprep.mubr.f32.mxu0 0.0
    %1562 = vmatmul.mubr.f32.gmra.mrb[0].mxu0 %v447
    %v1563 = vpop.f32.mrb[0].mxu0
    %v1564 = vadd.f32 %v1179, %v1563
    %v1565 = vpop.f32.mrb[0].mxu0
    %1566 = vmatprep.mubr.f32.mxu0 0.0
    %1567 = vmatmul.mubr.f32.gmra.mrb[0].mxu0 %v448
    %v1568 = vpop.f32.mrb[0].mxu0
    %v1569 = vadd.f32 %v1184, %v1568
    %v1570 = vpop.f32.mrb[0].mxu0
    %1571 = vmatprep.mubr.f32.mxu0 0.0
    %1572 = vmatmul.mubr.f32.gmra.mrb[0].mxu0 %v450
    %v1573 = vpop.f32.mrb[0].mxu0
    %v1574 = vadd.f32 %v1189, %v1573
    %v1575 = vpop.f32.mrb[0].mxu0
    %1576 = vmatprep.mubr.f32.mxu0 0.0
    %1577 = vmatmul.mubr.f32.gmra.mrb[0].mxu0 %v451
    %v1578 = vpop.f32.mrb[0].mxu0
    %v1579 = vadd.f32 %v1194, %v1578
    %v1580 = vpop.f32.mrb[0].mxu0
    %1581 = vdwg.mxu0
    %vm1582 = vcmask 1045504
    %v1583 = vrot.slane %v351, 2
    %v1584 = vrot.slane %v352, 2
    %v1585 = vsel %vm1582, %v1583, %v1584
    %v1586 = vrot.slane %v353, 2
    %v1587 = vsel %vm1582, %v1584, %v1586
    %v1588 = vrot.slane %v354, 2
    %v1589 = vrot.slane %v355, 2
    %v1590 = vsel %vm1582, %v1588, %v1589
    %v1591 = vrot.slane %v356, 2
    %v1592 = vsel %vm1582, %v1589, %v1591
    %v1593 = vrot.slane %v357, 2
    %v1594 = vrot.slane %v358, 2
    %v1595 = vsel %vm1582, %v1593, %v1594
    %v1596 = vrot.slane %v359, 2
    %v1597 = vsel %vm1582, %v1594, %v1596
    %v1598 = vrot.slane %v360, 2
    %v1599 = vrot.slane %v361, 2
    %v1600 = vsel %vm1582, %v1598, %v1599
    %v1601 = vrot.slane %v362, 2
    %v1602 = vsel %vm1582, %v1599, %v1601
    %v1603 = vrot.slane %v363, 2
    %v1604 = vrot.slane %v364, 2
    %v1605 = vsel %vm1582, %v1603, %v1604
    %v1606 = vrot.slane %v365, 2
    %v1607 = vsel %vm1582, %v1604, %v1606
    %v1608 = vrot.slane %v366, 2
    %v1609 = vrot.slane %v367, 2
    %v1610 = vsel %vm1582, %v1608, %v1609
    %v1611 = vrot.slane %v368, 2
    %v1612 = vsel %vm1582, %v1609, %v1611
    %v1613 = vrot.slane %v369, 2
    %v1614 = vrot.slane %v370, 2
    %v1615 = vsel %vm1582, %v1613, %v1614
    %v1616 = vrot.slane %v371, 2
    %v1617 = vsel %vm1582, %v1614, %v1616
    %v1618 = vrot.slane %v372, 2
    %v1619 = vrot.slane %v373, 2
    %v1620 = vsel %vm1582, %v1618, %v1619
    %v1621 = vrot.slane %v374, 2
    %v1622 = vsel %vm1582, %v1619, %v1621
    %v1623 = vrot.slane %v375, 2
    %v1624 = vrot.slane %v376, 2
    %v1625 = vsel %vm1582, %v1623, %v1624
    %v1626 = vrot.slane %v377, 2
    %v1627 = vsel %vm1582, %v1624, %v1626
    %v1628 = vrot.slane %v378, 2
    %v1629 = vrot.slane %v379, 2
    %v1630 = vsel %vm1582, %v1628, %v1629
    %v1631 = vrot.slane %v380, 2
    %v1632 = vsel %vm1582, %v1629, %v1631
    %v1633 = vrot.slane %v381, 2
    %v1634 = vrot.slane %v382, 2
    %v1635 = vsel %vm1582, %v1633, %v1634
    %v1636 = vrot.slane %v383, 2
    %v1637 = vsel %vm1582, %v1634, %v1636
    %v1638 = vrot.slane %v384, 2
    %v1639 = vrot.slane %v385, 2
    %v1640 = vsel %vm1582, %v1638, %v1639
    %v1641 = vrot.slane %v386, 2
    %v1642 = vsel %vm1582, %v1639, %v1641
    %v1643 = vrot.slane %v387, 2
    %v1644 = vrot.slane %v388, 2
    %v1645 = vsel %vm1582, %v1643, %v1644
    %v1646 = vrot.slane %v389, 2
    %v1647 = vsel %vm1582, %v1644, %v1646
    %v1648 = vrot.slane %v390, 2
    %v1649 = vrot.slane %v391, 2
    %v1650 = vsel %vm1582, %v1648, %v1649
    %v1651 = vrot.slane %v392, 2
    %v1652 = vsel %vm1582, %v1649, %v1651
    %v1653 = vrot.slane %v393, 2
    %v1654 = vrot.slane %v394, 2
    %v1655 = vsel %vm1582, %v1653, %v1654
    %v1656 = vrot.slane %v395, 2
    %v1657 = vsel %vm1582, %v1654, %v1656
    %v1658 = vrot.slane %v396, 2
    %v1659 = vrot.slane %v397, 2
    %v1660 = vsel %vm1582, %v1658, %v1659
    %v1661 = vrot.slane %v398, 2
    %v1662 = vsel %vm1582, %v1659, %v1661
    %v1663 = vrot.slane %v405, 2
    %v1664 = vrot.slane %v406, 2
    %v1665 = vsel %vm1582, %v1663, %v1664
    %v1666 = vrot.slane %v407, 2
    %v1667 = vsel %vm1582, %v1664, %v1666
    %v1668 = vrot.slane %v408, 2
    %v1669 = vrot.slane %v409, 2
    %v1670 = vsel %vm1582, %v1668, %v1669
    %v1671 = vrot.slane %v410, 2
    %v1672 = vsel %vm1582, %v1669, %v1671
    %v1673 = vrot.slane %v411, 2
    %v1674 = vrot.slane %v412, 2
    %v1675 = vsel %vm1582, %v1673, %v1674
    %v1676 = vrot.slane %v413, 2
    %v1677 = vsel %vm1582, %v1674, %v1676
    %v1678 = vrot.slane %v414, 2
    %v1679 = vrot.slane %v415, 2
    %v1680 = vsel %vm1582, %v1678, %v1679
    %v1681 = vrot.slane %v416, 2
    %v1682 = vsel %vm1582, %v1679, %v1681
    %v1683 = vrot.slane %v417, 2
    %v1684 = vrot.slane %v418, 2
    %v1685 = vsel %vm1582, %v1683, %v1684
    %v1686 = vrot.slane %v419, 2
    %v1687 = vsel %vm1582, %v1684, %v1686
    %v1688 = vrot.slane %v420, 2
    %v1689 = vrot.slane %v421, 2
    %v1690 = vsel %vm1582, %v1688, %v1689
    %v1691 = vrot.slane %v422, 2
    %v1692 = vsel %vm1582, %v1689, %v1691
    %v1693 = vrot.slane %v423, 2
    %v1694 = vrot.slane %v424, 2
    %v1695 = vsel %vm1582, %v1693, %v1694
    %v1696 = vrot.slane %v425, 2
    %v1697 = vsel %vm1582, %v1694, %v1696
    %v1698 = vrot.slane %v426, 2
    %v1699 = vrot.slane %v427, 2
    %v1700 = vsel %vm1582, %v1698, %v1699
    %v1701 = vrot.slane %v428, 2
    %v1702 = vsel %vm1582, %v1699, %v1701
    %v1703 = vrot.slane %v429, 2
    %v1704 = vrot.slane %v430, 2
    %v1705 = vsel %vm1582, %v1703, %v1704
    %v1706 = vrot.slane %v431, 2
    %v1707 = vsel %vm1582, %v1704, %v1706
    %v1708 = vrot.slane %v432, 2
    %v1709 = vrot.slane %v433, 2
    %v1710 = vsel %vm1582, %v1708, %v1709
    %v1711 = vrot.slane %v434, 2
    %v1712 = vsel %vm1582, %v1709, %v1711
    %v1713 = vrot.slane %v435, 2
    %v1714 = vrot.slane %v436, 2
    %v1715 = vsel %vm1582, %v1713, %v1714
    %v1716 = vrot.slane %v437, 2
    %v1717 = vsel %vm1582, %v1714, %v1716
    %v1718 = vrot.slane %v438, 2
    %v1719 = vrot.slane %v439, 2
    %v1720 = vsel %vm1582, %v1718, %v1719
    %v1721 = vrot.slane %v440, 2
    %v1722 = vsel %vm1582, %v1719, %v1721
    %v1723 = vrot.slane %v441, 2
    %v1724 = vrot.slane %v442, 2
    %v1725 = vsel %vm1582, %v1723, %v1724
    %v1726 = vrot.slane %v443, 2
    %v1727 = vsel %vm1582, %v1724, %v1726
    %v1728 = vrot.slane %v444, 2
    %v1729 = vrot.slane %v445, 2
    %v1730 = vsel %vm1582, %v1728, %v1729
    %v1731 = vrot.slane %v446, 2
    %v1732 = vsel %vm1582, %v1729, %v1731
    %v1733 = vrot.slane %v447, 2
    %v1734 = vrot.slane %v448, 2
    %v1735 = vsel %vm1582, %v1733, %v1734
    %v1736 = vrot.slane %v449, 2
    %v1737 = vsel %vm1582, %v1734, %v1736
    %v1738 = vrot.slane %v450, 2
    %v1739 = vrot.slane %v451, 2
    %v1740 = vsel %vm1582, %v1738, %v1739
    %v1741 = vrot.slane %v452, 2
    %v1742 = vsel %vm1582, %v1739, %v1741
    %v1807 = vld [vmem:[#allocation7 + $0x100] sm:$0xff]
    %v1808 = vld [vmem:[#allocation7 + $0x108] sm:$0xff]
    %v1809 = vld [vmem:[#allocation7 + $0x110] sm:$0xff]
    %v1810 = vld [vmem:[#allocation7 + $0x118] sm:$0xff]
    %v1811 = vld [vmem:[#allocation7 + $0x120] sm:$0xff]
    %v1812 = vld [vmem:[#allocation7 + $0x128] sm:$0xff]
    %v1813 = vld [vmem:[#allocation7 + $0x130] sm:$0xff]
    %v1814 = vld [vmem:[#allocation7 + $0x138] sm:$0xff]
    %v1815 = vld [vmem:[#allocation7 + $0x140] sm:$0xff]
    %v1816 = vld [vmem:[#allocation7 + $0x148] sm:$0xff]
    %v1817 = vld [vmem:[#allocation7 + $0x150] sm:$0xff]
    %v1818 = vld [vmem:[#allocation7 + $0x158] sm:$0xff]
    %v1819 = vld [vmem:[#allocation7 + $0x160] sm:$0xff]
    %v1820 = vld [vmem:[#allocation7 + $0x168] sm:$0xff]
    %v1821 = vld [vmem:[#allocation7 + $0x170] sm:$0xff]
    %v1822 = vld [vmem:[#allocation7 + $0x178] sm:$0xff]
    %1823 = vmatprep.subr.mxu0 0.0
    %1824 = vmatpush1.msra.mxu0 %v1807
    %1825 = vmatprep.subr.mxu0 0.0
    %1826 = vmatpush1.msra.mxu0 %v1808
    %1827 = vmatprep.subr.mxu0 0.0
    %1828 = vmatpush1.msra.mxu0 %v1809
    %1829 = vmatprep.subr.mxu0 0.0
    %1830 = vmatpush1.msra.mxu0 %v1810
    %1831 = vmatprep.subr.mxu0 0.0
    %1832 = vmatpush1.msra.mxu0 %v1811
    %1833 = vmatprep.subr.mxu0 0.0
    %1834 = vmatpush1.msra.mxu0 %v1812
    %1835 = vmatprep.subr.mxu0 0.0
    %1836 = vmatpush1.msra.mxu0 %v1813
    %1837 = vmatprep.subr.mxu0 0.0
    %1838 = vmatpush1.msra.mxu0 %v1814
    %1839 = vmatprep.subr.mxu0 0.0
    %1840 = vmatpush1.msra.mxu0 %v1815
    %1841 = vmatprep.subr.mxu0 0.0
    %1842 = vmatpush1.msra.mxu0 %v1816
    %1843 = vmatprep.subr.mxu0 0.0
    %1844 = vmatpush1.msra.mxu0 %v1817
    %1845 = vmatprep.subr.mxu0 0.0
    %1846 = vmatpush1.msra.mxu0 %v1818
    %1847 = vmatprep.subr.mxu0 0.0
    %1848 = vmatpush1.msra.mxu0 %v1819
    %1849 = vmatprep.subr.mxu0 0.0
    %1850 = vmatpush1.msra.mxu0 %v1820
    %1851 = vmatprep.subr.mxu0 0.0
    %1852 = vmatpush1.msra.mxu0 %v1821
    %1853 = vmatprep.subr.mxu0 0.0
    %1854 = vmatpush1.msra.mxu0 %v1822
    %1855 = vmatprep.subr.mxu0 0.0
    %1856 = vmatpush1.msra.mxu0 0.0
    %1857 = vmatprep.subr.mxu0 0.0
    %1858 = vmatpush1.msra.mxu0 0.0
    %1859 = vmatprep.subr.mxu0 0.0
    %1860 = vmatpush1.msra.mxu0 0.0
    %1861 = vmatprep.subr.mxu0 0.0
    %1862 = vmatpush1.msra.mxu0 0.0
    %1863 = vmatprep.subr.mxu0 0.0
    %1864 = vmatpush1.msra.mxu0 0.0
    %1865 = vmatprep.subr.mxu0 0.0
    %1866 = vmatpush1.msra.mxu0 0.0
    %1867 = vmatprep.subr.mxu0 0.0
    %1868 = vmatpush1.msra.mxu0 0.0
    %1869 = vmatprep.subr.mxu0 0.0
    %1870 = vmatpush1.msra.mxu0 0.0
    %1871 = vmatprep.subr.mxu0 0.0
    %1872 = vmatpush1.msra.mxu0 0.0
    %1873 = vmatprep.subr.mxu0 0.0
    %1874 = vmatpush1.msra.mxu0 0.0
    %1875 = vmatprep.subr.mxu0 0.0
    %1876 = vmatpush1.msra.mxu0 0.0
    %1877 = vmatprep.subr.mxu0 0.0
    %1878 = vmatpush1.msra.mxu0 0.0
    %1879 = vmatprep.subr.mxu0 0.0
    %1880 = vmatpush1.msra.mxu0 0.0
    %1881 = vmatprep.subr.mxu0 0.0
    %1882 = vmatpush1.msra.mxu0 0.0
    %1883 = vmatprep.subr.mxu0 0.0
    %1884 = vmatpush1.msra.mxu0 0.0
    %1885 = vmatprep.subr.mxu0 0.0
    %1886 = vmatpush1.msra.mxu0 0.0
    %1887 = vmatprep.mubr.f32.mxu0 0.0
    %1888 = vmatmul.mubr.f32.gmra.mrb[0].mxu0 %v1585
    %v1889 = vpop.f32.mrb[0].mxu0
    %v1890 = vadd.f32 0.0, %v1889
    %v1891 = vpop.f32.mrb[0].mxu0
    %1892 = vmatprep.mubr.f32.mxu0 0.0
    %1893 = vmatmul.mubr.f32.gmra.mrb[0].mxu0 %v1587
    %v1894 = vpop.f32.mrb[0].mxu0
    %v1895 = vadd.f32 0.0, %v1894
    %v1896 = vpop.f32.mrb[0].mxu0
    %1897 = vmatprep.mubr.f32.mxu0 0.0
    %1898 = vmatmul.mubr.f32.gmra.mrb[0].mxu0 %v1590
    %v1899 = vpop.f32.mrb[0].mxu0
    %v1900 = vadd.f32 0.0, %v1899
    %v1901 = vpop.f32.mrb[0].mxu0
    %1902 = vmatprep.mubr.f32.mxu0 0.0
    %1903 = vmatmul.mubr.f32.gmra.mrb[0].mxu0 %v1592
    %v1904 = vpop.f32.mrb[0].mxu0
    %v1905 = vadd.f32 0.0, %v1904
    %v1906 = vpop.f32.mrb[0].mxu0
    %1907 = vmatprep.mubr.f32.mxu0 0.0
    %1908 = vmatmul.mubr.f32.gmra.mrb[0].mxu0 %v1595
    %v1909 = vpop.f32.mrb[0].mxu0
    %v1910 = vadd.f32 0.0, %v1909
    %v1911 = vpop.f32.mrb[0].mxu0
    %1912 = vmatprep.mubr.f32.mxu0 0.0
    %1913 = vmatmul.mubr.f32.gmra.mrb[0].mxu0 %v1597
    %v1914 = vpop.f32.mrb[0].mxu0
    %v1915 = vadd.f32 0.0, %v1914
    %v1916 = vpop.f32.mrb[0].mxu0
    %1917 = vmatprep.mubr.f32.mxu0 0.0
    %1918 = vmatmul.mubr.f32.gmra.mrb[0].mxu0 %v1600
    %v1919 = vpop.f32.mrb[0].mxu0
    %v1920 = vadd.f32 0.0, %v1919
    %v1921 = vpop.f32.mrb[0].mxu0
    %1922 = vmatprep.mubr.f32.mxu0 0.0
    %1923 = vmatmul.mubr.f32.gmra.mrb[0].mxu0 %v1602
    %v1924 = vpop.f32.mrb[0].mxu0
    %v1925 = vadd.f32 0.0, %v1924
    %v1926 = vpop.f32.mrb[0].mxu0
    %1927 = vmatprep.mubr.f32.mxu0 0.0
    %1928 = vmatmul.mubr.f32.gmra.mrb[0].mxu0 %v1605
    %v1929 = vpop.f32.mrb[0].mxu0
    %v1930 = vadd.f32 0.0, %v1929
    %v1931 = vpop.f32.mrb[0].mxu0
    %1932 = vmatprep.mubr.f32.mxu0 0.0
    %1933 = vmatmul.mubr.f32.gmra.mrb[0].mxu0 %v1607
    %v1934 = vpop.f32.mrb[0].mxu0
    %v1935 = vadd.f32 0.0, %v1934
    %v1936 = vpop.f32.mrb[0].mxu0
    %1937 = vmatprep.mubr.f32.mxu0 0.0
    %1938 = vmatmul.mubr.f32.gmra.mrb[0].mxu0 %v1610
    %v1939 = vpop.f32.mrb[0].mxu0
    %v1940 = vadd.f32 0.0, %v1939
    %v1941 = vpop.f32.mrb[0].mxu0
    %1942 = vmatprep.mubr.f32.mxu0 0.0
    %1943 = vmatmul.mubr.f32.gmra.mrb[0].mxu0 %v1612
    %v1944 = vpop.f32.mrb[0].mxu0
    %v1945 = vadd.f32 0.0, %v1944
    %v1946 = vpop.f32.mrb[0].mxu0
    %1947 = vmatprep.mubr.f32.mxu0 0.0
    %1948 = vmatmul.mubr.f32.gmra.mrb[0].mxu0 %v1615
    %v1949 = vpop.f32.mrb[0].mxu0
    %v1950 = vadd.f32 0.0, %v1949
    %v1951 = vpop.f32.mrb[0].mxu0
    %1952 = vmatprep.mubr.f32.mxu0 0.0
    %1953 = vmatmul.mubr.f32.gmra.mrb[0].mxu0 %v1617
    %v1954 = vpop.f32.mrb[0].mxu0
    %v1955 = vadd.f32 0.0, %v1954
    %v1956 = vpop.f32.mrb[0].mxu0
    %1957 = vmatprep.mubr.f32.mxu0 0.0
    %1958 = vmatmul.mubr.f32.gmra.mrb[0].mxu0 %v1620
    %v1959 = vpop.f32.mrb[0].mxu0
    %v1960 = vadd.f32 0.0, %v1959
    %v1961 = vpop.f32.mrb[0].mxu0
    %1962 = vmatprep.mubr.f32.mxu0 0.0
    %1963 = vmatmul.mubr.f32.gmra.mrb[0].mxu0 %v1622
    %v1964 = vpop.f32.mrb[0].mxu0
    %v1965 = vadd.f32 0.0, %v1964
    %v1966 = vpop.f32.mrb[0].mxu0
    %1967 = vmatprep.mubr.f32.mxu0 0.0
    %1968 = vmatmul.mubr.f32.gmra.mrb[0].mxu0 %v1625
    %v1969 = vpop.f32.mrb[0].mxu0
    %v1970 = vadd.f32 0.0, %v1969
    %v1971 = vpop.f32.mrb[0].mxu0
    %1972 = vmatprep.mubr.f32.mxu0 0.0
    %1973 = vmatmul.mubr.f32.gmra.mrb[0].mxu0 %v1627
    %v1974 = vpop.f32.mrb[0].mxu0
    %v1975 = vadd.f32 0.0, %v1974
    %v1976 = vpop.f32.mrb[0].mxu0
    %1977 = vmatprep.mubr.f32.mxu0 0.0
    %1978 = vmatmul.mubr.f32.gmra.mrb[0].mxu0 %v1630
    %v1979 = vpop.f32.mrb[0].mxu0
    %v1980 = vadd.f32 0.0, %v1979
    %v1981 = vpop.f32.mrb[0].mxu0
    %1982 = vmatprep.mubr.f32.mxu0 0.0
    %1983 = vmatmul.mubr.f32.gmra.mrb[0].mxu0 %v1632
    %v1984 = vpop.f32.mrb[0].mxu0
    %v1985 = vadd.f32 0.0, %v1984
    %v1986 = vpop.f32.mrb[0].mxu0
    %1987 = vmatprep.mubr.f32.mxu0 0.0
    %1988 = vmatmul.mubr.f32.gmra.mrb[0].mxu0 %v1635
    %v1989 = vpop.f32.mrb[0].mxu0
    %v1990 = vadd.f32 0.0, %v1989
    %v1991 = vpop.f32.mrb[0].mxu0
    %1992 = vmatprep.mubr.f32.mxu0 0.0
    %1993 = vmatmul.mubr.f32.gmra.mrb[0].mxu0 %v1637
    %v1994 = vpop.f32.mrb[0].mxu0
    %v1995 = vadd.f32 0.0, %v1994
    %v1996 = vpop.f32.mrb[0].mxu0
    %1997 = vmatprep.mubr.f32.mxu0 0.0
    %1998 = vmatmul.mubr.f32.gmra.mrb[0].mxu0 %v1640
    %v1999 = vpop.f32.mrb[0].mxu0
    %v2000 = vadd.f32 0.0, %v1999
    %v2001 = vpop.f32.mrb[0].mxu0
    %2002 = vmatprep.mubr.f32.mxu0 0.0
    %2003 = vmatmul.mubr.f32.gmra.mrb[0].mxu0 %v1642
    %v2004 = vpop.f32.mrb[0].mxu0
    %v2005 = vadd.f32 0.0, %v2004
    %v2006 = vpop.f32.mrb[0].mxu0
    %2007 = vmatprep.mubr.f32.mxu0 0.0
    %2008 = vmatmul.mubr.f32.gmra.mrb[0].mxu0 %v1645
    %v2009 = vpop.f32.mrb[0].mxu0
    %v2010 = vadd.f32 0.0, %v2009
    %v2011 = vpop.f32.mrb[0].mxu0
    %2012 = vmatprep.mubr.f32.mxu0 0.0
    %2013 = vmatmul.mubr.f32.gmra.mrb[0].mxu0 %v1647
    %v2014 = vpop.f32.mrb[0].mxu0
    %v2015 = vadd.f32 0.0, %v2014
    %v2016 = vpop.f32.mrb[0].mxu0
    %2017 = vmatprep.mubr.f32.mxu0 0.0
    %2018 = vmatmul.mubr.f32.gmra.mrb[0].mxu0 %v1650
    %v2019 = vpop.f32.mrb[0].mxu0
    %v2020 = vadd.f32 0.0, %v2019
    %v2021 = vpop.f32.mrb[0].mxu0
    %2022 = vmatprep.mubr.f32.mxu0 0.0
    %2023 = vmatmul.mubr.f32.gmra.mrb[0].mxu0 %v1652
    %v2024 = vpop.f32.mrb[0].mxu0
    %v2025 = vadd.f32 0.0, %v2024
    %v2026 = vpop.f32.mrb[0].mxu0
    %2027 = vmatprep.mubr.f32.mxu0 0.0
    %2028 = vmatmul.mubr.f32.gmra.mrb[0].mxu0 %v1655
    %v2029 = vpop.f32.mrb[0].mxu0
    %v2030 = vadd.f32 0.0, %v2029
    %v2031 = vpop.f32.mrb[0].mxu0
    %2032 = vmatprep.mubr.f32.mxu0 0.0
    %2033 = vmatmul.mubr.f32.gmra.mrb[0].mxu0 %v1657
    %v2034 = vpop.f32.mrb[0].mxu0
    %v2035 = vadd.f32 0.0, %v2034
    %v2036 = vpop.f32.mrb[0].mxu0
    %2037 = vmatprep.mubr.f32.mxu0 0.0
    %2038 = vmatmul.mubr.f32.gmra.mrb[0].mxu0 %v1660
    %v2039 = vpop.f32.mrb[0].mxu0
    %v2040 = vadd.f32 0.0, %v2039
    %v2041 = vpop.f32.mrb[0].mxu0
    %2042 = vmatprep.mubr.f32.mxu0 0.0
    %2043 = vmatmul.mubr.f32.gmra.mrb[0].mxu0 %v1662
    %v2044 = vpop.f32.mrb[0].mxu0
    %v2045 = vadd.f32 0.0, %v2044
    %v2046 = vpop.f32.mrb[0].mxu0
    %2047 = vmatprep.mubr.f32.mxu0 0.0
    %2048 = vmatmul.mubr.f32.gmra.mrb[0].mxu0 %v1665
    %v2049 = vpop.f32.mrb[0].mxu0
    %v2050 = vadd.f32 0.0, %v2049
    %v2051 = vpop.f32.mrb[0].mxu0
    %2052 = vmatprep.mubr.f32.mxu0 0.0
    %2053 = vmatmul.mubr.f32.gmra.mrb[0].mxu0 %v1667
    %v2054 = vpop.f32.mrb[0].mxu0
    %v2055 = vadd.f32 0.0, %v2054
    %v2056 = vpop.f32.mrb[0].mxu0
    %2057 = vmatprep.mubr.f32.mxu0 0.0
    %2058 = vmatmul.mubr.f32.gmra.mrb[0].mxu0 %v1670
    %v2059 = vpop.f32.mrb[0].mxu0
    %v2060 = vadd.f32 0.0, %v2059
    %v2061 = vpop.f32.mrb[0].mxu0
    %2062 = vmatprep.mubr.f32.mxu0 0.0
    %2063 = vmatmul.mubr.f32.gmra.mrb[0].mxu0 %v1672
    %v2064 = vpop.f32.mrb[0].mxu0
    %v2065 = vadd.f32 0.0, %v2064
    %v2066 = vpop.f32.mrb[0].mxu0
    %2067 = vmatprep.mubr.f32.mxu0 0.0
    %2068 = vmatmul.mubr.f32.gmra.mrb[0].mxu0 %v1675
    %v2069 = vpop.f32.mrb[0].mxu0
    %v2070 = vadd.f32 0.0, %v2069
    %v2071 = vpop.f32.mrb[0].mxu0
    %2072 = vmatprep.mubr.f32.mxu0 0.0
    %2073 = vmatmul.mubr.f32.gmra.mrb[0].mxu0 %v1677
    %v2074 = vpop.f32.mrb[0].mxu0
    %v2075 = vadd.f32 0.0, %v2074
    %v2076 = vpop.f32.mrb[0].mxu0
    %2077 = vmatprep.mubr.f32.mxu0 0.0
    %2078 = vmatmul.mubr.f32.gmra.mrb[0].mxu0 %v1680
    %v2079 = vpop.f32.mrb[0].mxu0
    %v2080 = vadd.f32 0.0, %v2079
    %v2081 = vpop.f32.mrb[0].mxu0
    %2082 = vmatprep.mubr.f32.mxu0 0.0
    %2083 = vmatmul.mubr.f32.gmra.mrb[0].mxu0 %v1682
    %v2084 = vpop.f32.mrb[0].mxu0
    %v2085 = vadd.f32 0.0, %v2084
    %v2086 = vpop.f32.mrb[0].mxu0
    %2087 = vmatprep.mubr.f32.mxu0 0.0
    %2088 = vmatmul.mubr.f32.gmra.mrb[0].mxu0 %v1685
    %v2089 = vpop.f32.mrb[0].mxu0
    %v2090 = vadd.f32 0.0, %v2089
    %v2091 = vpop.f32.mrb[0].mxu0
    %2092 = vmatprep.mubr.f32.mxu0 0.0
    %2093 = vmatmul.mubr.f32.gmra.mrb[0].mxu0 %v1687
    %v2094 = vpop.f32.mrb[0].mxu0
    %v2095 = vadd.f32 0.0, %v2094
    %v2096 = vpop.f32.mrb[0].mxu0
    %2097 = vmatprep.mubr.f32.mxu0 0.0
    %2098 = vmatmul.mubr.f32.gmra.mrb[0].mxu0 %v1690
    %v2099 = vpop.f32.mrb[0].mxu0
    %v2100 = vadd.f32 0.0, %v2099
    %v2101 = vpop.f32.mrb[0].mxu0
    %2102 = vmatprep.mubr.f32.mxu0 0.0
    %2103 = vmatmul.mubr.f32.gmra.mrb[0].mxu0 %v1692
    %v2104 = vpop.f32.mrb[0].mxu0
    %v2105 = vadd.f32 0.0, %v2104
    %v2106 = vpop.f32.mrb[0].mxu0
    %2107 = vmatprep.mubr.f32.mxu0 0.0
    %2108 = vmatmul.mubr.f32.gmra.mrb[0].mxu0 %v1695
    %v2109 = vpop.f32.mrb[0].mxu0
    %v2110 = vadd.f32 0.0, %v2109
    %v2111 = vpop.f32.mrb[0].mxu0
    %2112 = vmatprep.mubr.f32.mxu0 0.0
    %2113 = vmatmul.mubr.f32.gmra.mrb[0].mxu0 %v1697
    %v2114 = vpop.f32.mrb[0].mxu0
    %v2115 = vadd.f32 0.0, %v2114
    %v2116 = vpop.f32.mrb[0].mxu0
    %2117 = vmatprep.mubr.f32.mxu0 0.0
    %2118 = vmatmul.mubr.f32.gmra.mrb[0].mxu0 %v1700
    %v2119 = vpop.f32.mrb[0].mxu0
    %v2120 = vadd.f32 0.0, %v2119
    %v2121 = vpop.f32.mrb[0].mxu0
    %2122 = vmatprep.mubr.f32.mxu0 0.0
    %2123 = vmatmul.mubr.f32.gmra.mrb[0].mxu0 %v1702
    %v2124 = vpop.f32.mrb[0].mxu0
    %v2125 = vadd.f32 0.0, %v2124
    %v2126 = vpop.f32.mrb[0].mxu0
    %2127 = vmatprep.mubr.f32.mxu0 0.0
    %2128 = vmatmul.mubr.f32.gmra.mrb[0].mxu0 %v1705
    %v2129 = vpop.f32.mrb[0].mxu0
    %v2130 = vadd.f32 0.0, %v2129
    %v2131 = vpop.f32.mrb[0].mxu0
    %2132 = vmatprep.mubr.f32.mxu0 0.0
    %2133 = vmatmul.mubr.f32.gmra.mrb[0].mxu0 %v1707
    %v2134 = vpop.f32.mrb[0].mxu0
    %v2135 = vadd.f32 0.0, %v2134
    %v2136 = vpop.f32.mrb[0].mxu0
    %2137 = vmatprep.mubr.f32.mxu0 0.0
    %2138 = vmatmul.mubr.f32.gmra.mrb[0].mxu0 %v1710
    %v2139 = vpop.f32.mrb[0].mxu0
    %v2140 = vadd.f32 0.0, %v2139
    %v2141 = vpop.f32.mrb[0].mxu0
    %2142 = vmatprep.mubr.f32.mxu0 0.0
    %2143 = vmatmul.mubr.f32.gmra.mrb[0].mxu0 %v1712
    %v2144 = vpop.f32.mrb[0].mxu0
    %v2145 = vadd.f32 0.0, %v2144
    %v2146 = vpop.f32.mrb[0].mxu0
    %2147 = vmatprep.mubr.f32.mxu0 0.0
    %2148 = vmatmul.mubr.f32.gmra.mrb[0].mxu0 %v1715
    %v2149 = vpop.f32.mrb[0].mxu0
    %v2150 = vadd.f32 0.0, %v2149
    %v2151 = vpop.f32.mrb[0].mxu0
    %2152 = vmatprep.mubr.f32.mxu0 0.0
    %2153 = vmatmul.mubr.f32.gmra.mrb[0].mxu0 %v1717
    %v2154 = vpop.f32.mrb[0].mxu0
    %v2155 = vadd.f32 0.0, %v2154
    %v2156 = vpop.f32.mrb[0].mxu0
    %2157 = vmatprep.mubr.f32.mxu0 0.0
    %2158 = vmatmul.mubr.f32.gmra.mrb[0].mxu0 %v1720
    %v2159 = vpop.f32.mrb[0].mxu0
    %v2160 = vadd.f32 0.0, %v2159
    %v2161 = vpop.f32.mrb[0].mxu0
    %2162 = vmatprep.mubr.f32.mxu0 0.0
    %2163 = vmatmul.mubr.f32.gmra.mrb[0].mxu0 %v1722
    %v2164 = vpop.f32.mrb[0].mxu0
    %v2165 = vadd.f32 0.0, %v2164
    %v2166 = vpop.f32.mrb[0].mxu0
    %2167 = vmatprep.mubr.f32.mxu0 0.0
    %2168 = vmatmul.mubr.f32.gmra.mrb[0].mxu0 %v1725
    %v2169 = vpop.f32.mrb[0].mxu0
    %v2170 = vadd.f32 0.0, %v2169
    %v2171 = vpop.f32.mrb[0].mxu0
    %2172 = vmatprep.mubr.f32.mxu0 0.0
    %2173 = vmatmul.mubr.f32.gmra.mrb[0].mxu0 %v1727
    %v2174 = vpop.f32.mrb[0].mxu0
    %v2175 = vadd.f32 0.0, %v2174
    %v2176 = vpop.f32.mrb[0].mxu0
    %2177 = vmatprep.mubr.f32.mxu0 0.0
    %2178 = vmatmul.mubr.f32.gmra.mrb[0].mxu0 %v1730
    %v2179 = vpop.f32.mrb[0].mxu0
    %v2180 = vadd.f32 0.0, %v2179
    %v2181 = vpop.f32.mrb[0].mxu0
    %2182 = vmatprep.mubr.f32.mxu0 0.0
    %2183 = vmatmul.mubr.f32.gmra.mrb[0].mxu0 %v1732
    %v2184 = vpop.f32.mrb[0].mxu0
    %v2185 = vadd.f32 0.0, %v2184
    %v2186 = vpop.f32.mrb[0].mxu0
    %2187 = vmatprep.mubr.f32.mxu0 0.0
    %2188 = vmatmul.mubr.f32.gmra.mrb[0].mxu0 %v1735
    %v2189 = vpop.f32.mrb[0].mxu0
    %v2190 = vadd.f32 0.0, %v2189
    %v2191 = vpop.f32.mrb[0].mxu0
    %2192 = vmatprep.mubr.f32.mxu0 0.0
    %2193 = vmatmul.mubr.f32.gmra.mrb[0].mxu0 %v1737
    %v2194 = vpop.f32.mrb[0].mxu0
    %v2195 = vadd.f32 0.0, %v2194
    %v2196 = vpop.f32.mrb[0].mxu0
    %2197 = vmatprep.mubr.f32.mxu0 0.0
    %2198 = vmatmul.mubr.f32.gmra.mrb[0].mxu0 %v1740
    %v2199 = vpop.f32.mrb[0].mxu0
    %v2200 = vadd.f32 0.0, %v2199
    %v2201 = vpop.f32.mrb[0].mxu0
    %2202 = vmatprep.mubr.f32.mxu0 0.0
    %2203 = vmatmul.mubr.f32.gmra.mrb[0].mxu0 %v1742
    %v2204 = vpop.f32.mrb[0].mxu0
    %v2205 = vadd.f32 0.0, %v2204
    %v2206 = vpop.f32.mrb[0].mxu0
    %2207 = vdwg.mxu0
    %v2208 = vadd.f32 %v1264, %v1890
    %v2209 = vadd.f32 %v1269, %v1895
    %v2210 = vadd.f32 %v1274, %v1900
    %v2211 = vadd.f32 %v1279, %v1905
    %v2212 = vadd.f32 %v1284, %v1910
    %v2213 = vadd.f32 %v1289, %v1915
    %v2214 = vadd.f32 %v1294, %v1920
    %v2215 = vadd.f32 %v1299, %v1925
    %v2216 = vadd.f32 %v1304, %v1930
    %v2217 = vadd.f32 %v1309, %v1935
    %v2218 = vadd.f32 %v1314, %v1940
    %v2219 = vadd.f32 %v1319, %v1945
    %v2220 = vadd.f32 %v1324, %v1950
    %v2221 = vadd.f32 %v1329, %v1955
    %v2222 = vadd.f32 %v1334, %v1960
    %v2223 = vadd.f32 %v1339, %v1965
    %v2224 = vadd.f32 %v1344, %v1970
    %v2225 = vadd.f32 %v1349, %v1975
    %v2226 = vadd.f32 %v1354, %v1980
    %v2227 = vadd.f32 %v1359, %v1985
    %v2228 = vadd.f32 %v1364, %v1990
    %v2229 = vadd.f32 %v1369, %v1995
    %v2230 = vadd.f32 %v1374, %v2000
    %v2231 = vadd.f32 %v1379, %v2005
    %v2232 = vadd.f32 %v1384, %v2010
    %v2233 = vadd.f32 %v1389, %v2015
    %v2234 = vadd.f32 %v1394, %v2020
    %v2235 = vadd.f32 %v1399, %v2025
    %v2236 = vadd.f32 %v1404, %v2030
    %v2237 = vadd.f32 %v1409, %v2035
    %v2238 = vadd.f32 %v1414, %v2040
    %v2239 = vadd.f32 %v1419, %v2045
    %v2240 = vadd.f32 %v1424, %v2050
    %v2241 = vadd.f32 %v1429, %v2055
    %v2242 = vadd.f32 %v1434, %v2060
    %v2243 = vadd.f32 %v1439, %v2065
    %v2244 = vadd.f32 %v1444, %v2070
    %v2245 = vadd.f32 %v1449, %v2075
    %v2246 = vadd.f32 %v1454, %v2080
    %v2247 = vadd.f32 %v1459, %v2085
    %v2248 = vadd.f32 %v1464, %v2090
    %v2249 = vadd.f32 %v1469, %v2095
    %v2250 = vadd.f32 %v1474, %v2100
    %v2251 = vadd.f32 %v1479, %v2105
    %v2252 = vadd.f32 %v1484, %v2110
    %v2253 = vadd.f32 %v1489, %v2115
    %v2254 = vadd.f32 %v1494, %v2120
    %v2255 = vadd.f32 %v1499, %v2125
    %v2256 = vadd.f32 %v1504, %v2130
    %v2257 = vadd.f32 %v1509, %v2135
    %v2258 = vadd.f32 %v1514, %v2140
    %v2259 = vadd.f32 %v1519, %v2145
    %v2260 = vadd.f32 %v1524, %v2150
    %v2261 = vadd.f32 %v1529, %v2155
    %v2262 = vadd.f32 %v1534, %v2160
    %v2263 = vadd.f32 %v1539, %v2165
    %v2264 = vadd.f32 %v1544, %v2170
    %v2265 = vadd.f32 %v1549, %v2175
    %v2266 = vadd.f32 %v1554, %v2180
    %v2267 = vadd.f32 %v1559, %v2185
    %v2268 = vadd.f32 %v1564, %v2190
    %v2269 = vadd.f32 %v1569, %v2195
    %v2270 = vadd.f32 %v1574, %v2200
    %v2271 = vadd.f32 %v1579, %v2205
    %v2272 = vld [vmem:[#allocation7 + $0x180] sm:$0xff]
    %v2273 = vld [vmem:[#allocation7 + $0x188] sm:$0xff]
    %v2274 = vld [vmem:[#allocation7 + $0x190] sm:$0xff]
    %v2275 = vld [vmem:[#allocation7 + $0x198] sm:$0xff]
    %v2276 = vld [vmem:[#allocation7 + $0x1a0] sm:$0xff]
    %v2277 = vld [vmem:[#allocation7 + $0x1a8] sm:$0xff]
    %v2278 = vld [vmem:[#allocation7 + $0x1b0] sm:$0xff]
    %v2279 = vld [vmem:[#allocation7 + $0x1b8] sm:$0xff]
    %v2280 = vld [vmem:[#allocation7 + $0x1c0] sm:$0xff]
    %v2281 = vld [vmem:[#allocation7 + $0x1c8] sm:$0xff]
    %v2282 = vld [vmem:[#allocation7 + $0x1d0] sm:$0xff]
    %v2283 = vld [vmem:[#allocation7 + $0x1d8] sm:$0xff]
    %v2284 = vld [vmem:[#allocation7 + $0x1e0] sm:$0xff]
    %v2285 = vld [vmem:[#allocation7 + $0x1e8] sm:$0xff]
    %v2286 = vld [vmem:[#allocation7 + $0x1f0] sm:$0xff]
    %v2287 = vld [vmem:[#allocation7 + $0x1f8] sm:$0xff]
    %2288 = vmatprep.subr.mxu0 0.0
    %2289 = vmatpush1.msra.mxu0 %v2272
    %2290 = vmatprep.subr.mxu0 0.0
    %2291 = vmatpush1.msra.mxu0 %v2273
    %2292 = vmatprep.subr.mxu0 0.0
    %2293 = vmatpush1.msra.mxu0 %v2274
    %2294 = vmatprep.subr.mxu0 0.0
    %2295 = vmatpush1.msra.mxu0 %v2275
    %2296 = vmatprep.subr.mxu0 0.0
    %2297 = vmatpush1.msra.mxu0 %v2276
    %2298 = vmatprep.subr.mxu0 0.0
    %2299 = vmatpush1.msra.mxu0 %v2277
    %2300 = vmatprep.subr.mxu0 0.0
    %2301 = vmatpush1.msra.mxu0 %v2278
    %2302 = vmatprep.subr.mxu0 0.0
    %2303 = vmatpush1.msra.mxu0 %v2279
    %2304 = vmatprep.subr.mxu0 0.0
    %2305 = vmatpush1.msra.mxu0 %v2280
    %2306 = vmatprep.subr.mxu0 0.0
    %2307 = vmatpush1.msra.mxu0 %v2281
    %2308 = vmatprep.subr.mxu0 0.0
    %2309 = vmatpush1.msra.mxu0 %v2282
    %2310 = vmatprep.subr.mxu0 0.0
    %2311 = vmatpush1.msra.mxu0 %v2283
    %2312 = vmatprep.subr.mxu0 0.0
    %2313 = vmatpush1.msra.mxu0 %v2284
    %2314 = vmatprep.subr.mxu0 0.0
    %2315 = vmatpush1.msra.mxu0 %v2285
    %2316 = vmatprep.subr.mxu0 0.0
    %2317 = vmatpush1.msra.mxu0 %v2286
    %2318 = vmatprep.subr.mxu0 0.0
    %2319 = vmatpush1.msra.mxu0 %v2287
    %2320 = vmatprep.subr.mxu0 0.0
    %2321 = vmatpush1.msra.mxu0 0.0
    %2322 = vmatprep.subr.mxu0 0.0
    %2323 = vmatpush1.msra.mxu0 0.0
    %2324 = vmatprep.subr.mxu0 0.0
    %2325 = vmatpush1.msra.mxu0 0.0
    %2326 = vmatprep.subr.mxu0 0.0
    %2327 = vmatpush1.msra.mxu0 0.0
    %2328 = vmatprep.subr.mxu0 0.0
    %2329 = vmatpush1.msra.mxu0 0.0
    %2330 = vmatprep.subr.mxu0 0.0
    %2331 = vmatpush1.msra.mxu0 0.0
    %2332 = vmatprep.subr.mxu0 0.0
    %2333 = vmatpush1.msra.mxu0 0.0
    %2334 = vmatprep.subr.mxu0 0.0
    %2335 = vmatpush1.msra.mxu0 0.0
    %2336 = vmatprep.subr.mxu0 0.0
    %2337 = vmatpush1.msra.mxu0 0.0
    %2338 = vmatprep.subr.mxu0 0.0
    %2339 = vmatpush1.msra.mxu0 0.0
    %2340 = vmatprep.subr.mxu0 0.0
    %2341 = vmatpush1.msra.mxu0 0.0
    %2342 = vmatprep.subr.mxu0 0.0
    %2343 = vmatpush1.msra.mxu0 0.0
    %2344 = vmatprep.subr.mxu0 0.0
    %2345 = vmatpush1.msra.mxu0 0.0
    %2346 = vmatprep.subr.mxu0 0.0
    %2347 = vmatpush1.msra.mxu0 0.0
    %2348 = vmatprep.subr.mxu0 0.0
    %2349 = vmatpush1.msra.mxu0 0.0
    %2350 = vmatprep.subr.mxu0 0.0
    %2351 = vmatpush1.msra.mxu0 0.0
    %2352 = vmatprep.mubr.f32.mxu0 0.0
    %2353 = vmatmul.mubr.f32.gmra.mrb[0].mxu0 %v354
    %v2354 = vpop.f32.mrb[0].mxu0
    %v2355 = vadd.f32 0.0, %v2354
    %v2356 = vpop.f32.mrb[0].mxu0
    %2357 = vmatprep.mubr.f32.mxu0 0.0
    %2358 = vmatmul.mubr.f32.gmra.mrb[0].mxu0 %v355
    %v2359 = vpop.f32.mrb[0].mxu0
    %v2360 = vadd.f32 0.0, %v2359
    %v2361 = vpop.f32.mrb[0].mxu0
    %2362 = vmatprep.mubr.f32.mxu0 0.0
    %2363 = vmatmul.mubr.f32.gmra.mrb[0].mxu0 %v357
    %v2364 = vpop.f32.mrb[0].mxu0
    %v2365 = vadd.f32 0.0, %v2364
    %v2366 = vpop.f32.mrb[0].mxu0
    %2367 = vmatprep.mubr.f32.mxu0 0.0
    %2368 = vmatmul.mubr.f32.gmra.mrb[0].mxu0 %v358
    %v2369 = vpop.f32.mrb[0].mxu0
    %v2370 = vadd.f32 0.0, %v2369
    %v2371 = vpop.f32.mrb[0].mxu0
    %2372 = vmatprep.mubr.f32.mxu0 0.0
    %2373 = vmatmul.mubr.f32.gmra.mrb[0].mxu0 %v360
    %v2374 = vpop.f32.mrb[0].mxu0
    %v2375 = vadd.f32 0.0, %v2374
    %v2376 = vpop.f32.mrb[0].mxu0
    %2377 = vmatprep.mubr.f32.mxu0 0.0
    %2378 = vmatmul.mubr.f32.gmra.mrb[0].mxu0 %v361
    %v2379 = vpop.f32.mrb[0].mxu0
    %v2380 = vadd.f32 0.0, %v2379
    %v2381 = vpop.f32.mrb[0].mxu0
    %2382 = vmatprep.mubr.f32.mxu0 0.0
    %2383 = vmatmul.mubr.f32.gmra.mrb[0].mxu0 %v363
    %v2384 = vpop.f32.mrb[0].mxu0
    %v2385 = vadd.f32 0.0, %v2384
    %v2386 = vpop.f32.mrb[0].mxu0
    %2387 = vmatprep.mubr.f32.mxu0 0.0
    %2388 = vmatmul.mubr.f32.gmra.mrb[0].mxu0 %v364
    %v2389 = vpop.f32.mrb[0].mxu0
    %v2390 = vadd.f32 0.0, %v2389
    %v2391 = vpop.f32.mrb[0].mxu0
    %2392 = vmatprep.mubr.f32.mxu0 0.0
    %2393 = vmatmul.mubr.f32.gmra.mrb[0].mxu0 %v366
    %v2394 = vpop.f32.mrb[0].mxu0
    %v2395 = vadd.f32 0.0, %v2394
    %v2396 = vpop.f32.mrb[0].mxu0
    %2397 = vmatprep.mubr.f32.mxu0 0.0
    %2398 = vmatmul.mubr.f32.gmra.mrb[0].mxu0 %v367
    %v2399 = vpop.f32.mrb[0].mxu0
    %v2400 = vadd.f32 0.0, %v2399
    %v2401 = vpop.f32.mrb[0].mxu0
    %2402 = vmatprep.mubr.f32.mxu0 0.0
    %2403 = vmatmul.mubr.f32.gmra.mrb[0].mxu0 %v369
    %v2404 = vpop.f32.mrb[0].mxu0
    %v2405 = vadd.f32 0.0, %v2404
    %v2406 = vpop.f32.mrb[0].mxu0
    %2407 = vmatprep.mubr.f32.mxu0 0.0
    %2408 = vmatmul.mubr.f32.gmra.mrb[0].mxu0 %v370
    %v2409 = vpop.f32.mrb[0].mxu0
    %v2410 = vadd.f32 0.0, %v2409
    %v2411 = vpop.f32.mrb[0].mxu0
    %2412 = vmatprep.mubr.f32.mxu0 0.0
    %2413 = vmatmul.mubr.f32.gmra.mrb[0].mxu0 %v372
    %v2414 = vpop.f32.mrb[0].mxu0
    %v2415 = vadd.f32 0.0, %v2414
    %v2416 = vpop.f32.mrb[0].mxu0
    %2417 = vmatprep.mubr.f32.mxu0 0.0
    %2418 = vmatmul.mubr.f32.gmra.mrb[0].mxu0 %v373
    %v2419 = vpop.f32.mrb[0].mxu0
    %v2420 = vadd.f32 0.0, %v2419
    %v2421 = vpop.f32.mrb[0].mxu0
    %2422 = vmatprep.mubr.f32.mxu0 0.0
    %2423 = vmatmul.mubr.f32.gmra.mrb[0].mxu0 %v375
    %v2424 = vpop.f32.mrb[0].mxu0
    %v2425 = vadd.f32 0.0, %v2424
    %v2426 = vpop.f32.mrb[0].mxu0
    %2427 = vmatprep.mubr.f32.mxu0 0.0
    %2428 = vmatmul.mubr.f32.gmra.mrb[0].mxu0 %v376
    %v2429 = vpop.f32.mrb[0].mxu0
    %v2430 = vadd.f32 0.0, %v2429
    %v2431 = vpop.f32.mrb[0].mxu0
    %2432 = vmatprep.mubr.f32.mxu0 0.0
    %2433 = vmatmul.mubr.f32.gmra.mrb[0].mxu0 %v378
    %v2434 = vpop.f32.mrb[0].mxu0
    %v2435 = vadd.f32 0.0, %v2434
    %v2436 = vpop.f32.mrb[0].mxu0
    %2437 = vmatprep.mubr.f32.mxu0 0.0
    %2438 = vmatmul.mubr.f32.gmra.mrb[0].mxu0 %v379
    %v2439 = vpop.f32.mrb[0].mxu0
    %v2440 = vadd.f32 0.0, %v2439
    %v2441 = vpop.f32.mrb[0].mxu0
    %2442 = vmatprep.mubr.f32.mxu0 0.0
    %2443 = vmatmul.mubr.f32.gmra.mrb[0].mxu0 %v381
    %v2444 = vpop.f32.mrb[0].mxu0
    %v2445 = vadd.f32 0.0, %v2444
    %v2446 = vpop.f32.mrb[0].mxu0
    %2447 = vmatprep.mubr.f32.mxu0 0.0
    %2448 = vmatmul.mubr.f32.gmra.mrb[0].mxu0 %v382
    %v2449 = vpop.f32.mrb[0].mxu0
    %v2450 = vadd.f32 0.0, %v2449
    %v2451 = vpop.f32.mrb[0].mxu0
    %2452 = vmatprep.mubr.f32.mxu0 0.0
    %2453 = vmatmul.mubr.f32.gmra.mrb[0].mxu0 %v384
    %v2454 = vpop.f32.mrb[0].mxu0
    %v2455 = vadd.f32 0.0, %v2454
    %v2456 = vpop.f32.mrb[0].mxu0
    %2457 = vmatprep.mubr.f32.mxu0 0.0
    %2458 = vmatmul.mubr.f32.gmra.mrb[0].mxu0 %v385
    %v2459 = vpop.f32.mrb[0].mxu0
    %v2460 = vadd.f32 0.0, %v2459
    %v2461 = vpop.f32.mrb[0].mxu0
    %2462 = vmatprep.mubr.f32.mxu0 0.0
    %2463 = vmatmul.mubr.f32.gmra.mrb[0].mxu0 %v387
    %v2464 = vpop.f32.mrb[0].mxu0
    %v2465 = vadd.f32 0.0, %v2464
    %v2466 = vpop.f32.mrb[0].mxu0
    %2467 = vmatprep.mubr.f32.mxu0 0.0
    %2468 = vmatmul.mubr.f32.gmra.mrb[0].mxu0 %v388
    %v2469 = vpop.f32.mrb[0].mxu0
    %v2470 = vadd.f32 0.0, %v2469
    %v2471 = vpop.f32.mrb[0].mxu0
    %2472 = vmatprep.mubr.f32.mxu0 0.0
    %2473 = vmatmul.mubr.f32.gmra.mrb[0].mxu0 %v390
    %v2474 = vpop.f32.mrb[0].mxu0
    %v2475 = vadd.f32 0.0, %v2474
    %v2476 = vpop.f32.mrb[0].mxu0
    %2477 = vmatprep.mubr.f32.mxu0 0.0
    %2478 = vmatmul.mubr.f32.gmra.mrb[0].mxu0 %v391
    %v2479 = vpop.f32.mrb[0].mxu0
    %v2480 = vadd.f32 0.0, %v2479
    %v2481 = vpop.f32.mrb[0].mxu0
    %2482 = vmatprep.mubr.f32.mxu0 0.0
    %2483 = vmatmul.mubr.f32.gmra.mrb[0].mxu0 %v393
    %v2484 = vpop.f32.mrb[0].mxu0
    %v2485 = vadd.f32 0.0, %v2484
    %v2486 = vpop.f32.mrb[0].mxu0
    %2487 = vmatprep.mubr.f32.mxu0 0.0
    %2488 = vmatmul.mubr.f32.gmra.mrb[0].mxu0 %v394
    %v2489 = vpop.f32.mrb[0].mxu0
    %v2490 = vadd.f32 0.0, %v2489
    %v2491 = vpop.f32.mrb[0].mxu0
    %2492 = vmatprep.mubr.f32.mxu0 0.0
    %2493 = vmatmul.mubr.f32.gmra.mrb[0].mxu0 %v396
    %v2494 = vpop.f32.mrb[0].mxu0
    %v2495 = vadd.f32 0.0, %v2494
    %v2496 = vpop.f32.mrb[0].mxu0
    %2497 = vmatprep.mubr.f32.mxu0 0.0
    %2498 = vmatmul.mubr.f32.gmra.mrb[0].mxu0 %v397
    %v2499 = vpop.f32.mrb[0].mxu0
    %v2500 = vadd.f32 0.0, %v2499
    %v2501 = vpop.f32.mrb[0].mxu0
    %2502 = vmatprep.mubr.f32.mxu0 0.0
    %2503 = vmatmul.mubr.f32.gmra.mrb[0].mxu0 %v399
    %v2504 = vpop.f32.mrb[0].mxu0
    %v2505 = vadd.f32 0.0, %v2504
    %v2506 = vpop.f32.mrb[0].mxu0
    %2507 = vmatprep.mubr.f32.mxu0 0.0
    %2508 = vmatmul.mubr.f32.gmra.mrb[0].mxu0 %v400
    %v2509 = vpop.f32.mrb[0].mxu0
    %v2510 = vadd.f32 0.0, %v2509
    %v2511 = vpop.f32.mrb[0].mxu0
    %2512 = vmatprep.mubr.f32.mxu0 0.0
    %2513 = vmatmul.mubr.f32.gmra.mrb[0].mxu0 %v408
    %v2514 = vpop.f32.mrb[0].mxu0
    %v2515 = vadd.f32 0.0, %v2514
    %v2516 = vpop.f32.mrb[0].mxu0
    %2517 = vmatprep.mubr.f32.mxu0 0.0
    %2518 = vmatmul.mubr.f32.gmra.mrb[0].mxu0 %v409
    %v2519 = vpop.f32.mrb[0].mxu0
    %v2520 = vadd.f32 0.0, %v2519
    %v2521 = vpop.f32.mrb[0].mxu0
    %2522 = vmatprep.mubr.f32.mxu0 0.0
    %2523 = vmatmul.mubr.f32.gmra.mrb[0].mxu0 %v411
    %v2524 = vpop.f32.mrb[0].mxu0
    %v2525 = vadd.f32 0.0, %v2524
    %v2526 = vpop.f32.mrb[0].mxu0
    %2527 = vmatprep.mubr.f32.mxu0 0.0
    %2528 = vmatmul.mubr.f32.gmra.mrb[0].mxu0 %v412
    %v2529 = vpop.f32.mrb[0].mxu0
    %v2530 = vadd.f32 0.0, %v2529
    %v2531 = vpop.f32.mrb[0].mxu0
    %2532 = vmatprep.mubr.f32.mxu0 0.0
    %2533 = vmatmul.mubr.f32.gmra.mrb[0].mxu0 %v414
    %v2534 = vpop.f32.mrb[0].mxu0
    %v2535 = vadd.f32 0.0, %v2534
    %v2536 = vpop.f32.mrb[0].mxu0
    %2537 = vmatprep.mubr.f32.mxu0 0.0
    %2538 = vmatmul.mubr.f32.gmra.mrb[0].mxu0 %v415
    %v2539 = vpop.f32.mrb[0].mxu0
    %v2540 = vadd.f32 0.0, %v2539
    %v2541 = vpop.f32.mrb[0].mxu0
    %2542 = vmatprep.mubr.f32.mxu0 0.0
    %2543 = vmatmul.mubr.f32.gmra.mrb[0].mxu0 %v417
    %v2544 = vpop.f32.mrb[0].mxu0
    %v2545 = vadd.f32 0.0, %v2544
    %v2546 = vpop.f32.mrb[0].mxu0
    %2547 = vmatprep.mubr.f32.mxu0 0.0
    %2548 = vmatmul.mubr.f32.gmra.mrb[0].mxu0 %v418
    %v2549 = vpop.f32.mrb[0].mxu0
    %v2550 = vadd.f32 0.0, %v2549
    %v2551 = vpop.f32.mrb[0].mxu0
    %2552 = vmatprep.mubr.f32.mxu0 0.0
    %2553 = vmatmul.mubr.f32.gmra.mrb[0].mxu0 %v420
    %v2554 = vpop.f32.mrb[0].mxu0
    %v2555 = vadd.f32 0.0, %v2554
    %v2556 = vpop.f32.mrb[0].mxu0
    %2557 = vmatprep.mubr.f32.mxu0 0.0
    %2558 = vmatmul.mubr.f32.gmra.mrb[0].mxu0 %v421
    %v2559 = vpop.f32.mrb[0].mxu0
    %v2560 = vadd.f32 0.0, %v2559
    %v2561 = vpop.f32.mrb[0].mxu0
    %2562 = vmatprep.mubr.f32.mxu0 0.0
    %2563 = vmatmul.mubr.f32.gmra.mrb[0].mxu0 %v423
    %v2564 = vpop.f32.mrb[0].mxu0
    %v2565 = vadd.f32 0.0, %v2564
    %v2566 = vpop.f32.mrb[0].mxu0
    %2567 = vmatprep.mubr.f32.mxu0 0.0
    %2568 = vmatmul.mubr.f32.gmra.mrb[0].mxu0 %v424
    %v2569 = vpop.f32.mrb[0].mxu0
    %v2570 = vadd.f32 0.0, %v2569
    %v2571 = vpop.f32.mrb[0].mxu0
    %2572 = vmatprep.mubr.f32.mxu0 0.0
    %2573 = vmatmul.mubr.f32.gmra.mrb[0].mxu0 %v426
    %v2574 = vpop.f32.mrb[0].mxu0
    %v2575 = vadd.f32 0.0, %v2574
    %v2576 = vpop.f32.mrb[0].mxu0
    %2577 = vmatprep.mubr.f32.mxu0 0.0
    %2578 = vmatmul.mubr.f32.gmra.mrb[0].mxu0 %v427
    %v2579 = vpop.f32.mrb[0].mxu0
    %v2580 = vadd.f32 0.0, %v2579
    %v2581 = vpop.f32.mrb[0].mxu0
    %2582 = vmatprep.mubr.f32.mxu0 0.0
    %2583 = vmatmul.mubr.f32.gmra.mrb[0].mxu0 %v429
    %v2584 = vpop.f32.mrb[0].mxu0
    %v2585 = vadd.f32 0.0, %v2584
    %v2586 = vpop.f32.mrb[0].mxu0
    %2587 = vmatprep.mubr.f32.mxu0 0.0
    %2588 = vmatmul.mubr.f32.gmra.mrb[0].mxu0 %v430
    %v2589 = vpop.f32.mrb[0].mxu0
    %v2590 = vadd.f32 0.0, %v2589
    %v2591 = vpop.f32.mrb[0].mxu0
    %2592 = vmatprep.mubr.f32.mxu0 0.0
    %2593 = vmatmul.mubr.f32.gmra.mrb[0].mxu0 %v432
    %v2594 = vpop.f32.mrb[0].mxu0
    %v2595 = vadd.f32 0.0, %v2594
    %v2596 = vpop.f32.mrb[0].mxu0
    %2597 = vmatprep.mubr.f32.mxu0 0.0
    %2598 = vmatmul.mubr.f32.gmra.mrb[0].mxu0 %v433
    %v2599 = vpop.f32.mrb[0].mxu0
    %v2600 = vadd.f32 0.0, %v2599
    %v2601 = vpop.f32.mrb[0].mxu0
    %2602 = vmatprep.mubr.f32.mxu0 0.0
    %2603 = vmatmul.mubr.f32.gmra.mrb[0].mxu0 %v435
    %v2604 = vpop.f32.mrb[0].mxu0
    %v2605 = vadd.f32 0.0, %v2604
    %v2606 = vpop.f32.mrb[0].mxu0
    %2607 = vmatprep.mubr.f32.mxu0 0.0
    %2608 = vmatmul.mubr.f32.gmra.mrb[0].mxu0 %v436
    %v2609 = vpop.f32.mrb[0].mxu0
    %v2610 = vadd.f32 0.0, %v2609
    %v2611 = vpop.f32.mrb[0].mxu0
    %2612 = vmatprep.mubr.f32.mxu0 0.0
    %2613 = vmatmul.mubr.f32.gmra.mrb[0].mxu0 %v438
    %v2614 = vpop.f32.mrb[0].mxu0
    %v2615 = vadd.f32 0.0, %v2614
    %v2616 = vpop.f32.mrb[0].mxu0
    %2617 = vmatprep.mubr.f32.mxu0 0.0
    %2618 = vmatmul.mubr.f32.gmra.mrb[0].mxu0 %v439
    %v2619 = vpop.f32.mrb[0].mxu0
    %v2620 = vadd.f32 0.0, %v2619
    %v2621 = vpop.f32.mrb[0].mxu0
    %2622 = vmatprep.mubr.f32.mxu0 0.0
    %2623 = vmatmul.mubr.f32.gmra.mrb[0].mxu0 %v441
    %v2624 = vpop.f32.mrb[0].mxu0
    %v2625 = vadd.f32 0.0, %v2624
    %v2626 = vpop.f32.mrb[0].mxu0
    %2627 = vmatprep.mubr.f32.mxu0 0.0
    %2628 = vmatmul.mubr.f32.gmra.mrb[0].mxu0 %v442
    %v2629 = vpop.f32.mrb[0].mxu0
    %v2630 = vadd.f32 0.0, %v2629
    %v2631 = vpop.f32.mrb[0].mxu0
    %2632 = vmatprep.mubr.f32.mxu0 0.0
    %2633 = vmatmul.mubr.f32.gmra.mrb[0].mxu0 %v444
    %v2634 = vpop.f32.mrb[0].mxu0
    %v2635 = vadd.f32 0.0, %v2634
    %v2636 = vpop.f32.mrb[0].mxu0
    %2637 = vmatprep.mubr.f32.mxu0 0.0
    %2638 = vmatmul.mubr.f32.gmra.mrb[0].mxu0 %v445
    %v2639 = vpop.f32.mrb[0].mxu0
    %v2640 = vadd.f32 0.0, %v2639
    %v2641 = vpop.f32.mrb[0].mxu0
    %2642 = vmatprep.mubr.f32.mxu0 0.0
    %2643 = vmatmul.mubr.f32.gmra.mrb[0].mxu0 %v447
    %v2644 = vpop.f32.mrb[0].mxu0
    %v2645 = vadd.f32 0.0, %v2644
    %v2646 = vpop.f32.mrb[0].mxu0
    %2647 = vmatprep.mubr.f32.mxu0 0.0
    %2648 = vmatmul.mubr.f32.gmra.mrb[0].mxu0 %v448
    %v2649 = vpop.f32.mrb[0].mxu0
    %v2650 = vadd.f32 0.0, %v2649
    %v2651 = vpop.f32.mrb[0].mxu0
    %2652 = vmatprep.mubr.f32.mxu0 0.0
    %2653 = vmatmul.mubr.f32.gmra.mrb[0].mxu0 %v450
    %v2654 = vpop.f32.mrb[0].mxu0
    %v2655 = vadd.f32 0.0, %v2654
    %v2656 = vpop.f32.mrb[0].mxu0
    %2657 = vmatprep.mubr.f32.mxu0 0.0
    %2658 = vmatmul.mubr.f32.gmra.mrb[0].mxu0 %v451
    %v2659 = vpop.f32.mrb[0].mxu0
    %v2660 = vadd.f32 0.0, %v2659
    %v2661 = vpop.f32.mrb[0].mxu0
    %2662 = vmatprep.mubr.f32.mxu0 0.0
    %2663 = vmatmul.mubr.f32.gmra.mrb[0].mxu0 %v453
    %v2664 = vpop.f32.mrb[0].mxu0
    %v2665 = vadd.f32 0.0, %v2664
    %v2666 = vpop.f32.mrb[0].mxu0
    %2667 = vmatprep.mubr.f32.mxu0 0.0
    %2668 = vmatmul.mubr.f32.gmra.mrb[0].mxu0 %v454
    %v2669 = vpop.f32.mrb[0].mxu0
    %v2670 = vadd.f32 0.0, %v2669
    %v2671 = vpop.f32.mrb[0].mxu0
    %2672 = vdwg.mxu0
    %v2673 = vadd.f32 %v2208, %v2355
    %v2674 = vadd.f32 %v2209, %v2360
    %v2675 = vadd.f32 %v2210, %v2365
    %v2676 = vadd.f32 %v2211, %v2370
    %v2677 = vadd.f32 %v2212, %v2375
    %v2678 = vadd.f32 %v2213, %v2380
    %v2679 = vadd.f32 %v2214, %v2385
    %v2680 = vadd.f32 %v2215, %v2390
    %v2681 = vadd.f32 %v2216, %v2395
    %v2682 = vadd.f32 %v2217, %v2400
    %v2683 = vadd.f32 %v2218, %v2405
    %v2684 = vadd.f32 %v2219, %v2410
    %v2685 = vadd.f32 %v2220, %v2415
    %v2686 = vadd.f32 %v2221, %v2420
    %v2687 = vadd.f32 %v2222, %v2425
    %v2688 = vadd.f32 %v2223, %v2430
    %v2689 = vadd.f32 %v2224, %v2435
    %v2690 = vadd.f32 %v2225, %v2440
    %v2691 = vadd.f32 %v2226, %v2445
    %v2692 = vadd.f32 %v2227, %v2450
    %v2693 = vadd.f32 %v2228, %v2455
    %v2694 = vadd.f32 %v2229, %v2460
    %v2695 = vadd.f32 %v2230, %v2465
    %v2696 = vadd.f32 %v2231, %v2470
    %v2697 = vadd.f32 %v2232, %v2475
    %v2698 = vadd.f32 %v2233, %v2480
    %v2699 = vadd.f32 %v2234, %v2485
    %v2700 = vadd.f32 %v2235, %v2490
    %v2701 = vadd.f32 %v2236, %v2495
    %v2702 = vadd.f32 %v2237, %v2500
    %v2703 = vadd.f32 %v2238, %v2505
    %v2704 = vadd.f32 %v2239, %v2510
    %v2705 = vadd.f32 %v2240, %v2515
    %v2706 = vadd.f32 %v2241, %v2520
    %v2707 = vadd.f32 %v2242, %v2525
    %v2708 = vadd.f32 %v2243, %v2530
    %v2709 = vadd.f32 %v2244, %v2535
    %v2710 = vadd.f32 %v2245, %v2540
    %v2711 = vadd.f32 %v2246, %v2545
    %v2712 = vadd.f32 %v2247, %v2550
    %v2713 = vadd.f32 %v2248, %v2555
    %v2714 = vadd.f32 %v2249, %v2560
    %v2715 = vadd.f32 %v2250, %v2565
    %v2716 = vadd.f32 %v2251, %v2570
    %v2717 = vadd.f32 %v2252, %v2575
    %v2718 = vadd.f32 %v2253, %v2580
    %v2719 = vadd.f32 %v2254, %v2585
    %v2720 = vadd.f32 %v2255, %v2590
    %v2721 = vadd.f32 %v2256, %v2595
    %v2722 = vadd.f32 %v2257, %v2600
    %v2723 = vadd.f32 %v2258, %v2605
    %v2724 = vadd.f32 %v2259, %v2610
    %v2725 = vadd.f32 %v2260, %v2615
    %v2726 = vadd.f32 %v2261, %v2620
    %v2727 = vadd.f32 %v2262, %v2625
    %v2728 = vadd.f32 %v2263, %v2630
    %v2729 = vadd.f32 %v2264, %v2635
    %v2730 = vadd.f32 %v2265, %v2640
    %v2731 = vadd.f32 %v2266, %v2645
    %v2732 = vadd.f32 %v2267, %v2650
    %v2733 = vadd.f32 %v2268, %v2655
    %v2734 = vadd.f32 %v2269, %v2660
    %v2735 = vadd.f32 %v2270, %v2665
    %v2736 = vadd.f32 %v2271, %v2670
    %v2743 = vrot.slane %v399, 1
    %v2744 = vrot.slane %v400, 1
    %v2745 = vsel %vm571, %v2743, %v2744
    %v2746 = vrot.slane %v401, 1
    %v2747 = vsel %vm571, %v2744, %v2746
    %v2748 = vrot.slane %v453, 1
    %v2749 = vrot.slane %v454, 1
    %v2750 = vsel %vm571, %v2748, %v2749
    %v2751 = vrot.slane %v455, 1
    %v2752 = vsel %vm571, %v2749, %v2751
    %v2757 = vld [vmem:[#allocation7 + $0x200] sm:$0xff]
    %v2758 = vld [vmem:[#allocation7 + $0x208] sm:$0xff]
    %v2759 = vld [vmem:[#allocation7 + $0x210] sm:$0xff]
    %v2760 = vld [vmem:[#allocation7 + $0x218] sm:$0xff]
    %v2761 = vld [vmem:[#allocation7 + $0x220] sm:$0xff]
    %v2762 = vld [vmem:[#allocation7 + $0x228] sm:$0xff]
    %v2763 = vld [vmem:[#allocation7 + $0x230] sm:$0xff]
    %v2764 = vld [vmem:[#allocation7 + $0x238] sm:$0xff]
    %v2765 = vld [vmem:[#allocation7 + $0x240] sm:$0xff]
    %v2766 = vld [vmem:[#allocation7 + $0x248] sm:$0xff]
    %v2767 = vld [vmem:[#allocation7 + $0x250] sm:$0xff]
    %v2768 = vld [vmem:[#allocation7 + $0x258] sm:$0xff]
    %v2769 = vld [vmem:[#allocation7 + $0x260] sm:$0xff]
    %v2770 = vld [vmem:[#allocation7 + $0x268] sm:$0xff]
    %v2771 = vld [vmem:[#allocation7 + $0x270] sm:$0xff]
    %v2772 = vld [vmem:[#allocation7 + $0x278] sm:$0xff]
    %2773 = vmatprep.subr.mxu0 0.0
    %2774 = vmatpush1.msra.mxu0 %v2757
    %2775 = vmatprep.subr.mxu0 0.0
    %2776 = vmatpush1.msra.mxu0 %v2758
    %2777 = vmatprep.subr.mxu0 0.0
    %2778 = vmatpush1.msra.mxu0 %v2759
    %2779 = vmatprep.subr.mxu0 0.0
    %2780 = vmatpush1.msra.mxu0 %v2760
    %2781 = vmatprep.subr.mxu0 0.0
    %2782 = vmatpush1.msra.mxu0 %v2761
    %2783 = vmatprep.subr.mxu0 0.0
    %2784 = vmatpush1.msra.mxu0 %v2762
    %2785 = vmatprep.subr.mxu0 0.0
    %2786 = vmatpush1.msra.mxu0 %v2763
    %2787 = vmatprep.subr.mxu0 0.0
    %2788 = vmatpush1.msra.mxu0 %v2764
    %2789 = vmatprep.subr.mxu0 0.0
    %2790 = vmatpush1.msra.mxu0 %v2765
    %2791 = vmatprep.subr.mxu0 0.0
    %2792 = vmatpush1.msra.mxu0 %v2766
    %2793 = vmatprep.subr.mxu0 0.0
    %2794 = vmatpush1.msra.mxu0 %v2767
    %2795 = vmatprep.subr.mxu0 0.0
    %2796 = vmatpush1.msra.mxu0 %v2768
    %2797 = vmatprep.subr.mxu0 0.0
    %2798 = vmatpush1.msra.mxu0 %v2769
    %2799 = vmatprep.subr.mxu0 0.0
    %2800 = vmatpush1.msra.mxu0 %v2770
    %2801 = vmatprep.subr.mxu0 0.0
    %2802 = vmatpush1.msra.mxu0 %v2771
    %2803 = vmatprep.subr.mxu0 0.0
    %2804 = vmatpush1.msra.mxu0 %v2772
    %2805 = vmatprep.subr.mxu0 0.0
    %2806 = vmatpush1.msra.mxu0 0.0
    %2807 = vmatprep.subr.mxu0 0.0
    %2808 = vmatpush1.msra.mxu0 0.0
    %2809 = vmatprep.subr.mxu0 0.0
    %2810 = vmatpush1.msra.mxu0 0.0
    %2811 = vmatprep.subr.mxu0 0.0
    %2812 = vmatpush1.msra.mxu0 0.0
    %2813 = vmatprep.subr.mxu0 0.0
    %2814 = vmatpush1.msra.mxu0 0.0
    %2815 = vmatprep.subr.mxu0 0.0
    %2816 = vmatpush1.msra.mxu0 0.0
    %2817 = vmatprep.subr.mxu0 0.0
    %2818 = vmatpush1.msra.mxu0 0.0
    %2819 = vmatprep.subr.mxu0 0.0
    %2820 = vmatpush1.msra.mxu0 0.0
    %2821 = vmatprep.subr.mxu0 0.0
    %2822 = vmatpush1.msra.mxu0 0.0
    %2823 = vmatprep.subr.mxu0 0.0
    %2824 = vmatpush1.msra.mxu0 0.0
    %2825 = vmatprep.subr.mxu0 0.0
    %2826 = vmatpush1.msra.mxu0 0.0
    %2827 = vmatprep.subr.mxu0 0.0
    %2828 = vmatpush1.msra.mxu0 0.0
    %2829 = vmatprep.subr.mxu0 0.0
    %2830 = vmatpush1.msra.mxu0 0.0
    %2831 = vmatprep.subr.mxu0 0.0
    %2832 = vmatpush1.msra.mxu0 0.0
    %2833 = vmatprep.subr.mxu0 0.0
    %2834 = vmatpush1.msra.mxu0 0.0
    %2835 = vmatprep.subr.mxu0 0.0
    %2836 = vmatpush1.msra.mxu0 0.0
    %2837 = vmatprep.mubr.f32.mxu0 0.0
    %2838 = vmatmul.mubr.f32.gmra.mrb[0].mxu0 %v579
    %v2839 = vpop.f32.mrb[0].mxu0
    %v2840 = vadd.f32 0.0, %v2839
    %v2841 = vpop.f32.mrb[0].mxu0
    %2842 = vmatprep.mubr.f32.mxu0 0.0
    %2843 = vmatmul.mubr.f32.gmra.mrb[0].mxu0 %v581
    %v2844 = vpop.f32.mrb[0].mxu0
    %v2845 = vadd.f32 0.0, %v2844
    %v2846 = vpop.f32.mrb[0].mxu0
    %2847 = vmatprep.mubr.f32.mxu0 0.0
    %2848 = vmatmul.mubr.f32.gmra.mrb[0].mxu0 %v584
    %v2849 = vpop.f32.mrb[0].mxu0
    %v2850 = vadd.f32 0.0, %v2849
    %v2851 = vpop.f32.mrb[0].mxu0
    %2852 = vmatprep.mubr.f32.mxu0 0.0
    %2853 = vmatmul.mubr.f32.gmra.mrb[0].mxu0 %v586
    %v2854 = vpop.f32.mrb[0].mxu0
    %v2855 = vadd.f32 0.0, %v2854
    %v2856 = vpop.f32.mrb[0].mxu0
    %2857 = vmatprep.mubr.f32.mxu0 0.0
    %2858 = vmatmul.mubr.f32.gmra.mrb[0].mxu0 %v589
    %v2859 = vpop.f32.mrb[0].mxu0
    %v2860 = vadd.f32 0.0, %v2859
    %v2861 = vpop.f32.mrb[0].mxu0
    %2862 = vmatprep.mubr.f32.mxu0 0.0
    %2863 = vmatmul.mubr.f32.gmra.mrb[0].mxu0 %v591
    %v2864 = vpop.f32.mrb[0].mxu0
    %v2865 = vadd.f32 0.0, %v2864
    %v2866 = vpop.f32.mrb[0].mxu0
    %2867 = vmatprep.mubr.f32.mxu0 0.0
    %2868 = vmatmul.mubr.f32.gmra.mrb[0].mxu0 %v594
    %v2869 = vpop.f32.mrb[0].mxu0
    %v2870 = vadd.f32 0.0, %v2869
    %v2871 = vpop.f32.mrb[0].mxu0
    %2872 = vmatprep.mubr.f32.mxu0 0.0
    %2873 = vmatmul.mubr.f32.gmra.mrb[0].mxu0 %v596
    %v2874 = vpop.f32.mrb[0].mxu0
    %v2875 = vadd.f32 0.0, %v2874
    %v2876 = vpop.f32.mrb[0].mxu0
    %2877 = vmatprep.mubr.f32.mxu0 0.0
    %2878 = vmatmul.mubr.f32.gmra.mrb[0].mxu0 %v599
    %v2879 = vpop.f32.mrb[0].mxu0
    %v2880 = vadd.f32 0.0, %v2879
    %v2881 = vpop.f32.mrb[0].mxu0
    %2882 = vmatprep.mubr.f32.mxu0 0.0
    %2883 = vmatmul.mubr.f32.gmra.mrb[0].mxu0 %v601
    %v2884 = vpop.f32.mrb[0].mxu0
    %v2885 = vadd.f32 0.0, %v2884
    %v2886 = vpop.f32.mrb[0].mxu0
    %2887 = vmatprep.mubr.f32.mxu0 0.0
    %2888 = vmatmul.mubr.f32.gmra.mrb[0].mxu0 %v604
    %v2889 = vpop.f32.mrb[0].mxu0
    %v2890 = vadd.f32 0.0, %v2889
    %v2891 = vpop.f32.mrb[0].mxu0
    %2892 = vmatprep.mubr.f32.mxu0 0.0
    %2893 = vmatmul.mubr.f32.gmra.mrb[0].mxu0 %v606
    %v2894 = vpop.f32.mrb[0].mxu0
    %v2895 = vadd.f32 0.0, %v2894
    %v2896 = vpop.f32.mrb[0].mxu0
    %2897 = vmatprep.mubr.f32.mxu0 0.0
    %2898 = vmatmul.mubr.f32.gmra.mrb[0].mxu0 %v609
    %v2899 = vpop.f32.mrb[0].mxu0
    %v2900 = vadd.f32 0.0, %v2899
    %v2901 = vpop.f32.mrb[0].mxu0
    %2902 = vmatprep.mubr.f32.mxu0 0.0
    %2903 = vmatmul.mubr.f32.gmra.mrb[0].mxu0 %v611
    %v2904 = vpop.f32.mrb[0].mxu0
    %v2905 = vadd.f32 0.0, %v2904
    %v2906 = vpop.f32.mrb[0].mxu0
    %2907 = vmatprep.mubr.f32.mxu0 0.0
    %2908 = vmatmul.mubr.f32.gmra.mrb[0].mxu0 %v614
    %v2909 = vpop.f32.mrb[0].mxu0
    %v2910 = vadd.f32 0.0, %v2909
    %v2911 = vpop.f32.mrb[0].mxu0
    %2912 = vmatprep.mubr.f32.mxu0 0.0
    %2913 = vmatmul.mubr.f32.gmra.mrb[0].mxu0 %v616
    %v2914 = vpop.f32.mrb[0].mxu0
    %v2915 = vadd.f32 0.0, %v2914
    %v2916 = vpop.f32.mrb[0].mxu0
    %2917 = vmatprep.mubr.f32.mxu0 0.0
    %2918 = vmatmul.mubr.f32.gmra.mrb[0].mxu0 %v619
    %v2919 = vpop.f32.mrb[0].mxu0
    %v2920 = vadd.f32 0.0, %v2919
    %v2921 = vpop.f32.mrb[0].mxu0
    %2922 = vmatprep.mubr.f32.mxu0 0.0
    %2923 = vmatmul.mubr.f32.gmra.mrb[0].mxu0 %v621
    %v2924 = vpop.f32.mrb[0].mxu0
    %v2925 = vadd.f32 0.0, %v2924
    %v2926 = vpop.f32.mrb[0].mxu0
    %2927 = vmatprep.mubr.f32.mxu0 0.0
    %2928 = vmatmul.mubr.f32.gmra.mrb[0].mxu0 %v624
    %v2929 = vpop.f32.mrb[0].mxu0
    %v2930 = vadd.f32 0.0, %v2929
    %v2931 = vpop.f32.mrb[0].mxu0
    %2932 = vmatprep.mubr.f32.mxu0 0.0
    %2933 = vmatmul.mubr.f32.gmra.mrb[0].mxu0 %v626
    %v2934 = vpop.f32.mrb[0].mxu0
    %v2935 = vadd.f32 0.0, %v2934
    %v2936 = vpop.f32.mrb[0].mxu0
    %2937 = vmatprep.mubr.f32.mxu0 0.0
    %2938 = vmatmul.mubr.f32.gmra.mrb[0].mxu0 %v629
    %v2939 = vpop.f32.mrb[0].mxu0
    %v2940 = vadd.f32 0.0, %v2939
    %v2941 = vpop.f32.mrb[0].mxu0
    %2942 = vmatprep.mubr.f32.mxu0 0.0
    %2943 = vmatmul.mubr.f32.gmra.mrb[0].mxu0 %v631
    %v2944 = vpop.f32.mrb[0].mxu0
    %v2945 = vadd.f32 0.0, %v2944
    %v2946 = vpop.f32.mrb[0].mxu0
    %2947 = vmatprep.mubr.f32.mxu0 0.0
    %2948 = vmatmul.mubr.f32.gmra.mrb[0].mxu0 %v634
    %v2949 = vpop.f32.mrb[0].mxu0
    %v2950 = vadd.f32 0.0, %v2949
    %v2951 = vpop.f32.mrb[0].mxu0
    %2952 = vmatprep.mubr.f32.mxu0 0.0
    %2953 = vmatmul.mubr.f32.gmra.mrb[0].mxu0 %v636
    %v2954 = vpop.f32.mrb[0].mxu0
    %v2955 = vadd.f32 0.0, %v2954
    %v2956 = vpop.f32.mrb[0].mxu0
    %2957 = vmatprep.mubr.f32.mxu0 0.0
    %2958 = vmatmul.mubr.f32.gmra.mrb[0].mxu0 %v639
    %v2959 = vpop.f32.mrb[0].mxu0
    %v2960 = vadd.f32 0.0, %v2959
    %v2961 = vpop.f32.mrb[0].mxu0
    %2962 = vmatprep.mubr.f32.mxu0 0.0
    %2963 = vmatmul.mubr.f32.gmra.mrb[0].mxu0 %v641
    %v2964 = vpop.f32.mrb[0].mxu0
    %v2965 = vadd.f32 0.0, %v2964
    %v2966 = vpop.f32.mrb[0].mxu0
    %2967 = vmatprep.mubr.f32.mxu0 0.0
    %2968 = vmatmul.mubr.f32.gmra.mrb[0].mxu0 %v644
    %v2969 = vpop.f32.mrb[0].mxu0
    %v2970 = vadd.f32 0.0, %v2969
    %v2971 = vpop.f32.mrb[0].mxu0
    %2972 = vmatprep.mubr.f32.mxu0 0.0
    %2973 = vmatmul.mubr.f32.gmra.mrb[0].mxu0 %v646
    %v2974 = vpop.f32.mrb[0].mxu0
    %v2975 = vadd.f32 0.0, %v2974
    %v2976 = vpop.f32.mrb[0].mxu0
    %2977 = vmatprep.mubr.f32.mxu0 0.0
    %2978 = vmatmul.mubr.f32.gmra.mrb[0].mxu0 %v649
    %v2979 = vpop.f32.mrb[0].mxu0
    %v2980 = vadd.f32 0.0, %v2979
    %v2981 = vpop.f32.mrb[0].mxu0
    %2982 = vmatprep.mubr.f32.mxu0 0.0
    %2983 = vmatmul.mubr.f32.gmra.mrb[0].mxu0 %v651
    %v2984 = vpop.f32.mrb[0].mxu0
    %v2985 = vadd.f32 0.0, %v2984
    %v2986 = vpop.f32.mrb[0].mxu0
    %2987 = vmatprep.mubr.f32.mxu0 0.0
    %2988 = vmatmul.mubr.f32.gmra.mrb[0].mxu0 %v2745
    %v2989 = vpop.f32.mrb[0].mxu0
    %v2990 = vadd.f32 0.0, %v2989
    %v2991 = vpop.f32.mrb[0].mxu0
    %2992 = vmatprep.mubr.f32.mxu0 0.0
    %2993 = vmatmul.mubr.f32.gmra.mrb[0].mxu0 %v2747
    %v2994 = vpop.f32.mrb[0].mxu0
    %v2995 = vadd.f32 0.0, %v2994
    %v2996 = vpop.f32.mrb[0].mxu0
    %2997 = vmatprep.mubr.f32.mxu0 0.0
    %2998 = vmatmul.mubr.f32.gmra.mrb[0].mxu0 %v659
    %v2999 = vpop.f32.mrb[0].mxu0
    %v3000 = vadd.f32 0.0, %v2999
    %v3001 = vpop.f32.mrb[0].mxu0
    %3002 = vmatprep.mubr.f32.mxu0 0.0
    %3003 = vmatmul.mubr.f32.gmra.mrb[0].mxu0 %v661
    %v3004 = vpop.f32.mrb[0].mxu0
    %v3005 = vadd.f32 0.0, %v3004
    %v3006 = vpop.f32.mrb[0].mxu0
    %3007 = vmatprep.mubr.f32.mxu0 0.0
    %3008 = vmatmul.mubr.f32.gmra.mrb[0].mxu0 %v664
    %v3009 = vpop.f32.mrb[0].mxu0
    %v3010 = vadd.f32 0.0, %v3009
    %v3011 = vpop.f32.mrb[0].mxu0
    %3012 = vmatprep.mubr.f32.mxu0 0.0
    %3013 = vmatmul.mubr.f32.gmra.mrb[0].mxu0 %v666
    %v3014 = vpop.f32.mrb[0].mxu0
    %v3015 = vadd.f32 0.0, %v3014
    %v3016 = vpop.f32.mrb[0].mxu0
    %3017 = vmatprep.mubr.f32.mxu0 0.0
    %3018 = vmatmul.mubr.f32.gmra.mrb[0].mxu0 %v669
    %v3019 = vpop.f32.mrb[0].mxu0
    %v3020 = vadd.f32 0.0, %v3019
    %v3021 = vpop.f32.mrb[0].mxu0
    %3022 = vmatprep.mubr.f32.mxu0 0.0
    %3023 = vmatmul.mubr.f32.gmra.mrb[0].mxu0 %v671
    %v3024 = vpop.f32.mrb[0].mxu0
    %v3025 = vadd.f32 0.0, %v3024
    %v3026 = vpop.f32.mrb[0].mxu0
    %3027 = vmatprep.mubr.f32.mxu0 0.0
    %3028 = vmatmul.mubr.f32.gmra.mrb[0].mxu0 %v674
    %v3029 = vpop.f32.mrb[0].mxu0
    %v3030 = vadd.f32 0.0, %v3029
    %v3031 = vpop.f32.mrb[0].mxu0
    %3032 = vmatprep.mubr.f32.mxu0 0.0
    %3033 = vmatmul.mubr.f32.gmra.mrb[0].mxu0 %v676
    %v3034 = vpop.f32.mrb[0].mxu0
    %v3035 = vadd.f32 0.0, %v3034
    %v3036 = vpop.f32.mrb[0].mxu0
    %3037 = vmatprep.mubr.f32.mxu0 0.0
    %3038 = vmatmul.mubr.f32.gmra.mrb[0].mxu0 %v679
    %v3039 = vpop.f32.mrb[0].mxu0
    %v3040 = vadd.f32 0.0, %v3039
    %v3041 = vpop.f32.mrb[0].mxu0
    %3042 = vmatprep.mubr.f32.mxu0 0.0
    %3043 = vmatmul.mubr.f32.gmra.mrb[0].mxu0 %v681
    %v3044 = vpop.f32.mrb[0].mxu0
    %v3045 = vadd.f32 0.0, %v3044
    %v3046 = vpop.f32.mrb[0].mxu0
    %3047 = vmatprep.mubr.f32.mxu0 0.0
    %3048 = vmatmul.mubr.f32.gmra.mrb[0].mxu0 %v684
    %v3049 = vpop.f32.mrb[0].mxu0
    %v3050 = vadd.f32 0.0, %v3049
    %v3051 = vpop.f32.mrb[0].mxu0
    %3052 = vmatprep.mubr.f32.mxu0 0.0
    %3053 = vmatmul.mubr.f32.gmra.mrb[0].mxu0 %v686
    %v3054 = vpop.f32.mrb[0].mxu0
    %v3055 = vadd.f32 0.0, %v3054
    %v3056 = vpop.f32.mrb[0].mxu0
    %3057 = vmatprep.mubr.f32.mxu0 0.0
    %3058 = vmatmul.mubr.f32.gmra.mrb[0].mxu0 %v689
    %v3059 = vpop.f32.mrb[0].mxu0
    %v3060 = vadd.f32 0.0, %v3059
    %v3061 = vpop.f32.mrb[0].mxu0
    %3062 = vmatprep.mubr.f32.mxu0 0.0
    %3063 = vmatmul.mubr.f32.gmra.mrb[0].mxu0 %v691
    %v3064 = vpop.f32.mrb[0].mxu0
    %v3065 = vadd.f32 0.0, %v3064
    %v3066 = vpop.f32.mrb[0].mxu0
    %3067 = vmatprep.mubr.f32.mxu0 0.0
    %3068 = vmatmul.mubr.f32.gmra.mrb[0].mxu0 %v694
    %v3069 = vpop.f32.mrb[0].mxu0
    %v3070 = vadd.f32 0.0, %v3069
    %v3071 = vpop.f32.mrb[0].mxu0
    %3072 = vmatprep.mubr.f32.mxu0 0.0
    %3073 = vmatmul.mubr.f32.gmra.mrb[0].mxu0 %v696
    %v3074 = vpop.f32.mrb[0].mxu0
    %v3075 = vadd.f32 0.0, %v3074
    %v3076 = vpop.f32.mrb[0].mxu0
    %3077 = vmatprep.mubr.f32.mxu0 0.0
    %3078 = vmatmul.mubr.f32.gmra.mrb[0].mxu0 %v699
    %v3079 = vpop.f32.mrb[0].mxu0
    %v3080 = vadd.f32 0.0, %v3079
    %v3081 = vpop.f32.mrb[0].mxu0
    %3082 = vmatprep.mubr.f32.mxu0 0.0
    %3083 = vmatmul.mubr.f32.gmra.mrb[0].mxu0 %v701
    %v3084 = vpop.f32.mrb[0].mxu0
    %v3085 = vadd.f32 0.0, %v3084
    %v3086 = vpop.f32.mrb[0].mxu0
    %3087 = vmatprep.mubr.f32.mxu0 0.0
    %3088 = vmatmul.mubr.f32.gmra.mrb[0].mxu0 %v704
    %v3089 = vpop.f32.mrb[0].mxu0
    %v3090 = vadd.f32 0.0, %v3089
    %v3091 = vpop.f32.mrb[0].mxu0
    %3092 = vmatprep.mubr.f32.mxu0 0.0
    %3093 = vmatmul.mubr.f32.gmra.mrb[0].mxu0 %v706
    %v3094 = vpop.f32.mrb[0].mxu0
    %v3095 = vadd.f32 0.0, %v3094
    %v3096 = vpop.f32.mrb[0].mxu0
    %3097 = vmatprep.mubr.f32.mxu0 0.0
    %3098 = vmatmul.mubr.f32.gmra.mrb[0].mxu0 %v709
    %v3099 = vpop.f32.mrb[0].mxu0
    %v3100 = vadd.f32 0.0, %v3099
    %v3101 = vpop.f32.mrb[0].mxu0
    %3102 = vmatprep.mubr.f32.mxu0 0.0
    %3103 = vmatmul.mubr.f32.gmra.mrb[0].mxu0 %v711
    %v3104 = vpop.f32.mrb[0].mxu0
    %v3105 = vadd.f32 0.0, %v3104
    %v3106 = vpop.f32.mrb[0].mxu0
    %3107 = vmatprep.mubr.f32.mxu0 0.0
    %3108 = vmatmul.mubr.f32.gmra.mrb[0].mxu0 %v714
    %v3109 = vpop.f32.mrb[0].mxu0
    %v3110 = vadd.f32 0.0, %v3109
    %v3111 = vpop.f32.mrb[0].mxu0
    %3112 = vmatprep.mubr.f32.mxu0 0.0
    %3113 = vmatmul.mubr.f32.gmra.mrb[0].mxu0 %v716
    %v3114 = vpop.f32.mrb[0].mxu0
    %v3115 = vadd.f32 0.0, %v3114
    %v3116 = vpop.f32.mrb[0].mxu0
    %3117 = vmatprep.mubr.f32.mxu0 0.0
    %3118 = vmatmul.mubr.f32.gmra.mrb[0].mxu0 %v719
    %v3119 = vpop.f32.mrb[0].mxu0
    %v3120 = vadd.f32 0.0, %v3119
    %v3121 = vpop.f32.mrb[0].mxu0
    %3122 = vmatprep.mubr.f32.mxu0 0.0
    %3123 = vmatmul.mubr.f32.gmra.mrb[0].mxu0 %v721
    %v3124 = vpop.f32.mrb[0].mxu0
    %v3125 = vadd.f32 0.0, %v3124
    %v3126 = vpop.f32.mrb[0].mxu0
    %3127 = vmatprep.mubr.f32.mxu0 0.0
    %3128 = vmatmul.mubr.f32.gmra.mrb[0].mxu0 %v724
    %v3129 = vpop.f32.mrb[0].mxu0
    %v3130 = vadd.f32 0.0, %v3129
    %v3131 = vpop.f32.mrb[0].mxu0
    %3132 = vmatprep.mubr.f32.mxu0 0.0
    %3133 = vmatmul.mubr.f32.gmra.mrb[0].mxu0 %v726
    %v3134 = vpop.f32.mrb[0].mxu0
    %v3135 = vadd.f32 0.0, %v3134
    %v3136 = vpop.f32.mrb[0].mxu0
    %3137 = vmatprep.mubr.f32.mxu0 0.0
    %3138 = vmatmul.mubr.f32.gmra.mrb[0].mxu0 %v729
    %v3139 = vpop.f32.mrb[0].mxu0
    %v3140 = vadd.f32 0.0, %v3139
    %v3141 = vpop.f32.mrb[0].mxu0
    %3142 = vmatprep.mubr.f32.mxu0 0.0
    %3143 = vmatmul.mubr.f32.gmra.mrb[0].mxu0 %v731
    %v3144 = vpop.f32.mrb[0].mxu0
    %v3145 = vadd.f32 0.0, %v3144
    %v3146 = vpop.f32.mrb[0].mxu0
    %3147 = vmatprep.mubr.f32.mxu0 0.0
    %3148 = vmatmul.mubr.f32.gmra.mrb[0].mxu0 %v2750
    %v3149 = vpop.f32.mrb[0].mxu0
    %v3150 = vadd.f32 0.0, %v3149
    %v3151 = vpop.f32.mrb[0].mxu0
    %3152 = vmatprep.mubr.f32.mxu0 0.0
    %3153 = vmatmul.mubr.f32.gmra.mrb[0].mxu0 %v2752
    %v3154 = vpop.f32.mrb[0].mxu0
    %v3155 = vadd.f32 0.0, %v3154
    %v3156 = vpop.f32.mrb[0].mxu0
    %3157 = vdwg.mxu0
    %v3158 = vadd.f32 %v2673, %v2840
    %v3159 = vadd.f32 %v2674, %v2845
    %v3160 = vadd.f32 %v2675, %v2850
    %v3161 = vadd.f32 %v2676, %v2855
    %v3162 = vadd.f32 %v2677, %v2860
    %v3163 = vadd.f32 %v2678, %v2865
    %v3164 = vadd.f32 %v2679, %v2870
    %v3165 = vadd.f32 %v2680, %v2875
    %v3166 = vadd.f32 %v2681, %v2880
    %v3167 = vadd.f32 %v2682, %v2885
    %v3168 = vadd.f32 %v2683, %v2890
    %v3169 = vadd.f32 %v2684, %v2895
    %v3170 = vadd.f32 %v2685, %v2900
    %v3171 = vadd.f32 %v2686, %v2905
    %v3172 = vadd.f32 %v2687, %v2910
    %v3173 = vadd.f32 %v2688, %v2915
    %v3174 = vadd.f32 %v2689, %v2920
    %v3175 = vadd.f32 %v2690, %v2925
    %v3176 = vadd.f32 %v2691, %v2930
    %v3177 = vadd.f32 %v2692, %v2935
    %v3178 = vadd.f32 %v2693, %v2940
    %v3179 = vadd.f32 %v2694, %v2945
    %v3180 = vadd.f32 %v2695, %v2950
    %v3181 = vadd.f32 %v2696, %v2955
    %v3182 = vadd.f32 %v2697, %v2960
    %v3183 = vadd.f32 %v2698, %v2965
    %v3184 = vadd.f32 %v2699, %v2970
    %v3185 = vadd.f32 %v2700, %v2975
    %v3186 = vadd.f32 %v2701, %v2980
    %v3187 = vadd.f32 %v2702, %v2985
    %v3188 = vadd.f32 %v2703, %v2990
    %v3189 = vadd.f32 %v2704, %v2995
    %v3190 = vadd.f32 %v2705, %v3000
    %v3191 = vadd.f32 %v2706, %v3005
    %v3192 = vadd.f32 %v2707, %v3010
    %v3193 = vadd.f32 %v2708, %v3015
    %v3194 = vadd.f32 %v2709, %v3020
    %v3195 = vadd.f32 %v2710, %v3025
    %v3196 = vadd.f32 %v2711, %v3030
    %v3197 = vadd.f32 %v2712, %v3035
    %v3198 = vadd.f32 %v2713, %v3040
    %v3199 = vadd.f32 %v2714, %v3045
    %v3200 = vadd.f32 %v2715, %v3050
    %v3201 = vadd.f32 %v2716, %v3055
    %v3202 = vadd.f32 %v2717, %v3060
    %v3203 = vadd.f32 %v2718, %v3065
    %v3204 = vadd.f32 %v2719, %v3070
    %v3205 = vadd.f32 %v2720, %v3075
    %v3206 = vadd.f32 %v2721, %v3080
    %v3207 = vadd.f32 %v2722, %v3085
    %v3208 = vadd.f32 %v2723, %v3090
    %v3209 = vadd.f32 %v2724, %v3095
    %v3210 = vadd.f32 %v2725, %v3100
    %v3211 = vadd.f32 %v2726, %v3105
    %v3212 = vadd.f32 %v2727, %v3110
    %v3213 = vadd.f32 %v2728, %v3115
    %v3214 = vadd.f32 %v2729, %v3120
    %v3215 = vadd.f32 %v2730, %v3125
    %v3216 = vadd.f32 %v2731, %v3130
    %v3217 = vadd.f32 %v2732, %v3135
    %v3218 = vadd.f32 %v2733, %v3140
    %v3219 = vadd.f32 %v2734, %v3145
    %v3220 = vadd.f32 %v2735, %v3150
    %v3221 = vadd.f32 %v2736, %v3155
    %v3222 = vrot.slane %v399, 2
    %v3223 = vrot.slane %v400, 2
    %v3224 = vsel %vm1582, %v3222, %v3223
    %v3225 = vrot.slane %v401, 2
    %v3226 = vsel %vm1582, %v3223, %v3225
    %v3227 = vrot.slane %v453, 2
    %v3228 = vrot.slane %v454, 2
    %v3229 = vsel %vm1582, %v3227, %v3228
    %v3230 = vrot.slane %v455, 2
    %v3231 = vsel %vm1582, %v3228, %v3230
    %v3236 = vld [vmem:[#allocation7 + $0x280] sm:$0xff]
    %v3237 = vld [vmem:[#allocation7 + $0x288] sm:$0xff]
    %v3238 = vld [vmem:[#allocation7 + $0x290] sm:$0xff]
    %v3239 = vld [vmem:[#allocation7 + $0x298] sm:$0xff]
    %v3240 = vld [vmem:[#allocation7 + $0x2a0] sm:$0xff]
    %v3241 = vld [vmem:[#allocation7 + $0x2a8] sm:$0xff]
    %v3242 = vld [vmem:[#allocation7 + $0x2b0] sm:$0xff]
    %v3243 = vld [vmem:[#allocation7 + $0x2b8] sm:$0xff]
    %v3244 = vld [vmem:[#allocation7 + $0x2c0] sm:$0xff]
    %v3245 = vld [vmem:[#allocation7 + $0x2c8] sm:$0xff]
    %v3246 = vld [vmem:[#allocation7 + $0x2d0] sm:$0xff]
    %v3247 = vld [vmem:[#allocation7 + $0x2d8] sm:$0xff]
    %v3248 = vld [vmem:[#allocation7 + $0x2e0] sm:$0xff]
    %v3249 = vld [vmem:[#allocation7 + $0x2e8] sm:$0xff]
    %v3250 = vld [vmem:[#allocation7 + $0x2f0] sm:$0xff]
    %v3251 = vld [vmem:[#allocation7 + $0x2f8] sm:$0xff]
    %3252 = vmatprep.subr.mxu0 0.0
    %3253 = vmatpush1.msra.mxu0 %v3236
    %3254 = vmatprep.subr.mxu0 0.0
    %3255 = vmatpush1.msra.mxu0 %v3237
    %3256 = vmatprep.subr.mxu0 0.0
    %3257 = vmatpush1.msra.mxu0 %v3238
    %3258 = vmatprep.subr.mxu0 0.0
    %3259 = vmatpush1.msra.mxu0 %v3239
    %3260 = vmatprep.subr.mxu0 0.0
    %3261 = vmatpush1.msra.mxu0 %v3240
    %3262 = vmatprep.subr.mxu0 0.0
    %3263 = vmatpush1.msra.mxu0 %v3241
    %3264 = vmatprep.subr.mxu0 0.0
    %3265 = vmatpush1.msra.mxu0 %v3242
    %3266 = vmatprep.subr.mxu0 0.0
    %3267 = vmatpush1.msra.mxu0 %v3243
    %3268 = vmatprep.subr.mxu0 0.0
    %3269 = vmatpush1.msra.mxu0 %v3244
    %3270 = vmatprep.subr.mxu0 0.0
    %3271 = vmatpush1.msra.mxu0 %v3245
    %3272 = vmatprep.subr.mxu0 0.0
    %3273 = vmatpush1.msra.mxu0 %v3246
    %3274 = vmatprep.subr.mxu0 0.0
    %3275 = vmatpush1.msra.mxu0 %v3247
    %3276 = vmatprep.subr.mxu0 0.0
    %3277 = vmatpush1.msra.mxu0 %v3248
    %3278 = vmatprep.subr.mxu0 0.0
    %3279 = vmatpush1.msra.mxu0 %v3249
    %3280 = vmatprep.subr.mxu0 0.0
    %3281 = vmatpush1.msra.mxu0 %v3250
    %3282 = vmatprep.subr.mxu0 0.0
    %3283 = vmatpush1.msra.mxu0 %v3251
    %3284 = vmatprep.subr.mxu0 0.0
    %3285 = vmatpush1.msra.mxu0 0.0
    %3286 = vmatprep.subr.mxu0 0.0
    %3287 = vmatpush1.msra.mxu0 0.0
    %3288 = vmatprep.subr.mxu0 0.0
    %3289 = vmatpush1.msra.mxu0 0.0
    %3290 = vmatprep.subr.mxu0 0.0
    %3291 = vmatpush1.msra.mxu0 0.0
    %3292 = vmatprep.subr.mxu0 0.0
    %3293 = vmatpush1.msra.mxu0 0.0
    %3294 = vmatprep.subr.mxu0 0.0
    %3295 = vmatpush1.msra.mxu0 0.0
    %3296 = vmatprep.subr.mxu0 0.0
    %3297 = vmatpush1.msra.mxu0 0.0
    %3298 = vmatprep.subr.mxu0 0.0
    %3299 = vmatpush1.msra.mxu0 0.0
    %3300 = vmatprep.subr.mxu0 0.0
    %3301 = vmatpush1.msra.mxu0 0.0
    %3302 = vmatprep.subr.mxu0 0.0
    %3303 = vmatpush1.msra.mxu0 0.0
    %3304 = vmatprep.subr.mxu0 0.0
    %3305 = vmatpush1.msra.mxu0 0.0
    %3306 = vmatprep.subr.mxu0 0.0
    %3307 = vmatpush1.msra.mxu0 0.0
    %3308 = vmatprep.subr.mxu0 0.0
    %3309 = vmatpush1.msra.mxu0 0.0
    %3310 = vmatprep.subr.mxu0 0.0
    %3311 = vmatpush1.msra.mxu0 0.0
    %3312 = vmatprep.subr.mxu0 0.0
    %3313 = vmatpush1.msra.mxu0 0.0
    %3314 = vmatprep.subr.mxu0 0.0
    %3315 = vmatpush1.msra.mxu0 0.0
    %3316 = vmatprep.mubr.f32.mxu0 0.0
    %3317 = vmatmul.mubr.f32.gmra.mrb[0].mxu0 %v1590
    %v3318 = vpop.f32.mrb[0].mxu0
    %v3319 = vadd.f32 0.0, %v3318
    %v3320 = vpop.f32.mrb[0].mxu0
    %3321 = vmatprep.mubr.f32.mxu0 0.0
    %3322 = vmatmul.mubr.f32.gmra.mrb[0].mxu0 %v1592
    %v3323 = vpop.f32.mrb[0].mxu0
    %v3324 = vadd.f32 0.0, %v3323
    %v3325 = vpop.f32.mrb[0].mxu0
    %3326 = vmatprep.mubr.f32.mxu0 0.0
    %3327 = vmatmul.mubr.f32.gmra.mrb[0].mxu0 %v1595
    %v3328 = vpop.f32.mrb[0].mxu0
    %v3329 = vadd.f32 0.0, %v3328
    %v3330 = vpop.f32.mrb[0].mxu0
    %3331 = vmatprep.mubr.f32.mxu0 0.0
    %3332 = vmatmul.mubr.f32.gmra.mrb[0].mxu0 %v1597
    %v3333 = vpop.f32.mrb[0].mxu0
    %v3334 = vadd.f32 0.0, %v3333
    %v3335 = vpop.f32.mrb[0].mxu0
    %3336 = vmatprep.mubr.f32.mxu0 0.0
    %3337 = vmatmul.mubr.f32.gmra.mrb[0].mxu0 %v1600
    %v3338 = vpop.f32.mrb[0].mxu0
    %v3339 = vadd.f32 0.0, %v3338
    %v3340 = vpop.f32.mrb[0].mxu0
    %3341 = vmatprep.mubr.f32.mxu0 0.0
    %3342 = vmatmul.mubr.f32.gmra.mrb[0].mxu0 %v1602
    %v3343 = vpop.f32.mrb[0].mxu0
    %v3344 = vadd.f32 0.0, %v3343
    %v3345 = vpop.f32.mrb[0].mxu0
    %3346 = vmatprep.mubr.f32.mxu0 0.0
    %3347 = vmatmul.mubr.f32.gmra.mrb[0].mxu0 %v1605
    %v3348 = vpop.f32.mrb[0].mxu0
    %v3349 = vadd.f32 0.0, %v3348
    %v3350 = vpop.f32.mrb[0].mxu0
    %3351 = vmatprep.mubr.f32.mxu0 0.0
    %3352 = vmatmul.mubr.f32.gmra.mrb[0].mxu0 %v1607
    %v3353 = vpop.f32.mrb[0].mxu0
    %v3354 = vadd.f32 0.0, %v3353
    %v3355 = vpop.f32.mrb[0].mxu0
    %3356 = vmatprep.mubr.f32.mxu0 0.0
    %3357 = vmatmul.mubr.f32.gmra.mrb[0].mxu0 %v1610
    %v3358 = vpop.f32.mrb[0].mxu0
    %v3359 = vadd.f32 0.0, %v3358
    %v3360 = vpop.f32.mrb[0].mxu0
    %3361 = vmatprep.mubr.f32.mxu0 0.0
    %3362 = vmatmul.mubr.f32.gmra.mrb[0].mxu0 %v1612
    %v3363 = vpop.f32.mrb[0].mxu0
    %v3364 = vadd.f32 0.0, %v3363
    %v3365 = vpop.f32.mrb[0].mxu0
    %3366 = vmatprep.mubr.f32.mxu0 0.0
    %3367 = vmatmul.mubr.f32.gmra.mrb[0].mxu0 %v1615
    %v3368 = vpop.f32.mrb[0].mxu0
    %v3369 = vadd.f32 0.0, %v3368
    %v3370 = vpop.f32.mrb[0].mxu0
    %3371 = vmatprep.mubr.f32.mxu0 0.0
    %3372 = vmatmul.mubr.f32.gmra.mrb[0].mxu0 %v1617
    %v3373 = vpop.f32.mrb[0].mxu0
    %v3374 = vadd.f32 0.0, %v3373
    %v3375 = vpop.f32.mrb[0].mxu0
    %3376 = vmatprep.mubr.f32.mxu0 0.0
    %3377 = vmatmul.mubr.f32.gmra.mrb[0].mxu0 %v1620
    %v3378 = vpop.f32.mrb[0].mxu0
    %v3379 = vadd.f32 0.0, %v3378
    %v3380 = vpop.f32.mrb[0].mxu0
    %3381 = vmatprep.mubr.f32.mxu0 0.0
    %3382 = vmatmul.mubr.f32.gmra.mrb[0].mxu0 %v1622
    %v3383 = vpop.f32.mrb[0].mxu0
    %v3384 = vadd.f32 0.0, %v3383
    %v3385 = vpop.f32.mrb[0].mxu0
    %3386 = vmatprep.mubr.f32.mxu0 0.0
    %3387 = vmatmul.mubr.f32.gmra.mrb[0].mxu0 %v1625
    %v3388 = vpop.f32.mrb[0].mxu0
    %v3389 = vadd.f32 0.0, %v3388
    %v3390 = vpop.f32.mrb[0].mxu0
    %3391 = vmatprep.mubr.f32.mxu0 0.0
    %3392 = vmatmul.mubr.f32.gmra.mrb[0].mxu0 %v1627
    %v3393 = vpop.f32.mrb[0].mxu0
    %v3394 = vadd.f32 0.0, %v3393
    %v3395 = vpop.f32.mrb[0].mxu0
    %3396 = vmatprep.mubr.f32.mxu0 0.0
    %3397 = vmatmul.mubr.f32.gmra.mrb[0].mxu0 %v1630
    %v3398 = vpop.f32.mrb[0].mxu0
    %v3399 = vadd.f32 0.0, %v3398
    %v3400 = vpop.f32.mrb[0].mxu0
    %3401 = vmatprep.mubr.f32.mxu0 0.0
    %3402 = vmatmul.mubr.f32.gmra.mrb[0].mxu0 %v1632
    %v3403 = vpop.f32.mrb[0].mxu0
    %v3404 = vadd.f32 0.0, %v3403
    %v3405 = vpop.f32.mrb[0].mxu0
    %3406 = vmatprep.mubr.f32.mxu0 0.0
    %3407 = vmatmul.mubr.f32.gmra.mrb[0].mxu0 %v1635
    %v3408 = vpop.f32.mrb[0].mxu0
    %v3409 = vadd.f32 0.0, %v3408
    %v3410 = vpop.f32.mrb[0].mxu0
    %3411 = vmatprep.mubr.f32.mxu0 0.0
    %3412 = vmatmul.mubr.f32.gmra.mrb[0].mxu0 %v1637
    %v3413 = vpop.f32.mrb[0].mxu0
    %v3414 = vadd.f32 0.0, %v3413
    %v3415 = vpop.f32.mrb[0].mxu0
    %3416 = vmatprep.mubr.f32.mxu0 0.0
    %3417 = vmatmul.mubr.f32.gmra.mrb[0].mxu0 %v1640
    %v3418 = vpop.f32.mrb[0].mxu0
    %v3419 = vadd.f32 0.0, %v3418
    %v3420 = vpop.f32.mrb[0].mxu0
    %3421 = vmatprep.mubr.f32.mxu0 0.0
    %3422 = vmatmul.mubr.f32.gmra.mrb[0].mxu0 %v1642
    %v3423 = vpop.f32.mrb[0].mxu0
    %v3424 = vadd.f32 0.0, %v3423
    %v3425 = vpop.f32.mrb[0].mxu0
    %3426 = vmatprep.mubr.f32.mxu0 0.0
    %3427 = vmatmul.mubr.f32.gmra.mrb[0].mxu0 %v1645
    %v3428 = vpop.f32.mrb[0].mxu0
    %v3429 = vadd.f32 0.0, %v3428
    %v3430 = vpop.f32.mrb[0].mxu0
    %3431 = vmatprep.mubr.f32.mxu0 0.0
    %3432 = vmatmul.mubr.f32.gmra.mrb[0].mxu0 %v1647
    %v3433 = vpop.f32.mrb[0].mxu0
    %v3434 = vadd.f32 0.0, %v3433
    %v3435 = vpop.f32.mrb[0].mxu0
    %3436 = vmatprep.mubr.f32.mxu0 0.0
    %3437 = vmatmul.mubr.f32.gmra.mrb[0].mxu0 %v1650
    %v3438 = vpop.f32.mrb[0].mxu0
    %v3439 = vadd.f32 0.0, %v3438
    %v3440 = vpop.f32.mrb[0].mxu0
    %3441 = vmatprep.mubr.f32.mxu0 0.0
    %3442 = vmatmul.mubr.f32.gmra.mrb[0].mxu0 %v1652
    %v3443 = vpop.f32.mrb[0].mxu0
    %v3444 = vadd.f32 0.0, %v3443
    %v3445 = vpop.f32.mrb[0].mxu0
    %3446 = vmatprep.mubr.f32.mxu0 0.0
    %3447 = vmatmul.mubr.f32.gmra.mrb[0].mxu0 %v1655
    %v3448 = vpop.f32.mrb[0].mxu0
    %v3449 = vadd.f32 0.0, %v3448
    %v3450 = vpop.f32.mrb[0].mxu0
    %3451 = vmatprep.mubr.f32.mxu0 0.0
    %3452 = vmatmul.mubr.f32.gmra.mrb[0].mxu0 %v1657
    %v3453 = vpop.f32.mrb[0].mxu0
    %v3454 = vadd.f32 0.0, %v3453
    %v3455 = vpop.f32.mrb[0].mxu0
    %3456 = vmatprep.mubr.f32.mxu0 0.0
    %3457 = vmatmul.mubr.f32.gmra.mrb[0].mxu0 %v1660
    %v3458 = vpop.f32.mrb[0].mxu0
    %v3459 = vadd.f32 0.0, %v3458
    %v3460 = vpop.f32.mrb[0].mxu0
    %3461 = vmatprep.mubr.f32.mxu0 0.0
    %3462 = vmatmul.mubr.f32.gmra.mrb[0].mxu0 %v1662
    %v3463 = vpop.f32.mrb[0].mxu0
    %v3464 = vadd.f32 0.0, %v3463
    %v3465 = vpop.f32.mrb[0].mxu0
    %3466 = vmatprep.mubr.f32.mxu0 0.0
    %3467 = vmatmul.mubr.f32.gmra.mrb[0].mxu0 %v3224
    %v3468 = vpop.f32.mrb[0].mxu0
    %v3469 = vadd.f32 0.0, %v3468
    %v3470 = vpop.f32.mrb[0].mxu0
    %3471 = vmatprep.mubr.f32.mxu0 0.0
    %3472 = vmatmul.mubr.f32.gmra.mrb[0].mxu0 %v3226
    %v3473 = vpop.f32.mrb[0].mxu0
    %v3474 = vadd.f32 0.0, %v3473
    %v3475 = vpop.f32.mrb[0].mxu0
    %3476 = vmatprep.mubr.f32.mxu0 0.0
    %3477 = vmatmul.mubr.f32.gmra.mrb[0].mxu0 %v1670
    %v3478 = vpop.f32.mrb[0].mxu0
    %v3479 = vadd.f32 0.0, %v3478
    %v3480 = vpop.f32.mrb[0].mxu0
    %3481 = vmatprep.mubr.f32.mxu0 0.0
    %3482 = vmatmul.mubr.f32.gmra.mrb[0].mxu0 %v1672
    %v3483 = vpop.f32.mrb[0].mxu0
    %v3484 = vadd.f32 0.0, %v3483
    %v3485 = vpop.f32.mrb[0].mxu0
    %3486 = vmatprep.mubr.f32.mxu0 0.0
    %3487 = vmatmul.mubr.f32.gmra.mrb[0].mxu0 %v1675
    %v3488 = vpop.f32.mrb[0].mxu0
    %v3489 = vadd.f32 0.0, %v3488
    %v3490 = vpop.f32.mrb[0].mxu0
    %3491 = vmatprep.mubr.f32.mxu0 0.0
    %3492 = vmatmul.mubr.f32.gmra.mrb[0].mxu0 %v1677
    %v3493 = vpop.f32.mrb[0].mxu0
    %v3494 = vadd.f32 0.0, %v3493
    %v3495 = vpop.f32.mrb[0].mxu0
    %3496 = vmatprep.mubr.f32.mxu0 0.0
    %3497 = vmatmul.mubr.f32.gmra.mrb[0].mxu0 %v1680
    %v3498 = vpop.f32.mrb[0].mxu0
    %v3499 = vadd.f32 0.0, %v3498
    %v3500 = vpop.f32.mrb[0].mxu0
    %3501 = vmatprep.mubr.f32.mxu0 0.0
    %3502 = vmatmul.mubr.f32.gmra.mrb[0].mxu0 %v1682
    %v3503 = vpop.f32.mrb[0].mxu0
    %v3504 = vadd.f32 0.0, %v3503
    %v3505 = vpop.f32.mrb[0].mxu0
    %3506 = vmatprep.mubr.f32.mxu0 0.0
    %3507 = vmatmul.mubr.f32.gmra.mrb[0].mxu0 %v1685
    %v3508 = vpop.f32.mrb[0].mxu0
    %v3509 = vadd.f32 0.0, %v3508
    %v3510 = vpop.f32.mrb[0].mxu0
    %3511 = vmatprep.mubr.f32.mxu0 0.0
    %3512 = vmatmul.mubr.f32.gmra.mrb[0].mxu0 %v1687
    %v3513 = vpop.f32.mrb[0].mxu0
    %v3514 = vadd.f32 0.0, %v3513
    %v3515 = vpop.f32.mrb[0].mxu0
    %3516 = vmatprep.mubr.f32.mxu0 0.0
    %3517 = vmatmul.mubr.f32.gmra.mrb[0].mxu0 %v1690
    %v3518 = vpop.f32.mrb[0].mxu0
    %v3519 = vadd.f32 0.0, %v3518
    %v3520 = vpop.f32.mrb[0].mxu0
    %3521 = vmatprep.mubr.f32.mxu0 0.0
    %3522 = vmatmul.mubr.f32.gmra.mrb[0].mxu0 %v1692
    %v3523 = vpop.f32.mrb[0].mxu0
    %v3524 = vadd.f32 0.0, %v3523
    %v3525 = vpop.f32.mrb[0].mxu0
    %3526 = vmatprep.mubr.f32.mxu0 0.0
    %3527 = vmatmul.mubr.f32.gmra.mrb[0].mxu0 %v1695
    %v3528 = vpop.f32.mrb[0].mxu0
    %v3529 = vadd.f32 0.0, %v3528
    %v3530 = vpop.f32.mrb[0].mxu0
    %3531 = vmatprep.mubr.f32.mxu0 0.0
    %3532 = vmatmul.mubr.f32.gmra.mrb[0].mxu0 %v1697
    %v3533 = vpop.f32.mrb[0].mxu0
    %v3534 = vadd.f32 0.0, %v3533
    %v3535 = vpop.f32.mrb[0].mxu0
    %3536 = vmatprep.mubr.f32.mxu0 0.0
    %3537 = vmatmul.mubr.f32.gmra.mrb[0].mxu0 %v1700
    %v3538 = vpop.f32.mrb[0].mxu0
    %v3539 = vadd.f32 0.0, %v3538
    %v3540 = vpop.f32.mrb[0].mxu0
    %3541 = vmatprep.mubr.f32.mxu0 0.0
    %3542 = vmatmul.mubr.f32.gmra.mrb[0].mxu0 %v1702
    %v3543 = vpop.f32.mrb[0].mxu0
    %v3544 = vadd.f32 0.0, %v3543
    %v3545 = vpop.f32.mrb[0].mxu0
    %3546 = vmatprep.mubr.f32.mxu0 0.0
    %3547 = vmatmul.mubr.f32.gmra.mrb[0].mxu0 %v1705
    %v3548 = vpop.f32.mrb[0].mxu0
    %v3549 = vadd.f32 0.0, %v3548
    %v3550 = vpop.f32.mrb[0].mxu0
    %3551 = vmatprep.mubr.f32.mxu0 0.0
    %3552 = vmatmul.mubr.f32.gmra.mrb[0].mxu0 %v1707
    %v3553 = vpop.f32.mrb[0].mxu0
    %v3554 = vadd.f32 0.0, %v3553
    %v3555 = vpop.f32.mrb[0].mxu0
    %3556 = vmatprep.mubr.f32.mxu0 0.0
    %3557 = vmatmul.mubr.f32.gmra.mrb[0].mxu0 %v1710
    %v3558 = vpop.f32.mrb[0].mxu0
    %v3559 = vadd.f32 0.0, %v3558
    %v3560 = vpop.f32.mrb[0].mxu0
    %3561 = vmatprep.mubr.f32.mxu0 0.0
    %3562 = vmatmul.mubr.f32.gmra.mrb[0].mxu0 %v1712
    %v3563 = vpop.f32.mrb[0].mxu0
    %v3564 = vadd.f32 0.0, %v3563
    %v3565 = vpop.f32.mrb[0].mxu0
    %3566 = vmatprep.mubr.f32.mxu0 0.0
    %3567 = vmatmul.mubr.f32.gmra.mrb[0].mxu0 %v1715
    %v3568 = vpop.f32.mrb[0].mxu0
    %v3569 = vadd.f32 0.0, %v3568
    %v3570 = vpop.f32.mrb[0].mxu0
    %3571 = vmatprep.mubr.f32.mxu0 0.0
    %3572 = vmatmul.mubr.f32.gmra.mrb[0].mxu0 %v1717
    %v3573 = vpop.f32.mrb[0].mxu0
    %v3574 = vadd.f32 0.0, %v3573
    %v3575 = vpop.f32.mrb[0].mxu0
    %3576 = vmatprep.mubr.f32.mxu0 0.0
    %3577 = vmatmul.mubr.f32.gmra.mrb[0].mxu0 %v1720
    %v3578 = vpop.f32.mrb[0].mxu0
    %v3579 = vadd.f32 0.0, %v3578
    %v3580 = vpop.f32.mrb[0].mxu0
    %3581 = vmatprep.mubr.f32.mxu0 0.0
    %3582 = vmatmul.mubr.f32.gmra.mrb[0].mxu0 %v1722
    %v3583 = vpop.f32.mrb[0].mxu0
    %v3584 = vadd.f32 0.0, %v3583
    %v3585 = vpop.f32.mrb[0].mxu0
    %3586 = vmatprep.mubr.f32.mxu0 0.0
    %3587 = vmatmul.mubr.f32.gmra.mrb[0].mxu0 %v1725
    %v3588 = vpop.f32.mrb[0].mxu0
    %v3589 = vadd.f32 0.0, %v3588
    %v3590 = vpop.f32.mrb[0].mxu0
    %3591 = vmatprep.mubr.f32.mxu0 0.0
    %3592 = vmatmul.mubr.f32.gmra.mrb[0].mxu0 %v1727
    %v3593 = vpop.f32.mrb[0].mxu0
    %v3594 = vadd.f32 0.0, %v3593
    %v3595 = vpop.f32.mrb[0].mxu0
    %3596 = vmatprep.mubr.f32.mxu0 0.0
    %3597 = vmatmul.mubr.f32.gmra.mrb[0].mxu0 %v1730
    %v3598 = vpop.f32.mrb[0].mxu0
    %v3599 = vadd.f32 0.0, %v3598
    %v3600 = vpop.f32.mrb[0].mxu0
    %3601 = vmatprep.mubr.f32.mxu0 0.0
    %3602 = vmatmul.mubr.f32.gmra.mrb[0].mxu0 %v1732
    %v3603 = vpop.f32.mrb[0].mxu0
    %v3604 = vadd.f32 0.0, %v3603
    %v3605 = vpop.f32.mrb[0].mxu0
    %3606 = vmatprep.mubr.f32.mxu0 0.0
    %3607 = vmatmul.mubr.f32.gmra.mrb[0].mxu0 %v1735
    %v3608 = vpop.f32.mrb[0].mxu0
    %v3609 = vadd.f32 0.0, %v3608
    %v3610 = vpop.f32.mrb[0].mxu0
    %3611 = vmatprep.mubr.f32.mxu0 0.0
    %3612 = vmatmul.mubr.f32.gmra.mrb[0].mxu0 %v1737
    %v3613 = vpop.f32.mrb[0].mxu0
    %v3614 = vadd.f32 0.0, %v3613
    %v3615 = vpop.f32.mrb[0].mxu0
    %3616 = vmatprep.mubr.f32.mxu0 0.0
    %3617 = vmatmul.mubr.f32.gmra.mrb[0].mxu0 %v1740
    %v3618 = vpop.f32.mrb[0].mxu0
    %v3619 = vadd.f32 0.0, %v3618
    %v3620 = vpop.f32.mrb[0].mxu0
    %3621 = vmatprep.mubr.f32.mxu0 0.0
    %3622 = vmatmul.mubr.f32.gmra.mrb[0].mxu0 %v1742
    %v3623 = vpop.f32.mrb[0].mxu0
    %v3624 = vadd.f32 0.0, %v3623
    %v3625 = vpop.f32.mrb[0].mxu0
    %3626 = vmatprep.mubr.f32.mxu0 0.0
    %3627 = vmatmul.mubr.f32.gmra.mrb[0].mxu0 %v3229
    %v3628 = vpop.f32.mrb[0].mxu0
    %v3629 = vadd.f32 0.0, %v3628
    %v3630 = vpop.f32.mrb[0].mxu0
    %3631 = vmatprep.mubr.f32.mxu0 0.0
    %3632 = vmatmul.mubr.f32.gmra.mrb[0].mxu0 %v3231
    %v3633 = vpop.f32.mrb[0].mxu0
    %v3634 = vadd.f32 0.0, %v3633
    %v3635 = vpop.f32.mrb[0].mxu0
    %3636 = vdwg.mxu0
    %v3637 = vadd.f32 %v3158, %v3319
    %v3638 = vadd.f32 %v3159, %v3324
    %v3639 = vadd.f32 %v3160, %v3329
    %v3640 = vadd.f32 %v3161, %v3334
    %v3641 = vadd.f32 %v3162, %v3339
    %v3642 = vadd.f32 %v3163, %v3344
    %v3643 = vadd.f32 %v3164, %v3349
    %v3644 = vadd.f32 %v3165, %v3354
    %v3645 = vadd.f32 %v3166, %v3359
    %v3646 = vadd.f32 %v3167, %v3364
    %v3647 = vadd.f32 %v3168, %v3369
    %v3648 = vadd.f32 %v3169, %v3374
    %v3649 = vadd.f32 %v3170, %v3379
    %v3650 = vadd.f32 %v3171, %v3384
    %v3651 = vadd.f32 %v3172, %v3389
    %v3652 = vadd.f32 %v3173, %v3394
    %v3653 = vadd.f32 %v3174, %v3399
    %v3654 = vadd.f32 %v3175, %v3404
    %v3655 = vadd.f32 %v3176, %v3409
    %v3656 = vadd.f32 %v3177, %v3414
    %v3657 = vadd.f32 %v3178, %v3419
    %v3658 = vadd.f32 %v3179, %v3424
    %v3659 = vadd.f32 %v3180, %v3429
    %v3660 = vadd.f32 %v3181, %v3434
    %v3661 = vadd.f32 %v3182, %v3439
    %v3662 = vadd.f32 %v3183, %v3444
    %v3663 = vadd.f32 %v3184, %v3449
    %v3664 = vadd.f32 %v3185, %v3454
    %v3665 = vadd.f32 %v3186, %v3459
    %v3666 = vadd.f32 %v3187, %v3464
    %v3667 = vadd.f32 %v3188, %v3469
    %v3668 = vadd.f32 %v3189, %v3474
    %v3669 = vadd.f32 %v3190, %v3479
    %v3670 = vadd.f32 %v3191, %v3484
    %v3671 = vadd.f32 %v3192, %v3489
    %v3672 = vadd.f32 %v3193, %v3494
    %v3673 = vadd.f32 %v3194, %v3499
    %v3674 = vadd.f32 %v3195, %v3504
    %v3675 = vadd.f32 %v3196, %v3509
    %v3676 = vadd.f32 %v3197, %v3514
    %v3677 = vadd.f32 %v3198, %v3519
    %v3678 = vadd.f32 %v3199, %v3524
    %v3679 = vadd.f32 %v3200, %v3529
    %v3680 = vadd.f32 %v3201, %v3534
    %v3681 = vadd.f32 %v3202, %v3539
    %v3682 = vadd.f32 %v3203, %v3544
    %v3683 = vadd.f32 %v3204, %v3549
    %v3684 = vadd.f32 %v3205, %v3554
    %v3685 = vadd.f32 %v3206, %v3559
    %v3686 = vadd.f32 %v3207, %v3564
    %v3687 = vadd.f32 %v3208, %v3569
    %v3688 = vadd.f32 %v3209, %v3574
    %v3689 = vadd.f32 %v3210, %v3579
    %v3690 = vadd.f32 %v3211, %v3584
    %v3691 = vadd.f32 %v3212, %v3589
    %v3692 = vadd.f32 %v3213, %v3594
    %v3693 = vadd.f32 %v3214, %v3599
    %v3694 = vadd.f32 %v3215, %v3604
    %v3695 = vadd.f32 %v3216, %v3609
    %v3696 = vadd.f32 %v3217, %v3614
    %v3697 = vadd.f32 %v3218, %v3619
    %v3698 = vadd.f32 %v3219, %v3624
    %v3699 = vadd.f32 %v3220, %v3629
    %v3700 = vadd.f32 %v3221, %v3634
    %v3701 = vld [vmem:[#allocation7 + $0x300] sm:$0xff]
    %v3702 = vld [vmem:[#allocation7 + $0x308] sm:$0xff]
    %v3703 = vld [vmem:[#allocation7 + $0x310] sm:$0xff]
    %v3704 = vld [vmem:[#allocation7 + $0x318] sm:$0xff]
    %v3705 = vld [vmem:[#allocation7 + $0x320] sm:$0xff]
    %v3706 = vld [vmem:[#allocation7 + $0x328] sm:$0xff]
    %v3707 = vld [vmem:[#allocation7 + $0x330] sm:$0xff]
    %v3708 = vld [vmem:[#allocation7 + $0x338] sm:$0xff]
    %v3709 = vld [vmem:[#allocation7 + $0x340] sm:$0xff]
    %v3710 = vld [vmem:[#allocation7 + $0x348] sm:$0xff]
    %v3711 = vld [vmem:[#allocation7 + $0x350] sm:$0xff]
    %v3712 = vld [vmem:[#allocation7 + $0x358] sm:$0xff]
    %v3713 = vld [vmem:[#allocation7 + $0x360] sm:$0xff]
    %v3714 = vld [vmem:[#allocation7 + $0x368] sm:$0xff]
    %v3715 = vld [vmem:[#allocation7 + $0x370] sm:$0xff]
    %v3716 = vld [vmem:[#allocation7 + $0x378] sm:$0xff]
    %3717 = vmatprep.subr.mxu0 0.0
    %3718 = vmatpush1.msra.mxu0 %v3701
    %3719 = vmatprep.subr.mxu0 0.0
    %3720 = vmatpush1.msra.mxu0 %v3702
    %3721 = vmatprep.subr.mxu0 0.0
    %3722 = vmatpush1.msra.mxu0 %v3703
    %3723 = vmatprep.subr.mxu0 0.0
    %3724 = vmatpush1.msra.mxu0 %v3704
    %3725 = vmatprep.subr.mxu0 0.0
    %3726 = vmatpush1.msra.mxu0 %v3705
    %3727 = vmatprep.subr.mxu0 0.0
    %3728 = vmatpush1.msra.mxu0 %v3706
    %3729 = vmatprep.subr.mxu0 0.0
    %3730 = vmatpush1.msra.mxu0 %v3707
    %3731 = vmatprep.subr.mxu0 0.0
    %3732 = vmatpush1.msra.mxu0 %v3708
    %3733 = vmatprep.subr.mxu0 0.0
    %3734 = vmatpush1.msra.mxu0 %v3709
    %3735 = vmatprep.subr.mxu0 0.0
    %3736 = vmatpush1.msra.mxu0 %v3710
    %3737 = vmatprep.subr.mxu0 0.0
    %3738 = vmatpush1.msra.mxu0 %v3711
    %3739 = vmatprep.subr.mxu0 0.0
    %3740 = vmatpush1.msra.mxu0 %v3712
    %3741 = vmatprep.subr.mxu0 0.0
    %3742 = vmatpush1.msra.mxu0 %v3713
    %3743 = vmatprep.subr.mxu0 0.0
    %3744 = vmatpush1.msra.mxu0 %v3714
    %3745 = vmatprep.subr.mxu0 0.0
    %3746 = vmatpush1.msra.mxu0 %v3715
    %3747 = vmatprep.subr.mxu0 0.0
    %3748 = vmatpush1.msra.mxu0 %v3716
    %3749 = vmatprep.subr.mxu0 0.0
    %3750 = vmatpush1.msra.mxu0 0.0
    %3751 = vmatprep.subr.mxu0 0.0
    %3752 = vmatpush1.msra.mxu0 0.0
    %3753 = vmatprep.subr.mxu0 0.0
    %3754 = vmatpush1.msra.mxu0 0.0
    %3755 = vmatprep.subr.mxu0 0.0
    %3756 = vmatpush1.msra.mxu0 0.0
    %3757 = vmatprep.subr.mxu0 0.0
    %3758 = vmatpush1.msra.mxu0 0.0
    %3759 = vmatprep.subr.mxu0 0.0
    %3760 = vmatpush1.msra.mxu0 0.0
    %3761 = vmatprep.subr.mxu0 0.0
    %3762 = vmatpush1.msra.mxu0 0.0
    %3763 = vmatprep.subr.mxu0 0.0
    %3764 = vmatpush1.msra.mxu0 0.0
    %3765 = vmatprep.subr.mxu0 0.0
    %3766 = vmatpush1.msra.mxu0 0.0
    %3767 = vmatprep.subr.mxu0 0.0
    %3768 = vmatpush1.msra.mxu0 0.0
    %3769 = vmatprep.subr.mxu0 0.0
    %3770 = vmatpush1.msra.mxu0 0.0
    %3771 = vmatprep.subr.mxu0 0.0
    %3772 = vmatpush1.msra.mxu0 0.0
    %3773 = vmatprep.subr.mxu0 0.0
    %3774 = vmatpush1.msra.mxu0 0.0
    %3775 = vmatprep.subr.mxu0 0.0
    %3776 = vmatpush1.msra.mxu0 0.0
    %3777 = vmatprep.subr.mxu0 0.0
    %3778 = vmatpush1.msra.mxu0 0.0
    %3779 = vmatprep.subr.mxu0 0.0
    %3780 = vmatpush1.msra.mxu0 0.0
    %3781 = vmatprep.mubr.f32.mxu0 0.0
    %3782 = vmatmul.mubr.f32.gmra.mrb[0].mxu0 %v357
    %v3783 = vpop.f32.mrb[0].mxu0
    %v3784 = vadd.f32 0.0, %v3783
    %v3785 = vpop.f32.mrb[0].mxu0
    %3786 = vmatprep.mubr.f32.mxu0 0.0
    %3787 = vmatmul.mubr.f32.gmra.mrb[0].mxu0 %v358
    %v3788 = vpop.f32.mrb[0].mxu0
    %v3789 = vadd.f32 0.0, %v3788
    %v3790 = vpop.f32.mrb[0].mxu0
    %3791 = vmatprep.mubr.f32.mxu0 0.0
    %3792 = vmatmul.mubr.f32.gmra.mrb[0].mxu0 %v360
    %v3793 = vpop.f32.mrb[0].mxu0
    %v3794 = vadd.f32 0.0, %v3793
    %v3795 = vpop.f32.mrb[0].mxu0
    %3796 = vmatprep.mubr.f32.mxu0 0.0
    %3797 = vmatmul.mubr.f32.gmra.mrb[0].mxu0 %v361
    %v3798 = vpop.f32.mrb[0].mxu0
    %v3799 = vadd.f32 0.0, %v3798
    %v3800 = vpop.f32.mrb[0].mxu0
    %3801 = vmatprep.mubr.f32.mxu0 0.0
    %3802 = vmatmul.mubr.f32.gmra.mrb[0].mxu0 %v363
    %v3803 = vpop.f32.mrb[0].mxu0
    %v3804 = vadd.f32 0.0, %v3803
    %v3805 = vpop.f32.mrb[0].mxu0
    %3806 = vmatprep.mubr.f32.mxu0 0.0
    %3807 = vmatmul.mubr.f32.gmra.mrb[0].mxu0 %v364
    %v3808 = vpop.f32.mrb[0].mxu0
    %v3809 = vadd.f32 0.0, %v3808
    %v3810 = vpop.f32.mrb[0].mxu0
    %3811 = vmatprep.mubr.f32.mxu0 0.0
    %3812 = vmatmul.mubr.f32.gmra.mrb[0].mxu0 %v366
    %v3813 = vpop.f32.mrb[0].mxu0
    %v3814 = vadd.f32 0.0, %v3813
    %v3815 = vpop.f32.mrb[0].mxu0
    %3816 = vmatprep.mubr.f32.mxu0 0.0
    %3817 = vmatmul.mubr.f32.gmra.mrb[0].mxu0 %v367
    %v3818 = vpop.f32.mrb[0].mxu0
    %v3819 = vadd.f32 0.0, %v3818
    %v3820 = vpop.f32.mrb[0].mxu0
    %3821 = vmatprep.mubr.f32.mxu0 0.0
    %3822 = vmatmul.mubr.f32.gmra.mrb[0].mxu0 %v369
    %v3823 = vpop.f32.mrb[0].mxu0
    %v3824 = vadd.f32 0.0, %v3823
    %v3825 = vpop.f32.mrb[0].mxu0
    %3826 = vmatprep.mubr.f32.mxu0 0.0
    %3827 = vmatmul.mubr.f32.gmra.mrb[0].mxu0 %v370
    %v3828 = vpop.f32.mrb[0].mxu0
    %v3829 = vadd.f32 0.0, %v3828
    %v3830 = vpop.f32.mrb[0].mxu0
    %3831 = vmatprep.mubr.f32.mxu0 0.0
    %3832 = vmatmul.mubr.f32.gmra.mrb[0].mxu0 %v372
    %v3833 = vpop.f32.mrb[0].mxu0
    %v3834 = vadd.f32 0.0, %v3833
    %v3835 = vpop.f32.mrb[0].mxu0
    %3836 = vmatprep.mubr.f32.mxu0 0.0
    %3837 = vmatmul.mubr.f32.gmra.mrb[0].mxu0 %v373
    %v3838 = vpop.f32.mrb[0].mxu0
    %v3839 = vadd.f32 0.0, %v3838
    %v3840 = vpop.f32.mrb[0].mxu0
    %3841 = vmatprep.mubr.f32.mxu0 0.0
    %3842 = vmatmul.mubr.f32.gmra.mrb[0].mxu0 %v375
    %v3843 = vpop.f32.mrb[0].mxu0
    %v3844 = vadd.f32 0.0, %v3843
    %v3845 = vpop.f32.mrb[0].mxu0
    %3846 = vmatprep.mubr.f32.mxu0 0.0
    %3847 = vmatmul.mubr.f32.gmra.mrb[0].mxu0 %v376
    %v3848 = vpop.f32.mrb[0].mxu0
    %v3849 = vadd.f32 0.0, %v3848
    %v3850 = vpop.f32.mrb[0].mxu0
    %3851 = vmatprep.mubr.f32.mxu0 0.0
    %3852 = vmatmul.mubr.f32.gmra.mrb[0].mxu0 %v378
    %v3853 = vpop.f32.mrb[0].mxu0
    %v3854 = vadd.f32 0.0, %v3853
    %v3855 = vpop.f32.mrb[0].mxu0
    %3856 = vmatprep.mubr.f32.mxu0 0.0
    %3857 = vmatmul.mubr.f32.gmra.mrb[0].mxu0 %v379
    %v3858 = vpop.f32.mrb[0].mxu0
    %v3859 = vadd.f32 0.0, %v3858
    %v3860 = vpop.f32.mrb[0].mxu0
    %3861 = vmatprep.mubr.f32.mxu0 0.0
    %3862 = vmatmul.mubr.f32.gmra.mrb[0].mxu0 %v381
    %v3863 = vpop.f32.mrb[0].mxu0
    %v3864 = vadd.f32 0.0, %v3863
    %v3865 = vpop.f32.mrb[0].mxu0
    %3866 = vmatprep.mubr.f32.mxu0 0.0
    %3867 = vmatmul.mubr.f32.gmra.mrb[0].mxu0 %v382
    %v3868 = vpop.f32.mrb[0].mxu0
    %v3869 = vadd.f32 0.0, %v3868
    %v3870 = vpop.f32.mrb[0].mxu0
    %3871 = vmatprep.mubr.f32.mxu0 0.0
    %3872 = vmatmul.mubr.f32.gmra.mrb[0].mxu0 %v384
    %v3873 = vpop.f32.mrb[0].mxu0
    %v3874 = vadd.f32 0.0, %v3873
    %v3875 = vpop.f32.mrb[0].mxu0
    %3876 = vmatprep.mubr.f32.mxu0 0.0
    %3877 = vmatmul.mubr.f32.gmra.mrb[0].mxu0 %v385
    %v3878 = vpop.f32.mrb[0].mxu0
    %v3879 = vadd.f32 0.0, %v3878
    %v3880 = vpop.f32.mrb[0].mxu0
    %3881 = vmatprep.mubr.f32.mxu0 0.0
    %3882 = vmatmul.mubr.f32.gmra.mrb[0].mxu0 %v387
    %v3883 = vpop.f32.mrb[0].mxu0
    %v3884 = vadd.f32 0.0, %v3883
    %v3885 = vpop.f32.mrb[0].mxu0
    %3886 = vmatprep.mubr.f32.mxu0 0.0
    %3887 = vmatmul.mubr.f32.gmra.mrb[0].mxu0 %v388
    %v3888 = vpop.f32.mrb[0].mxu0
    %v3889 = vadd.f32 0.0, %v3888
    %v3890 = vpop.f32.mrb[0].mxu0
    %3891 = vmatprep.mubr.f32.mxu0 0.0
    %3892 = vmatmul.mubr.f32.gmra.mrb[0].mxu0 %v390
    %v3893 = vpop.f32.mrb[0].mxu0
    %v3894 = vadd.f32 0.0, %v3893
    %v3895 = vpop.f32.mrb[0].mxu0
    %3896 = vmatprep.mubr.f32.mxu0 0.0
    %3897 = vmatmul.mubr.f32.gmra.mrb[0].mxu0 %v391
    %v3898 = vpop.f32.mrb[0].mxu0
    %v3899 = vadd.f32 0.0, %v3898
    %v3900 = vpop.f32.mrb[0].mxu0
    %3901 = vmatprep.mubr.f32.mxu0 0.0
    %3902 = vmatmul.mubr.f32.gmra.mrb[0].mxu0 %v393
    %v3903 = vpop.f32.mrb[0].mxu0
    %v3904 = vadd.f32 0.0, %v3903
    %v3905 = vpop.f32.mrb[0].mxu0
    %3906 = vmatprep.mubr.f32.mxu0 0.0
    %3907 = vmatmul.mubr.f32.gmra.mrb[0].mxu0 %v394
    %v3908 = vpop.f32.mrb[0].mxu0
    %v3909 = vadd.f32 0.0, %v3908
    %v3910 = vpop.f32.mrb[0].mxu0
    %3911 = vmatprep.mubr.f32.mxu0 0.0
    %3912 = vmatmul.mubr.f32.gmra.mrb[0].mxu0 %v396
    %v3913 = vpop.f32.mrb[0].mxu0
    %v3914 = vadd.f32 0.0, %v3913
    %v3915 = vpop.f32.mrb[0].mxu0
    %3916 = vmatprep.mubr.f32.mxu0 0.0
    %3917 = vmatmul.mubr.f32.gmra.mrb[0].mxu0 %v397
    %v3918 = vpop.f32.mrb[0].mxu0
    %v3919 = vadd.f32 0.0, %v3918
    %v3920 = vpop.f32.mrb[0].mxu0
    %3921 = vmatprep.mubr.f32.mxu0 0.0
    %3922 = vmatmul.mubr.f32.gmra.mrb[0].mxu0 %v399
    %v3923 = vpop.f32.mrb[0].mxu0
    %v3924 = vadd.f32 0.0, %v3923
    %v3925 = vpop.f32.mrb[0].mxu0
    %3926 = vmatprep.mubr.f32.mxu0 0.0
    %3927 = vmatmul.mubr.f32.gmra.mrb[0].mxu0 %v400
    %v3928 = vpop.f32.mrb[0].mxu0
    %v3929 = vadd.f32 0.0, %v3928
    %v3930 = vpop.f32.mrb[0].mxu0
    %3931 = vmatprep.mubr.f32.mxu0 0.0
    %3932 = vmatmul.mubr.f32.gmra.mrb[0].mxu0 %v402
    %v3933 = vpop.f32.mrb[0].mxu0
    %v3934 = vadd.f32 0.0, %v3933
    %v3935 = vpop.f32.mrb[0].mxu0
    %3936 = vmatprep.mubr.f32.mxu0 0.0
    %3937 = vmatmul.mubr.f32.gmra.mrb[0].mxu0 %v403
    %v3938 = vpop.f32.mrb[0].mxu0
    %v3939 = vadd.f32 0.0, %v3938
    %v3940 = vpop.f32.mrb[0].mxu0
    %3941 = vmatprep.mubr.f32.mxu0 0.0
    %3942 = vmatmul.mubr.f32.gmra.mrb[0].mxu0 %v411
    %v3943 = vpop.f32.mrb[0].mxu0
    %v3944 = vadd.f32 0.0, %v3943
    %v3945 = vpop.f32.mrb[0].mxu0
    %3946 = vmatprep.mubr.f32.mxu0 0.0
    %3947 = vmatmul.mubr.f32.gmra.mrb[0].mxu0 %v412
    %v3948 = vpop.f32.mrb[0].mxu0
    %v3949 = vadd.f32 0.0, %v3948
    %v3950 = vpop.f32.mrb[0].mxu0
    %3951 = vmatprep.mubr.f32.mxu0 0.0
    %3952 = vmatmul.mubr.f32.gmra.mrb[0].mxu0 %v414
    %v3953 = vpop.f32.mrb[0].mxu0
    %v3954 = vadd.f32 0.0, %v3953
    %v3955 = vpop.f32.mrb[0].mxu0
    %3956 = vmatprep.mubr.f32.mxu0 0.0
    %3957 = vmatmul.mubr.f32.gmra.mrb[0].mxu0 %v415
    %v3958 = vpop.f32.mrb[0].mxu0
    %v3959 = vadd.f32 0.0, %v3958
    %v3960 = vpop.f32.mrb[0].mxu0
    %3961 = vmatprep.mubr.f32.mxu0 0.0
    %3962 = vmatmul.mubr.f32.gmra.mrb[0].mxu0 %v417
    %v3963 = vpop.f32.mrb[0].mxu0
    %v3964 = vadd.f32 0.0, %v3963
    %v3965 = vpop.f32.mrb[0].mxu0
    %3966 = vmatprep.mubr.f32.mxu0 0.0
    %3967 = vmatmul.mubr.f32.gmra.mrb[0].mxu0 %v418
    %v3968 = vpop.f32.mrb[0].mxu0
    %v3969 = vadd.f32 0.0, %v3968
    %v3970 = vpop.f32.mrb[0].mxu0
    %3971 = vmatprep.mubr.f32.mxu0 0.0
    %3972 = vmatmul.mubr.f32.gmra.mrb[0].mxu0 %v420
    %v3973 = vpop.f32.mrb[0].mxu0
    %v3974 = vadd.f32 0.0, %v3973
    %v3975 = vpop.f32.mrb[0].mxu0
    %3976 = vmatprep.mubr.f32.mxu0 0.0
    %3977 = vmatmul.mubr.f32.gmra.mrb[0].mxu0 %v421
    %v3978 = vpop.f32.mrb[0].mxu0
    %v3979 = vadd.f32 0.0, %v3978
    %v3980 = vpop.f32.mrb[0].mxu0
    %3981 = vmatprep.mubr.f32.mxu0 0.0
    %3982 = vmatmul.mubr.f32.gmra.mrb[0].mxu0 %v423
    %v3983 = vpop.f32.mrb[0].mxu0
    %v3984 = vadd.f32 0.0, %v3983
    %v3985 = vpop.f32.mrb[0].mxu0
    %3986 = vmatprep.mubr.f32.mxu0 0.0
    %3987 = vmatmul.mubr.f32.gmra.mrb[0].mxu0 %v424
    %v3988 = vpop.f32.mrb[0].mxu0
    %v3989 = vadd.f32 0.0, %v3988
    %v3990 = vpop.f32.mrb[0].mxu0
    %3991 = vmatprep.mubr.f32.mxu0 0.0
    %3992 = vmatmul.mubr.f32.gmra.mrb[0].mxu0 %v426
    %v3993 = vpop.f32.mrb[0].mxu0
    %v3994 = vadd.f32 0.0, %v3993
    %v3995 = vpop.f32.mrb[0].mxu0
    %3996 = vmatprep.mubr.f32.mxu0 0.0
    %3997 = vmatmul.mubr.f32.gmra.mrb[0].mxu0 %v427
    %v3998 = vpop.f32.mrb[0].mxu0
    %v3999 = vadd.f32 0.0, %v3998
    %v4000 = vpop.f32.mrb[0].mxu0
    %4001 = vmatprep.mubr.f32.mxu0 0.0
    %4002 = vmatmul.mubr.f32.gmra.mrb[0].mxu0 %v429
    %v4003 = vpop.f32.mrb[0].mxu0
    %v4004 = vadd.f32 0.0, %v4003
    %v4005 = vpop.f32.mrb[0].mxu0
    %4006 = vmatprep.mubr.f32.mxu0 0.0
    %4007 = vmatmul.mubr.f32.gmra.mrb[0].mxu0 %v430
    %v4008 = vpop.f32.mrb[0].mxu0
    %v4009 = vadd.f32 0.0, %v4008
    %v4010 = vpop.f32.mrb[0].mxu0
    %4011 = vmatprep.mubr.f32.mxu0 0.0
    %4012 = vmatmul.mubr.f32.gmra.mrb[0].mxu0 %v432
    %v4013 = vpop.f32.mrb[0].mxu0
    %v4014 = vadd.f32 0.0, %v4013
    %v4015 = vpop.f32.mrb[0].mxu0
    %4016 = vmatprep.mubr.f32.mxu0 0.0
    %4017 = vmatmul.mubr.f32.gmra.mrb[0].mxu0 %v433
    %v4018 = vpop.f32.mrb[0].mxu0
    %v4019 = vadd.f32 0.0, %v4018
    %v4020 = vpop.f32.mrb[0].mxu0
    %4021 = vmatprep.mubr.f32.mxu0 0.0
    %4022 = vmatmul.mubr.f32.gmra.mrb[0].mxu0 %v435
    %v4023 = vpop.f32.mrb[0].mxu0
    %v4024 = vadd.f32 0.0, %v4023
    %v4025 = vpop.f32.mrb[0].mxu0
    %4026 = vmatprep.mubr.f32.mxu0 0.0
    %4027 = vmatmul.mubr.f32.gmra.mrb[0].mxu0 %v436
    %v4028 = vpop.f32.mrb[0].mxu0
    %v4029 = vadd.f32 0.0, %v4028
    %v4030 = vpop.f32.mrb[0].mxu0
    %4031 = vmatprep.mubr.f32.mxu0 0.0
    %4032 = vmatmul.mubr.f32.gmra.mrb[0].mxu0 %v438
    %v4033 = vpop.f32.mrb[0].mxu0
    %v4034 = vadd.f32 0.0, %v4033
    %v4035 = vpop.f32.mrb[0].mxu0
    %4036 = vmatprep.mubr.f32.mxu0 0.0
    %4037 = vmatmul.mubr.f32.gmra.mrb[0].mxu0 %v439
    %v4038 = vpop.f32.mrb[0].mxu0
    %v4039 = vadd.f32 0.0, %v4038
    %v4040 = vpop.f32.mrb[0].mxu0
    %4041 = vmatprep.mubr.f32.mxu0 0.0
    %4042 = vmatmul.mubr.f32.gmra.mrb[0].mxu0 %v441
    %v4043 = vpop.f32.mrb[0].mxu0
    %v4044 = vadd.f32 0.0, %v4043
    %v4045 = vpop.f32.mrb[0].mxu0
    %4046 = vmatprep.mubr.f32.mxu0 0.0
    %4047 = vmatmul.mubr.f32.gmra.mrb[0].mxu0 %v442
    %v4048 = vpop.f32.mrb[0].mxu0
    %v4049 = vadd.f32 0.0, %v4048
    %v4050 = vpop.f32.mrb[0].mxu0
    %4051 = vmatprep.mubr.f32.mxu0 0.0
    %4052 = vmatmul.mubr.f32.gmra.mrb[0].mxu0 %v444
    %v4053 = vpop.f32.mrb[0].mxu0
    %v4054 = vadd.f32 0.0, %v4053
    %v4055 = vpop.f32.mrb[0].mxu0
    %4056 = vmatprep.mubr.f32.mxu0 0.0
    %4057 = vmatmul.mubr.f32.gmra.mrb[0].mxu0 %v445
    %v4058 = vpop.f32.mrb[0].mxu0
    %v4059 = vadd.f32 0.0, %v4058
    %v4060 = vpop.f32.mrb[0].mxu0
    %4061 = vmatprep.mubr.f32.mxu0 0.0
    %4062 = vmatmul.mubr.f32.gmra.mrb[0].mxu0 %v447
    %v4063 = vpop.f32.mrb[0].mxu0
    %v4064 = vadd.f32 0.0, %v4063
    %v4065 = vpop.f32.mrb[0].mxu0
    %4066 = vmatprep.mubr.f32.mxu0 0.0
    %4067 = vmatmul.mubr.f32.gmra.mrb[0].mxu0 %v448
    %v4068 = vpop.f32.mrb[0].mxu0
    %v4069 = vadd.f32 0.0, %v4068
    %v4070 = vpop.f32.mrb[0].mxu0
    %4071 = vmatprep.mubr.f32.mxu0 0.0
    %4072 = vmatmul.mubr.f32.gmra.mrb[0].mxu0 %v450
    %v4073 = vpop.f32.mrb[0].mxu0
    %v4074 = vadd.f32 0.0, %v4073
    %v4075 = vpop.f32.mrb[0].mxu0
    %4076 = vmatprep.mubr.f32.mxu0 0.0
    %4077 = vmatmul.mubr.f32.gmra.mrb[0].mxu0 %v451
    %v4078 = vpop.f32.mrb[0].mxu0
    %v4079 = vadd.f32 0.0, %v4078
    %v4080 = vpop.f32.mrb[0].mxu0
    %4081 = vmatprep.mubr.f32.mxu0 0.0
    %4082 = vmatmul.mubr.f32.gmra.mrb[0].mxu0 %v453
    %v4083 = vpop.f32.mrb[0].mxu0
    %v4084 = vadd.f32 0.0, %v4083
    %v4085 = vpop.f32.mrb[0].mxu0
    %4086 = vmatprep.mubr.f32.mxu0 0.0
    %4087 = vmatmul.mubr.f32.gmra.mrb[0].mxu0 %v454
    %v4088 = vpop.f32.mrb[0].mxu0
    %v4089 = vadd.f32 0.0, %v4088
    %v4090 = vpop.f32.mrb[0].mxu0
    %4091 = vmatprep.mubr.f32.mxu0 0.0
    %4092 = vmatmul.mubr.f32.gmra.mrb[0].mxu0 %v456
    %v4093 = vpop.f32.mrb[0].mxu0
    %v4094 = vadd.f32 0.0, %v4093
    %v4095 = vpop.f32.mrb[0].mxu0
    %4096 = vmatprep.mubr.f32.mxu0 0.0
    %4097 = vmatmul.mubr.f32.gmra.mrb[0].mxu0 %v457
    %v4098 = vpop.f32.mrb[0].mxu0
    %v4099 = vadd.f32 0.0, %v4098
    %v4100 = vpop.f32.mrb[0].mxu0
    %4101 = vdwg.mxu0
    %v4102 = vadd.f32 %v3637, %v3784
    %v4103 = vadd.f32 %v3638, %v3789
    %v4104 = vadd.f32 %v3639, %v3794
    %v4105 = vadd.f32 %v3640, %v3799
    %v4106 = vadd.f32 %v3641, %v3804
    %v4107 = vadd.f32 %v3642, %v3809
    %v4108 = vadd.f32 %v3643, %v3814
    %v4109 = vadd.f32 %v3644, %v3819
    %v4110 = vadd.f32 %v3645, %v3824
    %v4111 = vadd.f32 %v3646, %v3829
    %v4112 = vadd.f32 %v3647, %v3834
    %v4113 = vadd.f32 %v3648, %v3839
    %v4114 = vadd.f32 %v3649, %v3844
    %v4115 = vadd.f32 %v3650, %v3849
    %v4116 = vadd.f32 %v3651, %v3854
    %v4117 = vadd.f32 %v3652, %v3859
    %v4118 = vadd.f32 %v3653, %v3864
    %v4119 = vadd.f32 %v3654, %v3869
    %v4120 = vadd.f32 %v3655, %v3874
    %v4121 = vadd.f32 %v3656, %v3879
    %v4122 = vadd.f32 %v3657, %v3884
    %v4123 = vadd.f32 %v3658, %v3889
    %v4124 = vadd.f32 %v3659, %v3894
    %v4125 = vadd.f32 %v3660, %v3899
    %v4126 = vadd.f32 %v3661, %v3904
    %v4127 = vadd.f32 %v3662, %v3909
    %v4128 = vadd.f32 %v3663, %v3914
    %v4129 = vadd.f32 %v3664, %v3919
    %v4130 = vadd.f32 %v3665, %v3924
    %v4131 = vadd.f32 %v3666, %v3929
    %v4132 = vadd.f32 %v3667, %v3934
    %v4133 = vadd.f32 %v3668, %v3939
    %v4134 = vadd.f32 %v3669, %v3944
    %v4135 = vadd.f32 %v3670, %v3949
    %v4136 = vadd.f32 %v3671, %v3954
    %v4137 = vadd.f32 %v3672, %v3959
    %v4138 = vadd.f32 %v3673, %v3964
    %v4139 = vadd.f32 %v3674, %v3969
    %v4140 = vadd.f32 %v3675, %v3974
    %v4141 = vadd.f32 %v3676, %v3979
    %v4142 = vadd.f32 %v3677, %v3984
    %v4143 = vadd.f32 %v3678, %v3989
    %v4144 = vadd.f32 %v3679, %v3994
    %v4145 = vadd.f32 %v3680, %v3999
    %v4146 = vadd.f32 %v3681, %v4004
    %v4147 = vadd.f32 %v3682, %v4009
    %v4148 = vadd.f32 %v3683, %v4014
    %v4149 = vadd.f32 %v3684, %v4019
    %v4150 = vadd.f32 %v3685, %v4024
    %v4151 = vadd.f32 %v3686, %v4029
    %v4152 = vadd.f32 %v3687, %v4034
    %v4153 = vadd.f32 %v3688, %v4039
    %v4154 = vadd.f32 %v3689, %v4044
    %v4155 = vadd.f32 %v3690, %v4049
    %v4156 = vadd.f32 %v3691, %v4054
    %v4157 = vadd.f32 %v3692, %v4059
    %v4158 = vadd.f32 %v3693, %v4064
    %v4159 = vadd.f32 %v3694, %v4069
    %v4160 = vadd.f32 %v3695, %v4074
    %v4161 = vadd.f32 %v3696, %v4079
    %v4162 = vadd.f32 %v3697, %v4084
    %v4163 = vadd.f32 %v3698, %v4089
    %v4164 = vadd.f32 %v3699, %v4094
    %v4165 = vadd.f32 %v3700, %v4099
    %v4172 = vrot.slane %v402, 1
    %v4173 = vrot.slane %v403, 1
    %v4174 = vsel %vm571, %v4172, %v4173
    %v4175 = vrot.slane %v404, 1
    %v4176 = vsel %vm571, %v4173, %v4175
    %v4177 = vrot.slane %v456, 1
    %v4178 = vrot.slane %v457, 1
    %v4179 = vsel %vm571, %v4177, %v4178
    %v4180 = vrot.slane %v458, 1
    %v4181 = vsel %vm571, %v4178, %v4180
    %v4186 = vld [vmem:[#allocation7 + $0x380] sm:$0xff]
    %v4187 = vld [vmem:[#allocation7 + $0x388] sm:$0xff]
    %v4188 = vld [vmem:[#allocation7 + $0x390] sm:$0xff]
    %v4189 = vld [vmem:[#allocation7 + $0x398] sm:$0xff]
    %v4190 = vld [vmem:[#allocation7 + $0x3a0] sm:$0xff]
    %v4191 = vld [vmem:[#allocation7 + $0x3a8] sm:$0xff]
    %v4192 = vld [vmem:[#allocation7 + $0x3b0] sm:$0xff]
    %v4193 = vld [vmem:[#allocation7 + $0x3b8] sm:$0xff]
    %v4194 = vld [vmem:[#allocation7 + $0x3c0] sm:$0xff]
    %v4195 = vld [vmem:[#allocation7 + $0x3c8] sm:$0xff]
    %v4196 = vld [vmem:[#allocation7 + $0x3d0] sm:$0xff]
    %v4197 = vld [vmem:[#allocation7 + $0x3d8] sm:$0xff]
    %v4198 = vld [vmem:[#allocation7 + $0x3e0] sm:$0xff]
    %v4199 = vld [vmem:[#allocation7 + $0x3e8] sm:$0xff]
    %v4200 = vld [vmem:[#allocation7 + $0x3f0] sm:$0xff]
    %v4201 = vld [vmem:[#allocation7 + $0x3f8] sm:$0xff]
    %4202 = vmatprep.subr.mxu0 0.0
    %4203 = vmatpush1.msra.mxu0 %v4186
    %4204 = vmatprep.subr.mxu0 0.0
    %4205 = vmatpush1.msra.mxu0 %v4187
    %4206 = vmatprep.subr.mxu0 0.0
    %4207 = vmatpush1.msra.mxu0 %v4188
    %4208 = vmatprep.subr.mxu0 0.0
    %4209 = vmatpush1.msra.mxu0 %v4189
    %4210 = vmatprep.subr.mxu0 0.0
    %4211 = vmatpush1.msra.mxu0 %v4190
    %4212 = vmatprep.subr.mxu0 0.0
    %4213 = vmatpush1.msra.mxu0 %v4191
    %4214 = vmatprep.subr.mxu0 0.0
    %4215 = vmatpush1.msra.mxu0 %v4192
    %4216 = vmatprep.subr.mxu0 0.0
    %4217 = vmatpush1.msra.mxu0 %v4193
    %4218 = vmatprep.subr.mxu0 0.0
    %4219 = vmatpush1.msra.mxu0 %v4194
    %4220 = vmatprep.subr.mxu0 0.0
    %4221 = vmatpush1.msra.mxu0 %v4195
    %4222 = vmatprep.subr.mxu0 0.0
    %4223 = vmatpush1.msra.mxu0 %v4196
    %4224 = vmatprep.subr.mxu0 0.0
    %4225 = vmatpush1.msra.mxu0 %v4197
    %4226 = vmatprep.subr.mxu0 0.0
    %4227 = vmatpush1.msra.mxu0 %v4198
    %4228 = vmatprep.subr.mxu0 0.0
    %4229 = vmatpush1.msra.mxu0 %v4199
    %4230 = vmatprep.subr.mxu0 0.0
    %4231 = vmatpush1.msra.mxu0 %v4200
    %4232 = vmatprep.subr.mxu0 0.0
    %4233 = vmatpush1.msra.mxu0 %v4201
    %4234 = vmatprep.subr.mxu0 0.0
    %4235 = vmatpush1.msra.mxu0 0.0
    %4236 = vmatprep.subr.mxu0 0.0
    %4237 = vmatpush1.msra.mxu0 0.0
    %4238 = vmatprep.subr.mxu0 0.0
    %4239 = vmatpush1.msra.mxu0 0.0
    %4240 = vmatprep.subr.mxu0 0.0
    %4241 = vmatpush1.msra.mxu0 0.0
    %4242 = vmatprep.subr.mxu0 0.0
    %4243 = vmatpush1.msra.mxu0 0.0
    %4244 = vmatprep.subr.mxu0 0.0
    %4245 = vmatpush1.msra.mxu0 0.0
    %4246 = vmatprep.subr.mxu0 0.0
    %4247 = vmatpush1.msra.mxu0 0.0
    %4248 = vmatprep.subr.mxu0 0.0
    %4249 = vmatpush1.msra.mxu0 0.0
    %4250 = vmatprep.subr.mxu0 0.0
    %4251 = vmatpush1.msra.mxu0 0.0
    %4252 = vmatprep.subr.mxu0 0.0
    %4253 = vmatpush1.msra.mxu0 0.0
    %4254 = vmatprep.subr.mxu0 0.0
    %4255 = vmatpush1.msra.mxu0 0.0
    %4256 = vmatprep.subr.mxu0 0.0
    %4257 = vmatpush1.msra.mxu0 0.0
    %4258 = vmatprep.subr.mxu0 0.0
    %4259 = vmatpush1.msra.mxu0 0.0
    %4260 = vmatprep.subr.mxu0 0.0
    %4261 = vmatpush1.msra.mxu0 0.0
    %4262 = vmatprep.subr.mxu0 0.0
    %4263 = vmatpush1.msra.mxu0 0.0
    %4264 = vmatprep.subr.mxu0 0.0
    %4265 = vmatpush1.msra.mxu0 0.0
    %4266 = vmatprep.mubr.f32.mxu0 0.0
    %4267 = vmatmul.mubr.f32.gmra.mrb[0].mxu0 %v584
    %v4268 = vpop.f32.mrb[0].mxu0
    %v4269 = vadd.f32 0.0, %v4268
    %v4270 = vpop.f32.mrb[0].mxu0
    %4271 = vmatprep.mubr.f32.mxu0 0.0
    %4272 = vmatmul.mubr.f32.gmra.mrb[0].mxu0 %v586
    %v4273 = vpop.f32.mrb[0].mxu0
    %v4274 = vadd.f32 0.0, %v4273
    %v4275 = vpop.f32.mrb[0].mxu0
    %4276 = vmatprep.mubr.f32.mxu0 0.0
    %4277 = vmatmul.mubr.f32.gmra.mrb[0].mxu0 %v589
    %v4278 = vpop.f32.mrb[0].mxu0
    %v4279 = vadd.f32 0.0, %v4278
    %v4280 = vpop.f32.mrb[0].mxu0
    %4281 = vmatprep.mubr.f32.mxu0 0.0
    %4282 = vmatmul.mubr.f32.gmra.mrb[0].mxu0 %v591
    %v4283 = vpop.f32.mrb[0].mxu0
    %v4284 = vadd.f32 0.0, %v4283
    %v4285 = vpop.f32.mrb[0].mxu0
    %4286 = vmatprep.mubr.f32.mxu0 0.0
    %4287 = vmatmul.mubr.f32.gmra.mrb[0].mxu0 %v594
    %v4288 = vpop.f32.mrb[0].mxu0
    %v4289 = vadd.f32 0.0, %v4288
    %v4290 = vpop.f32.mrb[0].mxu0
    %4291 = vmatprep.mubr.f32.mxu0 0.0
    %4292 = vmatmul.mubr.f32.gmra.mrb[0].mxu0 %v596
    %v4293 = vpop.f32.mrb[0].mxu0
    %v4294 = vadd.f32 0.0, %v4293
    %v4295 = vpop.f32.mrb[0].mxu0
    %4296 = vmatprep.mubr.f32.mxu0 0.0
    %4297 = vmatmul.mubr.f32.gmra.mrb[0].mxu0 %v599
    %v4298 = vpop.f32.mrb[0].mxu0
    %v4299 = vadd.f32 0.0, %v4298
    %v4300 = vpop.f32.mrb[0].mxu0
    %4301 = vmatprep.mubr.f32.mxu0 0.0
    %4302 = vmatmul.mubr.f32.gmra.mrb[0].mxu0 %v601
    %v4303 = vpop.f32.mrb[0].mxu0
    %v4304 = vadd.f32 0.0, %v4303
    %v4305 = vpop.f32.mrb[0].mxu0
    %4306 = vmatprep.mubr.f32.mxu0 0.0
    %4307 = vmatmul.mubr.f32.gmra.mrb[0].mxu0 %v604
    %v4308 = vpop.f32.mrb[0].mxu0
    %v4309 = vadd.f32 0.0, %v4308
    %v4310 = vpop.f32.mrb[0].mxu0
    %4311 = vmatprep.mubr.f32.mxu0 0.0
    %4312 = vmatmul.mubr.f32.gmra.mrb[0].mxu0 %v606
    %v4313 = vpop.f32.mrb[0].mxu0
    %v4314 = vadd.f32 0.0, %v4313
    %v4315 = vpop.f32.mrb[0].mxu0
    %4316 = vmatprep.mubr.f32.mxu0 0.0
    %4317 = vmatmul.mubr.f32.gmra.mrb[0].mxu0 %v609
    %v4318 = vpop.f32.mrb[0].mxu0
    %v4319 = vadd.f32 0.0, %v4318
    %v4320 = vpop.f32.mrb[0].mxu0
    %4321 = vmatprep.mubr.f32.mxu0 0.0
    %4322 = vmatmul.mubr.f32.gmra.mrb[0].mxu0 %v611
    %v4323 = vpop.f32.mrb[0].mxu0
    %v4324 = vadd.f32 0.0, %v4323
    %v4325 = vpop.f32.mrb[0].mxu0
    %4326 = vmatprep.mubr.f32.mxu0 0.0
    %4327 = vmatmul.mubr.f32.gmra.mrb[0].mxu0 %v614
    %v4328 = vpop.f32.mrb[0].mxu0
    %v4329 = vadd.f32 0.0, %v4328
    %v4330 = vpop.f32.mrb[0].mxu0
    %4331 = vmatprep.mubr.f32.mxu0 0.0
    %4332 = vmatmul.mubr.f32.gmra.mrb[0].mxu0 %v616
    %v4333 = vpop.f32.mrb[0].mxu0
    %v4334 = vadd.f32 0.0, %v4333
    %v4335 = vpop.f32.mrb[0].mxu0
    %4336 = vmatprep.mubr.f32.mxu0 0.0
    %4337 = vmatmul.mubr.f32.gmra.mrb[0].mxu0 %v619
    %v4338 = vpop.f32.mrb[0].mxu0
    %v4339 = vadd.f32 0.0, %v4338
    %v4340 = vpop.f32.mrb[0].mxu0
    %4341 = vmatprep.mubr.f32.mxu0 0.0
    %4342 = vmatmul.mubr.f32.gmra.mrb[0].mxu0 %v621
    %v4343 = vpop.f32.mrb[0].mxu0
    %v4344 = vadd.f32 0.0, %v4343
    %v4345 = vpop.f32.mrb[0].mxu0
    %4346 = vmatprep.mubr.f32.mxu0 0.0
    %4347 = vmatmul.mubr.f32.gmra.mrb[0].mxu0 %v624
    %v4348 = vpop.f32.mrb[0].mxu0
    %v4349 = vadd.f32 0.0, %v4348
    %v4350 = vpop.f32.mrb[0].mxu0
    %4351 = vmatprep.mubr.f32.mxu0 0.0
    %4352 = vmatmul.mubr.f32.gmra.mrb[0].mxu0 %v626
    %v4353 = vpop.f32.mrb[0].mxu0
    %v4354 = vadd.f32 0.0, %v4353
    %v4355 = vpop.f32.mrb[0].mxu0
    %4356 = vmatprep.mubr.f32.mxu0 0.0
    %4357 = vmatmul.mubr.f32.gmra.mrb[0].mxu0 %v629
    %v4358 = vpop.f32.mrb[0].mxu0
    %v4359 = vadd.f32 0.0, %v4358
    %v4360 = vpop.f32.mrb[0].mxu0
    %4361 = vmatprep.mubr.f32.mxu0 0.0
    %4362 = vmatmul.mubr.f32.gmra.mrb[0].mxu0 %v631
    %v4363 = vpop.f32.mrb[0].mxu0
    %v4364 = vadd.f32 0.0, %v4363
    %v4365 = vpop.f32.mrb[0].mxu0
    %4366 = vmatprep.mubr.f32.mxu0 0.0
    %4367 = vmatmul.mubr.f32.gmra.mrb[0].mxu0 %v634
    %v4368 = vpop.f32.mrb[0].mxu0
    %v4369 = vadd.f32 0.0, %v4368
    %v4370 = vpop.f32.mrb[0].mxu0
    %4371 = vmatprep.mubr.f32.mxu0 0.0
    %4372 = vmatmul.mubr.f32.gmra.mrb[0].mxu0 %v636
    %v4373 = vpop.f32.mrb[0].mxu0
    %v4374 = vadd.f32 0.0, %v4373
    %v4375 = vpop.f32.mrb[0].mxu0
    %4376 = vmatprep.mubr.f32.mxu0 0.0
    %4377 = vmatmul.mubr.f32.gmra.mrb[0].mxu0 %v639
    %v4378 = vpop.f32.mrb[0].mxu0
    %v4379 = vadd.f32 0.0, %v4378
    %v4380 = vpop.f32.mrb[0].mxu0
    %4381 = vmatprep.mubr.f32.mxu0 0.0
    %4382 = vmatmul.mubr.f32.gmra.mrb[0].mxu0 %v641
    %v4383 = vpop.f32.mrb[0].mxu0
    %v4384 = vadd.f32 0.0, %v4383
    %v4385 = vpop.f32.mrb[0].mxu0
    %4386 = vmatprep.mubr.f32.mxu0 0.0
    %4387 = vmatmul.mubr.f32.gmra.mrb[0].mxu0 %v644
    %v4388 = vpop.f32.mrb[0].mxu0
    %v4389 = vadd.f32 0.0, %v4388
    %v4390 = vpop.f32.mrb[0].mxu0
    %4391 = vmatprep.mubr.f32.mxu0 0.0
    %4392 = vmatmul.mubr.f32.gmra.mrb[0].mxu0 %v646
    %v4393 = vpop.f32.mrb[0].mxu0
    %v4394 = vadd.f32 0.0, %v4393
    %v4395 = vpop.f32.mrb[0].mxu0
    %4396 = vmatprep.mubr.f32.mxu0 0.0
    %4397 = vmatmul.mubr.f32.gmra.mrb[0].mxu0 %v649
    %v4398 = vpop.f32.mrb[0].mxu0
    %v4399 = vadd.f32 0.0, %v4398
    %v4400 = vpop.f32.mrb[0].mxu0
    %4401 = vmatprep.mubr.f32.mxu0 0.0
    %4402 = vmatmul.mubr.f32.gmra.mrb[0].mxu0 %v651
    %v4403 = vpop.f32.mrb[0].mxu0
    %v4404 = vadd.f32 0.0, %v4403
    %v4405 = vpop.f32.mrb[0].mxu0
    %4406 = vmatprep.mubr.f32.mxu0 0.0
    %4407 = vmatmul.mubr.f32.gmra.mrb[0].mxu0 %v2745
    %v4408 = vpop.f32.mrb[0].mxu0
    %v4409 = vadd.f32 0.0, %v4408
    %v4410 = vpop.f32.mrb[0].mxu0
    %4411 = vmatprep.mubr.f32.mxu0 0.0
    %4412 = vmatmul.mubr.f32.gmra.mrb[0].mxu0 %v2747
    %v4413 = vpop.f32.mrb[0].mxu0
    %v4414 = vadd.f32 0.0, %v4413
    %v4415 = vpop.f32.mrb[0].mxu0
    %4416 = vmatprep.mubr.f32.mxu0 0.0
    %4417 = vmatmul.mubr.f32.gmra.mrb[0].mxu0 %v4174
    %v4418 = vpop.f32.mrb[0].mxu0
    %v4419 = vadd.f32 0.0, %v4418
    %v4420 = vpop.f32.mrb[0].mxu0
    %4421 = vmatprep.mubr.f32.mxu0 0.0
    %4422 = vmatmul.mubr.f32.gmra.mrb[0].mxu0 %v4176
    %v4423 = vpop.f32.mrb[0].mxu0
    %v4424 = vadd.f32 0.0, %v4423
    %v4425 = vpop.f32.mrb[0].mxu0
    %4426 = vmatprep.mubr.f32.mxu0 0.0
    %4427 = vmatmul.mubr.f32.gmra.mrb[0].mxu0 %v664
    %v4428 = vpop.f32.mrb[0].mxu0
    %v4429 = vadd.f32 0.0, %v4428
    %v4430 = vpop.f32.mrb[0].mxu0
    %4431 = vmatprep.mubr.f32.mxu0 0.0
    %4432 = vmatmul.mubr.f32.gmra.mrb[0].mxu0 %v666
    %v4433 = vpop.f32.mrb[0].mxu0
    %v4434 = vadd.f32 0.0, %v4433
    %v4435 = vpop.f32.mrb[0].mxu0
    %4436 = vmatprep.mubr.f32.mxu0 0.0
    %4437 = vmatmul.mubr.f32.gmra.mrb[0].mxu0 %v669
    %v4438 = vpop.f32.mrb[0].mxu0
    %v4439 = vadd.f32 0.0, %v4438
    %v4440 = vpop.f32.mrb[0].mxu0
    %4441 = vmatprep.mubr.f32.mxu0 0.0
    %4442 = vmatmul.mubr.f32.gmra.mrb[0].mxu0 %v671
    %v4443 = vpop.f32.mrb[0].mxu0
    %v4444 = vadd.f32 0.0, %v4443
    %v4445 = vpop.f32.mrb[0].mxu0
    %4446 = vmatprep.mubr.f32.mxu0 0.0
    %4447 = vmatmul.mubr.f32.gmra.mrb[0].mxu0 %v674
    %v4448 = vpop.f32.mrb[0].mxu0
    %v4449 = vadd.f32 0.0, %v4448
    %v4450 = vpop.f32.mrb[0].mxu0
    %4451 = vmatprep.mubr.f32.mxu0 0.0
    %4452 = vmatmul.mubr.f32.gmra.mrb[0].mxu0 %v676
    %v4453 = vpop.f32.mrb[0].mxu0
    %v4454 = vadd.f32 0.0, %v4453
    %v4455 = vpop.f32.mrb[0].mxu0
    %4456 = vmatprep.mubr.f32.mxu0 0.0
    %4457 = vmatmul.mubr.f32.gmra.mrb[0].mxu0 %v679
    %v4458 = vpop.f32.mrb[0].mxu0
    %v4459 = vadd.f32 0.0, %v4458
    %v4460 = vpop.f32.mrb[0].mxu0
    %4461 = vmatprep.mubr.f32.mxu0 0.0
    %4462 = vmatmul.mubr.f32.gmra.mrb[0].mxu0 %v681
    %v4463 = vpop.f32.mrb[0].mxu0
    %v4464 = vadd.f32 0.0, %v4463
    %v4465 = vpop.f32.mrb[0].mxu0
    %4466 = vmatprep.mubr.f32.mxu0 0.0
    %4467 = vmatmul.mubr.f32.gmra.mrb[0].mxu0 %v684
    %v4468 = vpop.f32.mrb[0].mxu0
    %v4469 = vadd.f32 0.0, %v4468
    %v4470 = vpop.f32.mrb[0].mxu0
    %4471 = vmatprep.mubr.f32.mxu0 0.0
    %4472 = vmatmul.mubr.f32.gmra.mrb[0].mxu0 %v686
    %v4473 = vpop.f32.mrb[0].mxu0
    %v4474 = vadd.f32 0.0, %v4473
    %v4475 = vpop.f32.mrb[0].mxu0
    %4476 = vmatprep.mubr.f32.mxu0 0.0
    %4477 = vmatmul.mubr.f32.gmra.mrb[0].mxu0 %v689
    %v4478 = vpop.f32.mrb[0].mxu0
    %v4479 = vadd.f32 0.0, %v4478
    %v4480 = vpop.f32.mrb[0].mxu0
    %4481 = vmatprep.mubr.f32.mxu0 0.0
    %4482 = vmatmul.mubr.f32.gmra.mrb[0].mxu0 %v691
    %v4483 = vpop.f32.mrb[0].mxu0
    %v4484 = vadd.f32 0.0, %v4483
    %v4485 = vpop.f32.mrb[0].mxu0
    %4486 = vmatprep.mubr.f32.mxu0 0.0
    %4487 = vmatmul.mubr.f32.gmra.mrb[0].mxu0 %v694
    %v4488 = vpop.f32.mrb[0].mxu0
    %v4489 = vadd.f32 0.0, %v4488
    %v4490 = vpop.f32.mrb[0].mxu0
    %4491 = vmatprep.mubr.f32.mxu0 0.0
    %4492 = vmatmul.mubr.f32.gmra.mrb[0].mxu0 %v696
    %v4493 = vpop.f32.mrb[0].mxu0
    %v4494 = vadd.f32 0.0, %v4493
    %v4495 = vpop.f32.mrb[0].mxu0
    %4496 = vmatprep.mubr.f32.mxu0 0.0
    %4497 = vmatmul.mubr.f32.gmra.mrb[0].mxu0 %v699
    %v4498 = vpop.f32.mrb[0].mxu0
    %v4499 = vadd.f32 0.0, %v4498
    %v4500 = vpop.f32.mrb[0].mxu0
    %4501 = vmatprep.mubr.f32.mxu0 0.0
    %4502 = vmatmul.mubr.f32.gmra.mrb[0].mxu0 %v701
    %v4503 = vpop.f32.mrb[0].mxu0
    %v4504 = vadd.f32 0.0, %v4503
    %v4505 = vpop.f32.mrb[0].mxu0
    %4506 = vmatprep.mubr.f32.mxu0 0.0
    %4507 = vmatmul.mubr.f32.gmra.mrb[0].mxu0 %v704
    %v4508 = vpop.f32.mrb[0].mxu0
    %v4509 = vadd.f32 0.0, %v4508
    %v4510 = vpop.f32.mrb[0].mxu0
    %4511 = vmatprep.mubr.f32.mxu0 0.0
    %4512 = vmatmul.mubr.f32.gmra.mrb[0].mxu0 %v706
    %v4513 = vpop.f32.mrb[0].mxu0
    %v4514 = vadd.f32 0.0, %v4513
    %v4515 = vpop.f32.mrb[0].mxu0
    %4516 = vmatprep.mubr.f32.mxu0 0.0
    %4517 = vmatmul.mubr.f32.gmra.mrb[0].mxu0 %v709
    %v4518 = vpop.f32.mrb[0].mxu0
    %v4519 = vadd.f32 0.0, %v4518
    %v4520 = vpop.f32.mrb[0].mxu0
    %4521 = vmatprep.mubr.f32.mxu0 0.0
    %4522 = vmatmul.mubr.f32.gmra.mrb[0].mxu0 %v711
    %v4523 = vpop.f32.mrb[0].mxu0
    %v4524 = vadd.f32 0.0, %v4523
    %v4525 = vpop.f32.mrb[0].mxu0
    %4526 = vmatprep.mubr.f32.mxu0 0.0
    %4527 = vmatmul.mubr.f32.gmra.mrb[0].mxu0 %v714
    %v4528 = vpop.f32.mrb[0].mxu0
    %v4529 = vadd.f32 0.0, %v4528
    %v4530 = vpop.f32.mrb[0].mxu0
    %4531 = vmatprep.mubr.f32.mxu0 0.0
    %4532 = vmatmul.mubr.f32.gmra.mrb[0].mxu0 %v716
    %v4533 = vpop.f32.mrb[0].mxu0
    %v4534 = vadd.f32 0.0, %v4533
    %v4535 = vpop.f32.mrb[0].mxu0
    %4536 = vmatprep.mubr.f32.mxu0 0.0
    %4537 = vmatmul.mubr.f32.gmra.mrb[0].mxu0 %v719
    %v4538 = vpop.f32.mrb[0].mxu0
    %v4539 = vadd.f32 0.0, %v4538
    %v4540 = vpop.f32.mrb[0].mxu0
    %4541 = vmatprep.mubr.f32.mxu0 0.0
    %4542 = vmatmul.mubr.f32.gmra.mrb[0].mxu0 %v721
    %v4543 = vpop.f32.mrb[0].mxu0
    %v4544 = vadd.f32 0.0, %v4543
    %v4545 = vpop.f32.mrb[0].mxu0
    %4546 = vmatprep.mubr.f32.mxu0 0.0
    %4547 = vmatmul.mubr.f32.gmra.mrb[0].mxu0 %v724
    %v4548 = vpop.f32.mrb[0].mxu0
    %v4549 = vadd.f32 0.0, %v4548
    %v4550 = vpop.f32.mrb[0].mxu0
    %4551 = vmatprep.mubr.f32.mxu0 0.0
    %4552 = vmatmul.mubr.f32.gmra.mrb[0].mxu0 %v726
    %v4553 = vpop.f32.mrb[0].mxu0
    %v4554 = vadd.f32 0.0, %v4553
    %v4555 = vpop.f32.mrb[0].mxu0
    %4556 = vmatprep.mubr.f32.mxu0 0.0
    %4557 = vmatmul.mubr.f32.gmra.mrb[0].mxu0 %v729
    %v4558 = vpop.f32.mrb[0].mxu0
    %v4559 = vadd.f32 0.0, %v4558
    %v4560 = vpop.f32.mrb[0].mxu0
    %4561 = vmatprep.mubr.f32.mxu0 0.0
    %4562 = vmatmul.mubr.f32.gmra.mrb[0].mxu0 %v731
    %v4563 = vpop.f32.mrb[0].mxu0
    %v4564 = vadd.f32 0.0, %v4563
    %v4565 = vpop.f32.mrb[0].mxu0
    %4566 = vmatprep.mubr.f32.mxu0 0.0
    %4567 = vmatmul.mubr.f32.gmra.mrb[0].mxu0 %v2750
    %v4568 = vpop.f32.mrb[0].mxu0
    %v4569 = vadd.f32 0.0, %v4568
    %v4570 = vpop.f32.mrb[0].mxu0
    %4571 = vmatprep.mubr.f32.mxu0 0.0
    %4572 = vmatmul.mubr.f32.gmra.mrb[0].mxu0 %v2752
    %v4573 = vpop.f32.mrb[0].mxu0
    %v4574 = vadd.f32 0.0, %v4573
    %v4575 = vpop.f32.mrb[0].mxu0
    %4576 = vmatprep.mubr.f32.mxu0 0.0
    %4577 = vmatmul.mubr.f32.gmra.mrb[0].mxu0 %v4179
    %v4578 = vpop.f32.mrb[0].mxu0
    %v4579 = vadd.f32 0.0, %v4578
    %v4580 = vpop.f32.mrb[0].mxu0
    %4581 = vmatprep.mubr.f32.mxu0 0.0
    %4582 = vmatmul.mubr.f32.gmra.mrb[0].mxu0 %v4181
    %v4583 = vpop.f32.mrb[0].mxu0
    %v4584 = vadd.f32 0.0, %v4583
    %v4585 = vpop.f32.mrb[0].mxu0
    %4586 = vdwg.mxu0
    %v4587 = vadd.f32 %v4102, %v4269
    %v4588 = vadd.f32 %v4103, %v4274
    %v4589 = vadd.f32 %v4104, %v4279
    %v4590 = vadd.f32 %v4105, %v4284
    %v4591 = vadd.f32 %v4106, %v4289
    %v4592 = vadd.f32 %v4107, %v4294
    %v4593 = vadd.f32 %v4108, %v4299
    %v4594 = vadd.f32 %v4109, %v4304
    %v4595 = vadd.f32 %v4110, %v4309
    %v4596 = vadd.f32 %v4111, %v4314
    %v4597 = vadd.f32 %v4112, %v4319
    %v4598 = vadd.f32 %v4113, %v4324
    %v4599 = vadd.f32 %v4114, %v4329
    %v4600 = vadd.f32 %v4115, %v4334
    %v4601 = vadd.f32 %v4116, %v4339
    %v4602 = vadd.f32 %v4117, %v4344
    %v4603 = vadd.f32 %v4118, %v4349
    %v4604 = vadd.f32 %v4119, %v4354
    %v4605 = vadd.f32 %v4120, %v4359
    %v4606 = vadd.f32 %v4121, %v4364
    %v4607 = vadd.f32 %v4122, %v4369
    %v4608 = vadd.f32 %v4123, %v4374
    %v4609 = vadd.f32 %v4124, %v4379
    %v4610 = vadd.f32 %v4125, %v4384
    %v4611 = vadd.f32 %v4126, %v4389
    %v4612 = vadd.f32 %v4127, %v4394
    %v4613 = vadd.f32 %v4128, %v4399
    %v4614 = vadd.f32 %v4129, %v4404
    %v4615 = vadd.f32 %v4130, %v4409
    %v4616 = vadd.f32 %v4131, %v4414
    %v4617 = vadd.f32 %v4132, %v4419
    %v4618 = vadd.f32 %v4133, %v4424
    %v4619 = vadd.f32 %v4134, %v4429
    %v4620 = vadd.f32 %v4135, %v4434
    %v4621 = vadd.f32 %v4136, %v4439
    %v4622 = vadd.f32 %v4137, %v4444
    %v4623 = vadd.f32 %v4138, %v4449
    %v4624 = vadd.f32 %v4139, %v4454
    %v4625 = vadd.f32 %v4140, %v4459
    %v4626 = vadd.f32 %v4141, %v4464
    %v4627 = vadd.f32 %v4142, %v4469
    %v4628 = vadd.f32 %v4143, %v4474
    %v4629 = vadd.f32 %v4144, %v4479
    %v4630 = vadd.f32 %v4145, %v4484
    %v4631 = vadd.f32 %v4146, %v4489
    %v4632 = vadd.f32 %v4147, %v4494
    %v4633 = vadd.f32 %v4148, %v4499
    %v4634 = vadd.f32 %v4149, %v4504
    %v4635 = vadd.f32 %v4150, %v4509
    %v4636 = vadd.f32 %v4151, %v4514
    %v4637 = vadd.f32 %v4152, %v4519
    %v4638 = vadd.f32 %v4153, %v4524
    %v4639 = vadd.f32 %v4154, %v4529
    %v4640 = vadd.f32 %v4155, %v4534
    %v4641 = vadd.f32 %v4156, %v4539
    %v4642 = vadd.f32 %v4157, %v4544
    %v4643 = vadd.f32 %v4158, %v4549
    %v4644 = vadd.f32 %v4159, %v4554
    %v4645 = vadd.f32 %v4160, %v4559
    %v4646 = vadd.f32 %v4161, %v4564
    %v4647 = vadd.f32 %v4162, %v4569
    %v4648 = vadd.f32 %v4163, %v4574
    %v4649 = vadd.f32 %v4164, %v4579
    %v4650 = vadd.f32 %v4165, %v4584
    %v4651 = vrot.slane %v402, 2
    %v4652 = vrot.slane %v403, 2
    %v4653 = vsel %vm1582, %v4651, %v4652
    %v4654 = vrot.slane %v404, 2
    %v4655 = vsel %vm1582, %v4652, %v4654
    %v4656 = vrot.slane %v456, 2
    %v4657 = vrot.slane %v457, 2
    %v4658 = vsel %vm1582, %v4656, %v4657
    %v4659 = vrot.slane %v458, 2
    %v4660 = vsel %vm1582, %v4657, %v4659
    %v4665 = vld [vmem:[#allocation7 + $0x400] sm:$0xff]
    %v4666 = vld [vmem:[#allocation7 + $0x408] sm:$0xff]
    %v4667 = vld [vmem:[#allocation7 + $0x410] sm:$0xff]
    %v4668 = vld [vmem:[#allocation7 + $0x418] sm:$0xff]
    %v4669 = vld [vmem:[#allocation7 + $0x420] sm:$0xff]
    %v4670 = vld [vmem:[#allocation7 + $0x428] sm:$0xff]
    %v4671 = vld [vmem:[#allocation7 + $0x430] sm:$0xff]
    %v4672 = vld [vmem:[#allocation7 + $0x438] sm:$0xff]
    %v4673 = vld [vmem:[#allocation7 + $0x440] sm:$0xff]
    %v4674 = vld [vmem:[#allocation7 + $0x448] sm:$0xff]
    %v4675 = vld [vmem:[#allocation7 + $0x450] sm:$0xff]
    %v4676 = vld [vmem:[#allocation7 + $0x458] sm:$0xff]
    %v4677 = vld [vmem:[#allocation7 + $0x460] sm:$0xff]
    %v4678 = vld [vmem:[#allocation7 + $0x468] sm:$0xff]
    %v4679 = vld [vmem:[#allocation7 + $0x470] sm:$0xff]
    %v4680 = vld [vmem:[#allocation7 + $0x478] sm:$0xff]
    %4681 = vmatprep.subr.mxu0 0.0
    %4682 = vmatpush1.msra.mxu0 %v4665
    %4683 = vmatprep.subr.mxu0 0.0
    %4684 = vmatpush1.msra.mxu0 %v4666
    %4685 = vmatprep.subr.mxu0 0.0
    %4686 = vmatpush1.msra.mxu0 %v4667
    %4687 = vmatprep.subr.mxu0 0.0
    %4688 = vmatpush1.msra.mxu0 %v4668
    %4689 = vmatprep.subr.mxu0 0.0
    %4690 = vmatpush1.msra.mxu0 %v4669
    %4691 = vmatprep.subr.mxu0 0.0
    %4692 = vmatpush1.msra.mxu0 %v4670
    %4693 = vmatprep.subr.mxu0 0.0
    %4694 = vmatpush1.msra.mxu0 %v4671
    %4695 = vmatprep.subr.mxu0 0.0
    %4696 = vmatpush1.msra.mxu0 %v4672
    %4697 = vmatprep.subr.mxu0 0.0
    %4698 = vmatpush1.msra.mxu0 %v4673
    %4699 = vmatprep.subr.mxu0 0.0
    %4700 = vmatpush1.msra.mxu0 %v4674
    %4701 = vmatprep.subr.mxu0 0.0
    %4702 = vmatpush1.msra.mxu0 %v4675
    %4703 = vmatprep.subr.mxu0 0.0
    %4704 = vmatpush1.msra.mxu0 %v4676
    %4705 = vmatprep.subr.mxu0 0.0
    %4706 = vmatpush1.msra.mxu0 %v4677
    %4707 = vmatprep.subr.mxu0 0.0
    %4708 = vmatpush1.msra.mxu0 %v4678
    %4709 = vmatprep.subr.mxu0 0.0
    %4710 = vmatpush1.msra.mxu0 %v4679
    %4711 = vmatprep.subr.mxu0 0.0
    %4712 = vmatpush1.msra.mxu0 %v4680
    %4713 = vmatprep.subr.mxu0 0.0
    %4714 = vmatpush1.msra.mxu0 0.0
    %4715 = vmatprep.subr.mxu0 0.0
    %4716 = vmatpush1.msra.mxu0 0.0
    %4717 = vmatprep.subr.mxu0 0.0
    %4718 = vmatpush1.msra.mxu0 0.0
    %4719 = vmatprep.subr.mxu0 0.0
    %4720 = vmatpush1.msra.mxu0 0.0
    %4721 = vmatprep.subr.mxu0 0.0
    %4722 = vmatpush1.msra.mxu0 0.0
    %4723 = vmatprep.subr.mxu0 0.0
    %4724 = vmatpush1.msra.mxu0 0.0
    %4725 = vmatprep.subr.mxu0 0.0
    %4726 = vmatpush1.msra.mxu0 0.0
    %4727 = vmatprep.subr.mxu0 0.0
    %4728 = vmatpush1.msra.mxu0 0.0
    %4729 = vmatprep.subr.mxu0 0.0
    %4730 = vmatpush1.msra.mxu0 0.0
    %4731 = vmatprep.subr.mxu0 0.0
    %4732 = vmatpush1.msra.mxu0 0.0
    %4733 = vmatprep.subr.mxu0 0.0
    %4734 = vmatpush1.msra.mxu0 0.0
    %4735 = vmatprep.subr.mxu0 0.0
    %4736 = vmatpush1.msra.mxu0 0.0
    %4737 = vmatprep.subr.mxu0 0.0
    %4738 = vmatpush1.msra.mxu0 0.0
    %4739 = vmatprep.subr.mxu0 0.0
    %4740 = vmatpush1.msra.mxu0 0.0
    %4741 = vmatprep.subr.mxu0 0.0
    %4742 = vmatpush1.msra.mxu0 0.0
    %4743 = vmatprep.subr.mxu0 0.0
    %4744 = vmatpush1.msra.mxu0 0.0
    %4745 = vmatprep.mubr.f32.mxu0 0.0
    %4746 = vmatmul.mubr.f32.gmra.mrb[0].mxu0 %v1595
    %v4747 = vpop.f32.mrb[0].mxu0
    %v4748 = vadd.f32 0.0, %v4747
    %v4749 = vpop.f32.mrb[0].mxu0
    %4750 = vmatprep.mubr.f32.mxu0 0.0
    %4751 = vmatmul.mubr.f32.gmra.mrb[0].mxu0 %v1597
    %v4752 = vpop.f32.mrb[0].mxu0
    %v4753 = vadd.f32 0.0, %v4752
    %v4754 = vpop.f32.mrb[0].mxu0
    %4755 = vmatprep.mubr.f32.mxu0 0.0
    %4756 = vmatmul.mubr.f32.gmra.mrb[0].mxu0 %v1600
    %v4757 = vpop.f32.mrb[0].mxu0
    %v4758 = vadd.f32 0.0, %v4757
    %v4759 = vpop.f32.mrb[0].mxu0
    %4760 = vmatprep.mubr.f32.mxu0 0.0
    %4761 = vmatmul.mubr.f32.gmra.mrb[0].mxu0 %v1602
    %v4762 = vpop.f32.mrb[0].mxu0
    %v4763 = vadd.f32 0.0, %v4762
    %v4764 = vpop.f32.mrb[0].mxu0
    %4765 = vmatprep.mubr.f32.mxu0 0.0
    %4766 = vmatmul.mubr.f32.gmra.mrb[0].mxu0 %v1605
    %v4767 = vpop.f32.mrb[0].mxu0
    %v4768 = vadd.f32 0.0, %v4767
    %v4769 = vpop.f32.mrb[0].mxu0
    %4770 = vmatprep.mubr.f32.mxu0 0.0
    %4771 = vmatmul.mubr.f32.gmra.mrb[0].mxu0 %v1607
    %v4772 = vpop.f32.mrb[0].mxu0
    %v4773 = vadd.f32 0.0, %v4772
    %v4774 = vpop.f32.mrb[0].mxu0
    %4775 = vmatprep.mubr.f32.mxu0 0.0
    %4776 = vmatmul.mubr.f32.gmra.mrb[0].mxu0 %v1610
    %v4777 = vpop.f32.mrb[0].mxu0
    %v4778 = vadd.f32 0.0, %v4777
    %v4779 = vpop.f32.mrb[0].mxu0
    %4780 = vmatprep.mubr.f32.mxu0 0.0
    %4781 = vmatmul.mubr.f32.gmra.mrb[0].mxu0 %v1612
    %v4782 = vpop.f32.mrb[0].mxu0
    %v4783 = vadd.f32 0.0, %v4782
    %v4784 = vpop.f32.mrb[0].mxu0
    %4785 = vmatprep.mubr.f32.mxu0 0.0
    %4786 = vmatmul.mubr.f32.gmra.mrb[0].mxu0 %v1615
    %v4787 = vpop.f32.mrb[0].mxu0
    %v4788 = vadd.f32 0.0, %v4787
    %v4789 = vpop.f32.mrb[0].mxu0
    %4790 = vmatprep.mubr.f32.mxu0 0.0
    %4791 = vmatmul.mubr.f32.gmra.mrb[0].mxu0 %v1617
    %v4792 = vpop.f32.mrb[0].mxu0
    %v4793 = vadd.f32 0.0, %v4792
    %v4794 = vpop.f32.mrb[0].mxu0
    %4795 = vmatprep.mubr.f32.mxu0 0.0
    %4796 = vmatmul.mubr.f32.gmra.mrb[0].mxu0 %v1620
    %v4797 = vpop.f32.mrb[0].mxu0
    %v4798 = vadd.f32 0.0, %v4797
    %v4799 = vpop.f32.mrb[0].mxu0
    %4800 = vmatprep.mubr.f32.mxu0 0.0
    %4801 = vmatmul.mubr.f32.gmra.mrb[0].mxu0 %v1622
    %v4802 = vpop.f32.mrb[0].mxu0
    %v4803 = vadd.f32 0.0, %v4802
    %v4804 = vpop.f32.mrb[0].mxu0
    %4805 = vmatprep.mubr.f32.mxu0 0.0
    %4806 = vmatmul.mubr.f32.gmra.mrb[0].mxu0 %v1625
    %v4807 = vpop.f32.mrb[0].mxu0
    %v4808 = vadd.f32 0.0, %v4807
    %v4809 = vpop.f32.mrb[0].mxu0
    %4810 = vmatprep.mubr.f32.mxu0 0.0
    %4811 = vmatmul.mubr.f32.gmra.mrb[0].mxu0 %v1627
    %v4812 = vpop.f32.mrb[0].mxu0
    %v4813 = vadd.f32 0.0, %v4812
    %v4814 = vpop.f32.mrb[0].mxu0
    %4815 = vmatprep.mubr.f32.mxu0 0.0
    %4816 = vmatmul.mubr.f32.gmra.mrb[0].mxu0 %v1630
    %v4817 = vpop.f32.mrb[0].mxu0
    %v4818 = vadd.f32 0.0, %v4817
    %v4819 = vpop.f32.mrb[0].mxu0
    %4820 = vmatprep.mubr.f32.mxu0 0.0
    %4821 = vmatmul.mubr.f32.gmra.mrb[0].mxu0 %v1632
    %v4822 = vpop.f32.mrb[0].mxu0
    %v4823 = vadd.f32 0.0, %v4822
    %v4824 = vpop.f32.mrb[0].mxu0
    %4825 = vmatprep.mubr.f32.mxu0 0.0
    %4826 = vmatmul.mubr.f32.gmra.mrb[0].mxu0 %v1635
    %v4827 = vpop.f32.mrb[0].mxu0
    %v4828 = vadd.f32 0.0, %v4827
    %v4829 = vpop.f32.mrb[0].mxu0
    %4830 = vmatprep.mubr.f32.mxu0 0.0
    %4831 = vmatmul.mubr.f32.gmra.mrb[0].mxu0 %v1637
    %v4832 = vpop.f32.mrb[0].mxu0
    %v4833 = vadd.f32 0.0, %v4832
    %v4834 = vpop.f32.mrb[0].mxu0
    %4835 = vmatprep.mubr.f32.mxu0 0.0
    %4836 = vmatmul.mubr.f32.gmra.mrb[0].mxu0 %v1640
    %v4837 = vpop.f32.mrb[0].mxu0
    %v4838 = vadd.f32 0.0, %v4837
    %v4839 = vpop.f32.mrb[0].mxu0
    %4840 = vmatprep.mubr.f32.mxu0 0.0
    %4841 = vmatmul.mubr.f32.gmra.mrb[0].mxu0 %v1642
    %v4842 = vpop.f32.mrb[0].mxu0
    %v4843 = vadd.f32 0.0, %v4842
    %v4844 = vpop.f32.mrb[0].mxu0
    %4845 = vmatprep.mubr.f32.mxu0 0.0
    %4846 = vmatmul.mubr.f32.gmra.mrb[0].mxu0 %v1645
    %v4847 = vpop.f32.mrb[0].mxu0
    %v4848 = vadd.f32 0.0, %v4847
    %v4849 = vpop.f32.mrb[0].mxu0
    %4850 = vmatprep.mubr.f32.mxu0 0.0
    %4851 = vmatmul.mubr.f32.gmra.mrb[0].mxu0 %v1647
    %v4852 = vpop.f32.mrb[0].mxu0
    %v4853 = vadd.f32 0.0, %v4852
    %v4854 = vpop.f32.mrb[0].mxu0
    %4855 = vmatprep.mubr.f32.mxu0 0.0
    %4856 = vmatmul.mubr.f32.gmra.mrb[0].mxu0 %v1650
    %v4857 = vpop.f32.mrb[0].mxu0
    %v4858 = vadd.f32 0.0, %v4857
    %v4859 = vpop.f32.mrb[0].mxu0
    %4860 = vmatprep.mubr.f32.mxu0 0.0
    %4861 = vmatmul.mubr.f32.gmra.mrb[0].mxu0 %v1652
    %v4862 = vpop.f32.mrb[0].mxu0
    %v4863 = vadd.f32 0.0, %v4862
    %v4864 = vpop.f32.mrb[0].mxu0
    %4865 = vmatprep.mubr.f32.mxu0 0.0
    %4866 = vmatmul.mubr.f32.gmra.mrb[0].mxu0 %v1655
    %v4867 = vpop.f32.mrb[0].mxu0
    %v4868 = vadd.f32 0.0, %v4867
    %v4869 = vpop.f32.mrb[0].mxu0
    %4870 = vmatprep.mubr.f32.mxu0 0.0
    %4871 = vmatmul.mubr.f32.gmra.mrb[0].mxu0 %v1657
    %v4872 = vpop.f32.mrb[0].mxu0
    %v4873 = vadd.f32 0.0, %v4872
    %v4874 = vpop.f32.mrb[0].mxu0
    %4875 = vmatprep.mubr.f32.mxu0 0.0
    %4876 = vmatmul.mubr.f32.gmra.mrb[0].mxu0 %v1660
    %v4877 = vpop.f32.mrb[0].mxu0
    %v4878 = vadd.f32 0.0, %v4877
    %v4879 = vpop.f32.mrb[0].mxu0
    %4880 = vmatprep.mubr.f32.mxu0 0.0
    %4881 = vmatmul.mubr.f32.gmra.mrb[0].mxu0 %v1662
    %v4882 = vpop.f32.mrb[0].mxu0
    %v4883 = vadd.f32 0.0, %v4882
    %v4884 = vpop.f32.mrb[0].mxu0
    %4885 = vmatprep.mubr.f32.mxu0 0.0
    %4886 = vmatmul.mubr.f32.gmra.mrb[0].mxu0 %v3224
    %v4887 = vpop.f32.mrb[0].mxu0
    %v4888 = vadd.f32 0.0, %v4887
    %v4889 = vpop.f32.mrb[0].mxu0
    %4890 = vmatprep.mubr.f32.mxu0 0.0
    %4891 = vmatmul.mubr.f32.gmra.mrb[0].mxu0 %v3226
    %v4892 = vpop.f32.mrb[0].mxu0
    %v4893 = vadd.f32 0.0, %v4892
    %v4894 = vpop.f32.mrb[0].mxu0
    %4895 = vmatprep.mubr.f32.mxu0 0.0
    %4896 = vmatmul.mubr.f32.gmra.mrb[0].mxu0 %v4653
    %v4897 = vpop.f32.mrb[0].mxu0
    %v4898 = vadd.f32 0.0, %v4897
    %v4899 = vpop.f32.mrb[0].mxu0
    %4900 = vmatprep.mubr.f32.mxu0 0.0
    %4901 = vmatmul.mubr.f32.gmra.mrb[0].mxu0 %v4655
    %v4902 = vpop.f32.mrb[0].mxu0
    %v4903 = vadd.f32 0.0, %v4902
    %v4904 = vpop.f32.mrb[0].mxu0
    %4905 = vmatprep.mubr.f32.mxu0 0.0
    %4906 = vmatmul.mubr.f32.gmra.mrb[0].mxu0 %v1675
    %v4907 = vpop.f32.mrb[0].mxu0
    %v4908 = vadd.f32 0.0, %v4907
    %v4909 = vpop.f32.mrb[0].mxu0
    %4910 = vmatprep.mubr.f32.mxu0 0.0
    %4911 = vmatmul.mubr.f32.gmra.mrb[0].mxu0 %v1677
    %v4912 = vpop.f32.mrb[0].mxu0
    %v4913 = vadd.f32 0.0, %v4912
    %v4914 = vpop.f32.mrb[0].mxu0
    %4915 = vmatprep.mubr.f32.mxu0 0.0
    %4916 = vmatmul.mubr.f32.gmra.mrb[0].mxu0 %v1680
    %v4917 = vpop.f32.mrb[0].mxu0
    %v4918 = vadd.f32 0.0, %v4917
    %v4919 = vpop.f32.mrb[0].mxu0
    %4920 = vmatprep.mubr.f32.mxu0 0.0
    %4921 = vmatmul.mubr.f32.gmra.mrb[0].mxu0 %v1682
    %v4922 = vpop.f32.mrb[0].mxu0
    %v4923 = vadd.f32 0.0, %v4922
    %v4924 = vpop.f32.mrb[0].mxu0
    %4925 = vmatprep.mubr.f32.mxu0 0.0
    %4926 = vmatmul.mubr.f32.gmra.mrb[0].mxu0 %v1685
    %v4927 = vpop.f32.mrb[0].mxu0
    %v4928 = vadd.f32 0.0, %v4927
    %v4929 = vpop.f32.mrb[0].mxu0
    %4930 = vmatprep.mubr.f32.mxu0 0.0
    %4931 = vmatmul.mubr.f32.gmra.mrb[0].mxu0 %v1687
    %v4932 = vpop.f32.mrb[0].mxu0
    %v4933 = vadd.f32 0.0, %v4932
    %v4934 = vpop.f32.mrb[0].mxu0
    %4935 = vmatprep.mubr.f32.mxu0 0.0
    %4936 = vmatmul.mubr.f32.gmra.mrb[0].mxu0 %v1690
    %v4937 = vpop.f32.mrb[0].mxu0
    %v4938 = vadd.f32 0.0, %v4937
    %v4939 = vpop.f32.mrb[0].mxu0
    %4940 = vmatprep.mubr.f32.mxu0 0.0
    %4941 = vmatmul.mubr.f32.gmra.mrb[0].mxu0 %v1692
    %v4942 = vpop.f32.mrb[0].mxu0
    %v4943 = vadd.f32 0.0, %v4942
    %v4944 = vpop.f32.mrb[0].mxu0
    %4945 = vmatprep.mubr.f32.mxu0 0.0
    %4946 = vmatmul.mubr.f32.gmra.mrb[0].mxu0 %v1695
    %v4947 = vpop.f32.mrb[0].mxu0
    %v4948 = vadd.f32 0.0, %v4947
    %v4949 = vpop.f32.mrb[0].mxu0
    %4950 = vmatprep.mubr.f32.mxu0 0.0
    %4951 = vmatmul.mubr.f32.gmra.mrb[0].mxu0 %v1697
    %v4952 = vpop.f32.mrb[0].mxu0
    %v4953 = vadd.f32 0.0, %v4952
    %v4954 = vpop.f32.mrb[0].mxu0
    %4955 = vmatprep.mubr.f32.mxu0 0.0
    %4956 = vmatmul.mubr.f32.gmra.mrb[0].mxu0 %v1700
    %v4957 = vpop.f32.mrb[0].mxu0
    %v4958 = vadd.f32 0.0, %v4957
    %v4959 = vpop.f32.mrb[0].mxu0
    %4960 = vmatprep.mubr.f32.mxu0 0.0
    %4961 = vmatmul.mubr.f32.gmra.mrb[0].mxu0 %v1702
    %v4962 = vpop.f32.mrb[0].mxu0
    %v4963 = vadd.f32 0.0, %v4962
    %v4964 = vpop.f32.mrb[0].mxu0
    %4965 = vmatprep.mubr.f32.mxu0 0.0
    %4966 = vmatmul.mubr.f32.gmra.mrb[0].mxu0 %v1705
    %v4967 = vpop.f32.mrb[0].mxu0
    %v4968 = vadd.f32 0.0, %v4967
    %v4969 = vpop.f32.mrb[0].mxu0
    %4970 = vmatprep.mubr.f32.mxu0 0.0
    %4971 = vmatmul.mubr.f32.gmra.mrb[0].mxu0 %v1707
    %v4972 = vpop.f32.mrb[0].mxu0
    %v4973 = vadd.f32 0.0, %v4972
    %v4974 = vpop.f32.mrb[0].mxu0
    %4975 = vmatprep.mubr.f32.mxu0 0.0
    %4976 = vmatmul.mubr.f32.gmra.mrb[0].mxu0 %v1710
    %v4977 = vpop.f32.mrb[0].mxu0
    %v4978 = vadd.f32 0.0, %v4977
    %v4979 = vpop.f32.mrb[0].mxu0
    %4980 = vmatprep.mubr.f32.mxu0 0.0
    %4981 = vmatmul.mubr.f32.gmra.mrb[0].mxu0 %v1712
    %v4982 = vpop.f32.mrb[0].mxu0
    %v4983 = vadd.f32 0.0, %v4982
    %v4984 = vpop.f32.mrb[0].mxu0
    %4985 = vmatprep.mubr.f32.mxu0 0.0
    %4986 = vmatmul.mubr.f32.gmra.mrb[0].mxu0 %v1715
    %v4987 = vpop.f32.mrb[0].mxu0
    %v4988 = vadd.f32 0.0, %v4987
    %v4989 = vpop.f32.mrb[0].mxu0
    %4990 = vmatprep.mubr.f32.mxu0 0.0
    %4991 = vmatmul.mubr.f32.gmra.mrb[0].mxu0 %v1717
    %v4992 = vpop.f32.mrb[0].mxu0
    %v4993 = vadd.f32 0.0, %v4992
    %v4994 = vpop.f32.mrb[0].mxu0
    %4995 = vmatprep.mubr.f32.mxu0 0.0
    %4996 = vmatmul.mubr.f32.gmra.mrb[0].mxu0 %v1720
    %v4997 = vpop.f32.mrb[0].mxu0
    %v4998 = vadd.f32 0.0, %v4997
    %v4999 = vpop.f32.mrb[0].mxu0
    %5000 = vmatprep.mubr.f32.mxu0 0.0
    %5001 = vmatmul.mubr.f32.gmra.mrb[0].mxu0 %v1722
    %v5002 = vpop.f32.mrb[0].mxu0
    %v5003 = vadd.f32 0.0, %v5002
    %v5004 = vpop.f32.mrb[0].mxu0
    %5005 = vmatprep.mubr.f32.mxu0 0.0
    %5006 = vmatmul.mubr.f32.gmra.mrb[0].mxu0 %v1725
    %v5007 = vpop.f32.mrb[0].mxu0
    %v5008 = vadd.f32 0.0, %v5007
    %v5009 = vpop.f32.mrb[0].mxu0
    %5010 = vmatprep.mubr.f32.mxu0 0.0
    %5011 = vmatmul.mubr.f32.gmra.mrb[0].mxu0 %v1727
    %v5012 = vpop.f32.mrb[0].mxu0
    %v5013 = vadd.f32 0.0, %v5012
    %v5014 = vpop.f32.mrb[0].mxu0
    %5015 = vmatprep.mubr.f32.mxu0 0.0
    %5016 = vmatmul.mubr.f32.gmra.mrb[0].mxu0 %v1730
    %v5017 = vpop.f32.mrb[0].mxu0
    %v5018 = vadd.f32 0.0, %v5017
    %v5019 = vpop.f32.mrb[0].mxu0
    %5020 = vmatprep.mubr.f32.mxu0 0.0
    %5021 = vmatmul.mubr.f32.gmra.mrb[0].mxu0 %v1732
    %v5022 = vpop.f32.mrb[0].mxu0
    %v5023 = vadd.f32 0.0, %v5022
    %v5024 = vpop.f32.mrb[0].mxu0
    %5025 = vmatprep.mubr.f32.mxu0 0.0
    %5026 = vmatmul.mubr.f32.gmra.mrb[0].mxu0 %v1735
    %v5027 = vpop.f32.mrb[0].mxu0
    %v5028 = vadd.f32 0.0, %v5027
    %v5029 = vpop.f32.mrb[0].mxu0
    %5030 = vmatprep.mubr.f32.mxu0 0.0
    %5031 = vmatmul.mubr.f32.gmra.mrb[0].mxu0 %v1737
    %v5032 = vpop.f32.mrb[0].mxu0
    %v5033 = vadd.f32 0.0, %v5032
    %v5034 = vpop.f32.mrb[0].mxu0
    %5035 = vmatprep.mubr.f32.mxu0 0.0
    %5036 = vmatmul.mubr.f32.gmra.mrb[0].mxu0 %v1740
    %v5037 = vpop.f32.mrb[0].mxu0
    %v5038 = vadd.f32 0.0, %v5037
    %v5039 = vpop.f32.mrb[0].mxu0
    %5040 = vmatprep.mubr.f32.mxu0 0.0
    %5041 = vmatmul.mubr.f32.gmra.mrb[0].mxu0 %v1742
    %v5042 = vpop.f32.mrb[0].mxu0
    %v5043 = vadd.f32 0.0, %v5042
    %v5044 = vpop.f32.mrb[0].mxu0
    %5045 = vmatprep.mubr.f32.mxu0 0.0
    %5046 = vmatmul.mubr.f32.gmra.mrb[0].mxu0 %v3229
    %v5047 = vpop.f32.mrb[0].mxu0
    %v5048 = vadd.f32 0.0, %v5047
    %v5049 = vpop.f32.mrb[0].mxu0
    %5050 = vmatprep.mubr.f32.mxu0 0.0
    %5051 = vmatmul.mubr.f32.gmra.mrb[0].mxu0 %v3231
    %v5052 = vpop.f32.mrb[0].mxu0
    %v5053 = vadd.f32 0.0, %v5052
    %v5054 = vpop.f32.mrb[0].mxu0
    %5055 = vmatprep.mubr.f32.mxu0 0.0
    %5056 = vmatmul.mubr.f32.gmra.mrb[0].mxu0 %v4658
    %v5057 = vpop.f32.mrb[0].mxu0
    %v5058 = vadd.f32 0.0, %v5057
    %v5059 = vpop.f32.mrb[0].mxu0
    %5060 = vmatprep.mubr.f32.mxu0 0.0
    %5061 = vmatmul.mubr.f32.gmra.mrb[0].mxu0 %v4660
    %v5062 = vpop.f32.mrb[0].mxu0
    %v5063 = vadd.f32 0.0, %v5062
    %v5064 = vpop.f32.mrb[0].mxu0
    %5065 = vdwg.mxu0
    %v5066 = vadd.f32 %v4587, %v4748
    %v5067 = vadd.f32 %v4588, %v4753
    %v5068 = vadd.f32 %v4589, %v4758
    %v5069 = vadd.f32 %v4590, %v4763
    %v5070 = vadd.f32 %v4591, %v4768
    %v5071 = vadd.f32 %v4592, %v4773
    %v5072 = vadd.f32 %v4593, %v4778
    %v5073 = vadd.f32 %v4594, %v4783
    %v5074 = vadd.f32 %v4595, %v4788
    %v5075 = vadd.f32 %v4596, %v4793
    %v5076 = vadd.f32 %v4597, %v4798
    %v5077 = vadd.f32 %v4598, %v4803
    %v5078 = vadd.f32 %v4599, %v4808
    %v5079 = vadd.f32 %v4600, %v4813
    %v5080 = vadd.f32 %v4601, %v4818
    %v5081 = vadd.f32 %v4602, %v4823
    %v5082 = vadd.f32 %v4603, %v4828
    %v5083 = vadd.f32 %v4604, %v4833
    %v5084 = vadd.f32 %v4605, %v4838
    %v5085 = vadd.f32 %v4606, %v4843
    %v5086 = vadd.f32 %v4607, %v4848
    %v5087 = vadd.f32 %v4608, %v4853
    %v5088 = vadd.f32 %v4609, %v4858
    %v5089 = vadd.f32 %v4610, %v4863
    %v5090 = vadd.f32 %v4611, %v4868
    %v5091 = vadd.f32 %v4612, %v4873
    %v5092 = vadd.f32 %v4613, %v4878
    %v5093 = vadd.f32 %v4614, %v4883
    %v5094 = vadd.f32 %v4615, %v4888
    %v5095 = vadd.f32 %v4616, %v4893
    %v5096 = vadd.f32 %v4617, %v4898
    %v5097 = vadd.f32 %v4618, %v4903
    %v5098 = vadd.f32 %v4619, %v4908
    %v5099 = vadd.f32 %v4620, %v4913
    %v5100 = vadd.f32 %v4621, %v4918
    %v5101 = vadd.f32 %v4622, %v4923
    %v5102 = vadd.f32 %v4623, %v4928
    %v5103 = vadd.f32 %v4624, %v4933
    %v5104 = vadd.f32 %v4625, %v4938
    %v5105 = vadd.f32 %v4626, %v4943
    %v5106 = vadd.f32 %v4627, %v4948
    %v5107 = vadd.f32 %v4628, %v4953
    %v5108 = vadd.f32 %v4629, %v4958
    %v5109 = vadd.f32 %v4630, %v4963
    %v5110 = vadd.f32 %v4631, %v4968
    %v5111 = vadd.f32 %v4632, %v4973
    %v5112 = vadd.f32 %v4633, %v4978
    %v5113 = vadd.f32 %v4634, %v4983
    %v5114 = vadd.f32 %v4635, %v4988
    %v5115 = vadd.f32 %v4636, %v4993
    %v5116 = vadd.f32 %v4637, %v4998
    %v5117 = vadd.f32 %v4638, %v5003
    %v5118 = vadd.f32 %v4639, %v5008
    %v5119 = vadd.f32 %v4640, %v5013
    %v5120 = vadd.f32 %v4641, %v5018
    %v5121 = vadd.f32 %v4642, %v5023
    %v5122 = vadd.f32 %v4643, %v5028
    %v5123 = vadd.f32 %v4644, %v5033
    %v5124 = vadd.f32 %v4645, %v5038
    %v5125 = vadd.f32 %v4646, %v5043
    %v5126 = vadd.f32 %v4647, %v5048
    %v5127 = vadd.f32 %v4648, %v5053
    %v5128 = vadd.f32 %v4649, %v5058
    %v5129 = vadd.f32 %v4650, %v5063
    %v5130 = vld [vmem:[#allocation9] sm:$0x1]
    %v5131 = vld [vmem:[#allocation10] sm:$0x1]
    %v5132 = vadd.f32 %v5066, %v5067
    %v5133 = vadd.f32 %v5132, %v5068
    %v5134 = vadd.f32 %v5133, %v5069
    %v5135 = vadd.f32 %v5134, %v5070
    %v5136 = vadd.f32 %v5135, %v5071
    %v5137 = vadd.f32 %v5136, %v5072
    %v5138 = vadd.f32 %v5137, %v5073
    %v5139 = vadd.f32 %v5138, %v5074
    %v5140 = vadd.f32 %v5139, %v5075
    %v5141 = vadd.f32 %v5140, %v5076
    %v5142 = vadd.f32 %v5141, %v5077
    %v5143 = vadd.f32 %v5142, %v5078
    %v5144 = vadd.f32 %v5143, %v5079
    %v5145 = vadd.f32 %v5144, %v5080
    %v5146 = vadd.f32 %v5145, %v5081
    %v5147 = vadd.f32 %v5146, %v5082
    %v5148 = vadd.f32 %v5147, %v5083
    %v5149 = vadd.f32 %v5148, %v5084
    %v5150 = vadd.f32 %v5149, %v5085
    %v5151 = vadd.f32 %v5150, %v5086
    %v5152 = vadd.f32 %v5151, %v5087
    %v5153 = vadd.f32 %v5152, %v5088
    %v5154 = vadd.f32 %v5153, %v5089
    %v5155 = vadd.f32 %v5154, %v5090
    %v5156 = vadd.f32 %v5155, %v5091
    %v5157 = vadd.f32 %v5156, %v5092
    %v5158 = vadd.f32 %v5157, %v5093
    %v5159 = vadd.f32 %v5158, %v5094
    %v5160 = vadd.f32 %v5159, %v5095
    %v5161 = vadd.f32 %v5160, %v5096
    %v5162 = vadd.f32 %v5161, %v5097
    %v5163 = vadd.f32 %v5162, %v5098
    %v5164 = vadd.f32 %v5163, %v5099
    %v5165 = vadd.f32 %v5164, %v5100
    %v5166 = vadd.f32 %v5165, %v5101
    %v5167 = vadd.f32 %v5166, %v5102
    %v5168 = vadd.f32 %v5167, %v5103
    %v5169 = vadd.f32 %v5168, %v5104
    %v5170 = vadd.f32 %v5169, %v5105
    %v5171 = vadd.f32 %v5170, %v5106
    %v5172 = vadd.f32 %v5171, %v5107
    %v5173 = vadd.f32 %v5172, %v5108
    %v5174 = vadd.f32 %v5173, %v5109
    %v5175 = vadd.f32 %v5174, %v5110
    %v5176 = vadd.f32 %v5175, %v5111
    %v5177 = vadd.f32 %v5176, %v5112
    %v5178 = vadd.f32 %v5177, %v5113
    %v5179 = vadd.f32 %v5178, %v5114
    %v5180 = vadd.f32 %v5179, %v5115
    %v5181 = vadd.f32 %v5180, %v5116
    %v5182 = vadd.f32 %v5181, %v5117
    %v5183 = vadd.f32 %v5182, %v5118
    %v5184 = vadd.f32 %v5183, %v5119
    %v5185 = vadd.f32 %v5184, %v5120
    %v5186 = vadd.f32 %v5185, %v5121
    %v5187 = vadd.f32 %v5186, %v5122
    %v5188 = vadd.f32 %v5187, %v5123
    %v5189 = vadd.f32 %v5188, %v5124
    %v5190 = vadd.f32 %v5189, %v5125
    %v5191 = vadd.f32 %v5190, %v5126
    %v5192 = vadd.f32 %v5191, %v5127
    %v5193 = vadd.f32 %v5192, %v5128
    %v5194 = vadd.f32 %v5193, %v5129
    %v5195 = vrot.slane %v5194, 4
    %v5196 = vadd.f32 %v5194, %v5195
    %v5197 = vrot.slane %v5196, 2
    %v5198 = vadd.f32 %v5196, %v5197
    %v5199 = vrot.slane %v5198, 1
    %v5200 = vadd.f32 %v5198, %v5199
    %v5201 = vmul.f32 %v5066, %v5066
    %v5202 = vmul.f32 %v5067, %v5067
    %v5203 = vmul.f32 %v5068, %v5068
    %v5204 = vmul.f32 %v5069, %v5069
    %v5205 = vmul.f32 %v5070, %v5070
    %v5206 = vmul.f32 %v5071, %v5071
    %v5207 = vmul.f32 %v5072, %v5072
    %v5208 = vmul.f32 %v5073, %v5073
    %v5209 = vmul.f32 %v5074, %v5074
    %v5210 = vmul.f32 %v5075, %v5075
    %v5211 = vmul.f32 %v5076, %v5076
    %v5212 = vmul.f32 %v5077, %v5077
    %v5213 = vmul.f32 %v5078, %v5078
    %v5214 = vmul.f32 %v5079, %v5079
    %v5215 = vmul.f32 %v5080, %v5080
    %v5216 = vmul.f32 %v5081, %v5081
    %v5217 = vmul.f32 %v5082, %v5082
    %v5218 = vmul.f32 %v5083, %v5083
    %v5219 = vmul.f32 %v5084, %v5084
    %v5220 = vmul.f32 %v5085, %v5085
    %v5221 = vmul.f32 %v5086, %v5086
    %v5222 = vmul.f32 %v5087, %v5087
    %v5223 = vmul.f32 %v5088, %v5088
    %v5224 = vmul.f32 %v5089, %v5089
    %v5225 = vmul.f32 %v5090, %v5090
    %v5226 = vmul.f32 %v5091, %v5091
    %v5227 = vmul.f32 %v5092, %v5092
    %v5228 = vmul.f32 %v5093, %v5093
    %v5229 = vmul.f32 %v5094, %v5094
    %v5230 = vmul.f32 %v5095, %v5095
    %v5231 = vmul.f32 %v5096, %v5096
    %v5232 = vmul.f32 %v5097, %v5097
    %v5233 = vmul.f32 %v5098, %v5098
    %v5234 = vmul.f32 %v5099, %v5099
    %v5235 = vmul.f32 %v5100, %v5100
    %v5236 = vmul.f32 %v5101, %v5101
    %v5237 = vmul.f32 %v5102, %v5102
    %v5238 = vmul.f32 %v5103, %v5103
    %v5239 = vmul.f32 %v5104, %v5104
    %v5240 = vmul.f32 %v5105, %v5105
    %v5241 = vmul.f32 %v5106, %v5106
    %v5242 = vmul.f32 %v5107, %v5107
    %v5243 = vmul.f32 %v5108, %v5108
    %v5244 = vmul.f32 %v5109, %v5109
    %v5245 = vmul.f32 %v5110, %v5110
    %v5246 = vmul.f32 %v5111, %v5111
    %v5247 = vmul.f32 %v5112, %v5112
    %v5248 = vmul.f32 %v5113, %v5113
    %v5249 = vmul.f32 %v5114, %v5114
    %v5250 = vmul.f32 %v5115, %v5115
    %v5251 = vmul.f32 %v5116, %v5116
    %v5252 = vmul.f32 %v5117, %v5117
    %v5253 = vmul.f32 %v5118, %v5118
    %v5254 = vmul.f32 %v5119, %v5119
    %v5255 = vmul.f32 %v5120, %v5120
    %v5256 = vmul.f32 %v5121, %v5121
    %v5257 = vmul.f32 %v5122, %v5122
    %v5258 = vmul.f32 %v5123, %v5123
    %v5259 = vmul.f32 %v5124, %v5124
    %v5260 = vmul.f32 %v5125, %v5125
    %v5261 = vmul.f32 %v5126, %v5126
    %v5262 = vmul.f32 %v5127, %v5127
    %v5263 = vmul.f32 %v5128, %v5128
    %v5264 = vmul.f32 %v5129, %v5129
    %v5265 = vadd.f32 %v5201, %v5202
    %v5266 = vadd.f32 %v5265, %v5203
    %v5267 = vadd.f32 %v5266, %v5204
    %v5268 = vadd.f32 %v5267, %v5205
    %v5269 = vadd.f32 %v5268, %v5206
    %v5270 = vadd.f32 %v5269, %v5207
    %v5271 = vadd.f32 %v5270, %v5208
    %v5272 = vadd.f32 %v5271, %v5209
    %v5273 = vadd.f32 %v5272, %v5210
    %v5274 = vadd.f32 %v5273, %v5211
    %v5275 = vadd.f32 %v5274, %v5212
    %v5276 = vadd.f32 %v5275, %v5213
    %v5277 = vadd.f32 %v5276, %v5214
    %v5278 = vadd.f32 %v5277, %v5215
    %v5279 = vadd.f32 %v5278, %v5216
    %v5280 = vadd.f32 %v5279, %v5217
    %v5281 = vadd.f32 %v5280, %v5218
    %v5282 = vadd.f32 %v5281, %v5219
    %v5283 = vadd.f32 %v5282, %v5220
    %v5284 = vadd.f32 %v5283, %v5221
    %v5285 = vadd.f32 %v5284, %v5222
    %v5286 = vadd.f32 %v5285, %v5223
    %v5287 = vadd.f32 %v5286, %v5224
    %v5288 = vadd.f32 %v5287, %v5225
    %v5289 = vadd.f32 %v5288, %v5226
    %v5290 = vadd.f32 %v5289, %v5227
    %v5291 = vadd.f32 %v5290, %v5228
    %v5292 = vadd.f32 %v5291, %v5229
    %v5293 = vadd.f32 %v5292, %v5230
    %v5294 = vadd.f32 %v5293, %v5231
    %v5295 = vadd.f32 %v5294, %v5232
    %v5296 = vadd.f32 %v5295, %v5233
    %v5297 = vadd.f32 %v5296, %v5234
    %v5298 = vadd.f32 %v5297, %v5235
    %v5299 = vadd.f32 %v5298, %v5236
    %v5300 = vadd.f32 %v5299, %v5237
    %v5301 = vadd.f32 %v5300, %v5238
    %v5302 = vadd.f32 %v5301, %v5239
    %v5303 = vadd.f32 %v5302, %v5240
    %v5304 = vadd.f32 %v5303, %v5241
    %v5305 = vadd.f32 %v5304, %v5242
    %v5306 = vadd.f32 %v5305, %v5243
    %v5307 = vadd.f32 %v5306, %v5244
    %v5308 = vadd.f32 %v5307, %v5245
    %v5309 = vadd.f32 %v5308, %v5246
    %v5310 = vadd.f32 %v5309, %v5247
    %v5311 = vadd.f32 %v5310, %v5248
    %v5312 = vadd.f32 %v5311, %v5249
    %v5313 = vadd.f32 %v5312, %v5250
    %v5314 = vadd.f32 %v5313, %v5251
    %v5315 = vadd.f32 %v5314, %v5252
    %v5316 = vadd.f32 %v5315, %v5253
    %v5317 = vadd.f32 %v5316, %v5254
    %v5318 = vadd.f32 %v5317, %v5255
    %v5319 = vadd.f32 %v5318, %v5256
    %v5320 = vadd.f32 %v5319, %v5257
    %v5321 = vadd.f32 %v5320, %v5258
    %v5322 = vadd.f32 %v5321, %v5259
    %v5323 = vadd.f32 %v5322, %v5260
    %v5324 = vadd.f32 %v5323, %v5261
    %v5325 = vadd.f32 %v5324, %v5262
    %v5326 = vadd.f32 %v5325, %v5263
    %v5327 = vadd.f32 %v5326, %v5264
    %v5328 = vrot.slane %v5327, 4
    %v5329 = vadd.f32 %v5327, %v5328
    %v5330 = vrot.slane %v5329, 2
    %v5331 = vadd.f32 %v5329, %v5330
    %v5332 = vrot.slane %v5331, 1
    %v5333 = vadd.f32 %v5331, %v5332
    %v5334 = vmul.f32 %v5200, 0.001953125
    %v5335 = vmul.f32 %v5333, 0.001953125
    %v5336 = vmul.f32 %v5334, %v5334
    %v5337 = vsub.f32 %v5335, %v5336
    %v5338 = vmax.f32 %v5337, 0.0
    %v5339 = vadd.f32 %v5338, 1e-05
    %v5340 = vrsqrt.pop %v5339
    %v5341 = vmul.f32 %v5130, %v5340
    %v5342 = vmul.f32 %v5334, %v5341
    %v5343 = vsub.f32 %v5131, %v5342
    %v5345 = vlaneseq
    %v5346 = vshrl.u32 %v5345, 7
    %v5347 = vsub.s32 0, %v5346
    %v5348 = vrot.slane %v5341, %v5347
    %v5350 = vmul.f32 %v5066, %v5348
    %v5351 = vmul.f32 %v5067, %v5348
    %v5352 = vmul.f32 %v5068, %v5348
    %v5353 = vmul.f32 %v5069, %v5348
    %v5354 = vmul.f32 %v5070, %v5348
    %v5355 = vmul.f32 %v5071, %v5348
    %v5356 = vmul.f32 %v5072, %v5348
    %v5357 = vmul.f32 %v5073, %v5348
    %v5358 = vmul.f32 %v5074, %v5348
    %v5359 = vmul.f32 %v5075, %v5348
    %v5360 = vmul.f32 %v5076, %v5348
    %v5361 = vmul.f32 %v5077, %v5348
    %v5362 = vmul.f32 %v5078, %v5348
    %v5363 = vmul.f32 %v5079, %v5348
    %v5364 = vmul.f32 %v5080, %v5348
    %v5365 = vmul.f32 %v5081, %v5348
    %v5366 = vmul.f32 %v5082, %v5348
    %v5367 = vmul.f32 %v5083, %v5348
    %v5368 = vmul.f32 %v5084, %v5348
    %v5369 = vmul.f32 %v5085, %v5348
    %v5370 = vmul.f32 %v5086, %v5348
    %v5371 = vmul.f32 %v5087, %v5348
    %v5372 = vmul.f32 %v5088, %v5348
    %v5373 = vmul.f32 %v5089, %v5348
    %v5374 = vmul.f32 %v5090, %v5348
    %v5375 = vmul.f32 %v5091, %v5348
    %v5376 = vmul.f32 %v5092, %v5348
    %v5377 = vmul.f32 %v5093, %v5348
    %v5378 = vmul.f32 %v5094, %v5348
    %v5379 = vmul.f32 %v5095, %v5348
    %v5380 = vmul.f32 %v5096, %v5348
    %v5381 = vmul.f32 %v5097, %v5348
    %v5382 = vmul.f32 %v5098, %v5348
    %v5383 = vmul.f32 %v5099, %v5348
    %v5384 = vmul.f32 %v5100, %v5348
    %v5385 = vmul.f32 %v5101, %v5348
    %v5386 = vmul.f32 %v5102, %v5348
    %v5387 = vmul.f32 %v5103, %v5348
    %v5388 = vmul.f32 %v5104, %v5348
    %v5389 = vmul.f32 %v5105, %v5348
    %v5390 = vmul.f32 %v5106, %v5348
    %v5391 = vmul.f32 %v5107, %v5348
    %v5392 = vmul.f32 %v5108, %v5348
    %v5393 = vmul.f32 %v5109, %v5348
    %v5394 = vmul.f32 %v5110, %v5348
    %v5395 = vmul.f32 %v5111, %v5348
    %v5396 = vmul.f32 %v5112, %v5348
    %v5397 = vmul.f32 %v5113, %v5348
    %v5398 = vmul.f32 %v5114, %v5348
    %v5399 = vmul.f32 %v5115, %v5348
    %v5400 = vmul.f32 %v5116, %v5348
    %v5401 = vmul.f32 %v5117, %v5348
    %v5402 = vmul.f32 %v5118, %v5348
    %v5403 = vmul.f32 %v5119, %v5348
    %v5404 = vmul.f32 %v5120, %v5348
    %v5405 = vmul.f32 %v5121, %v5348
    %v5406 = vmul.f32 %v5122, %v5348
    %v5407 = vmul.f32 %v5123, %v5348
    %v5408 = vmul.f32 %v5124, %v5348
    %v5409 = vmul.f32 %v5125, %v5348
    %v5410 = vmul.f32 %v5126, %v5348
    %v5411 = vmul.f32 %v5127, %v5348
    %v5412 = vmul.f32 %v5128, %v5348
    %v5413 = vmul.f32 %v5129, %v5348
    %v5415 = vlaneseq
    %v5416 = vshrl.u32 %v5415, 7
    %v5417 = vsub.s32 0, %v5416
    %v5418 = vrot.slane %v5343, %v5417
    %v5420 = vadd.f32 %v5350, %v5418
    %v5421 = vadd.f32 %v5351, %v5418
    %v5422 = vadd.f32 %v5352, %v5418
    %v5423 = vadd.f32 %v5353, %v5418
    %v5424 = vadd.f32 %v5354, %v5418
    %v5425 = vadd.f32 %v5355, %v5418
    %v5426 = vadd.f32 %v5356, %v5418
    %v5427 = vadd.f32 %v5357, %v5418
    %v5428 = vadd.f32 %v5358, %v5418
    %v5429 = vadd.f32 %v5359, %v5418
    %v5430 = vadd.f32 %v5360, %v5418
    %v5431 = vadd.f32 %v5361, %v5418
    %v5432 = vadd.f32 %v5362, %v5418
    %v5433 = vadd.f32 %v5363, %v5418
    %v5434 = vadd.f32 %v5364, %v5418
    %v5435 = vadd.f32 %v5365, %v5418
    %v5436 = vadd.f32 %v5366, %v5418
    %v5437 = vadd.f32 %v5367, %v5418
    %v5438 = vadd.f32 %v5368, %v5418
    %v5439 = vadd.f32 %v5369, %v5418
    %v5440 = vadd.f32 %v5370, %v5418
    %v5441 = vadd.f32 %v5371, %v5418
    %v5442 = vadd.f32 %v5372, %v5418
    %v5443 = vadd.f32 %v5373, %v5418
    %v5444 = vadd.f32 %v5374, %v5418
    %v5445 = vadd.f32 %v5375, %v5418
    %v5446 = vadd.f32 %v5376, %v5418
    %v5447 = vadd.f32 %v5377, %v5418
    %v5448 = vadd.f32 %v5378, %v5418
    %v5449 = vadd.f32 %v5379, %v5418
    %v5450 = vadd.f32 %v5380, %v5418
    %v5451 = vadd.f32 %v5381, %v5418
    %v5452 = vadd.f32 %v5382, %v5418
    %v5453 = vadd.f32 %v5383, %v5418
    %v5454 = vadd.f32 %v5384, %v5418
    %v5455 = vadd.f32 %v5385, %v5418
    %v5456 = vadd.f32 %v5386, %v5418
    %v5457 = vadd.f32 %v5387, %v5418
    %v5458 = vadd.f32 %v5388, %v5418
    %v5459 = vadd.f32 %v5389, %v5418
    %v5460 = vadd.f32 %v5390, %v5418
    %v5461 = vadd.f32 %v5391, %v5418
    %v5462 = vadd.f32 %v5392, %v5418
    %v5463 = vadd.f32 %v5393, %v5418
    %v5464 = vadd.f32 %v5394, %v5418
    %v5465 = vadd.f32 %v5395, %v5418
    %v5466 = vadd.f32 %v5396, %v5418
    %v5467 = vadd.f32 %v5397, %v5418
    %v5468 = vadd.f32 %v5398, %v5418
    %v5469 = vadd.f32 %v5399, %v5418
    %v5470 = vadd.f32 %v5400, %v5418
    %v5471 = vadd.f32 %v5401, %v5418
    %v5472 = vadd.f32 %v5402, %v5418
    %v5473 = vadd.f32 %v5403, %v5418
    %v5474 = vadd.f32 %v5404, %v5418
    %v5475 = vadd.f32 %v5405, %v5418
    %v5476 = vadd.f32 %v5406, %v5418
    %v5477 = vadd.f32 %v5407, %v5418
    %v5478 = vadd.f32 %v5408, %v5418
    %v5479 = vadd.f32 %v5409, %v5418
    %v5480 = vadd.f32 %v5410, %v5418
    %v5481 = vadd.f32 %v5411, %v5418
    %v5482 = vadd.f32 %v5412, %v5418
    %v5483 = vadd.f32 %v5413, %v5418
    %5484 = vst [vmem:[#allocation3] sm:$0xff] 0.0
    %5485 = vst [vmem:[#allocation3 + $0x8] sm:$0xff] 0.0
    %5486 = vst [vmem:[#allocation3 + $0x10] sm:$0x3] 0.0
    %5487 = vst [vmem:[#allocation3 + $0x18] sm:$0xff] 0.0
    %5488 = vst [vmem:[#allocation3 + $0x20] sm:$0xff] 0.0
    %5489 = vst [vmem:[#allocation3 + $0x28] sm:$0x3] 0.0
    %5490 = vst [vmem:[#allocation3 + $0x30] sm:$0xff] 0.0
    %5491 = vst [vmem:[#allocation3 + $0x38] sm:$0xff] 0.0
    %5492 = vst [vmem:[#allocation3 + $0x40] sm:$0x3] 0.0
    %5493 = vst [vmem:[#allocation3 + $0x48] sm:$0xff] 0.0
    %5494 = vst [vmem:[#allocation3 + $0x50] sm:$0xff] 0.0
    %5495 = vst [vmem:[#allocation3 + $0x58] sm:$0x3] 0.0
    %5496 = vst [vmem:[#allocation3 + $0x60] sm:$0xff] 0.0
    %5497 = vst [vmem:[#allocation3 + $0x68] sm:$0xff] 0.0
    %5498 = vst [vmem:[#allocation3 + $0x70] sm:$0x3] 0.0
    %5499 = vst [vmem:[#allocation3 + $0x78] sm:$0xff] 0.0
    %5500 = vst [vmem:[#allocation3 + $0x80] sm:$0xff] 0.0
    %5501 = vst [vmem:[#allocation3 + $0x88] sm:$0x3] 0.0
    %5502 = vst [vmem:[#allocation3 + $0x90] sm:$0xff] 0.0
    %5503 = vst [vmem:[#allocation3 + $0x98] sm:$0xff] 0.0
    %5504 = vst [vmem:[#allocation3 + $0xa0] sm:$0x3] 0.0
    %5505 = vst [vmem:[#allocation3 + $0xa8] sm:$0xff] 0.0
    %5506 = vst [vmem:[#allocation3 + $0xb0] sm:$0xff] 0.0
    %5507 = vst [vmem:[#allocation3 + $0xb8] sm:$0x3] 0.0
    %5508 = vst [vmem:[#allocation3 + $0xc0] sm:$0xff] 0.0
    %5509 = vst [vmem:[#allocation3 + $0xc8] sm:$0xff] 0.0
    %5510 = vst [vmem:[#allocation3 + $0xd0] sm:$0x3] 0.0
    %5511 = vst [vmem:[#allocation3 + $0xd8] sm:$0xff] 0.0
    %5512 = vst [vmem:[#allocation3 + $0xe0] sm:$0xff] 0.0
    %5513 = vst [vmem:[#allocation3 + $0xe8] sm:$0x3] 0.0
    %5514 = vst [vmem:[#allocation3 + $0xf0] sm:$0xff] 0.0
    %5515 = vst [vmem:[#allocation3 + $0xf8] sm:$0xff] 0.0
    %5516 = vst [vmem:[#allocation3 + $0x100] sm:$0x3] 0.0
    %5517 = vst [vmem:[#allocation3 + $0x108] sm:$0xff] 0.0
    %5518 = vst [vmem:[#allocation3 + $0x110] sm:$0xff] 0.0
    %5519 = vst [vmem:[#allocation3 + $0x118] sm:$0x3] 0.0
    %5520 = vst [vmem:[#allocation3 + $0x120] sm:$0xff] 0.0
    %5521 = vst [vmem:[#allocation3 + $0x128] sm:$0xff] 0.0
    %5522 = vst [vmem:[#allocation3 + $0x130] sm:$0x3] 0.0
    %5523 = vst [vmem:[#allocation3 + $0x138] sm:$0xff] 0.0
    %5524 = vst [vmem:[#allocation3 + $0x140] sm:$0xff] 0.0
    %5525 = vst [vmem:[#allocation3 + $0x148] sm:$0x3] 0.0
    %5526 = vst [vmem:[#allocation3 + $0x150] sm:$0xff] 0.0
    %5527 = vst [vmem:[#allocation3 + $0x158] sm:$0xff] 0.0
    %5528 = vst [vmem:[#allocation3 + $0x160] sm:$0x3] 0.0
    %5529 = vst [vmem:[#allocation3 + $0x168] sm:$0xff] 0.0
    %5530 = vst [vmem:[#allocation3 + $0x170] sm:$0xff] 0.0
    %5531 = vst [vmem:[#allocation3 + $0x178] sm:$0x3] 0.0
    %5532 = vst [vmem:[#allocation3 + $0x180] sm:$0xff] 0.0
    %5533 = vst [vmem:[#allocation3 + $0x188] sm:$0xff] 0.0
    %5534 = vst [vmem:[#allocation3 + $0x190] sm:$0x3] 0.0
    %5535 = vst [vmem:[#allocation3 + $0x198] sm:$0xff] 0.0
    %5536 = vst [vmem:[#allocation3 + $0x1a0] sm:$0xff] 0.0
    %5537 = vst [vmem:[#allocation3 + $0x1a8] sm:$0x3] 0.0
    %5538 = vst [vmem:[#allocation3 + $0x1b0] sm:$0xff] 0.0
    %5539 = vst [vmem:[#allocation3 + $0x1b8] sm:$0xff] 0.0
    %5540 = vst [vmem:[#allocation3 + $0x1c0] sm:$0x3] 0.0
    %5541 = vst [vmem:[#allocation3 + $0x1c8] sm:$0xff] 0.0
    %5542 = vst [vmem:[#allocation3 + $0x1d0] sm:$0xff] 0.0
    %5543 = vst [vmem:[#allocation3 + $0x1d8] sm:$0x3] 0.0
    %5544 = vst [vmem:[#allocation3 + $0x1e0] sm:$0xff] 0.0
    %5545 = vst [vmem:[#allocation3 + $0x1e8] sm:$0xff] 0.0
    %5546 = vst [vmem:[#allocation3 + $0x1f0] sm:$0x3] 0.0
    %5547 = vst [vmem:[#allocation3 + $0x1f8] sm:$0xff] 0.0
    %5548 = vst [vmem:[#allocation3 + $0x200] sm:$0xff] 0.0
    %5549 = vst [vmem:[#allocation3 + $0x208] sm:$0x3] 0.0
    %5550 = vst [vmem:[#allocation3 + $0x210] sm:$0xff] 0.0
    %5551 = vst [vmem:[#allocation3 + $0x218] sm:$0xff] 0.0
    %5552 = vst [vmem:[#allocation3 + $0x220] sm:$0x3] 0.0
    %5553 = vst [vmem:[#allocation3 + $0x228] sm:$0xff] 0.0
    %5554 = vst [vmem:[#allocation3 + $0x230] sm:$0xff] 0.0
    %5555 = vst [vmem:[#allocation3 + $0x238] sm:$0x3] 0.0
    %5556 = vst [vmem:[#allocation3 + $0x240] sm:$0xff] 0.0
    %5557 = vst [vmem:[#allocation3 + $0x248] sm:$0xff] 0.0
    %5558 = vst [vmem:[#allocation3 + $0x250] sm:$0x3] 0.0
    %5559 = vst [vmem:[#allocation3 + $0x258] sm:$0xff] 0.0
    %5560 = vst [vmem:[#allocation3 + $0x260] sm:$0xff] 0.0
    %5561 = vst [vmem:[#allocation3 + $0x268] sm:$0x3] 0.0
    %5562 = vst [vmem:[#allocation3 + $0x270] sm:$0xff] 0.0
    %5563 = vst [vmem:[#allocation3 + $0x278] sm:$0xff] 0.0
    %5564 = vst [vmem:[#allocation3 + $0x280] sm:$0x3] 0.0
    %5565 = vst [vmem:[#allocation3 + $0x288] sm:$0xff] 0.0
    %5566 = vst [vmem:[#allocation3 + $0x290] sm:$0xff] 0.0
    %5567 = vst [vmem:[#allocation3 + $0x298] sm:$0x3] 0.0
    %5568 = vst [vmem:[#allocation3 + $0x2a0] sm:$0xff] 0.0
    %5569 = vst [vmem:[#allocation3 + $0x2a8] sm:$0xff] 0.0
    %5570 = vst [vmem:[#allocation3 + $0x2b0] sm:$0x3] 0.0
    %5571 = vst [vmem:[#allocation3 + $0x2b8] sm:$0xff] 0.0
    %5572 = vst [vmem:[#allocation3 + $0x2c0] sm:$0xff] 0.0
    %5573 = vst [vmem:[#allocation3 + $0x2c8] sm:$0x3] 0.0
    %5574 = vst [vmem:[#allocation3 + $0x2d0] sm:$0xff] 0.0
    %5575 = vst [vmem:[#allocation3 + $0x2d8] sm:$0xff] 0.0
    %5576 = vst [vmem:[#allocation3 + $0x2e0] sm:$0x3] 0.0
    %5577 = vst [vmem:[#allocation3 + $0x2e8] sm:$0xff] 0.0
    %5578 = vst [vmem:[#allocation3 + $0x2f0] sm:$0xff] 0.0
    %5579 = vst [vmem:[#allocation3 + $0x2f8] sm:$0x3] 0.0
    %5580 = vst [vmem:[#allocation3 + $0x300] sm:$0xff] 0.0
    %5581 = vst [vmem:[#allocation3 + $0x308] sm:$0xff] 0.0
    %5582 = vst [vmem:[#allocation3 + $0x310] sm:$0x3] 0.0
    %5583 = vst [vmem:[#allocation3 + $0x318] sm:$0xff] 0.0
    %5584 = vst [vmem:[#allocation3 + $0x320] sm:$0xff] 0.0
    %5585 = vst [vmem:[#allocation3 + $0x328] sm:$0x3] 0.0
    %5586 = vst [vmem:[#allocation3 + $0x330] sm:$0xff] 0.0
    %5587 = vst [vmem:[#allocation3 + $0x338] sm:$0xff] 0.0
    %5588 = vst [vmem:[#allocation3 + $0x340] sm:$0x3] 0.0
    %5589 = vst [vmem:[#allocation3 + $0x348] sm:$0xff] 0.0
    %5590 = vst [vmem:[#allocation3 + $0x350] sm:$0xff] 0.0
    %5591 = vst [vmem:[#allocation3 + $0x358] sm:$0x3] 0.0
    %s5592 = scalar_lea.vmem [#allocation3], 24
    %5593 = vst [vmem:[%s5592 + $0x1] sm:$0xff] %v5420
    %5594 = vst [vmem:[%s5592 + $0x9] sm:$0xff] %v5421
    %5595 = vst [vmem:[%s5592 + $0x19] sm:$0xff] %v5422
    %5596 = vst [vmem:[%s5592 + $0x21] sm:$0xff] %v5423
    %5597 = vst [vmem:[%s5592 + $0x31] sm:$0xff] %v5424
    %5598 = vst [vmem:[%s5592 + $0x39] sm:$0xff] %v5425
    %5599 = vst [vmem:[%s5592 + $0x49] sm:$0xff] %v5426
    %5600 = vst [vmem:[%s5592 + $0x51] sm:$0xff] %v5427
    %5601 = vst [vmem:[%s5592 + $0x61] sm:$0xff] %v5428
    %5602 = vst [vmem:[%s5592 + $0x69] sm:$0xff] %v5429
    %5603 = vst [vmem:[%s5592 + $0x79] sm:$0xff] %v5430
    %5604 = vst [vmem:[%s5592 + $0x81] sm:$0xff] %v5431
    %5605 = vst [vmem:[%s5592 + $0x91] sm:$0xff] %v5432
    %5606 = vst [vmem:[%s5592 + $0x99] sm:$0xff] %v5433
    %5607 = vst [vmem:[%s5592 + $0xa9] sm:$0xff] %v5434
    %5608 = vst [vmem:[%s5592 + $0xb1] sm:$0xff] %v5435
    %5609 = vst [vmem:[%s5592 + $0xc1] sm:$0xff] %v5436
    %5610 = vst [vmem:[%s5592 + $0xc9] sm:$0xff] %v5437
    %5611 = vst [vmem:[%s5592 + $0xd9] sm:$0xff] %v5438
    %5612 = vst [vmem:[%s5592 + $0xe1] sm:$0xff] %v5439
    %5613 = vst [vmem:[%s5592 + $0xf1] sm:$0xff] %v5440
    %5614 = vst [vmem:[%s5592 + $0xf9] sm:$0xff] %v5441
    %5615 = vst [vmem:[%s5592 + $0x109] sm:$0xff] %v5442
    %5616 = vst [vmem:[%s5592 + $0x111] sm:$0xff] %v5443
    %5617 = vst [vmem:[%s5592 + $0x121] sm:$0xff] %v5444
    %5618 = vst [vmem:[%s5592 + $0x129] sm:$0xff] %v5445
    %5619 = vst [vmem:[%s5592 + $0x139] sm:$0xff] %v5446
    %5620 = vst [vmem:[%s5592 + $0x141] sm:$0xff] %v5447
    %5621 = vst [vmem:[%s5592 + $0x151] sm:$0xff] %v5448
    %5622 = vst [vmem:[%s5592 + $0x159] sm:$0xff] %v5449
    %5623 = vst [vmem:[%s5592 + $0x169] sm:$0xff] %v5450
    %5624 = vst [vmem:[%s5592 + $0x171] sm:$0xff] %v5451
    %5625 = vst [vmem:[%s5592 + $0x1b1] sm:$0xff] %v5452
    %5626 = vst [vmem:[%s5592 + $0x1b9] sm:$0xff] %v5453
    %5627 = vst [vmem:[%s5592 + $0x1c9] sm:$0xff] %v5454
    %5628 = vst [vmem:[%s5592 + $0x1d1] sm:$0xff] %v5455
    %5629 = vst [vmem:[%s5592 + $0x1e1] sm:$0xff] %v5456
    %5630 = vst [vmem:[%s5592 + $0x1e9] sm:$0xff] %v5457
    %5631 = vst [vmem:[%s5592 + $0x1f9] sm:$0xff] %v5458
    %5632 = vst [vmem:[%s5592 + $0x201] sm:$0xff] %v5459
    %5633 = vst [vmem:[%s5592 + $0x211] sm:$0xff] %v5460
    %5634 = vst [vmem:[%s5592 + $0x219] sm:$0xff] %v5461
    %5635 = vst [vmem:[%s5592 + $0x229] sm:$0xff] %v5462
    %5636 = vst [vmem:[%s5592 + $0x231] sm:$0xff] %v5463
    %5637 = vst [vmem:[%s5592 + $0x241] sm:$0xff] %v5464
    %5638 = vst [vmem:[%s5592 + $0x249] sm:$0xff] %v5465
    %5639 = vst [vmem:[%s5592 + $0x259] sm:$0xff] %v5466
    %5640 = vst [vmem:[%s5592 + $0x261] sm:$0xff] %v5467
    %5641 = vst [vmem:[%s5592 + $0x271] sm:$0xff] %v5468
    %5642 = vst [vmem:[%s5592 + $0x279] sm:$0xff] %v5469
    %5643 = vst [vmem:[%s5592 + $0x289] sm:$0xff] %v5470
    %5644 = vst [vmem:[%s5592 + $0x291] sm:$0xff] %v5471
    %5645 = vst [vmem:[%s5592 + $0x2a1] sm:$0xff] %v5472
    %5646 = vst [vmem:[%s5592 + $0x2a9] sm:$0xff] %v5473
    %5647 = vst [vmem:[%s5592 + $0x2b9] sm:$0xff] %v5474
    %5648 = vst [vmem:[%s5592 + $0x2c1] sm:$0xff] %v5475
    %5649 = vst [vmem:[%s5592 + $0x2d1] sm:$0xff] %v5476
    %5650 = vst [vmem:[%s5592 + $0x2d9] sm:$0xff] %v5477
    %5651 = vst [vmem:[%s5592 + $0x2e9] sm:$0xff] %v5478
    %5652 = vst [vmem:[%s5592 + $0x2f1] sm:$0xff] %v5479
    %5653 = vst [vmem:[%s5592 + $0x301] sm:$0xff] %v5480
    %5654 = vst [vmem:[%s5592 + $0x309] sm:$0xff] %v5481
    %5655 = vst [vmem:[%s5592 + $0x319] sm:$0xff] %v5482
    %5656 = vst [vmem:[%s5592 + $0x321] sm:$0xff] %v5483
    %v5657 = vld [vmem:[#allocation3] sm:$0xff]
    %v5658 = vld [vmem:[#allocation3 + $0x8] sm:$0xff]
    %v5659 = vld [vmem:[#allocation3 + $0x10] sm:$0x3]
    %v5660 = vld [vmem:[#allocation3 + $0x18] sm:$0xff]
    %v5661 = vld [vmem:[#allocation3 + $0x20] sm:$0xff]
    %v5662 = vld [vmem:[#allocation3 + $0x28] sm:$0x3]
    %v5663 = vld [vmem:[#allocation3 + $0x30] sm:$0xff]
    %v5664 = vld [vmem:[#allocation3 + $0x38] sm:$0xff]
    %v5665 = vld [vmem:[#allocation3 + $0x40] sm:$0x3]
    %v5666 = vld [vmem:[#allocation3 + $0x48] sm:$0xff]
    %v5667 = vld [vmem:[#allocation3 + $0x50] sm:$0xff]
    %v5668 = vld [vmem:[#allocation3 + $0x58] sm:$0x3]
    %v5669 = vld [vmem:[#allocation3 + $0x60] sm:$0xff]
    %v5670 = vld [vmem:[#allocation3 + $0x68] sm:$0xff]
    %v5671 = vld [vmem:[#allocation3 + $0x70] sm:$0x3]
    %v5672 = vld [vmem:[#allocation3 + $0x78] sm:$0xff]
    %v5673 = vld [vmem:[#allocation3 + $0x80] sm:$0xff]
    %v5674 = vld [vmem:[#allocation3 + $0x88] sm:$0x3]
    %v5675 = vld [vmem:[#allocation3 + $0x90] sm:$0xff]
    %v5676 = vld [vmem:[#allocation3 + $0x98] sm:$0xff]
    %v5677 = vld [vmem:[#allocation3 + $0xa0] sm:$0x3]
    %v5678 = vld [vmem:[#allocation3 + $0xa8] sm:$0xff]
    %v5679 = vld [vmem:[#allocation3 + $0xb0] sm:$0xff]
    %v5680 = vld [vmem:[#allocation3 + $0xb8] sm:$0x3]
    %v5681 = vld [vmem:[#allocation3 + $0xc0] sm:$0xff]
    %v5682 = vld [vmem:[#allocation3 + $0xc8] sm:$0xff]
    %v5683 = vld [vmem:[#allocation3 + $0xd0] sm:$0x3]
    %v5684 = vld [vmem:[#allocation3 + $0xd8] sm:$0xff]
    %v5685 = vld [vmem:[#allocation3 + $0xe0] sm:$0xff]
    %v5686 = vld [vmem:[#allocation3 + $0xe8] sm:$0x3]
    %v5687 = vld [vmem:[#allocation3 + $0xf0] sm:$0xff]
    %v5688 = vld [vmem:[#allocation3 + $0xf8] sm:$0xff]
    %v5689 = vld [vmem:[#allocation3 + $0x100] sm:$0x3]
    %v5690 = vld [vmem:[#allocation3 + $0x108] sm:$0xff]
    %v5691 = vld [vmem:[#allocation3 + $0x110] sm:$0xff]
    %v5692 = vld [vmem:[#allocation3 + $0x118] sm:$0x3]
    %v5693 = vld [vmem:[#allocation3 + $0x120] sm:$0xff]
    %v5694 = vld [vmem:[#allocation3 + $0x128] sm:$0xff]
    %v5695 = vld [vmem:[#allocation3 + $0x130] sm:$0x3]
    %v5696 = vld [vmem:[#allocation3 + $0x138] sm:$0xff]
    %v5697 = vld [vmem:[#allocation3 + $0x140] sm:$0xff]
    %v5698 = vld [vmem:[#allocation3 + $0x148] sm:$0x3]
    %v5699 = vld [vmem:[#allocation3 + $0x150] sm:$0xff]
    %v5700 = vld [vmem:[#allocation3 + $0x158] sm:$0xff]
    %v5701 = vld [vmem:[#allocation3 + $0x160] sm:$0x3]
    %v5702 = vld [vmem:[#allocation3 + $0x168] sm:$0xff]
    %v5703 = vld [vmem:[#allocation3 + $0x170] sm:$0xff]
    %v5704 = vld [vmem:[#allocation3 + $0x178] sm:$0x3]
    %v5705 = vld [vmem:[#allocation3 + $0x180] sm:$0xff]
    %v5706 = vld [vmem:[#allocation3 + $0x188] sm:$0xff]
    %v5707 = vld [vmem:[#allocation3 + $0x190] sm:$0x3]
    %v5708 = vld [vmem:[#allocation3 + $0x198] sm:$0xff]
    %v5709 = vld [vmem:[#allocation3 + $0x1a0] sm:$0xff]
    %v5710 = vld [vmem:[#allocation3 + $0x1a8] sm:$0x3]
    %v5711 = vld [vmem:[#allocation3 + $0x1b0] sm:$0xff]
    %v5712 = vld [vmem:[#allocation3 + $0x1b8] sm:$0xff]
    %v5713 = vld [vmem:[#allocation3 + $0x1c0] sm:$0x3]
    %v5714 = vld [vmem:[#allocation3 + $0x1c8] sm:$0xff]
    %v5715 = vld [vmem:[#allocation3 + $0x1d0] sm:$0xff]
    %v5716 = vld [vmem:[#allocation3 + $0x1d8] sm:$0x3]
    %v5717 = vld [vmem:[#allocation3 + $0x1e0] sm:$0xff]
    %v5718 = vld [vmem:[#allocation3 + $0x1e8] sm:$0xff]
    %v5719 = vld [vmem:[#allocation3 + $0x1f0] sm:$0x3]
    %v5720 = vld [vmem:[#allocation3 + $0x1f8] sm:$0xff]
    %v5721 = vld [vmem:[#allocation3 + $0x200] sm:$0xff]
    %v5722 = vld [vmem:[#allocation3 + $0x208] sm:$0x3]
    %v5723 = vld [vmem:[#allocation3 + $0x210] sm:$0xff]
    %v5724 = vld [vmem:[#allocation3 + $0x218] sm:$0xff]
    %v5725 = vld [vmem:[#allocation3 + $0x220] sm:$0x3]
    %v5726 = vld [vmem:[#allocation3 + $0x228] sm:$0xff]
    %v5727 = vld [vmem:[#allocation3 + $0x230] sm:$0xff]
    %v5728 = vld [vmem:[#allocation3 + $0x238] sm:$0x3]
    %v5729 = vld [vmem:[#allocation3 + $0x240] sm:$0xff]
    %v5730 = vld [vmem:[#allocation3 + $0x248] sm:$0xff]
    %v5731 = vld [vmem:[#allocation3 + $0x250] sm:$0x3]
    %v5732 = vld [vmem:[#allocation3 + $0x258] sm:$0xff]
    %v5733 = vld [vmem:[#allocation3 + $0x260] sm:$0xff]
    %v5734 = vld [vmem:[#allocation3 + $0x268] sm:$0x3]
    %v5735 = vld [vmem:[#allocation3 + $0x270] sm:$0xff]
    %v5736 = vld [vmem:[#allocation3 + $0x278] sm:$0xff]
    %v5737 = vld [vmem:[#allocation3 + $0x280] sm:$0x3]
    %v5738 = vld [vmem:[#allocation3 + $0x288] sm:$0xff]
    %v5739 = vld [vmem:[#allocation3 + $0x290] sm:$0xff]
    %v5740 = vld [vmem:[#allocation3 + $0x298] sm:$0x3]
    %v5741 = vld [vmem:[#allocation3 + $0x2a0] sm:$0xff]
    %v5742 = vld [vmem:[#allocation3 + $0x2a8] sm:$0xff]
    %v5743 = vld [vmem:[#allocation3 + $0x2b0] sm:$0x3]
    %v5744 = vld [vmem:[#allocation3 + $0x2b8] sm:$0xff]
    %v5745 = vld [vmem:[#allocation3 + $0x2c0] sm:$0xff]
    %v5746 = vld [vmem:[#allocation3 + $0x2c8] sm:$0x3]
    %v5747 = vld [vmem:[#allocation3 + $0x2d0] sm:$0xff]
    %v5748 = vld [vmem:[#allocation3 + $0x2d8] sm:$0xff]
    %v5749 = vld [vmem:[#allocation3 + $0x2e0] sm:$0x3]
    %v5750 = vld [vmem:[#allocation3 + $0x2e8] sm:$0xff]
    %v5751 = vld [vmem:[#allocation3 + $0x2f0] sm:$0xff]
    %v5752 = vld [vmem:[#allocation3 + $0x2f8] sm:$0x3]
    %v5753 = vld [vmem:[#allocation3 + $0x300] sm:$0xff]
    %v5754 = vld [vmem:[#allocation3 + $0x308] sm:$0xff]
    %v5755 = vld [vmem:[#allocation3 + $0x310] sm:$0x3]
    %v5756 = vld [vmem:[#allocation3 + $0x318] sm:$0xff]
    %v5757 = vld [vmem:[#allocation3 + $0x320] sm:$0xff]
    %v5758 = vld [vmem:[#allocation3 + $0x328] sm:$0x3]
    %v5759 = vld [vmem:[#allocation3 + $0x330] sm:$0xff]
    %v5760 = vld [vmem:[#allocation3 + $0x338] sm:$0xff]
    %v5761 = vld [vmem:[#allocation3 + $0x340] sm:$0x3]
    %v5762 = vld [vmem:[#allocation3 + $0x348] sm:$0xff]
    %v5763 = vld [vmem:[#allocation3 + $0x350] sm:$0xff]
    %v5764 = vld [vmem:[#allocation3 + $0x358] sm:$0x3]
    %v5765 = vld [vmem:[#allocation12] sm:$0xff]
    %v5766 = vld [vmem:[#allocation12 + $0x8] sm:$0xff]
    %v5767 = vld [vmem:[#allocation12 + $0x10] sm:$0xff]
    %v5768 = vld [vmem:[#allocation12 + $0x18] sm:$0xff]
    %v5769 = vld [vmem:[#allocation12 + $0x20] sm:$0xff]
    %v5770 = vld [vmem:[#allocation12 + $0x28] sm:$0xff]
    %v5771 = vld [vmem:[#allocation12 + $0x30] sm:$0xff]
    %v5772 = vld [vmem:[#allocation12 + $0x38] sm:$0xff]
    %v5773 = vld [vmem:[#allocation12 + $0x40] sm:$0xff]
    %v5774 = vld [vmem:[#allocation12 + $0x48] sm:$0xff]
    %v5775 = vld [vmem:[#allocation12 + $0x50] sm:$0xff]
    %v5776 = vld [vmem:[#allocation12 + $0x58] sm:$0xff]
    %v5777 = vld [vmem:[#allocation12 + $0x60] sm:$0xff]
    %v5778 = vld [vmem:[#allocation12 + $0x68] sm:$0xff]
    %v5779 = vld [vmem:[#allocation12 + $0x70] sm:$0xff]
    %v5780 = vld [vmem:[#allocation12 + $0x78] sm:$0xff]
    %v5877 = vrot.slane %v5657, 1
    %v5878 = vrot.slane %v5658, 1
    %v5879 = vsel %vm571, %v5877, %v5878
    %v5880 = vrot.slane %v5659, 1
    %v5881 = vsel %vm571, %v5878, %v5880
    %v5882 = vrot.slane %v5660, 1
    %v5883 = vrot.slane %v5661, 1
    %v5884 = vsel %vm571, %v5882, %v5883
    %v5885 = vrot.slane %v5662, 1
    %v5886 = vsel %vm571, %v5883, %v5885
    %v5887 = vrot.slane %v5663, 1
    %v5888 = vrot.slane %v5664, 1
    %v5889 = vsel %vm571, %v5887, %v5888
    %v5890 = vrot.slane %v5665, 1
    %v5891 = vsel %vm571, %v5888, %v5890
    %v5892 = vrot.slane %v5666, 1
    %v5893 = vrot.slane %v5667, 1
    %v5894 = vsel %vm571, %v5892, %v5893
    %v5895 = vrot.slane %v5668, 1
    %v5896 = vsel %vm571, %v5893, %v5895
    %v5897 = vrot.slane %v5669, 1
    %v5898 = vrot.slane %v5670, 1
    %v5899 = vsel %vm571, %v5897, %v5898
    %v5900 = vrot.slane %v5671, 1
    %v5901 = vsel %vm571, %v5898, %v5900
    %v5902 = vrot.slane %v5672, 1
    %v5903 = vrot.slane %v5673, 1
    %v5904 = vsel %vm571, %v5902, %v5903
    %v5905 = vrot.slane %v5674, 1
    %v5906 = vsel %vm571, %v5903, %v5905
    %v5907 = vrot.slane %v5675, 1
    %v5908 = vrot.slane %v5676, 1
    %v5909 = vsel %vm571, %v5907, %v5908
    %v5910 = vrot.slane %v5677, 1
    %v5911 = vsel %vm571, %v5908, %v5910
    %v5912 = vrot.slane %v5678, 1
    %v5913 = vrot.slane %v5679, 1
    %v5914 = vsel %vm571, %v5912, %v5913
    %v5915 = vrot.slane %v5680, 1
    %v5916 = vsel %vm571, %v5913, %v5915
    %v5917 = vrot.slane %v5681, 1
    %v5918 = vrot.slane %v5682, 1
    %v5919 = vsel %vm571, %v5917, %v5918
    %v5920 = vrot.slane %v5683, 1
    %v5921 = vsel %vm571, %v5918, %v5920
    %v5922 = vrot.slane %v5684, 1
    %v5923 = vrot.slane %v5685, 1
    %v5924 = vsel %vm571, %v5922, %v5923
    %v5925 = vrot.slane %v5686, 1
    %v5926 = vsel %vm571, %v5923, %v5925
    %v5927 = vrot.slane %v5687, 1
    %v5928 = vrot.slane %v5688, 1
    %v5929 = vsel %vm571, %v5927, %v5928
    %v5930 = vrot.slane %v5689, 1
    %v5931 = vsel %vm571, %v5928, %v5930
    %v5932 = vrot.slane %v5690, 1
    %v5933 = vrot.slane %v5691, 1
    %v5934 = vsel %vm571, %v5932, %v5933
    %v5935 = vrot.slane %v5692, 1
    %v5936 = vsel %vm571, %v5933, %v5935
    %v5937 = vrot.slane %v5693, 1
    %v5938 = vrot.slane %v5694, 1
    %v5939 = vsel %vm571, %v5937, %v5938
    %v5940 = vrot.slane %v5695, 1
    %v5941 = vsel %vm571, %v5938, %v5940
    %v5942 = vrot.slane %v5696, 1
    %v5943 = vrot.slane %v5697, 1
    %v5944 = vsel %vm571, %v5942, %v5943
    %v5945 = vrot.slane %v5698, 1
    %v5946 = vsel %vm571, %v5943, %v5945
    %v5947 = vrot.slane %v5699, 1
    %v5948 = vrot.slane %v5700, 1
    %v5949 = vsel %vm571, %v5947, %v5948
    %v5950 = vrot.slane %v5701, 1
    %v5951 = vsel %vm571, %v5948, %v5950
    %v5952 = vrot.slane %v5702, 1
    %v5953 = vrot.slane %v5703, 1
    %v5954 = vsel %vm571, %v5952, %v5953
    %v5955 = vrot.slane %v5704, 1
    %v5956 = vsel %vm571, %v5953, %v5955
    %v5957 = vrot.slane %v5711, 1
    %v5958 = vrot.slane %v5712, 1
    %v5959 = vsel %vm571, %v5957, %v5958
    %v5960 = vrot.slane %v5713, 1
    %v5961 = vsel %vm571, %v5958, %v5960
    %v5962 = vrot.slane %v5714, 1
    %v5963 = vrot.slane %v5715, 1
    %v5964 = vsel %vm571, %v5962, %v5963
    %v5965 = vrot.slane %v5716, 1
    %v5966 = vsel %vm571, %v5963, %v5965
    %v5967 = vrot.slane %v5717, 1
    %v5968 = vrot.slane %v5718, 1
    %v5969 = vsel %vm571, %v5967, %v5968
    %v5970 = vrot.slane %v5719, 1
    %v5971 = vsel %vm571, %v5968, %v5970
    %v5972 = vrot.slane %v5720, 1
    %v5973 = vrot.slane %v5721, 1
    %v5974 = vsel %vm571, %v5972, %v5973
    %v5975 = vrot.slane %v5722, 1
    %v5976 = vsel %vm571, %v5973, %v5975
    %v5977 = vrot.slane %v5723, 1
    %v5978 = vrot.slane %v5724, 1
    %v5979 = vsel %vm571, %v5977, %v5978
    %v5980 = vrot.slane %v5725, 1
    %v5981 = vsel %vm571, %v5978, %v5980
    %v5982 = vrot.slane %v5726, 1
    %v5983 = vrot.slane %v5727, 1
    %v5984 = vsel %vm571, %v5982, %v5983
    %v5985 = vrot.slane %v5728, 1
    %v5986 = vsel %vm571, %v5983, %v5985
    %v5987 = vrot.slane %v5729, 1
    %v5988 = vrot.slane %v5730, 1
    %v5989 = vsel %vm571, %v5987, %v5988
    %v5990 = vrot.slane %v5731, 1
    %v5991 = vsel %vm571, %v5988, %v5990
    %v5992 = vrot.slane %v5732, 1
    %v5993 = vrot.slane %v5733, 1
    %v5994 = vsel %vm571, %v5992, %v5993
    %v5995 = vrot.slane %v5734, 1
    %v5996 = vsel %vm571, %v5993, %v5995
    %v5997 = vrot.slane %v5735, 1
    %v5998 = vrot.slane %v5736, 1
    %v5999 = vsel %vm571, %v5997, %v5998
    %v6000 = vrot.slane %v5737, 1
    %v6001 = vsel %vm571, %v5998, %v6000
    %v6002 = vrot.slane %v5738, 1
    %v6003 = vrot.slane %v5739, 1
    %v6004 = vsel %vm571, %v6002, %v6003
    %v6005 = vrot.slane %v5740, 1
    %v6006 = vsel %vm571, %v6003, %v6005
    %v6007 = vrot.slane %v5741, 1
    %v6008 = vrot.slane %v5742, 1
    %v6009 = vsel %vm571, %v6007, %v6008
    %v6010 = vrot.slane %v5743, 1
    %v6011 = vsel %vm571, %v6008, %v6010
    %v6012 = vrot.slane %v5744, 1
    %v6013 = vrot.slane %v5745, 1
    %v6014 = vsel %vm571, %v6012, %v6013
    %v6015 = vrot.slane %v5746, 1
    %v6016 = vsel %vm571, %v6013, %v6015
    %v6017 = vrot.slane %v5747, 1
    %v6018 = vrot.slane %v5748, 1
    %v6019 = vsel %vm571, %v6017, %v6018
    %v6020 = vrot.slane %v5749, 1
    %v6021 = vsel %vm571, %v6018, %v6020
    %v6022 = vrot.slane %v5750, 1
    %v6023 = vrot.slane %v5751, 1
    %v6024 = vsel %vm571, %v6022, %v6023
    %v6025 = vrot.slane %v5752, 1
    %v6026 = vsel %vm571, %v6023, %v6025
    %v6027 = vrot.slane %v5753, 1
    %v6028 = vrot.slane %v5754, 1
    %v6029 = vsel %vm571, %v6027, %v6028
    %v6030 = vrot.slane %v5755, 1
    %v6031 = vsel %vm571, %v6028, %v6030
    %v6032 = vrot.slane %v5756, 1
    %v6033 = vrot.slane %v5757, 1
    %v6034 = vsel %vm571, %v6032, %v6033
    %v6035 = vrot.slane %v5758, 1
    %v6036 = vsel %vm571, %v6033, %v6035
    %v6101 = vld [vmem:[#allocation12 + $0x80] sm:$0xff]
    %v6102 = vld [vmem:[#allocation12 + $0x88] sm:$0xff]
    %v6103 = vld [vmem:[#allocation12 + $0x90] sm:$0xff]
    %v6104 = vld [vmem:[#allocation12 + $0x98] sm:$0xff]
    %v6105 = vld [vmem:[#allocation12 + $0xa0] sm:$0xff]
    %v6106 = vld [vmem:[#allocation12 + $0xa8] sm:$0xff]
    %v6107 = vld [vmem:[#allocation12 + $0xb0] sm:$0xff]
    %v6108 = vld [vmem:[#allocation12 + $0xb8] sm:$0xff]
    %v6109 = vld [vmem:[#allocation12 + $0xc0] sm:$0xff]
    %v6110 = vld [vmem:[#allocation12 + $0xc8] sm:$0xff]
    %v6111 = vld [vmem:[#allocation12 + $0xd0] sm:$0xff]
    %v6112 = vld [vmem:[#allocation12 + $0xd8] sm:$0xff]
    %v6113 = vld [vmem:[#allocation12 + $0xe0] sm:$0xff]
    %v6114 = vld [vmem:[#allocation12 + $0xe8] sm:$0xff]
    %v6115 = vld [vmem:[#allocation12 + $0xf0] sm:$0xff]
    %v6116 = vld [vmem:[#allocation12 + $0xf8] sm:$0xff]
    %6117 = vmatprep.subr.mxu0 0.0
    %6118 = vmatpush1.msra.mxu0 %v6101
    %6119 = vmatprep.subr.mxu0 0.0
    %6120 = vmatpush1.msra.mxu0 %v6102
    %6121 = vmatprep.subr.mxu0 0.0
    %6122 = vmatpush1.msra.mxu0 %v6103
    %6123 = vmatprep.subr.mxu0 0.0
    %6124 = vmatpush1.msra.mxu0 %v6104
    %6125 = vmatprep.subr.mxu0 0.0
    %6126 = vmatpush1.msra.mxu0 %v6105
    %6127 = vmatprep.subr.mxu0 0.0
    %6128 = vmatpush1.msra.mxu0 %v6106
    %6129 = vmatprep.subr.mxu0 0.0
    %6130 = vmatpush1.msra.mxu0 %v6107
    %6131 = vmatprep.subr.mxu0 0.0
    %6132 = vmatpush1.msra.mxu0 %v6108
    %6133 = vmatprep.subr.mxu0 0.0
    %6134 = vmatpush1.msra.mxu0 %v6109
    %6135 = vmatprep.subr.mxu0 0.0
    %6136 = vmatpush1.msra.mxu0 %v6110
    %6137 = vmatprep.subr.mxu0 0.0
    %6138 = vmatpush1.msra.mxu0 %v6111
    %6139 = vmatprep.subr.mxu0 0.0
    %6140 = vmatpush1.msra.mxu0 %v6112
    %6141 = vmatprep.subr.mxu0 0.0
    %6142 = vmatpush1.msra.mxu0 %v6113
    %6143 = vmatprep.subr.mxu0 0.0
    %6144 = vmatpush1.msra.mxu0 %v6114
    %6145 = vmatprep.subr.mxu0 0.0
    %6146 = vmatpush1.msra.mxu0 %v6115
    %6147 = vmatprep.subr.mxu0 0.0
    %6148 = vmatpush1.msra.mxu0 %v6116
    %6149 = vmatprep.subr.mxu0 0.0
    %6150 = vmatpush1.msra.mxu0 0.0
    %6151 = vmatprep.subr.mxu0 0.0
    %6152 = vmatpush1.msra.mxu0 0.0
    %6153 = vmatprep.subr.mxu0 0.0
    %6154 = vmatpush1.msra.mxu0 0.0
    %6155 = vmatprep.subr.mxu0 0.0
    %6156 = vmatpush1.msra.mxu0 0.0
    %6157 = vmatprep.subr.mxu0 0.0
    %6158 = vmatpush1.msra.mxu0 0.0
    %6159 = vmatprep.subr.mxu0 0.0
    %6160 = vmatpush1.msra.mxu0 0.0
    %6161 = vmatprep.subr.mxu0 0.0
    %6162 = vmatpush1.msra.mxu0 0.0
    %6163 = vmatprep.subr.mxu0 0.0
    %6164 = vmatpush1.msra.mxu0 0.0
    %6165 = vmatprep.subr.mxu0 0.0
    %6166 = vmatpush1.msra.mxu0 0.0
    %6167 = vmatprep.subr.mxu0 0.0
    %6168 = vmatpush1.msra.mxu0 0.0
    %6169 = vmatprep.subr.mxu0 0.0
    %6170 = vmatpush1.msra.mxu0 0.0
    %6171 = vmatprep.subr.mxu0 0.0
    %6172 = vmatpush1.msra.mxu0 0.0
    %6173 = vmatprep.subr.mxu0 0.0
    %6174 = vmatpush1.msra.mxu0 0.0
    %6175 = vmatprep.subr.mxu0 0.0
    %6176 = vmatpush1.msra.mxu0 0.0
    %6177 = vmatprep.subr.mxu0 0.0
    %6178 = vmatpush1.msra.mxu0 0.0
    %6179 = vmatprep.subr.mxu0 0.0
    %6180 = vmatpush1.msra.mxu0 0.0
    %6181 = vmatprep.mubr.f32.mxu0 0.0
    %6182 = vmatmul.mubr.f32.gmra.mrb[0].mxu0 %v5879
    %v6183 = vpop.f32.mrb[0].mxu0
    %v6184 = vadd.f32 0.0, %v6183
    %v6185 = vpop.f32.mrb[0].mxu0
    %6186 = vmatprep.mubr.f32.mxu0 0.0
    %6187 = vmatmul.mubr.f32.gmra.mrb[0].mxu0 %v5881
    %v6188 = vpop.f32.mrb[0].mxu0
    %v6189 = vadd.f32 0.0, %v6188
    %v6190 = vpop.f32.mrb[0].mxu0
    %6191 = vmatprep.mubr.f32.mxu0 0.0
    %6192 = vmatmul.mubr.f32.gmra.mrb[0].mxu0 %v5884
    %v6193 = vpop.f32.mrb[0].mxu0
    %v6194 = vadd.f32 0.0, %v6193
    %v6195 = vpop.f32.mrb[0].mxu0
    %6196 = vmatprep.mubr.f32.mxu0 0.0
    %6197 = vmatmul.mubr.f32.gmra.mrb[0].mxu0 %v5886
    %v6198 = vpop.f32.mrb[0].mxu0
    %v6199 = vadd.f32 0.0, %v6198
    %v6200 = vpop.f32.mrb[0].mxu0
    %6201 = vmatprep.mubr.f32.mxu0 0.0
    %6202 = vmatmul.mubr.f32.gmra.mrb[0].mxu0 %v5889
    %v6203 = vpop.f32.mrb[0].mxu0
    %v6204 = vadd.f32 0.0, %v6203
    %v6205 = vpop.f32.mrb[0].mxu0
    %6206 = vmatprep.mubr.f32.mxu0 0.0
    %6207 = vmatmul.mubr.f32.gmra.mrb[0].mxu0 %v5891
    %v6208 = vpop.f32.mrb[0].mxu0
    %v6209 = vadd.f32 0.0, %v6208
    %v6210 = vpop.f32.mrb[0].mxu0
    %6211 = vmatprep.mubr.f32.mxu0 0.0
    %6212 = vmatmul.mubr.f32.gmra.mrb[0].mxu0 %v5894
    %v6213 = vpop.f32.mrb[0].mxu0
    %v6214 = vadd.f32 0.0, %v6213
    %v6215 = vpop.f32.mrb[0].mxu0
    %6216 = vmatprep.mubr.f32.mxu0 0.0
    %6217 = vmatmul.mubr.f32.gmra.mrb[0].mxu0 %v5896
    %v6218 = vpop.f32.mrb[0].mxu0
    %v6219 = vadd.f32 0.0, %v6218
    %v6220 = vpop.f32.mrb[0].mxu0
    %6221 = vmatprep.mubr.f32.mxu0 0.0
    %6222 = vmatmul.mubr.f32.gmra.mrb[0].mxu0 %v5899
    %v6223 = vpop.f32.mrb[0].mxu0
    %v6224 = vadd.f32 0.0, %v6223
    %v6225 = vpop.f32.mrb[0].mxu0
    %6226 = vmatprep.mubr.f32.mxu0 0.0
    %6227 = vmatmul.mubr.f32.gmra.mrb[0].mxu0 %v5901
    %v6228 = vpop.f32.mrb[0].mxu0
    %v6229 = vadd.f32 0.0, %v6228
    %v6230 = vpop.f32.mrb[0].mxu0
    %6231 = vmatprep.mubr.f32.mxu0 0.0
    %6232 = vmatmul.mubr.f32.gmra.mrb[0].mxu0 %v5904
    %v6233 = vpop.f32.mrb[0].mxu0
    %v6234 = vadd.f32 0.0, %v6233
    %v6235 = vpop.f32.mrb[0].mxu0
    %6236 = vmatprep.mubr.f32.mxu0 0.0
    %6237 = vmatmul.mubr.f32.gmra.mrb[0].mxu0 %v5906
    %v6238 = vpop.f32.mrb[0].mxu0
    %v6239 = vadd.f32 0.0, %v6238
    %v6240 = vpop.f32.mrb[0].mxu0
    %6241 = vmatprep.mubr.f32.mxu0 0.0
    %6242 = vmatmul.mubr.f32.gmra.mrb[0].mxu0 %v5909
    %v6243 = vpop.f32.mrb[0].mxu0
    %v6244 = vadd.f32 0.0, %v6243
    %v6245 = vpop.f32.mrb[0].mxu0
    %6246 = vmatprep.mubr.f32.mxu0 0.0
    %6247 = vmatmul.mubr.f32.gmra.mrb[0].mxu0 %v5911
    %v6248 = vpop.f32.mrb[0].mxu0
    %v6249 = vadd.f32 0.0, %v6248
    %v6250 = vpop.f32.mrb[0].mxu0
    %6251 = vmatprep.mubr.f32.mxu0 0.0
    %6252 = vmatmul.mubr.f32.gmra.mrb[0].mxu0 %v5914
    %v6253 = vpop.f32.mrb[0].mxu0
    %v6254 = vadd.f32 0.0, %v6253
    %v6255 = vpop.f32.mrb[0].mxu0
    %6256 = vmatprep.mubr.f32.mxu0 0.0
    %6257 = vmatmul.mubr.f32.gmra.mrb[0].mxu0 %v5916
    %v6258 = vpop.f32.mrb[0].mxu0
    %v6259 = vadd.f32 0.0, %v6258
    %v6260 = vpop.f32.mrb[0].mxu0
    %6261 = vmatprep.mubr.f32.mxu0 0.0
    %6262 = vmatmul.mubr.f32.gmra.mrb[0].mxu0 %v5919
    %v6263 = vpop.f32.mrb[0].mxu0
    %v6264 = vadd.f32 0.0, %v6263
    %v6265 = vpop.f32.mrb[0].mxu0
    %6266 = vmatprep.mubr.f32.mxu0 0.0
    %6267 = vmatmul.mubr.f32.gmra.mrb[0].mxu0 %v5921
    %v6268 = vpop.f32.mrb[0].mxu0
    %v6269 = vadd.f32 0.0, %v6268
    %v6270 = vpop.f32.mrb[0].mxu0
    %6271 = vmatprep.mubr.f32.mxu0 0.0
    %6272 = vmatmul.mubr.f32.gmra.mrb[0].mxu0 %v5924
    %v6273 = vpop.f32.mrb[0].mxu0
    %v6274 = vadd.f32 0.0, %v6273
    %v6275 = vpop.f32.mrb[0].mxu0
    %6276 = vmatprep.mubr.f32.mxu0 0.0
    %6277 = vmatmul.mubr.f32.gmra.mrb[0].mxu0 %v5926
    %v6278 = vpop.f32.mrb[0].mxu0
    %v6279 = vadd.f32 0.0, %v6278
    %v6280 = vpop.f32.mrb[0].mxu0
    %6281 = vmatprep.mubr.f32.mxu0 0.0
    %6282 = vmatmul.mubr.f32.gmra.mrb[0].mxu0 %v5929
    %v6283 = vpop.f32.mrb[0].mxu0
    %v6284 = vadd.f32 0.0, %v6283
    %v6285 = vpop.f32.mrb[0].mxu0
    %6286 = vmatprep.mubr.f32.mxu0 0.0
    %6287 = vmatmul.mubr.f32.gmra.mrb[0].mxu0 %v5931
    %v6288 = vpop.f32.mrb[0].mxu0
    %v6289 = vadd.f32 0.0, %v6288
    %v6290 = vpop.f32.mrb[0].mxu0
    %6291 = vmatprep.mubr.f32.mxu0 0.0
    %6292 = vmatmul.mubr.f32.gmra.mrb[0].mxu0 %v5934
    %v6293 = vpop.f32.mrb[0].mxu0
    %v6294 = vadd.f32 0.0, %v6293
    %v6295 = vpop.f32.mrb[0].mxu0
    %6296 = vmatprep.mubr.f32.mxu0 0.0
    %6297 = vmatmul.mubr.f32.gmra.mrb[0].mxu0 %v5936
    %v6298 = vpop.f32.mrb[0].mxu0
    %v6299 = vadd.f32 0.0, %v6298
    %v6300 = vpop.f32.mrb[0].mxu0
    %6301 = vmatprep.mubr.f32.mxu0 0.0
    %6302 = vmatmul.mubr.f32.gmra.mrb[0].mxu0 %v5939
    %v6303 = vpop.f32.mrb[0].mxu0
    %v6304 = vadd.f32 0.0, %v6303
    %v6305 = vpop.f32.mrb[0].mxu0
    %6306 = vmatprep.mubr.f32.mxu0 0.0
    %6307 = vmatmul.mubr.f32.gmra.mrb[0].mxu0 %v5941
    %v6308 = vpop.f32.mrb[0].mxu0
    %v6309 = vadd.f32 0.0, %v6308
    %v6310 = vpop.f32.mrb[0].mxu0
    %6311 = vmatprep.mubr.f32.mxu0 0.0
    %6312 = vmatmul.mubr.f32.gmra.mrb[0].mxu0 %v5944
    %v6313 = vpop.f32.mrb[0].mxu0
    %v6314 = vadd.f32 0.0, %v6313
    %v6315 = vpop.f32.mrb[0].mxu0
    %6316 = vmatprep.mubr.f32.mxu0 0.0
    %6317 = vmatmul.mubr.f32.gmra.mrb[0].mxu0 %v5946
    %v6318 = vpop.f32.mrb[0].mxu0
    %v6319 = vadd.f32 0.0, %v6318
    %v6320 = vpop.f32.mrb[0].mxu0
    %6321 = vmatprep.mubr.f32.mxu0 0.0
    %6322 = vmatmul.mubr.f32.gmra.mrb[0].mxu0 %v5949
    %v6323 = vpop.f32.mrb[0].mxu0
    %v6324 = vadd.f32 0.0, %v6323
    %v6325 = vpop.f32.mrb[0].mxu0
    %6326 = vmatprep.mubr.f32.mxu0 0.0
    %6327 = vmatmul.mubr.f32.gmra.mrb[0].mxu0 %v5951
    %v6328 = vpop.f32.mrb[0].mxu0
    %v6329 = vadd.f32 0.0, %v6328
    %v6330 = vpop.f32.mrb[0].mxu0
    %6331 = vmatprep.mubr.f32.mxu0 0.0
    %6332 = vmatmul.mubr.f32.gmra.mrb[0].mxu0 %v5954
    %v6333 = vpop.f32.mrb[0].mxu0
    %v6334 = vadd.f32 0.0, %v6333
    %v6335 = vpop.f32.mrb[0].mxu0
    %6336 = vmatprep.mubr.f32.mxu0 0.0
    %6337 = vmatmul.mubr.f32.gmra.mrb[0].mxu0 %v5956
    %v6338 = vpop.f32.mrb[0].mxu0
    %v6339 = vadd.f32 0.0, %v6338
    %v6340 = vpop.f32.mrb[0].mxu0
    %6341 = vmatprep.mubr.f32.mxu0 0.0
    %6342 = vmatmul.mubr.f32.gmra.mrb[0].mxu0 %v5959
    %v6343 = vpop.f32.mrb[0].mxu0
    %v6344 = vadd.f32 0.0, %v6343
    %v6345 = vpop.f32.mrb[0].mxu0
    %6346 = vmatprep.mubr.f32.mxu0 0.0
    %6347 = vmatmul.mubr.f32.gmra.mrb[0].mxu0 %v5961
    %v6348 = vpop.f32.mrb[0].mxu0
    %v6349 = vadd.f32 0.0, %v6348
    %v6350 = vpop.f32.mrb[0].mxu0
    %6351 = vmatprep.mubr.f32.mxu0 0.0
    %6352 = vmatmul.mubr.f32.gmra.mrb[0].mxu0 %v5964
    %v6353 = vpop.f32.mrb[0].mxu0
    %v6354 = vadd.f32 0.0, %v6353
    %v6355 = vpop.f32.mrb[0].mxu0
    %6356 = vmatprep.mubr.f32.mxu0 0.0
    %6357 = vmatmul.mubr.f32.gmra.mrb[0].mxu0 %v5966
    %v6358 = vpop.f32.mrb[0].mxu0
    %v6359 = vadd.f32 0.0, %v6358
    %v6360 = vpop.f32.mrb[0].mxu0
    %6361 = vmatprep.mubr.f32.mxu0 0.0
    %6362 = vmatmul.mubr.f32.gmra.mrb[0].mxu0 %v5969
    %v6363 = vpop.f32.mrb[0].mxu0
    %v6364 = vadd.f32 0.0, %v6363
    %v6365 = vpop.f32.mrb[0].mxu0
    %6366 = vmatprep.mubr.f32.mxu0 0.0
    %6367 = vmatmul.mubr.f32.gmra.mrb[0].mxu0 %v5971
    %v6368 = vpop.f32.mrb[0].mxu0
    %v6369 = vadd.f32 0.0, %v6368
    %v6370 = vpop.f32.mrb[0].mxu0
    %6371 = vmatprep.mubr.f32.mxu0 0.0
    %6372 = vmatmul.mubr.f32.gmra.mrb[0].mxu0 %v5974
    %v6373 = vpop.f32.mrb[0].mxu0
    %v6374 = vadd.f32 0.0, %v6373
    %v6375 = vpop.f32.mrb[0].mxu0
    %6376 = vmatprep.mubr.f32.mxu0 0.0
    %6377 = vmatmul.mubr.f32.gmra.mrb[0].mxu0 %v5976
    %v6378 = vpop.f32.mrb[0].mxu0
    %v6379 = vadd.f32 0.0, %v6378
    %v6380 = vpop.f32.mrb[0].mxu0
    %6381 = vmatprep.mubr.f32.mxu0 0.0
    %6382 = vmatmul.mubr.f32.gmra.mrb[0].mxu0 %v5979
    %v6383 = vpop.f32.mrb[0].mxu0
    %v6384 = vadd.f32 0.0, %v6383
    %v6385 = vpop.f32.mrb[0].mxu0
    %6386 = vmatprep.mubr.f32.mxu0 0.0
    %6387 = vmatmul.mubr.f32.gmra.mrb[0].mxu0 %v5981
    %v6388 = vpop.f32.mrb[0].mxu0
    %v6389 = vadd.f32 0.0, %v6388
    %v6390 = vpop.f32.mrb[0].mxu0
    %6391 = vmatprep.mubr.f32.mxu0 0.0
    %6392 = vmatmul.mubr.f32.gmra.mrb[0].mxu0 %v5984
    %v6393 = vpop.f32.mrb[0].mxu0
    %v6394 = vadd.f32 0.0, %v6393
    %v6395 = vpop.f32.mrb[0].mxu0
    %6396 = vmatprep.mubr.f32.mxu0 0.0
    %6397 = vmatmul.mubr.f32.gmra.mrb[0].mxu0 %v5986
    %v6398 = vpop.f32.mrb[0].mxu0
    %v6399 = vadd.f32 0.0, %v6398
    %v6400 = vpop.f32.mrb[0].mxu0
    %6401 = vmatprep.mubr.f32.mxu0 0.0
    %6402 = vmatmul.mubr.f32.gmra.mrb[0].mxu0 %v5989
    %v6403 = vpop.f32.mrb[0].mxu0
    %v6404 = vadd.f32 0.0, %v6403
    %v6405 = vpop.f32.mrb[0].mxu0
    %6406 = vmatprep.mubr.f32.mxu0 0.0
    %6407 = vmatmul.mubr.f32.gmra.mrb[0].mxu0 %v5991
    %v6408 = vpop.f32.mrb[0].mxu0
    %v6409 = vadd.f32 0.0, %v6408
    %v6410 = vpop.f32.mrb[0].mxu0
    %6411 = vmatprep.mubr.f32.mxu0 0.0
    %6412 = vmatmul.mubr.f32.gmra.mrb[0].mxu0 %v5994
    %v6413 = vpop.f32.mrb[0].mxu0
    %v6414 = vadd.f32 0.0, %v6413
    %v6415 = vpop.f32.mrb[0].mxu0
    %6416 = vmatprep.mubr.f32.mxu0 0.0
    %6417 = vmatmul.mubr.f32.gmra.mrb[0].mxu0 %v5996
    %v6418 = vpop.f32.mrb[0].mxu0
    %v6419 = vadd.f32 0.0, %v6418
    %v6420 = vpop.f32.mrb[0].mxu0
    %6421 = vmatprep.mubr.f32.mxu0 0.0
    %6422 = vmatmul.mubr.f32.gmra.mrb[0].mxu0 %v5999
    %v6423 = vpop.f32.mrb[0].mxu0
    %v6424 = vadd.f32 0.0, %v6423
    %v6425 = vpop.f32.mrb[0].mxu0
    %6426 = vmatprep.mubr.f32.mxu0 0.0
    %6427 = vmatmul.mubr.f32.gmra.mrb[0].mxu0 %v6001
    %v6428 = vpop.f32.mrb[0].mxu0
    %v6429 = vadd.f32 0.0, %v6428
    %v6430 = vpop.f32.mrb[0].mxu0
    %6431 = vmatprep.mubr.f32.mxu0 0.0
    %6432 = vmatmul.mubr.f32.gmra.mrb[0].mxu0 %v6004
    %v6433 = vpop.f32.mrb[0].mxu0
    %v6434 = vadd.f32 0.0, %v6433
    %v6435 = vpop.f32.mrb[0].mxu0
    %6436 = vmatprep.mubr.f32.mxu0 0.0
    %6437 = vmatmul.mubr.f32.gmra.mrb[0].mxu0 %v6006
    %v6438 = vpop.f32.mrb[0].mxu0
    %v6439 = vadd.f32 0.0, %v6438
    %v6440 = vpop.f32.mrb[0].mxu0
    %6441 = vmatprep.mubr.f32.mxu0 0.0
    %6442 = vmatmul.mubr.f32.gmra.mrb[0].mxu0 %v6009
    %v6443 = vpop.f32.mrb[0].mxu0
    %v6444 = vadd.f32 0.0, %v6443
    %v6445 = vpop.f32.mrb[0].mxu0
    %6446 = vmatprep.mubr.f32.mxu0 0.0
    %6447 = vmatmul.mubr.f32.gmra.mrb[0].mxu0 %v6011
    %v6448 = vpop.f32.mrb[0].mxu0
    %v6449 = vadd.f32 0.0, %v6448
    %v6450 = vpop.f32.mrb[0].mxu0
    %6451 = vmatprep.mubr.f32.mxu0 0.0
    %6452 = vmatmul.mubr.f32.gmra.mrb[0].mxu0 %v6014
    %v6453 = vpop.f32.mrb[0].mxu0
    %v6454 = vadd.f32 0.0, %v6453
    %v6455 = vpop.f32.mrb[0].mxu0
    %6456 = vmatprep.mubr.f32.mxu0 0.0
    %6457 = vmatmul.mubr.f32.gmra.mrb[0].mxu0 %v6016
    %v6458 = vpop.f32.mrb[0].mxu0
    %v6459 = vadd.f32 0.0, %v6458
    %v6460 = vpop.f32.mrb[0].mxu0
    %6461 = vmatprep.mubr.f32.mxu0 0.0
    %6462 = vmatmul.mubr.f32.gmra.mrb[0].mxu0 %v6019
    %v6463 = vpop.f32.mrb[0].mxu0
    %v6464 = vadd.f32 0.0, %v6463
    %v6465 = vpop.f32.mrb[0].mxu0
    %6466 = vmatprep.mubr.f32.mxu0 0.0
    %6467 = vmatmul.mubr.f32.gmra.mrb[0].mxu0 %v6021
    %v6468 = vpop.f32.mrb[0].mxu0
    %v6469 = vadd.f32 0.0, %v6468
    %v6470 = vpop.f32.mrb[0].mxu0
    %6471 = vmatprep.mubr.f32.mxu0 0.0
    %6472 = vmatmul.mubr.f32.gmra.mrb[0].mxu0 %v6024
    %v6473 = vpop.f32.mrb[0].mxu0
    %v6474 = vadd.f32 0.0, %v6473
    %v6475 = vpop.f32.mrb[0].mxu0
    %6476 = vmatprep.mubr.f32.mxu0 0.0
    %6477 = vmatmul.mubr.f32.gmra.mrb[0].mxu0 %v6026
    %v6478 = vpop.f32.mrb[0].mxu0
    %v6479 = vadd.f32 0.0, %v6478
    %v6480 = vpop.f32.mrb[0].mxu0
    %6481 = vmatprep.mubr.f32.mxu0 0.0
    %6482 = vmatmul.mubr.f32.gmra.mrb[0].mxu0 %v6029
    %v6483 = vpop.f32.mrb[0].mxu0
    %v6484 = vadd.f32 0.0, %v6483
    %v6485 = vpop.f32.mrb[0].mxu0
    %6486 = vmatprep.mubr.f32.mxu0 0.0
    %6487 = vmatmul.mubr.f32.gmra.mrb[0].mxu0 %v6031
    %v6488 = vpop.f32.mrb[0].mxu0
    %v6489 = vadd.f32 0.0, %v6488
    %v6490 = vpop.f32.mrb[0].mxu0
    %6491 = vmatprep.mubr.f32.mxu0 0.0
    %6492 = vmatmul.mubr.f32.gmra.mrb[0].mxu0 %v6034
    %v6493 = vpop.f32.mrb[0].mxu0
    %v6494 = vadd.f32 0.0, %v6493
    %v6495 = vpop.f32.mrb[0].mxu0
    %6496 = vmatprep.mubr.f32.mxu0 0.0
    %6497 = vmatmul.mubr.f32.gmra.mrb[0].mxu0 %v6036
    %v6498 = vpop.f32.mrb[0].mxu0
    %v6499 = vadd.f32 0.0, %v6498
    %v6500 = vpop.f32.mrb[0].mxu0
    %6501 = vdwg.mxu0
    %6502 = vmatprep.subr.mxu0 0.0
    %6503 = vmatpush1.msra.mxu0 %v5765
    %6504 = vmatprep.subr.mxu0 0.0
    %6505 = vmatpush1.msra.mxu0 %v5766
    %6506 = vmatprep.subr.mxu0 0.0
    %6507 = vmatpush1.msra.mxu0 %v5767
    %6508 = vmatprep.subr.mxu0 0.0
    %6509 = vmatpush1.msra.mxu0 %v5768
    %6510 = vmatprep.subr.mxu0 0.0
    %6511 = vmatpush1.msra.mxu0 %v5769
    %6512 = vmatprep.subr.mxu0 0.0
    %6513 = vmatpush1.msra.mxu0 %v5770
    %6514 = vmatprep.subr.mxu0 0.0
    %6515 = vmatpush1.msra.mxu0 %v5771
    %6516 = vmatprep.subr.mxu0 0.0
    %6517 = vmatpush1.msra.mxu0 %v5772
    %6518 = vmatprep.subr.mxu0 0.0
    %6519 = vmatpush1.msra.mxu0 %v5773
    %6520 = vmatprep.subr.mxu0 0.0
    %6521 = vmatpush1.msra.mxu0 %v5774
    %6522 = vmatprep.subr.mxu0 0.0
    %6523 = vmatpush1.msra.mxu0 %v5775
    %6524 = vmatprep.subr.mxu0 0.0
    %6525 = vmatpush1.msra.mxu0 %v5776
    %6526 = vmatprep.subr.mxu0 0.0
    %6527 = vmatpush1.msra.mxu0 %v5777
    %6528 = vmatprep.subr.mxu0 0.0
    %6529 = vmatpush1.msra.mxu0 %v5778
    %6530 = vmatprep.subr.mxu0 0.0
    %6531 = vmatpush1.msra.mxu0 %v5779
    %6532 = vmatprep.subr.mxu0 0.0
    %6533 = vmatpush1.msra.mxu0 %v5780
    %6534 = vmatprep.subr.mxu0 0.0
    %6535 = vmatpush1.msra.mxu0 0.0
    %6536 = vmatprep.subr.mxu0 0.0
    %6537 = vmatpush1.msra.mxu0 0.0
    %6538 = vmatprep.subr.mxu0 0.0
    %6539 = vmatpush1.msra.mxu0 0.0
    %6540 = vmatprep.subr.mxu0 0.0
    %6541 = vmatpush1.msra.mxu0 0.0
    %6542 = vmatprep.subr.mxu0 0.0
    %6543 = vmatpush1.msra.mxu0 0.0
    %6544 = vmatprep.subr.mxu0 0.0
    %6545 = vmatpush1.msra.mxu0 0.0
    %6546 = vmatprep.subr.mxu0 0.0
    %6547 = vmatpush1.msra.mxu0 0.0
    %6548 = vmatprep.subr.mxu0 0.0
    %6549 = vmatpush1.msra.mxu0 0.0
    %6550 = vmatprep.subr.mxu0 0.0
    %6551 = vmatpush1.msra.mxu0 0.0
    %6552 = vmatprep.subr.mxu0 0.0
    %6553 = vmatpush1.msra.mxu0 0.0
    %6554 = vmatprep.subr.mxu0 0.0
    %6555 = vmatpush1.msra.mxu0 0.0
    %6556 = vmatprep.subr.mxu0 0.0
    %6557 = vmatpush1.msra.mxu0 0.0
    %6558 = vmatprep.subr.mxu0 0.0
    %6559 = vmatpush1.msra.mxu0 0.0
    %6560 = vmatprep.subr.mxu0 0.0
    %6561 = vmatpush1.msra.mxu0 0.0
    %6562 = vmatprep.subr.mxu0 0.0
    %6563 = vmatpush1.msra.mxu0 0.0
    %6564 = vmatprep.subr.mxu0 0.0
    %6565 = vmatpush1.msra.mxu0 0.0
    %6566 = vmatprep.mubr.f32.mxu0 0.0
    %6567 = vmatmul.mubr.f32.gmra.mrb[0].mxu0 %v5657
    %v6568 = vpop.f32.mrb[0].mxu0
    %v6569 = vadd.f32 %v6184, %v6568
    %v6570 = vpop.f32.mrb[0].mxu0
    %6571 = vmatprep.mubr.f32.mxu0 0.0
    %6572 = vmatmul.mubr.f32.gmra.mrb[0].mxu0 %v5658
    %v6573 = vpop.f32.mrb[0].mxu0
    %v6574 = vadd.f32 %v6189, %v6573
    %v6575 = vpop.f32.mrb[0].mxu0
    %6576 = vmatprep.mubr.f32.mxu0 0.0
    %6577 = vmatmul.mubr.f32.gmra.mrb[0].mxu0 %v5660
    %v6578 = vpop.f32.mrb[0].mxu0
    %v6579 = vadd.f32 %v6194, %v6578
    %v6580 = vpop.f32.mrb[0].mxu0
    %6581 = vmatprep.mubr.f32.mxu0 0.0
    %6582 = vmatmul.mubr.f32.gmra.mrb[0].mxu0 %v5661
    %v6583 = vpop.f32.mrb[0].mxu0
    %v6584 = vadd.f32 %v6199, %v6583
    %v6585 = vpop.f32.mrb[0].mxu0
    %6586 = vmatprep.mubr.f32.mxu0 0.0
    %6587 = vmatmul.mubr.f32.gmra.mrb[0].mxu0 %v5663
    %v6588 = vpop.f32.mrb[0].mxu0
    %v6589 = vadd.f32 %v6204, %v6588
    %v6590 = vpop.f32.mrb[0].mxu0
    %6591 = vmatprep.mubr.f32.mxu0 0.0
    %6592 = vmatmul.mubr.f32.gmra.mrb[0].mxu0 %v5664
    %v6593 = vpop.f32.mrb[0].mxu0
    %v6594 = vadd.f32 %v6209, %v6593
    %v6595 = vpop.f32.mrb[0].mxu0
    %6596 = vmatprep.mubr.f32.mxu0 0.0
    %6597 = vmatmul.mubr.f32.gmra.mrb[0].mxu0 %v5666
    %v6598 = vpop.f32.mrb[0].mxu0
    %v6599 = vadd.f32 %v6214, %v6598
    %v6600 = vpop.f32.mrb[0].mxu0
    %6601 = vmatprep.mubr.f32.mxu0 0.0
    %6602 = vmatmul.mubr.f32.gmra.mrb[0].mxu0 %v5667
    %v6603 = vpop.f32.mrb[0].mxu0
    %v6604 = vadd.f32 %v6219, %v6603
    %v6605 = vpop.f32.mrb[0].mxu0
    %6606 = vmatprep.mubr.f32.mxu0 0.0
    %6607 = vmatmul.mubr.f32.gmra.mrb[0].mxu0 %v5669
    %v6608 = vpop.f32.mrb[0].mxu0
    %v6609 = vadd.f32 %v6224, %v6608
    %v6610 = vpop.f32.mrb[0].mxu0
    %6611 = vmatprep.mubr.f32.mxu0 0.0
    %6612 = vmatmul.mubr.f32.gmra.mrb[0].mxu0 %v5670
    %v6613 = vpop.f32.mrb[0].mxu0
    %v6614 = vadd.f32 %v6229, %v6613
    %v6615 = vpop.f32.mrb[0].mxu0
    %6616 = vmatprep.mubr.f32.mxu0 0.0
    %6617 = vmatmul.mubr.f32.gmra.mrb[0].mxu0 %v5672
    %v6618 = vpop.f32.mrb[0].mxu0
    %v6619 = vadd.f32 %v6234, %v6618
    %v6620 = vpop.f32.mrb[0].mxu0
    %6621 = vmatprep.mubr.f32.mxu0 0.0
    %6622 = vmatmul.mubr.f32.gmra.mrb[0].mxu0 %v5673
    %v6623 = vpop.f32.mrb[0].mxu0
    %v6624 = vadd.f32 %v6239, %v6623
    %v6625 = vpop.f32.mrb[0].mxu0
    %6626 = vmatprep.mubr.f32.mxu0 0.0
    %6627 = vmatmul.mubr.f32.gmra.mrb[0].mxu0 %v5675
    %v6628 = vpop.f32.mrb[0].mxu0
    %v6629 = vadd.f32 %v6244, %v6628
    %v6630 = vpop.f32.mrb[0].mxu0
    %6631 = vmatprep.mubr.f32.mxu0 0.0
    %6632 = vmatmul.mubr.f32.gmra.mrb[0].mxu0 %v5676
    %v6633 = vpop.f32.mrb[0].mxu0
    %v6634 = vadd.f32 %v6249, %v6633
    %v6635 = vpop.f32.mrb[0].mxu0
    %6636 = vmatprep.mubr.f32.mxu0 0.0
    %6637 = vmatmul.mubr.f32.gmra.mrb[0].mxu0 %v5678
    %v6638 = vpop.f32.mrb[0].mxu0
    %v6639 = vadd.f32 %v6254, %v6638
    %v6640 = vpop.f32.mrb[0].mxu0
    %6641 = vmatprep.mubr.f32.mxu0 0.0
    %6642 = vmatmul.mubr.f32.gmra.mrb[0].mxu0 %v5679
    %v6643 = vpop.f32.mrb[0].mxu0
    %v6644 = vadd.f32 %v6259, %v6643
    %v6645 = vpop.f32.mrb[0].mxu0
    %6646 = vmatprep.mubr.f32.mxu0 0.0
    %6647 = vmatmul.mubr.f32.gmra.mrb[0].mxu0 %v5681
    %v6648 = vpop.f32.mrb[0].mxu0
    %v6649 = vadd.f32 %v6264, %v6648
    %v6650 = vpop.f32.mrb[0].mxu0
    %6651 = vmatprep.mubr.f32.mxu0 0.0
    %6652 = vmatmul.mubr.f32.gmra.mrb[0].mxu0 %v5682
    %v6653 = vpop.f32.mrb[0].mxu0
    %v6654 = vadd.f32 %v6269, %v6653
    %v6655 = vpop.f32.mrb[0].mxu0
    %6656 = vmatprep.mubr.f32.mxu0 0.0
    %6657 = vmatmul.mubr.f32.gmra.mrb[0].mxu0 %v5684
    %v6658 = vpop.f32.mrb[0].mxu0
    %v6659 = vadd.f32 %v6274, %v6658
    %v6660 = vpop.f32.mrb[0].mxu0
    %6661 = vmatprep.mubr.f32.mxu0 0.0
    %6662 = vmatmul.mubr.f32.gmra.mrb[0].mxu0 %v5685
    %v6663 = vpop.f32.mrb[0].mxu0
    %v6664 = vadd.f32 %v6279, %v6663
    %v6665 = vpop.f32.mrb[0].mxu0
    %6666 = vmatprep.mubr.f32.mxu0 0.0
    %6667 = vmatmul.mubr.f32.gmra.mrb[0].mxu0 %v5687
    %v6668 = vpop.f32.mrb[0].mxu0
    %v6669 = vadd.f32 %v6284, %v6668
    %v6670 = vpop.f32.mrb[0].mxu0
    %6671 = vmatprep.mubr.f32.mxu0 0.0
    %6672 = vmatmul.mubr.f32.gmra.mrb[0].mxu0 %v5688
    %v6673 = vpop.f32.mrb[0].mxu0
    %v6674 = vadd.f32 %v6289, %v6673
    %v6675 = vpop.f32.mrb[0].mxu0
    %6676 = vmatprep.mubr.f32.mxu0 0.0
    %6677 = vmatmul.mubr.f32.gmra.mrb[0].mxu0 %v5690
    %v6678 = vpop.f32.mrb[0].mxu0
    %v6679 = vadd.f32 %v6294, %v6678
    %v6680 = vpop.f32.mrb[0].mxu0
    %6681 = vmatprep.mubr.f32.mxu0 0.0
    %6682 = vmatmul.mubr.f32.gmra.mrb[0].mxu0 %v5691
    %v6683 = vpop.f32.mrb[0].mxu0
    %v6684 = vadd.f32 %v6299, %v6683
    %v6685 = vpop.f32.mrb[0].mxu0
    %6686 = vmatprep.mubr.f32.mxu0 0.0
    %6687 = vmatmul.mubr.f32.gmra.mrb[0].mxu0 %v5693
    %v6688 = vpop.f32.mrb[0].mxu0
    %v6689 = vadd.f32 %v6304, %v6688
    %v6690 = vpop.f32.mrb[0].mxu0
    %6691 = vmatprep.mubr.f32.mxu0 0.0
    %6692 = vmatmul.mubr.f32.gmra.mrb[0].mxu0 %v5694
    %v6693 = vpop.f32.mrb[0].mxu0
    %v6694 = vadd.f32 %v6309, %v6693
    %v6695 = vpop.f32.mrb[0].mxu0
    %6696 = vmatprep.mubr.f32.mxu0 0.0
    %6697 = vmatmul.mubr.f32.gmra.mrb[0].mxu0 %v5696
    %v6698 = vpop.f32.mrb[0].mxu0
    %v6699 = vadd.f32 %v6314, %v6698
    %v6700 = vpop.f32.mrb[0].mxu0
    %6701 = vmatprep.mubr.f32.mxu0 0.0
    %6702 = vmatmul.mubr.f32.gmra.mrb[0].mxu0 %v5697
    %v6703 = vpop.f32.mrb[0].mxu0
    %v6704 = vadd.f32 %v6319, %v6703
    %v6705 = vpop.f32.mrb[0].mxu0
    %6706 = vmatprep.mubr.f32.mxu0 0.0
    %6707 = vmatmul.mubr.f32.gmra.mrb[0].mxu0 %v5699
    %v6708 = vpop.f32.mrb[0].mxu0
    %v6709 = vadd.f32 %v6324, %v6708
    %v6710 = vpop.f32.mrb[0].mxu0
    %6711 = vmatprep.mubr.f32.mxu0 0.0
    %6712 = vmatmul.mubr.f32.gmra.mrb[0].mxu0 %v5700
    %v6713 = vpop.f32.mrb[0].mxu0
    %v6714 = vadd.f32 %v6329, %v6713
    %v6715 = vpop.f32.mrb[0].mxu0
    %6716 = vmatprep.mubr.f32.mxu0 0.0
    %6717 = vmatmul.mubr.f32.gmra.mrb[0].mxu0 %v5702
    %v6718 = vpop.f32.mrb[0].mxu0
    %v6719 = vadd.f32 %v6334, %v6718
    %v6720 = vpop.f32.mrb[0].mxu0
    %6721 = vmatprep.mubr.f32.mxu0 0.0
    %6722 = vmatmul.mubr.f32.gmra.mrb[0].mxu0 %v5703
    %v6723 = vpop.f32.mrb[0].mxu0
    %v6724 = vadd.f32 %v6339, %v6723
    %v6725 = vpop.f32.mrb[0].mxu0
    %6726 = vmatprep.mubr.f32.mxu0 0.0
    %6727 = vmatmul.mubr.f32.gmra.mrb[0].mxu0 %v5711
    %v6728 = vpop.f32.mrb[0].mxu0
    %v6729 = vadd.f32 %v6344, %v6728
    %v6730 = vpop.f32.mrb[0].mxu0
    %6731 = vmatprep.mubr.f32.mxu0 0.0
    %6732 = vmatmul.mubr.f32.gmra.mrb[0].mxu0 %v5712
    %v6733 = vpop.f32.mrb[0].mxu0
    %v6734 = vadd.f32 %v6349, %v6733
    %v6735 = vpop.f32.mrb[0].mxu0
    %6736 = vmatprep.mubr.f32.mxu0 0.0
    %6737 = vmatmul.mubr.f32.gmra.mrb[0].mxu0 %v5714
    %v6738 = vpop.f32.mrb[0].mxu0
    %v6739 = vadd.f32 %v6354, %v6738
    %v6740 = vpop.f32.mrb[0].mxu0
    %6741 = vmatprep.mubr.f32.mxu0 0.0
    %6742 = vmatmul.mubr.f32.gmra.mrb[0].mxu0 %v5715
    %v6743 = vpop.f32.mrb[0].mxu0
    %v6744 = vadd.f32 %v6359, %v6743
    %v6745 = vpop.f32.mrb[0].mxu0
    %6746 = vmatprep.mubr.f32.mxu0 0.0
    %6747 = vmatmul.mubr.f32.gmra.mrb[0].mxu0 %v5717
    %v6748 = vpop.f32.mrb[0].mxu0
    %v6749 = vadd.f32 %v6364, %v6748
    %v6750 = vpop.f32.mrb[0].mxu0
    %6751 = vmatprep.mubr.f32.mxu0 0.0
    %6752 = vmatmul.mubr.f32.gmra.mrb[0].mxu0 %v5718
    %v6753 = vpop.f32.mrb[0].mxu0
    %v6754 = vadd.f32 %v6369, %v6753
    %v6755 = vpop.f32.mrb[0].mxu0
    %6756 = vmatprep.mubr.f32.mxu0 0.0
    %6757 = vmatmul.mubr.f32.gmra.mrb[0].mxu0 %v5720
    %v6758 = vpop.f32.mrb[0].mxu0
    %v6759 = vadd.f32 %v6374, %v6758
    %v6760 = vpop.f32.mrb[0].mxu0
    %6761 = vmatprep.mubr.f32.mxu0 0.0
    %6762 = vmatmul.mubr.f32.gmra.mrb[0].mxu0 %v5721
    %v6763 = vpop.f32.mrb[0].mxu0
    %v6764 = vadd.f32 %v6379, %v6763
    %v6765 = vpop.f32.mrb[0].mxu0
    %6766 = vmatprep.mubr.f32.mxu0 0.0
    %6767 = vmatmul.mubr.f32.gmra.mrb[0].mxu0 %v5723
    %v6768 = vpop.f32.mrb[0].mxu0
    %v6769 = vadd.f32 %v6384, %v6768
    %v6770 = vpop.f32.mrb[0].mxu0
    %6771 = vmatprep.mubr.f32.mxu0 0.0
    %6772 = vmatmul.mubr.f32.gmra.mrb[0].mxu0 %v5724
    %v6773 = vpop.f32.mrb[0].mxu0
    %v6774 = vadd.f32 %v6389, %v6773
    %v6775 = vpop.f32.mrb[0].mxu0
    %6776 = vmatprep.mubr.f32.mxu0 0.0
    %6777 = vmatmul.mubr.f32.gmra.mrb[0].mxu0 %v5726
    %v6778 = vpop.f32.mrb[0].mxu0
    %v6779 = vadd.f32 %v6394, %v6778
    %v6780 = vpop.f32.mrb[0].mxu0
    %6781 = vmatprep.mubr.f32.mxu0 0.0
    %6782 = vmatmul.mubr.f32.gmra.mrb[0].mxu0 %v5727
    %v6783 = vpop.f32.mrb[0].mxu0
    %v6784 = vadd.f32 %v6399, %v6783
    %v6785 = vpop.f32.mrb[0].mxu0
    %6786 = vmatprep.mubr.f32.mxu0 0.0
    %6787 = vmatmul.mubr.f32.gmra.mrb[0].mxu0 %v5729
    %v6788 = vpop.f32.mrb[0].mxu0
    %v6789 = vadd.f32 %v6404, %v6788
    %v6790 = vpop.f32.mrb[0].mxu0
    %6791 = vmatprep.mubr.f32.mxu0 0.0
    %6792 = vmatmul.mubr.f32.gmra.mrb[0].mxu0 %v5730
    %v6793 = vpop.f32.mrb[0].mxu0
    %v6794 = vadd.f32 %v6409, %v6793
    %v6795 = vpop.f32.mrb[0].mxu0
    %6796 = vmatprep.mubr.f32.mxu0 0.0
    %6797 = vmatmul.mubr.f32.gmra.mrb[0].mxu0 %v5732
    %v6798 = vpop.f32.mrb[0].mxu0
    %v6799 = vadd.f32 %v6414, %v6798
    %v6800 = vpop.f32.mrb[0].mxu0
    %6801 = vmatprep.mubr.f32.mxu0 0.0
    %6802 = vmatmul.mubr.f32.gmra.mrb[0].mxu0 %v5733
    %v6803 = vpop.f32.mrb[0].mxu0
    %v6804 = vadd.f32 %v6419, %v6803
    %v6805 = vpop.f32.mrb[0].mxu0
    %6806 = vmatprep.mubr.f32.mxu0 0.0
    %6807 = vmatmul.mubr.f32.gmra.mrb[0].mxu0 %v5735
    %v6808 = vpop.f32.mrb[0].mxu0
    %v6809 = vadd.f32 %v6424, %v6808
    %v6810 = vpop.f32.mrb[0].mxu0
    %6811 = vmatprep.mubr.f32.mxu0 0.0
    %6812 = vmatmul.mubr.f32.gmra.mrb[0].mxu0 %v5736
    %v6813 = vpop.f32.mrb[0].mxu0
    %v6814 = vadd.f32 %v6429, %v6813
    %v6815 = vpop.f32.mrb[0].mxu0
    %6816 = vmatprep.mubr.f32.mxu0 0.0
    %6817 = vmatmul.mubr.f32.gmra.mrb[0].mxu0 %v5738
    %v6818 = vpop.f32.mrb[0].mxu0
    %v6819 = vadd.f32 %v6434, %v6818
    %v6820 = vpop.f32.mrb[0].mxu0
    %6821 = vmatprep.mubr.f32.mxu0 0.0
    %6822 = vmatmul.mubr.f32.gmra.mrb[0].mxu0 %v5739
    %v6823 = vpop.f32.mrb[0].mxu0
    %v6824 = vadd.f32 %v6439, %v6823
    %v6825 = vpop.f32.mrb[0].mxu0
    %6826 = vmatprep.mubr.f32.mxu0 0.0
    %6827 = vmatmul.mubr.f32.gmra.mrb[0].mxu0 %v5741
    %v6828 = vpop.f32.mrb[0].mxu0
    %v6829 = vadd.f32 %v6444, %v6828
    %v6830 = vpop.f32.mrb[0].mxu0
    %6831 = vmatprep.mubr.f32.mxu0 0.0
    %6832 = vmatmul.mubr.f32.gmra.mrb[0].mxu0 %v5742
    %v6833 = vpop.f32.mrb[0].mxu0
    %v6834 = vadd.f32 %v6449, %v6833
    %v6835 = vpop.f32.mrb[0].mxu0
    %6836 = vmatprep.mubr.f32.mxu0 0.0
    %6837 = vmatmul.mubr.f32.gmra.mrb[0].mxu0 %v5744
    %v6838 = vpop.f32.mrb[0].mxu0
    %v6839 = vadd.f32 %v6454, %v6838
    %v6840 = vpop.f32.mrb[0].mxu0
    %6841 = vmatprep.mubr.f32.mxu0 0.0
    %6842 = vmatmul.mubr.f32.gmra.mrb[0].mxu0 %v5745
    %v6843 = vpop.f32.mrb[0].mxu0
    %v6844 = vadd.f32 %v6459, %v6843
    %v6845 = vpop.f32.mrb[0].mxu0
    %6846 = vmatprep.mubr.f32.mxu0 0.0
    %6847 = vmatmul.mubr.f32.gmra.mrb[0].mxu0 %v5747
    %v6848 = vpop.f32.mrb[0].mxu0
    %v6849 = vadd.f32 %v6464, %v6848
    %v6850 = vpop.f32.mrb[0].mxu0
    %6851 = vmatprep.mubr.f32.mxu0 0.0
    %6852 = vmatmul.mubr.f32.gmra.mrb[0].mxu0 %v5748
    %v6853 = vpop.f32.mrb[0].mxu0
    %v6854 = vadd.f32 %v6469, %v6853
    %v6855 = vpop.f32.mrb[0].mxu0
    %6856 = vmatprep.mubr.f32.mxu0 0.0
    %6857 = vmatmul.mubr.f32.gmra.mrb[0].mxu0 %v5750
    %v6858 = vpop.f32.mrb[0].mxu0
    %v6859 = vadd.f32 %v6474, %v6858
    %v6860 = vpop.f32.mrb[0].mxu0
    %6861 = vmatprep.mubr.f32.mxu0 0.0
    %6862 = vmatmul.mubr.f32.gmra.mrb[0].mxu0 %v5751
    %v6863 = vpop.f32.mrb[0].mxu0
    %v6864 = vadd.f32 %v6479, %v6863
    %v6865 = vpop.f32.mrb[0].mxu0
    %6866 = vmatprep.mubr.f32.mxu0 0.0
    %6867 = vmatmul.mubr.f32.gmra.mrb[0].mxu0 %v5753
    %v6868 = vpop.f32.mrb[0].mxu0
    %v6869 = vadd.f32 %v6484, %v6868
    %v6870 = vpop.f32.mrb[0].mxu0
    %6871 = vmatprep.mubr.f32.mxu0 0.0
    %6872 = vmatmul.mubr.f32.gmra.mrb[0].mxu0 %v5754
    %v6873 = vpop.f32.mrb[0].mxu0
    %v6874 = vadd.f32 %v6489, %v6873
    %v6875 = vpop.f32.mrb[0].mxu0
    %6876 = vmatprep.mubr.f32.mxu0 0.0
    %6877 = vmatmul.mubr.f32.gmra.mrb[0].mxu0 %v5756
    %v6878 = vpop.f32.mrb[0].mxu0
    %v6879 = vadd.f32 %v6494, %v6878
    %v6880 = vpop.f32.mrb[0].mxu0
    %6881 = vmatprep.mubr.f32.mxu0 0.0
    %6882 = vmatmul.mubr.f32.gmra.mrb[0].mxu0 %v5757
    %v6883 = vpop.f32.mrb[0].mxu0
    %v6884 = vadd.f32 %v6499, %v6883
    %v6885 = vpop.f32.mrb[0].mxu0
    %6886 = vdwg.mxu0
    %v6887 = vrot.slane %v5657, 2
    %v6888 = vrot.slane %v5658, 2
    %v6889 = vsel %vm1582, %v6887, %v6888
    %v6890 = vrot.slane %v5659, 2
    %v6891 = vsel %vm1582, %v6888, %v6890
    %v6892 = vrot.slane %v5660, 2
    %v6893 = vrot.slane %v5661, 2
    %v6894 = vsel %vm1582, %v6892, %v6893
    %v6895 = vrot.slane %v5662, 2
    %v6896 = vsel %vm1582, %v6893, %v6895
    %v6897 = vrot.slane %v5663, 2
    %v6898 = vrot.slane %v5664, 2
    %v6899 = vsel %vm1582, %v6897, %v6898
    %v6900 = vrot.slane %v5665, 2
    %v6901 = vsel %vm1582, %v6898, %v6900
    %v6902 = vrot.slane %v5666, 2
    %v6903 = vrot.slane %v5667, 2
    %v6904 = vsel %vm1582, %v6902, %v6903
    %v6905 = vrot.slane %v5668, 2
    %v6906 = vsel %vm1582, %v6903, %v6905
    %v6907 = vrot.slane %v5669, 2
    %v6908 = vrot.slane %v5670, 2
    %v6909 = vsel %vm1582, %v6907, %v6908
    %v6910 = vrot.slane %v5671, 2
    %v6911 = vsel %vm1582, %v6908, %v6910
    %v6912 = vrot.slane %v5672, 2
    %v6913 = vrot.slane %v5673, 2
    %v6914 = vsel %vm1582, %v6912, %v6913
    %v6915 = vrot.slane %v5674, 2
    %v6916 = vsel %vm1582, %v6913, %v6915
    %v6917 = vrot.slane %v5675, 2
    %v6918 = vrot.slane %v5676, 2
    %v6919 = vsel %vm1582, %v6917, %v6918
    %v6920 = vrot.slane %v5677, 2
    %v6921 = vsel %vm1582, %v6918, %v6920
    %v6922 = vrot.slane %v5678, 2
    %v6923 = vrot.slane %v5679, 2
    %v6924 = vsel %vm1582, %v6922, %v6923
    %v6925 = vrot.slane %v5680, 2
    %v6926 = vsel %vm1582, %v6923, %v6925
    %v6927 = vrot.slane %v5681, 2
    %v6928 = vrot.slane %v5682, 2
    %v6929 = vsel %vm1582, %v6927, %v6928
    %v6930 = vrot.slane %v5683, 2
    %v6931 = vsel %vm1582, %v6928, %v6930
    %v6932 = vrot.slane %v5684, 2
    %v6933 = vrot.slane %v5685, 2
    %v6934 = vsel %vm1582, %v6932, %v6933
    %v6935 = vrot.slane %v5686, 2
    %v6936 = vsel %vm1582, %v6933, %v6935
    %v6937 = vrot.slane %v5687, 2
    %v6938 = vrot.slane %v5688, 2
    %v6939 = vsel %vm1582, %v6937, %v6938
    %v6940 = vrot.slane %v5689, 2
    %v6941 = vsel %vm1582, %v6938, %v6940
    %v6942 = vrot.slane %v5690, 2
    %v6943 = vrot.slane %v5691, 2
    %v6944 = vsel %vm1582, %v6942, %v6943
    %v6945 = vrot.slane %v5692, 2
    %v6946 = vsel %vm1582, %v6943, %v6945
    %v6947 = vrot.slane %v5693, 2
    %v6948 = vrot.slane %v5694, 2
    %v6949 = vsel %vm1582, %v6947, %v6948
    %v6950 = vrot.slane %v5695, 2
    %v6951 = vsel %vm1582, %v6948, %v6950
    %v6952 = vrot.slane %v5696, 2
    %v6953 = vrot.slane %v5697, 2
    %v6954 = vsel %vm1582, %v6952, %v6953
    %v6955 = vrot.slane %v5698, 2
    %v6956 = vsel %vm1582, %v6953, %v6955
    %v6957 = vrot.slane %v5699, 2
    %v6958 = vrot.slane %v5700, 2
    %v6959 = vsel %vm1582, %v6957, %v6958
    %v6960 = vrot.slane %v5701, 2
    %v6961 = vsel %vm1582, %v6958, %v6960
    %v6962 = vrot.slane %v5702, 2
    %v6963 = vrot.slane %v5703, 2
    %v6964 = vsel %vm1582, %v6962, %v6963
    %v6965 = vrot.slane %v5704, 2
    %v6966 = vsel %vm1582, %v6963, %v6965
    %v6967 = vrot.slane %v5711, 2
    %v6968 = vrot.slane %v5712, 2
    %v6969 = vsel %vm1582, %v6967, %v6968
    %v6970 = vrot.slane %v5713, 2
    %v6971 = vsel %vm1582, %v6968, %v6970
    %v6972 = vrot.slane %v5714, 2
    %v6973 = vrot.slane %v5715, 2
    %v6974 = vsel %vm1582, %v6972, %v6973
    %v6975 = vrot.slane %v5716, 2
    %v6976 = vsel %vm1582, %v6973, %v6975
    %v6977 = vrot.slane %v5717, 2
    %v6978 = vrot.slane %v5718, 2
    %v6979 = vsel %vm1582, %v6977, %v6978
    %v6980 = vrot.slane %v5719, 2
    %v6981 = vsel %vm1582, %v6978, %v6980
    %v6982 = vrot.slane %v5720, 2
    %v6983 = vrot.slane %v5721, 2
    %v6984 = vsel %vm1582, %v6982, %v6983
    %v6985 = vrot.slane %v5722, 2
    %v6986 = vsel %vm1582, %v6983, %v6985
    %v6987 = vrot.slane %v5723, 2
    %v6988 = vrot.slane %v5724, 2
    %v6989 = vsel %vm1582, %v6987, %v6988
    %v6990 = vrot.slane %v5725, 2
    %v6991 = vsel %vm1582, %v6988, %v6990
    %v6992 = vrot.slane %v5726, 2
    %v6993 = vrot.slane %v5727, 2
    %v6994 = vsel %vm1582, %v6992, %v6993
    %v6995 = vrot.slane %v5728, 2
    %v6996 = vsel %vm1582, %v6993, %v6995
    %v6997 = vrot.slane %v5729, 2
    %v6998 = vrot.slane %v5730, 2
    %v6999 = vsel %vm1582, %v6997, %v6998
    %v7000 = vrot.slane %v5731, 2
    %v7001 = vsel %vm1582, %v6998, %v7000
    %v7002 = vrot.slane %v5732, 2
    %v7003 = vrot.slane %v5733, 2
    %v7004 = vsel %vm1582, %v7002, %v7003
    %v7005 = vrot.slane %v5734, 2
    %v7006 = vsel %vm1582, %v7003, %v7005
    %v7007 = vrot.slane %v5735, 2
    %v7008 = vrot.slane %v5736, 2
    %v7009 = vsel %vm1582, %v7007, %v7008
    %v7010 = vrot.slane %v5737, 2
    %v7011 = vsel %vm1582, %v7008, %v7010
    %v7012 = vrot.slane %v5738, 2
    %v7013 = vrot.slane %v5739, 2
    %v7014 = vsel %vm1582, %v7012, %v7013
    %v7015 = vrot.slane %v5740, 2
    %v7016 = vsel %vm1582, %v7013, %v7015
    %v7017 = vrot.slane %v5741, 2
    %v7018 = vrot.slane %v5742, 2
    %v7019 = vsel %vm1582, %v7017, %v7018
    %v7020 = vrot.slane %v5743, 2
    %v7021 = vsel %vm1582, %v7018, %v7020
    %v7022 = vrot.slane %v5744, 2
    %v7023 = vrot.slane %v5745, 2
    %v7024 = vsel %vm1582, %v7022, %v7023
    %v7025 = vrot.slane %v5746, 2
    %v7026 = vsel %vm1582, %v7023, %v7025
    %v7027 = vrot.slane %v5747, 2
    %v7028 = vrot.slane %v5748, 2
    %v7029 = vsel %vm1582, %v7027, %v7028
    %v7030 = vrot.slane %v5749, 2
    %v7031 = vsel %vm1582, %v7028, %v7030
    %v7032 = vrot.slane %v5750, 2
    %v7033 = vrot.slane %v5751, 2
    %v7034 = vsel %vm1582, %v7032, %v7033
    %v7035 = vrot.slane %v5752, 2
    %v7036 = vsel %vm1582, %v7033, %v7035
    %v7037 = vrot.slane %v5753, 2
    %v7038 = vrot.slane %v5754, 2
    %v7039 = vsel %vm1582, %v7037, %v7038
    %v7040 = vrot.slane %v5755, 2
    %v7041 = vsel %vm1582, %v7038, %v7040
    %v7042 = vrot.slane %v5756, 2
    %v7043 = vrot.slane %v5757, 2
    %v7044 = vsel %vm1582, %v7042, %v7043
    %v7045 = vrot.slane %v5758, 2
    %v7046 = vsel %vm1582, %v7043, %v7045
    %v7111 = vld [vmem:[#allocation12 + $0x100] sm:$0xff]
    %v7112 = vld [vmem:[#allocation12 + $0x108] sm:$0xff]
    %v7113 = vld [vmem:[#allocation12 + $0x110] sm:$0xff]
    %v7114 = vld [vmem:[#allocation12 + $0x118] sm:$0xff]
    %v7115 = vld [vmem:[#allocation12 + $0x120] sm:$0xff]
    %v7116 = vld [vmem:[#allocation12 + $0x128] sm:$0xff]
    %v7117 = vld [vmem:[#allocation12 + $0x130] sm:$0xff]
    %v7118 = vld [vmem:[#allocation12 + $0x138] sm:$0xff]
    %v7119 = vld [vmem:[#allocation12 + $0x140] sm:$0xff]
    %v7120 = vld [vmem:[#allocation12 + $0x148] sm:$0xff]
    %v7121 = vld [vmem:[#allocation12 + $0x150] sm:$0xff]
    %v7122 = vld [vmem:[#allocation12 + $0x158] sm:$0xff]
    %v7123 = vld [vmem:[#allocation12 + $0x160] sm:$0xff]
    %v7124 = vld [vmem:[#allocation12 + $0x168] sm:$0xff]
    %v7125 = vld [vmem:[#allocation12 + $0x170] sm:$0xff]
    %v7126 = vld [vmem:[#allocation12 + $0x178] sm:$0xff]
    %7127 = vmatprep.subr.mxu0 0.0
    %7128 = vmatpush1.msra.mxu0 %v7111
    %7129 = vmatprep.subr.mxu0 0.0
    %7130 = vmatpush1.msra.mxu0 %v7112
    %7131 = vmatprep.subr.mxu0 0.0
    %7132 = vmatpush1.msra.mxu0 %v7113
    %7133 = vmatprep.subr.mxu0 0.0
    %7134 = vmatpush1.msra.mxu0 %v7114
    %7135 = vmatprep.subr.mxu0 0.0
    %7136 = vmatpush1.msra.mxu0 %v7115
    %7137 = vmatprep.subr.mxu0 0.0
    %7138 = vmatpush1.msra.mxu0 %v7116
    %7139 = vmatprep.subr.mxu0 0.0
    %7140 = vmatpush1.msra.mxu0 %v7117
    %7141 = vmatprep.subr.mxu0 0.0
    %7142 = vmatpush1.msra.mxu0 %v7118
    %7143 = vmatprep.subr.mxu0 0.0
    %7144 = vmatpush1.msra.mxu0 %v7119
    %7145 = vmatprep.subr.mxu0 0.0
    %7146 = vmatpush1.msra.mxu0 %v7120
    %7147 = vmatprep.subr.mxu0 0.0
    %7148 = vmatpush1.msra.mxu0 %v7121
    %7149 = vmatprep.subr.mxu0 0.0
    %7150 = vmatpush1.msra.mxu0 %v7122
    %7151 = vmatprep.subr.mxu0 0.0
    %7152 = vmatpush1.msra.mxu0 %v7123
    %7153 = vmatprep.subr.mxu0 0.0
    %7154 = vmatpush1.msra.mxu0 %v7124
    %7155 = vmatprep.subr.mxu0 0.0
    %7156 = vmatpush1.msra.mxu0 %v7125
    %7157 = vmatprep.subr.mxu0 0.0
    %7158 = vmatpush1.msra.mxu0 %v7126
    %7159 = vmatprep.subr.mxu0 0.0
    %7160 = vmatpush1.msra.mxu0 0.0
    %7161 = vmatprep.subr.mxu0 0.0
    %7162 = vmatpush1.msra.mxu0 0.0
    %7163 = vmatprep.subr.mxu0 0.0
    %7164 = vmatpush1.msra.mxu0 0.0
    %7165 = vmatprep.subr.mxu0 0.0
    %7166 = vmatpush1.msra.mxu0 0.0
    %7167 = vmatprep.subr.mxu0 0.0
    %7168 = vmatpush1.msra.mxu0 0.0
    %7169 = vmatprep.subr.mxu0 0.0
    %7170 = vmatpush1.msra.mxu0 0.0
    %7171 = vmatprep.subr.mxu0 0.0
    %7172 = vmatpush1.msra.mxu0 0.0
    %7173 = vmatprep.subr.mxu0 0.0
    %7174 = vmatpush1.msra.mxu0 0.0
    %7175 = vmatprep.subr.mxu0 0.0
    %7176 = vmatpush1.msra.mxu0 0.0
    %7177 = vmatprep.subr.mxu0 0.0
    %7178 = vmatpush1.msra.mxu0 0.0
    %7179 = vmatprep.subr.mxu0 0.0
    %7180 = vmatpush1.msra.mxu0 0.0
    %7181 = vmatprep.subr.mxu0 0.0
    %7182 = vmatpush1.msra.mxu0 0.0
    %7183 = vmatprep.subr.mxu0 0.0
    %7184 = vmatpush1.msra.mxu0 0.0
    %7185 = vmatprep.subr.mxu0 0.0
    %7186 = vmatpush1.msra.mxu0 0.0
    %7187 = vmatprep.subr.mxu0 0.0
    %7188 = vmatpush1.msra.mxu0 0.0
    %7189 = vmatprep.subr.mxu0 0.0
    %7190 = vmatpush1.msra.mxu0 0.0
    %7191 = vmatprep.mubr.f32.mxu0 0.0
    %7192 = vmatmul.mubr.f32.gmra.mrb[0].mxu0 %v6889
    %v7193 = vpop.f32.mrb[0].mxu0
    %v7194 = vadd.f32 0.0, %v7193
    %v7195 = vpop.f32.mrb[0].mxu0
    %7196 = vmatprep.mubr.f32.mxu0 0.0
    %7197 = vmatmul.mubr.f32.gmra.mrb[0].mxu0 %v6891
    %v7198 = vpop.f32.mrb[0].mxu0
    %v7199 = vadd.f32 0.0, %v7198
    %v7200 = vpop.f32.mrb[0].mxu0
    %7201 = vmatprep.mubr.f32.mxu0 0.0
    %7202 = vmatmul.mubr.f32.gmra.mrb[0].mxu0 %v6894
    %v7203 = vpop.f32.mrb[0].mxu0
    %v7204 = vadd.f32 0.0, %v7203
    %v7205 = vpop.f32.mrb[0].mxu0
    %7206 = vmatprep.mubr.f32.mxu0 0.0
    %7207 = vmatmul.mubr.f32.gmra.mrb[0].mxu0 %v6896
    %v7208 = vpop.f32.mrb[0].mxu0
    %v7209 = vadd.f32 0.0, %v7208
    %v7210 = vpop.f32.mrb[0].mxu0
    %7211 = vmatprep.mubr.f32.mxu0 0.0
    %7212 = vmatmul.mubr.f32.gmra.mrb[0].mxu0 %v6899
    %v7213 = vpop.f32.mrb[0].mxu0
    %v7214 = vadd.f32 0.0, %v7213
    %v7215 = vpop.f32.mrb[0].mxu0
    %7216 = vmatprep.mubr.f32.mxu0 0.0
    %7217 = vmatmul.mubr.f32.gmra.mrb[0].mxu0 %v6901
    %v7218 = vpop.f32.mrb[0].mxu0
    %v7219 = vadd.f32 0.0, %v7218
    %v7220 = vpop.f32.mrb[0].mxu0
    %7221 = vmatprep.mubr.f32.mxu0 0.0
    %7222 = vmatmul.mubr.f32.gmra.mrb[0].mxu0 %v6904
    %v7223 = vpop.f32.mrb[0].mxu0
    %v7224 = vadd.f32 0.0, %v7223
    %v7225 = vpop.f32.mrb[0].mxu0
    %7226 = vmatprep.mubr.f32.mxu0 0.0
    %7227 = vmatmul.mubr.f32.gmra.mrb[0].mxu0 %v6906
    %v7228 = vpop.f32.mrb[0].mxu0
    %v7229 = vadd.f32 0.0, %v7228
    %v7230 = vpop.f32.mrb[0].mxu0
    %7231 = vmatprep.mubr.f32.mxu0 0.0
    %7232 = vmatmul.mubr.f32.gmra.mrb[0].mxu0 %v6909
    %v7233 = vpop.f32.mrb[0].mxu0
    %v7234 = vadd.f32 0.0, %v7233
    %v7235 = vpop.f32.mrb[0].mxu0
    %7236 = vmatprep.mubr.f32.mxu0 0.0
    %7237 = vmatmul.mubr.f32.gmra.mrb[0].mxu0 %v6911
    %v7238 = vpop.f32.mrb[0].mxu0
    %v7239 = vadd.f32 0.0, %v7238
    %v7240 = vpop.f32.mrb[0].mxu0
    %7241 = vmatprep.mubr.f32.mxu0 0.0
    %7242 = vmatmul.mubr.f32.gmra.mrb[0].mxu0 %v6914
    %v7243 = vpop.f32.mrb[0].mxu0
    %v7244 = vadd.f32 0.0, %v7243
    %v7245 = vpop.f32.mrb[0].mxu0
    %7246 = vmatprep.mubr.f32.mxu0 0.0
    %7247 = vmatmul.mubr.f32.gmra.mrb[0].mxu0 %v6916
    %v7248 = vpop.f32.mrb[0].mxu0
    %v7249 = vadd.f32 0.0, %v7248
    %v7250 = vpop.f32.mrb[0].mxu0
    %7251 = vmatprep.mubr.f32.mxu0 0.0
    %7252 = vmatmul.mubr.f32.gmra.mrb[0].mxu0 %v6919
    %v7253 = vpop.f32.mrb[0].mxu0
    %v7254 = vadd.f32 0.0, %v7253
    %v7255 = vpop.f32.mrb[0].mxu0
    %7256 = vmatprep.mubr.f32.mxu0 0.0
    %7257 = vmatmul.mubr.f32.gmra.mrb[0].mxu0 %v6921
    %v7258 = vpop.f32.mrb[0].mxu0
    %v7259 = vadd.f32 0.0, %v7258
    %v7260 = vpop.f32.mrb[0].mxu0
    %7261 = vmatprep.mubr.f32.mxu0 0.0
    %7262 = vmatmul.mubr.f32.gmra.mrb[0].mxu0 %v6924
    %v7263 = vpop.f32.mrb[0].mxu0
    %v7264 = vadd.f32 0.0, %v7263
    %v7265 = vpop.f32.mrb[0].mxu0
    %7266 = vmatprep.mubr.f32.mxu0 0.0
    %7267 = vmatmul.mubr.f32.gmra.mrb[0].mxu0 %v6926
    %v7268 = vpop.f32.mrb[0].mxu0
    %v7269 = vadd.f32 0.0, %v7268
    %v7270 = vpop.f32.mrb[0].mxu0
    %7271 = vmatprep.mubr.f32.mxu0 0.0
    %7272 = vmatmul.mubr.f32.gmra.mrb[0].mxu0 %v6929
    %v7273 = vpop.f32.mrb[0].mxu0
    %v7274 = vadd.f32 0.0, %v7273
    %v7275 = vpop.f32.mrb[0].mxu0
    %7276 = vmatprep.mubr.f32.mxu0 0.0
    %7277 = vmatmul.mubr.f32.gmra.mrb[0].mxu0 %v6931
    %v7278 = vpop.f32.mrb[0].mxu0
    %v7279 = vadd.f32 0.0, %v7278
    %v7280 = vpop.f32.mrb[0].mxu0
    %7281 = vmatprep.mubr.f32.mxu0 0.0
    %7282 = vmatmul.mubr.f32.gmra.mrb[0].mxu0 %v6934
    %v7283 = vpop.f32.mrb[0].mxu0
    %v7284 = vadd.f32 0.0, %v7283
    %v7285 = vpop.f32.mrb[0].mxu0
    %7286 = vmatprep.mubr.f32.mxu0 0.0
    %7287 = vmatmul.mubr.f32.gmra.mrb[0].mxu0 %v6936
    %v7288 = vpop.f32.mrb[0].mxu0
    %v7289 = vadd.f32 0.0, %v7288
    %v7290 = vpop.f32.mrb[0].mxu0
    %7291 = vmatprep.mubr.f32.mxu0 0.0
    %7292 = vmatmul.mubr.f32.gmra.mrb[0].mxu0 %v6939
    %v7293 = vpop.f32.mrb[0].mxu0
    %v7294 = vadd.f32 0.0, %v7293
    %v7295 = vpop.f32.mrb[0].mxu0
    %7296 = vmatprep.mubr.f32.mxu0 0.0
    %7297 = vmatmul.mubr.f32.gmra.mrb[0].mxu0 %v6941
    %v7298 = vpop.f32.mrb[0].mxu0
    %v7299 = vadd.f32 0.0, %v7298
    %v7300 = vpop.f32.mrb[0].mxu0
    %7301 = vmatprep.mubr.f32.mxu0 0.0
    %7302 = vmatmul.mubr.f32.gmra.mrb[0].mxu0 %v6944
    %v7303 = vpop.f32.mrb[0].mxu0
    %v7304 = vadd.f32 0.0, %v7303
    %v7305 = vpop.f32.mrb[0].mxu0
    %7306 = vmatprep.mubr.f32.mxu0 0.0
    %7307 = vmatmul.mubr.f32.gmra.mrb[0].mxu0 %v6946
    %v7308 = vpop.f32.mrb[0].mxu0
    %v7309 = vadd.f32 0.0, %v7308
    %v7310 = vpop.f32.mrb[0].mxu0
    %7311 = vmatprep.mubr.f32.mxu0 0.0
    %7312 = vmatmul.mubr.f32.gmra.mrb[0].mxu0 %v6949
    %v7313 = vpop.f32.mrb[0].mxu0
    %v7314 = vadd.f32 0.0, %v7313
    %v7315 = vpop.f32.mrb[0].mxu0
    %7316 = vmatprep.mubr.f32.mxu0 0.0
    %7317 = vmatmul.mubr.f32.gmra.mrb[0].mxu0 %v6951
    %v7318 = vpop.f32.mrb[0].mxu0
    %v7319 = vadd.f32 0.0, %v7318
    %v7320 = vpop.f32.mrb[0].mxu0
    %7321 = vmatprep.mubr.f32.mxu0 0.0
    %7322 = vmatmul.mubr.f32.gmra.mrb[0].mxu0 %v6954
    %v7323 = vpop.f32.mrb[0].mxu0
    %v7324 = vadd.f32 0.0, %v7323
    %v7325 = vpop.f32.mrb[0].mxu0
    %7326 = vmatprep.mubr.f32.mxu0 0.0
    %7327 = vmatmul.mubr.f32.gmra.mrb[0].mxu0 %v6956
    %v7328 = vpop.f32.mrb[0].mxu0
    %v7329 = vadd.f32 0.0, %v7328
    %v7330 = vpop.f32.mrb[0].mxu0
    %7331 = vmatprep.mubr.f32.mxu0 0.0
    %7332 = vmatmul.mubr.f32.gmra.mrb[0].mxu0 %v6959
    %v7333 = vpop.f32.mrb[0].mxu0
    %v7334 = vadd.f32 0.0, %v7333
    %v7335 = vpop.f32.mrb[0].mxu0
    %7336 = vmatprep.mubr.f32.mxu0 0.0
    %7337 = vmatmul.mubr.f32.gmra.mrb[0].mxu0 %v6961
    %v7338 = vpop.f32.mrb[0].mxu0
    %v7339 = vadd.f32 0.0, %v7338
    %v7340 = vpop.f32.mrb[0].mxu0
    %7341 = vmatprep.mubr.f32.mxu0 0.0
    %7342 = vmatmul.mubr.f32.gmra.mrb[0].mxu0 %v6964
    %v7343 = vpop.f32.mrb[0].mxu0
    %v7344 = vadd.f32 0.0, %v7343
    %v7345 = vpop.f32.mrb[0].mxu0
    %7346 = vmatprep.mubr.f32.mxu0 0.0
    %7347 = vmatmul.mubr.f32.gmra.mrb[0].mxu0 %v6966
    %v7348 = vpop.f32.mrb[0].mxu0
    %v7349 = vadd.f32 0.0, %v7348
    %v7350 = vpop.f32.mrb[0].mxu0
    %7351 = vmatprep.mubr.f32.mxu0 0.0
    %7352 = vmatmul.mubr.f32.gmra.mrb[0].mxu0 %v6969
    %v7353 = vpop.f32.mrb[0].mxu0
    %v7354 = vadd.f32 0.0, %v7353
    %v7355 = vpop.f32.mrb[0].mxu0
    %7356 = vmatprep.mubr.f32.mxu0 0.0
    %7357 = vmatmul.mubr.f32.gmra.mrb[0].mxu0 %v6971
    %v7358 = vpop.f32.mrb[0].mxu0
    %v7359 = vadd.f32 0.0, %v7358
    %v7360 = vpop.f32.mrb[0].mxu0
    %7361 = vmatprep.mubr.f32.mxu0 0.0
    %7362 = vmatmul.mubr.f32.gmra.mrb[0].mxu0 %v6974
    %v7363 = vpop.f32.mrb[0].mxu0
    %v7364 = vadd.f32 0.0, %v7363
    %v7365 = vpop.f32.mrb[0].mxu0
    %7366 = vmatprep.mubr.f32.mxu0 0.0
    %7367 = vmatmul.mubr.f32.gmra.mrb[0].mxu0 %v6976
    %v7368 = vpop.f32.mrb[0].mxu0
    %v7369 = vadd.f32 0.0, %v7368
    %v7370 = vpop.f32.mrb[0].mxu0
    %7371 = vmatprep.mubr.f32.mxu0 0.0
    %7372 = vmatmul.mubr.f32.gmra.mrb[0].mxu0 %v6979
    %v7373 = vpop.f32.mrb[0].mxu0
    %v7374 = vadd.f32 0.0, %v7373
    %v7375 = vpop.f32.mrb[0].mxu0
    %7376 = vmatprep.mubr.f32.mxu0 0.0
    %7377 = vmatmul.mubr.f32.gmra.mrb[0].mxu0 %v6981
    %v7378 = vpop.f32.mrb[0].mxu0
    %v7379 = vadd.f32 0.0, %v7378
    %v7380 = vpop.f32.mrb[0].mxu0
    %7381 = vmatprep.mubr.f32.mxu0 0.0
    %7382 = vmatmul.mubr.f32.gmra.mrb[0].mxu0 %v6984
    %v7383 = vpop.f32.mrb[0].mxu0
    %v7384 = vadd.f32 0.0, %v7383
    %v7385 = vpop.f32.mrb[0].mxu0
    %7386 = vmatprep.mubr.f32.mxu0 0.0
    %7387 = vmatmul.mubr.f32.gmra.mrb[0].mxu0 %v6986
    %v7388 = vpop.f32.mrb[0].mxu0
    %v7389 = vadd.f32 0.0, %v7388
    %v7390 = vpop.f32.mrb[0].mxu0
    %7391 = vmatprep.mubr.f32.mxu0 0.0
    %7392 = vmatmul.mubr.f32.gmra.mrb[0].mxu0 %v6989
    %v7393 = vpop.f32.mrb[0].mxu0
    %v7394 = vadd.f32 0.0, %v7393
    %v7395 = vpop.f32.mrb[0].mxu0
    %7396 = vmatprep.mubr.f32.mxu0 0.0
    %7397 = vmatmul.mubr.f32.gmra.mrb[0].mxu0 %v6991
    %v7398 = vpop.f32.mrb[0].mxu0
    %v7399 = vadd.f32 0.0, %v7398
    %v7400 = vpop.f32.mrb[0].mxu0
    %7401 = vmatprep.mubr.f32.mxu0 0.0
    %7402 = vmatmul.mubr.f32.gmra.mrb[0].mxu0 %v6994
    %v7403 = vpop.f32.mrb[0].mxu0
    %v7404 = vadd.f32 0.0, %v7403
    %v7405 = vpop.f32.mrb[0].mxu0
    %7406 = vmatprep.mubr.f32.mxu0 0.0
    %7407 = vmatmul.mubr.f32.gmra.mrb[0].mxu0 %v6996
    %v7408 = vpop.f32.mrb[0].mxu0
    %v7409 = vadd.f32 0.0, %v7408
    %v7410 = vpop.f32.mrb[0].mxu0
    %7411 = vmatprep.mubr.f32.mxu0 0.0
    %7412 = vmatmul.mubr.f32.gmra.mrb[0].mxu0 %v6999
    %v7413 = vpop.f32.mrb[0].mxu0
    %v7414 = vadd.f32 0.0, %v7413
    %v7415 = vpop.f32.mrb[0].mxu0
    %7416 = vmatprep.mubr.f32.mxu0 0.0
    %7417 = vmatmul.mubr.f32.gmra.mrb[0].mxu0 %v7001
    %v7418 = vpop.f32.mrb[0].mxu0
    %v7419 = vadd.f32 0.0, %v7418
    %v7420 = vpop.f32.mrb[0].mxu0
    %7421 = vmatprep.mubr.f32.mxu0 0.0
    %7422 = vmatmul.mubr.f32.gmra.mrb[0].mxu0 %v7004
    %v7423 = vpop.f32.mrb[0].mxu0
    %v7424 = vadd.f32 0.0, %v7423
    %v7425 = vpop.f32.mrb[0].mxu0
    %7426 = vmatprep.mubr.f32.mxu0 0.0
    %7427 = vmatmul.mubr.f32.gmra.mrb[0].mxu0 %v7006
    %v7428 = vpop.f32.mrb[0].mxu0
    %v7429 = vadd.f32 0.0, %v7428
    %v7430 = vpop.f32.mrb[0].mxu0
    %7431 = vmatprep.mubr.f32.mxu0 0.0
    %7432 = vmatmul.mubr.f32.gmra.mrb[0].mxu0 %v7009
    %v7433 = vpop.f32.mrb[0].mxu0
    %v7434 = vadd.f32 0.0, %v7433
    %v7435 = vpop.f32.mrb[0].mxu0
    %7436 = vmatprep.mubr.f32.mxu0 0.0
    %7437 = vmatmul.mubr.f32.gmra.mrb[0].mxu0 %v7011
    %v7438 = vpop.f32.mrb[0].mxu0
    %v7439 = vadd.f32 0.0, %v7438
    %v7440 = vpop.f32.mrb[0].mxu0
    %7441 = vmatprep.mubr.f32.mxu0 0.0
    %7442 = vmatmul.mubr.f32.gmra.mrb[0].mxu0 %v7014
    %v7443 = vpop.f32.mrb[0].mxu0
    %v7444 = vadd.f32 0.0, %v7443
    %v7445 = vpop.f32.mrb[0].mxu0
    %7446 = vmatprep.mubr.f32.mxu0 0.0
    %7447 = vmatmul.mubr.f32.gmra.mrb[0].mxu0 %v7016
    %v7448 = vpop.f32.mrb[0].mxu0
    %v7449 = vadd.f32 0.0, %v7448
    %v7450 = vpop.f32.mrb[0].mxu0
    %7451 = vmatprep.mubr.f32.mxu0 0.0
    %7452 = vmatmul.mubr.f32.gmra.mrb[0].mxu0 %v7019
    %v7453 = vpop.f32.mrb[0].mxu0
    %v7454 = vadd.f32 0.0, %v7453
    %v7455 = vpop.f32.mrb[0].mxu0
    %7456 = vmatprep.mubr.f32.mxu0 0.0
    %7457 = vmatmul.mubr.f32.gmra.mrb[0].mxu0 %v7021
    %v7458 = vpop.f32.mrb[0].mxu0
    %v7459 = vadd.f32 0.0, %v7458
    %v7460 = vpop.f32.mrb[0].mxu0
    %7461 = vmatprep.mubr.f32.mxu0 0.0
    %7462 = vmatmul.mubr.f32.gmra.mrb[0].mxu0 %v7024
    %v7463 = vpop.f32.mrb[0].mxu0
    %v7464 = vadd.f32 0.0, %v7463
    %v7465 = vpop.f32.mrb[0].mxu0
    %7466 = vmatprep.mubr.f32.mxu0 0.0
    %7467 = vmatmul.mubr.f32.gmra.mrb[0].mxu0 %v7026
    %v7468 = vpop.f32.mrb[0].mxu0
    %v7469 = vadd.f32 0.0, %v7468
    %v7470 = vpop.f32.mrb[0].mxu0
    %7471 = vmatprep.mubr.f32.mxu0 0.0
    %7472 = vmatmul.mubr.f32.gmra.mrb[0].mxu0 %v7029
    %v7473 = vpop.f32.mrb[0].mxu0
    %v7474 = vadd.f32 0.0, %v7473
    %v7475 = vpop.f32.mrb[0].mxu0
    %7476 = vmatprep.mubr.f32.mxu0 0.0
    %7477 = vmatmul.mubr.f32.gmra.mrb[0].mxu0 %v7031
    %v7478 = vpop.f32.mrb[0].mxu0
    %v7479 = vadd.f32 0.0, %v7478
    %v7480 = vpop.f32.mrb[0].mxu0
    %7481 = vmatprep.mubr.f32.mxu0 0.0
    %7482 = vmatmul.mubr.f32.gmra.mrb[0].mxu0 %v7034
    %v7483 = vpop.f32.mrb[0].mxu0
    %v7484 = vadd.f32 0.0, %v7483
    %v7485 = vpop.f32.mrb[0].mxu0
    %7486 = vmatprep.mubr.f32.mxu0 0.0
    %7487 = vmatmul.mubr.f32.gmra.mrb[0].mxu0 %v7036
    %v7488 = vpop.f32.mrb[0].mxu0
    %v7489 = vadd.f32 0.0, %v7488
    %v7490 = vpop.f32.mrb[0].mxu0
    %7491 = vmatprep.mubr.f32.mxu0 0.0
    %7492 = vmatmul.mubr.f32.gmra.mrb[0].mxu0 %v7039
    %v7493 = vpop.f32.mrb[0].mxu0
    %v7494 = vadd.f32 0.0, %v7493
    %v7495 = vpop.f32.mrb[0].mxu0
    %7496 = vmatprep.mubr.f32.mxu0 0.0
    %7497 = vmatmul.mubr.f32.gmra.mrb[0].mxu0 %v7041
    %v7498 = vpop.f32.mrb[0].mxu0
    %v7499 = vadd.f32 0.0, %v7498
    %v7500 = vpop.f32.mrb[0].mxu0
    %7501 = vmatprep.mubr.f32.mxu0 0.0
    %7502 = vmatmul.mubr.f32.gmra.mrb[0].mxu0 %v7044
    %v7503 = vpop.f32.mrb[0].mxu0
    %v7504 = vadd.f32 0.0, %v7503
    %v7505 = vpop.f32.mrb[0].mxu0
    %7506 = vmatprep.mubr.f32.mxu0 0.0
    %7507 = vmatmul.mubr.f32.gmra.mrb[0].mxu0 %v7046
    %v7508 = vpop.f32.mrb[0].mxu0
    %v7509 = vadd.f32 0.0, %v7508
    %v7510 = vpop.f32.mrb[0].mxu0
    %7511 = vdwg.mxu0
    %v7512 = vadd.f32 %v6569, %v7194
    %v7513 = vadd.f32 %v6574, %v7199
    %v7514 = vadd.f32 %v6579, %v7204
    %v7515 = vadd.f32 %v6584, %v7209
    %v7516 = vadd.f32 %v6589, %v7214
    %v7517 = vadd.f32 %v6594, %v7219
    %v7518 = vadd.f32 %v6599, %v7224
    %v7519 = vadd.f32 %v6604, %v7229
    %v7520 = vadd.f32 %v6609, %v7234
    %v7521 = vadd.f32 %v6614, %v7239
    %v7522 = vadd.f32 %v6619, %v7244
    %v7523 = vadd.f32 %v6624, %v7249
    %v7524 = vadd.f32 %v6629, %v7254
    %v7525 = vadd.f32 %v6634, %v7259
    %v7526 = vadd.f32 %v6639, %v7264
    %v7527 = vadd.f32 %v6644, %v7269
    %v7528 = vadd.f32 %v6649, %v7274
    %v7529 = vadd.f32 %v6654, %v7279
    %v7530 = vadd.f32 %v6659, %v7284
    %v7531 = vadd.f32 %v6664, %v7289
    %v7532 = vadd.f32 %v6669, %v7294
    %v7533 = vadd.f32 %v6674, %v7299
    %v7534 = vadd.f32 %v6679, %v7304
    %v7535 = vadd.f32 %v6684, %v7309
    %v7536 = vadd.f32 %v6689, %v7314
    %v7537 = vadd.f32 %v6694, %v7319
    %v7538 = vadd.f32 %v6699, %v7324
    %v7539 = vadd.f32 %v6704, %v7329
    %v7540 = vadd.f32 %v6709, %v7334
    %v7541 = vadd.f32 %v6714, %v7339
    %v7542 = vadd.f32 %v6719, %v7344
    %v7543 = vadd.f32 %v6724, %v7349
    %v7544 = vadd.f32 %v6729, %v7354
    %v7545 = vadd.f32 %v6734, %v7359
    %v7546 = vadd.f32 %v6739, %v7364
    %v7547 = vadd.f32 %v6744, %v7369
    %v7548 = vadd.f32 %v6749, %v7374
    %v7549 = vadd.f32 %v6754, %v7379
    %v7550 = vadd.f32 %v6759, %v7384
    %v7551 = vadd.f32 %v6764, %v7389
    %v7552 = vadd.f32 %v6769, %v7394
    %v7553 = vadd.f32 %v6774, %v7399
    %v7554 = vadd.f32 %v6779, %v7404
    %v7555 = vadd.f32 %v6784, %v7409
    %v7556 = vadd.f32 %v6789, %v7414
    %v7557 = vadd.f32 %v6794, %v7419
    %v7558 = vadd.f32 %v6799, %v7424
    %v7559 = vadd.f32 %v6804, %v7429
    %v7560 = vadd.f32 %v6809, %v7434
    %v7561 = vadd.f32 %v6814, %v7439
    %v7562 = vadd.f32 %v6819, %v7444
    %v7563 = vadd.f32 %v6824, %v7449
    %v7564 = vadd.f32 %v6829, %v7454
    %v7565 = vadd.f32 %v6834, %v7459
    %v7566 = vadd.f32 %v6839, %v7464
    %v7567 = vadd.f32 %v6844, %v7469
    %v7568 = vadd.f32 %v6849, %v7474
    %v7569 = vadd.f32 %v6854, %v7479
    %v7570 = vadd.f32 %v6859, %v7484
    %v7571 = vadd.f32 %v6864, %v7489
    %v7572 = vadd.f32 %v6869, %v7494
    %v7573 = vadd.f32 %v6874, %v7499
    %v7574 = vadd.f32 %v6879, %v7504
    %v7575 = vadd.f32 %v6884, %v7509
    %v7576 = vld [vmem:[#allocation12 + $0x180] sm:$0xff]
    %v7577 = vld [vmem:[#allocation12 + $0x188] sm:$0xff]
    %v7578 = vld [vmem:[#allocation12 + $0x190] sm:$0xff]
    %v7579 = vld [vmem:[#allocation12 + $0x198] sm:$0xff]
    %v7580 = vld [vmem:[#allocation12 + $0x1a0] sm:$0xff]
    %v7581 = vld [vmem:[#allocation12 + $0x1a8] sm:$0xff]
    %v7582 = vld [vmem:[#allocation12 + $0x1b0] sm:$0xff]
    %v7583 = vld [vmem:[#allocation12 + $0x1b8] sm:$0xff]
    %v7584 = vld [vmem:[#allocation12 + $0x1c0] sm:$0xff]
    %v7585 = vld [vmem:[#allocation12 + $0x1c8] sm:$0xff]
    %v7586 = vld [vmem:[#allocation12 + $0x1d0] sm:$0xff]
    %v7587 = vld [vmem:[#allocation12 + $0x1d8] sm:$0xff]
    %v7588 = vld [vmem:[#allocation12 + $0x1e0] sm:$0xff]
    %v7589 = vld [vmem:[#allocation12 + $0x1e8] sm:$0xff]
    %v7590 = vld [vmem:[#allocation12 + $0x1f0] sm:$0xff]
    %v7591 = vld [vmem:[#allocation12 + $0x1f8] sm:$0xff]
    %7592 = vmatprep.subr.mxu0 0.0
    %7593 = vmatpush1.msra.mxu0 %v7576
    %7594 = vmatprep.subr.mxu0 0.0
    %7595 = vmatpush1.msra.mxu0 %v7577
    %7596 = vmatprep.subr.mxu0 0.0
    %7597 = vmatpush1.msra.mxu0 %v7578
    %7598 = vmatprep.subr.mxu0 0.0
    %7599 = vmatpush1.msra.mxu0 %v7579
    %7600 = vmatprep.subr.mxu0 0.0
    %7601 = vmatpush1.msra.mxu0 %v7580
    %7602 = vmatprep.subr.mxu0 0.0
    %7603 = vmatpush1.msra.mxu0 %v7581
    %7604 = vmatprep.subr.mxu0 0.0
    %7605 = vmatpush1.msra.mxu0 %v7582
    %7606 = vmatprep.subr.mxu0 0.0
    %7607 = vmatpush1.msra.mxu0 %v7583
    %7608 = vmatprep.subr.mxu0 0.0
    %7609 = vmatpush1.msra.mxu0 %v7584
    %7610 = vmatprep.subr.mxu0 0.0
    %7611 = vmatpush1.msra.mxu0 %v7585
    %7612 = vmatprep.subr.mxu0 0.0
    %7613 = vmatpush1.msra.mxu0 %v7586
    %7614 = vmatprep.subr.mxu0 0.0
    %7615 = vmatpush1.msra.mxu0 %v7587
    %7616 = vmatprep.subr.mxu0 0.0
    %7617 = vmatpush1.msra.mxu0 %v7588
    %7618 = vmatprep.subr.mxu0 0.0
    %7619 = vmatpush1.msra.mxu0 %v7589
    %7620 = vmatprep.subr.mxu0 0.0
    %7621 = vmatpush1.msra.mxu0 %v7590
    %7622 = vmatprep.subr.mxu0 0.0
    %7623 = vmatpush1.msra.mxu0 %v7591
    %7624 = vmatprep.subr.mxu0 0.0
    %7625 = vmatpush1.msra.mxu0 0.0
    %7626 = vmatprep.subr.mxu0 0.0
    %7627 = vmatpush1.msra.mxu0 0.0
    %7628 = vmatprep.subr.mxu0 0.0
    %7629 = vmatpush1.msra.mxu0 0.0
    %7630 = vmatprep.subr.mxu0 0.0
    %7631 = vmatpush1.msra.mxu0 0.0
    %7632 = vmatprep.subr.mxu0 0.0
    %7633 = vmatpush1.msra.mxu0 0.0
    %7634 = vmatprep.subr.mxu0 0.0
    %7635 = vmatpush1.msra.mxu0 0.0
    %7636 = vmatprep.subr.mxu0 0.0
    %7637 = vmatpush1.msra.mxu0 0.0
    %7638 = vmatprep.subr.mxu0 0.0
    %7639 = vmatpush1.msra.mxu0 0.0
    %7640 = vmatprep.subr.mxu0 0.0
    %7641 = vmatpush1.msra.mxu0 0.0
    %7642 = vmatprep.subr.mxu0 0.0
    %7643 = vmatpush1.msra.mxu0 0.0
    %7644 = vmatprep.subr.mxu0 0.0
    %7645 = vmatpush1.msra.mxu0 0.0
    %7646 = vmatprep.subr.mxu0 0.0
    %7647 = vmatpush1.msra.mxu0 0.0
    %7648 = vmatprep.subr.mxu0 0.0
    %7649 = vmatpush1.msra.mxu0 0.0
    %7650 = vmatprep.subr.mxu0 0.0
    %7651 = vmatpush1.msra.mxu0 0.0
    %7652 = vmatprep.subr.mxu0 0.0
    %7653 = vmatpush1.msra.mxu0 0.0
    %7654 = vmatprep.subr.mxu0 0.0
    %7655 = vmatpush1.msra.mxu0 0.0
    %7656 = vmatprep.mubr.f32.mxu0 0.0
    %7657 = vmatmul.mubr.f32.gmra.mrb[0].mxu0 %v5660
    %v7658 = vpop.f32.mrb[0].mxu0
    %v7659 = vadd.f32 0.0, %v7658
    %v7660 = vpop.f32.mrb[0].mxu0
    %7661 = vmatprep.mubr.f32.mxu0 0.0
    %7662 = vmatmul.mubr.f32.gmra.mrb[0].mxu0 %v5661
    %v7663 = vpop.f32.mrb[0].mxu0
    %v7664 = vadd.f32 0.0, %v7663
    %v7665 = vpop.f32.mrb[0].mxu0
    %7666 = vmatprep.mubr.f32.mxu0 0.0
    %7667 = vmatmul.mubr.f32.gmra.mrb[0].mxu0 %v5663
    %v7668 = vpop.f32.mrb[0].mxu0
    %v7669 = vadd.f32 0.0, %v7668
    %v7670 = vpop.f32.mrb[0].mxu0
    %7671 = vmatprep.mubr.f32.mxu0 0.0
    %7672 = vmatmul.mubr.f32.gmra.mrb[0].mxu0 %v5664
    %v7673 = vpop.f32.mrb[0].mxu0
    %v7674 = vadd.f32 0.0, %v7673
    %v7675 = vpop.f32.mrb[0].mxu0
    %7676 = vmatprep.mubr.f32.mxu0 0.0
    %7677 = vmatmul.mubr.f32.gmra.mrb[0].mxu0 %v5666
    %v7678 = vpop.f32.mrb[0].mxu0
    %v7679 = vadd.f32 0.0, %v7678
    %v7680 = vpop.f32.mrb[0].mxu0
    %7681 = vmatprep.mubr.f32.mxu0 0.0
    %7682 = vmatmul.mubr.f32.gmra.mrb[0].mxu0 %v5667
    %v7683 = vpop.f32.mrb[0].mxu0
    %v7684 = vadd.f32 0.0, %v7683
    %v7685 = vpop.f32.mrb[0].mxu0
    %7686 = vmatprep.mubr.f32.mxu0 0.0
    %7687 = vmatmul.mubr.f32.gmra.mrb[0].mxu0 %v5669
    %v7688 = vpop.f32.mrb[0].mxu0
    %v7689 = vadd.f32 0.0, %v7688
    %v7690 = vpop.f32.mrb[0].mxu0
    %7691 = vmatprep.mubr.f32.mxu0 0.0
    %7692 = vmatmul.mubr.f32.gmra.mrb[0].mxu0 %v5670
    %v7693 = vpop.f32.mrb[0].mxu0
    %v7694 = vadd.f32 0.0, %v7693
    %v7695 = vpop.f32.mrb[0].mxu0
    %7696 = vmatprep.mubr.f32.mxu0 0.0
    %7697 = vmatmul.mubr.f32.gmra.mrb[0].mxu0 %v5672
    %v7698 = vpop.f32.mrb[0].mxu0
    %v7699 = vadd.f32 0.0, %v7698
    %v7700 = vpop.f32.mrb[0].mxu0
    %7701 = vmatprep.mubr.f32.mxu0 0.0
    %7702 = vmatmul.mubr.f32.gmra.mrb[0].mxu0 %v5673
    %v7703 = vpop.f32.mrb[0].mxu0
    %v7704 = vadd.f32 0.0, %v7703
    %v7705 = vpop.f32.mrb[0].mxu0
    %7706 = vmatprep.mubr.f32.mxu0 0.0
    %7707 = vmatmul.mubr.f32.gmra.mrb[0].mxu0 %v5675
    %v7708 = vpop.f32.mrb[0].mxu0
    %v7709 = vadd.f32 0.0, %v7708
    %v7710 = vpop.f32.mrb[0].mxu0
    %7711 = vmatprep.mubr.f32.mxu0 0.0
    %7712 = vmatmul.mubr.f32.gmra.mrb[0].mxu0 %v5676
    %v7713 = vpop.f32.mrb[0].mxu0
    %v7714 = vadd.f32 0.0, %v7713
    %v7715 = vpop.f32.mrb[0].mxu0
    %7716 = vmatprep.mubr.f32.mxu0 0.0
    %7717 = vmatmul.mubr.f32.gmra.mrb[0].mxu0 %v5678
    %v7718 = vpop.f32.mrb[0].mxu0
    %v7719 = vadd.f32 0.0, %v7718
    %v7720 = vpop.f32.mrb[0].mxu0
    %7721 = vmatprep.mubr.f32.mxu0 0.0
    %7722 = vmatmul.mubr.f32.gmra.mrb[0].mxu0 %v5679
    %v7723 = vpop.f32.mrb[0].mxu0
    %v7724 = vadd.f32 0.0, %v7723
    %v7725 = vpop.f32.mrb[0].mxu0
    %7726 = vmatprep.mubr.f32.mxu0 0.0
    %7727 = vmatmul.mubr.f32.gmra.mrb[0].mxu0 %v5681
    %v7728 = vpop.f32.mrb[0].mxu0
    %v7729 = vadd.f32 0.0, %v7728
    %v7730 = vpop.f32.mrb[0].mxu0
    %7731 = vmatprep.mubr.f32.mxu0 0.0
    %7732 = vmatmul.mubr.f32.gmra.mrb[0].mxu0 %v5682
    %v7733 = vpop.f32.mrb[0].mxu0
    %v7734 = vadd.f32 0.0, %v7733
    %v7735 = vpop.f32.mrb[0].mxu0
    %7736 = vmatprep.mubr.f32.mxu0 0.0
    %7737 = vmatmul.mubr.f32.gmra.mrb[0].mxu0 %v5684
    %v7738 = vpop.f32.mrb[0].mxu0
    %v7739 = vadd.f32 0.0, %v7738
    %v7740 = vpop.f32.mrb[0].mxu0
    %7741 = vmatprep.mubr.f32.mxu0 0.0
    %7742 = vmatmul.mubr.f32.gmra.mrb[0].mxu0 %v5685
    %v7743 = vpop.f32.mrb[0].mxu0
    %v7744 = vadd.f32 0.0, %v7743
    %v7745 = vpop.f32.mrb[0].mxu0
    %7746 = vmatprep.mubr.f32.mxu0 0.0
    %7747 = vmatmul.mubr.f32.gmra.mrb[0].mxu0 %v5687
    %v7748 = vpop.f32.mrb[0].mxu0
    %v7749 = vadd.f32 0.0, %v7748
    %v7750 = vpop.f32.mrb[0].mxu0
    %7751 = vmatprep.mubr.f32.mxu0 0.0
    %7752 = vmatmul.mubr.f32.gmra.mrb[0].mxu0 %v5688
    %v7753 = vpop.f32.mrb[0].mxu0
    %v7754 = vadd.f32 0.0, %v7753
    %v7755 = vpop.f32.mrb[0].mxu0
    %7756 = vmatprep.mubr.f32.mxu0 0.0
    %7757 = vmatmul.mubr.f32.gmra.mrb[0].mxu0 %v5690
    %v7758 = vpop.f32.mrb[0].mxu0
    %v7759 = vadd.f32 0.0, %v7758
    %v7760 = vpop.f32.mrb[0].mxu0
    %7761 = vmatprep.mubr.f32.mxu0 0.0
    %7762 = vmatmul.mubr.f32.gmra.mrb[0].mxu0 %v5691
    %v7763 = vpop.f32.mrb[0].mxu0
    %v7764 = vadd.f32 0.0, %v7763
    %v7765 = vpop.f32.mrb[0].mxu0
    %7766 = vmatprep.mubr.f32.mxu0 0.0
    %7767 = vmatmul.mubr.f32.gmra.mrb[0].mxu0 %v5693
    %v7768 = vpop.f32.mrb[0].mxu0
    %v7769 = vadd.f32 0.0, %v7768
    %v7770 = vpop.f32.mrb[0].mxu0
    %7771 = vmatprep.mubr.f32.mxu0 0.0
    %7772 = vmatmul.mubr.f32.gmra.mrb[0].mxu0 %v5694
    %v7773 = vpop.f32.mrb[0].mxu0
    %v7774 = vadd.f32 0.0, %v7773
    %v7775 = vpop.f32.mrb[0].mxu0
    %7776 = vmatprep.mubr.f32.mxu0 0.0
    %7777 = vmatmul.mubr.f32.gmra.mrb[0].mxu0 %v5696
    %v7778 = vpop.f32.mrb[0].mxu0
    %v7779 = vadd.f32 0.0, %v7778
    %v7780 = vpop.f32.mrb[0].mxu0
    %7781 = vmatprep.mubr.f32.mxu0 0.0
    %7782 = vmatmul.mubr.f32.gmra.mrb[0].mxu0 %v5697
    %v7783 = vpop.f32.mrb[0].mxu0
    %v7784 = vadd.f32 0.0, %v7783
    %v7785 = vpop.f32.mrb[0].mxu0
    %7786 = vmatprep.mubr.f32.mxu0 0.0
    %7787 = vmatmul.mubr.f32.gmra.mrb[0].mxu0 %v5699
    %v7788 = vpop.f32.mrb[0].mxu0
    %v7789 = vadd.f32 0.0, %v7788
    %v7790 = vpop.f32.mrb[0].mxu0
    %7791 = vmatprep.mubr.f32.mxu0 0.0
    %7792 = vmatmul.mubr.f32.gmra.mrb[0].mxu0 %v5700
    %v7793 = vpop.f32.mrb[0].mxu0
    %v7794 = vadd.f32 0.0, %v7793
    %v7795 = vpop.f32.mrb[0].mxu0
    %7796 = vmatprep.mubr.f32.mxu0 0.0
    %7797 = vmatmul.mubr.f32.gmra.mrb[0].mxu0 %v5702
    %v7798 = vpop.f32.mrb[0].mxu0
    %v7799 = vadd.f32 0.0, %v7798
    %v7800 = vpop.f32.mrb[0].mxu0
    %7801 = vmatprep.mubr.f32.mxu0 0.0
    %7802 = vmatmul.mubr.f32.gmra.mrb[0].mxu0 %v5703
    %v7803 = vpop.f32.mrb[0].mxu0
    %v7804 = vadd.f32 0.0, %v7803
    %v7805 = vpop.f32.mrb[0].mxu0
    %7806 = vmatprep.mubr.f32.mxu0 0.0
    %7807 = vmatmul.mubr.f32.gmra.mrb[0].mxu0 %v5705
    %v7808 = vpop.f32.mrb[0].mxu0
    %v7809 = vadd.f32 0.0, %v7808
    %v7810 = vpop.f32.mrb[0].mxu0
    %7811 = vmatprep.mubr.f32.mxu0 0.0
    %7812 = vmatmul.mubr.f32.gmra.mrb[0].mxu0 %v5706
    %v7813 = vpop.f32.mrb[0].mxu0
    %v7814 = vadd.f32 0.0, %v7813
    %v7815 = vpop.f32.mrb[0].mxu0
    %7816 = vmatprep.mubr.f32.mxu0 0.0
    %7817 = vmatmul.mubr.f32.gmra.mrb[0].mxu0 %v5714
    %v7818 = vpop.f32.mrb[0].mxu0
    %v7819 = vadd.f32 0.0, %v7818
    %v7820 = vpop.f32.mrb[0].mxu0
    %7821 = vmatprep.mubr.f32.mxu0 0.0
    %7822 = vmatmul.mubr.f32.gmra.mrb[0].mxu0 %v5715
    %v7823 = vpop.f32.mrb[0].mxu0
    %v7824 = vadd.f32 0.0, %v7823
    %v7825 = vpop.f32.mrb[0].mxu0
    %7826 = vmatprep.mubr.f32.mxu0 0.0
    %7827 = vmatmul.mubr.f32.gmra.mrb[0].mxu0 %v5717
    %v7828 = vpop.f32.mrb[0].mxu0
    %v7829 = vadd.f32 0.0, %v7828
    %v7830 = vpop.f32.mrb[0].mxu0
    %7831 = vmatprep.mubr.f32.mxu0 0.0
    %7832 = vmatmul.mubr.f32.gmra.mrb[0].mxu0 %v5718
    %v7833 = vpop.f32.mrb[0].mxu0
    %v7834 = vadd.f32 0.0, %v7833
    %v7835 = vpop.f32.mrb[0].mxu0
    %7836 = vmatprep.mubr.f32.mxu0 0.0
    %7837 = vmatmul.mubr.f32.gmra.mrb[0].mxu0 %v5720
    %v7838 = vpop.f32.mrb[0].mxu0
    %v7839 = vadd.f32 0.0, %v7838
    %v7840 = vpop.f32.mrb[0].mxu0
    %7841 = vmatprep.mubr.f32.mxu0 0.0
    %7842 = vmatmul.mubr.f32.gmra.mrb[0].mxu0 %v5721
    %v7843 = vpop.f32.mrb[0].mxu0
    %v7844 = vadd.f32 0.0, %v7843
    %v7845 = vpop.f32.mrb[0].mxu0
    %7846 = vmatprep.mubr.f32.mxu0 0.0
    %7847 = vmatmul.mubr.f32.gmra.mrb[0].mxu0 %v5723
    %v7848 = vpop.f32.mrb[0].mxu0
    %v7849 = vadd.f32 0.0, %v7848
    %v7850 = vpop.f32.mrb[0].mxu0
    %7851 = vmatprep.mubr.f32.mxu0 0.0
    %7852 = vmatmul.mubr.f32.gmra.mrb[0].mxu0 %v5724
    %v7853 = vpop.f32.mrb[0].mxu0
    %v7854 = vadd.f32 0.0, %v7853
    %v7855 = vpop.f32.mrb[0].mxu0
    %7856 = vmatprep.mubr.f32.mxu0 0.0
    %7857 = vmatmul.mubr.f32.gmra.mrb[0].mxu0 %v5726
    %v7858 = vpop.f32.mrb[0].mxu0
    %v7859 = vadd.f32 0.0, %v7858
    %v7860 = vpop.f32.mrb[0].mxu0
    %7861 = vmatprep.mubr.f32.mxu0 0.0
    %7862 = vmatmul.mubr.f32.gmra.mrb[0].mxu0 %v5727
    %v7863 = vpop.f32.mrb[0].mxu0
    %v7864 = vadd.f32 0.0, %v7863
    %v7865 = vpop.f32.mrb[0].mxu0
    %7866 = vmatprep.mubr.f32.mxu0 0.0
    %7867 = vmatmul.mubr.f32.gmra.mrb[0].mxu0 %v5729
    %v7868 = vpop.f32.mrb[0].mxu0
    %v7869 = vadd.f32 0.0, %v7868
    %v7870 = vpop.f32.mrb[0].mxu0
    %7871 = vmatprep.mubr.f32.mxu0 0.0
    %7872 = vmatmul.mubr.f32.gmra.mrb[0].mxu0 %v5730
    %v7873 = vpop.f32.mrb[0].mxu0
    %v7874 = vadd.f32 0.0, %v7873
    %v7875 = vpop.f32.mrb[0].mxu0
    %7876 = vmatprep.mubr.f32.mxu0 0.0
    %7877 = vmatmul.mubr.f32.gmra.mrb[0].mxu0 %v5732
    %v7878 = vpop.f32.mrb[0].mxu0
    %v7879 = vadd.f32 0.0, %v7878
    %v7880 = vpop.f32.mrb[0].mxu0
    %7881 = vmatprep.mubr.f32.mxu0 0.0
    %7882 = vmatmul.mubr.f32.gmra.mrb[0].mxu0 %v5733
    %v7883 = vpop.f32.mrb[0].mxu0
    %v7884 = vadd.f32 0.0, %v7883
    %v7885 = vpop.f32.mrb[0].mxu0
    %7886 = vmatprep.mubr.f32.mxu0 0.0
    %7887 = vmatmul.mubr.f32.gmra.mrb[0].mxu0 %v5735
    %v7888 = vpop.f32.mrb[0].mxu0
    %v7889 = vadd.f32 0.0, %v7888
    %v7890 = vpop.f32.mrb[0].mxu0
    %7891 = vmatprep.mubr.f32.mxu0 0.0
    %7892 = vmatmul.mubr.f32.gmra.mrb[0].mxu0 %v5736
    %v7893 = vpop.f32.mrb[0].mxu0
    %v7894 = vadd.f32 0.0, %v7893
    %v7895 = vpop.f32.mrb[0].mxu0
    %7896 = vmatprep.mubr.f32.mxu0 0.0
    %7897 = vmatmul.mubr.f32.gmra.mrb[0].mxu0 %v5738
    %v7898 = vpop.f32.mrb[0].mxu0
    %v7899 = vadd.f32 0.0, %v7898
    %v7900 = vpop.f32.mrb[0].mxu0
    %7901 = vmatprep.mubr.f32.mxu0 0.0
    %7902 = vmatmul.mubr.f32.gmra.mrb[0].mxu0 %v5739
    %v7903 = vpop.f32.mrb[0].mxu0
    %v7904 = vadd.f32 0.0, %v7903
    %v7905 = vpop.f32.mrb[0].mxu0
    %7906 = vmatprep.mubr.f32.mxu0 0.0
    %7907 = vmatmul.mubr.f32.gmra.mrb[0].mxu0 %v5741
    %v7908 = vpop.f32.mrb[0].mxu0
    %v7909 = vadd.f32 0.0, %v7908
    %v7910 = vpop.f32.mrb[0].mxu0
    %7911 = vmatprep.mubr.f32.mxu0 0.0
    %7912 = vmatmul.mubr.f32.gmra.mrb[0].mxu0 %v5742
    %v7913 = vpop.f32.mrb[0].mxu0
    %v7914 = vadd.f32 0.0, %v7913
    %v7915 = vpop.f32.mrb[0].mxu0
    %7916 = vmatprep.mubr.f32.mxu0 0.0
    %7917 = vmatmul.mubr.f32.gmra.mrb[0].mxu0 %v5744
    %v7918 = vpop.f32.mrb[0].mxu0
    %v7919 = vadd.f32 0.0, %v7918
    %v7920 = vpop.f32.mrb[0].mxu0
    %7921 = vmatprep.mubr.f32.mxu0 0.0
    %7922 = vmatmul.mubr.f32.gmra.mrb[0].mxu0 %v5745
    %v7923 = vpop.f32.mrb[0].mxu0
    %v7924 = vadd.f32 0.0, %v7923
    %v7925 = vpop.f32.mrb[0].mxu0
    %7926 = vmatprep.mubr.f32.mxu0 0.0
    %7927 = vmatmul.mubr.f32.gmra.mrb[0].mxu0 %v5747
    %v7928 = vpop.f32.mrb[0].mxu0
    %v7929 = vadd.f32 0.0, %v7928
    %v7930 = vpop.f32.mrb[0].mxu0
    %7931 = vmatprep.mubr.f32.mxu0 0.0
    %7932 = vmatmul.mubr.f32.gmra.mrb[0].mxu0 %v5748
    %v7933 = vpop.f32.mrb[0].mxu0
    %v7934 = vadd.f32 0.0, %v7933
    %v7935 = vpop.f32.mrb[0].mxu0
    %7936 = vmatprep.mubr.f32.mxu0 0.0
    %7937 = vmatmul.mubr.f32.gmra.mrb[0].mxu0 %v5750
    %v7938 = vpop.f32.mrb[0].mxu0
    %v7939 = vadd.f32 0.0, %v7938
    %v7940 = vpop.f32.mrb[0].mxu0
    %7941 = vmatprep.mubr.f32.mxu0 0.0
    %7942 = vmatmul.mubr.f32.gmra.mrb[0].mxu0 %v5751
    %v7943 = vpop.f32.mrb[0].mxu0
    %v7944 = vadd.f32 0.0, %v7943
    %v7945 = vpop.f32.mrb[0].mxu0
    %7946 = vmatprep.mubr.f32.mxu0 0.0
    %7947 = vmatmul.mubr.f32.gmra.mrb[0].mxu0 %v5753
    %v7948 = vpop.f32.mrb[0].mxu0
    %v7949 = vadd.f32 0.0, %v7948
    %v7950 = vpop.f32.mrb[0].mxu0
    %7951 = vmatprep.mubr.f32.mxu0 0.0
    %7952 = vmatmul.mubr.f32.gmra.mrb[0].mxu0 %v5754
    %v7953 = vpop.f32.mrb[0].mxu0
    %v7954 = vadd.f32 0.0, %v7953
    %v7955 = vpop.f32.mrb[0].mxu0
    %7956 = vmatprep.mubr.f32.mxu0 0.0
    %7957 = vmatmul.mubr.f32.gmra.mrb[0].mxu0 %v5756
    %v7958 = vpop.f32.mrb[0].mxu0
    %v7959 = vadd.f32 0.0, %v7958
    %v7960 = vpop.f32.mrb[0].mxu0
    %7961 = vmatprep.mubr.f32.mxu0 0.0
    %7962 = vmatmul.mubr.f32.gmra.mrb[0].mxu0 %v5757
    %v7963 = vpop.f32.mrb[0].mxu0
    %v7964 = vadd.f32 0.0, %v7963
    %v7965 = vpop.f32.mrb[0].mxu0
    %7966 = vmatprep.mubr.f32.mxu0 0.0
    %7967 = vmatmul.mubr.f32.gmra.mrb[0].mxu0 %v5759
    %v7968 = vpop.f32.mrb[0].mxu0
    %v7969 = vadd.f32 0.0, %v7968
    %v7970 = vpop.f32.mrb[0].mxu0
    %7971 = vmatprep.mubr.f32.mxu0 0.0
    %7972 = vmatmul.mubr.f32.gmra.mrb[0].mxu0 %v5760
    %v7973 = vpop.f32.mrb[0].mxu0
    %v7974 = vadd.f32 0.0, %v7973
    %v7975 = vpop.f32.mrb[0].mxu0
    %7976 = vdwg.mxu0
    %v7977 = vadd.f32 %v7512, %v7659
    %v7978 = vadd.f32 %v7513, %v7664
    %v7979 = vadd.f32 %v7514, %v7669
    %v7980 = vadd.f32 %v7515, %v7674
    %v7981 = vadd.f32 %v7516, %v7679
    %v7982 = vadd.f32 %v7517, %v7684
    %v7983 = vadd.f32 %v7518, %v7689
    %v7984 = vadd.f32 %v7519, %v7694
    %v7985 = vadd.f32 %v7520, %v7699
    %v7986 = vadd.f32 %v7521, %v7704
    %v7987 = vadd.f32 %v7522, %v7709
    %v7988 = vadd.f32 %v7523, %v7714
    %v7989 = vadd.f32 %v7524, %v7719
    %v7990 = vadd.f32 %v7525, %v7724
    %v7991 = vadd.f32 %v7526, %v7729
    %v7992 = vadd.f32 %v7527, %v7734
    %v7993 = vadd.f32 %v7528, %v7739
    %v7994 = vadd.f32 %v7529, %v7744
    %v7995 = vadd.f32 %v7530, %v7749
    %v7996 = vadd.f32 %v7531, %v7754
    %v7997 = vadd.f32 %v7532, %v7759
    %v7998 = vadd.f32 %v7533, %v7764
    %v7999 = vadd.f32 %v7534, %v7769
    %v8000 = vadd.f32 %v7535, %v7774
    %v8001 = vadd.f32 %v7536, %v7779
    %v8002 = vadd.f32 %v7537, %v7784
    %v8003 = vadd.f32 %v7538, %v7789
    %v8004 = vadd.f32 %v7539, %v7794
    %v8005 = vadd.f32 %v7540, %v7799
    %v8006 = vadd.f32 %v7541, %v7804
    %v8007 = vadd.f32 %v7542, %v7809
    %v8008 = vadd.f32 %v7543, %v7814
    %v8009 = vadd.f32 %v7544, %v7819
    %v8010 = vadd.f32 %v7545, %v7824
    %v8011 = vadd.f32 %v7546, %v7829
    %v8012 = vadd.f32 %v7547, %v7834
    %v8013 = vadd.f32 %v7548, %v7839
    %v8014 = vadd.f32 %v7549, %v7844
    %v8015 = vadd.f32 %v7550, %v7849
    %v8016 = vadd.f32 %v7551, %v7854
    %v8017 = vadd.f32 %v7552, %v7859
    %v8018 = vadd.f32 %v7553, %v7864
    %v8019 = vadd.f32 %v7554, %v7869
    %v8020 = vadd.f32 %v7555, %v7874
    %v8021 = vadd.f32 %v7556, %v7879
    %v8022 = vadd.f32 %v7557, %v7884
    %v8023 = vadd.f32 %v7558, %v7889
    %v8024 = vadd.f32 %v7559, %v7894
    %v8025 = vadd.f32 %v7560, %v7899
    %v8026 = vadd.f32 %v7561, %v7904
    %v8027 = vadd.f32 %v7562, %v7909
    %v8028 = vadd.f32 %v7563, %v7914
    %v8029 = vadd.f32 %v7564, %v7919
    %v8030 = vadd.f32 %v7565, %v7924
    %v8031 = vadd.f32 %v7566, %v7929
    %v8032 = vadd.f32 %v7567, %v7934
    %v8033 = vadd.f32 %v7568, %v7939
    %v8034 = vadd.f32 %v7569, %v7944
    %v8035 = vadd.f32 %v7570, %v7949
    %v8036 = vadd.f32 %v7571, %v7954
    %v8037 = vadd.f32 %v7572, %v7959
    %v8038 = vadd.f32 %v7573, %v7964
    %v8039 = vadd.f32 %v7574, %v7969
    %v8040 = vadd.f32 %v7575, %v7974
    %v8047 = vrot.slane %v5705, 1
    %v8048 = vrot.slane %v5706, 1
    %v8049 = vsel %vm571, %v8047, %v8048
    %v8050 = vrot.slane %v5707, 1
    %v8051 = vsel %vm571, %v8048, %v8050
    %v8052 = vrot.slane %v5759, 1
    %v8053 = vrot.slane %v5760, 1
    %v8054 = vsel %vm571, %v8052, %v8053
    %v8055 = vrot.slane %v5761, 1
    %v8056 = vsel %vm571, %v8053, %v8055
    %v8061 = vld [vmem:[#allocation12 + $0x200] sm:$0xff]
    %v8062 = vld [vmem:[#allocation12 + $0x208] sm:$0xff]
    %v8063 = vld [vmem:[#allocation12 + $0x210] sm:$0xff]
    %v8064 = vld [vmem:[#allocation12 + $0x218] sm:$0xff]
    %v8065 = vld [vmem:[#allocation12 + $0x220] sm:$0xff]
    %v8066 = vld [vmem:[#allocation12 + $0x228] sm:$0xff]
    %v8067 = vld [vmem:[#allocation12 + $0x230] sm:$0xff]
    %v8068 = vld [vmem:[#allocation12 + $0x238] sm:$0xff]
    %v8069 = vld [vmem:[#allocation12 + $0x240] sm:$0xff]
    %v8070 = vld [vmem:[#allocation12 + $0x248] sm:$0xff]
    %v8071 = vld [vmem:[#allocation12 + $0x250] sm:$0xff]
    %v8072 = vld [vmem:[#allocation12 + $0x258] sm:$0xff]
    %v8073 = vld [vmem:[#allocation12 + $0x260] sm:$0xff]
    %v8074 = vld [vmem:[#allocation12 + $0x268] sm:$0xff]
    %v8075 = vld [vmem:[#allocation12 + $0x270] sm:$0xff]
    %v8076 = vld [vmem:[#allocation12 + $0x278] sm:$0xff]
    %8077 = vmatprep.subr.mxu0 0.0
    %8078 = vmatpush1.msra.mxu0 %v8061
    %8079 = vmatprep.subr.mxu0 0.0
    %8080 = vmatpush1.msra.mxu0 %v8062
    %8081 = vmatprep.subr.mxu0 0.0
    %8082 = vmatpush1.msra.mxu0 %v8063
    %8083 = vmatprep.subr.mxu0 0.0
    %8084 = vmatpush1.msra.mxu0 %v8064
    %8085 = vmatprep.subr.mxu0 0.0
    %8086 = vmatpush1.msra.mxu0 %v8065
    %8087 = vmatprep.subr.mxu0 0.0
    %8088 = vmatpush1.msra.mxu0 %v8066
    %8089 = vmatprep.subr.mxu0 0.0
    %8090 = vmatpush1.msra.mxu0 %v8067
    %8091 = vmatprep.subr.mxu0 0.0
    %8092 = vmatpush1.msra.mxu0 %v8068
    %8093 = vmatprep.subr.mxu0 0.0
    %8094 = vmatpush1.msra.mxu0 %v8069
    %8095 = vmatprep.subr.mxu0 0.0
    %8096 = vmatpush1.msra.mxu0 %v8070
    %8097 = vmatprep.subr.mxu0 0.0
    %8098 = vmatpush1.msra.mxu0 %v8071
    %8099 = vmatprep.subr.mxu0 0.0
    %8100 = vmatpush1.msra.mxu0 %v8072
    %8101 = vmatprep.subr.mxu0 0.0
    %8102 = vmatpush1.msra.mxu0 %v8073
    %8103 = vmatprep.subr.mxu0 0.0
    %8104 = vmatpush1.msra.mxu0 %v8074
    %8105 = vmatprep.subr.mxu0 0.0
    %8106 = vmatpush1.msra.mxu0 %v8075
    %8107 = vmatprep.subr.mxu0 0.0
    %8108 = vmatpush1.msra.mxu0 %v8076
    %8109 = vmatprep.subr.mxu0 0.0
    %8110 = vmatpush1.msra.mxu0 0.0
    %8111 = vmatprep.subr.mxu0 0.0
    %8112 = vmatpush1.msra.mxu0 0.0
    %8113 = vmatprep.subr.mxu0 0.0
    %8114 = vmatpush1.msra.mxu0 0.0
    %8115 = vmatprep.subr.mxu0 0.0
    %8116 = vmatpush1.msra.mxu0 0.0
    %8117 = vmatprep.subr.mxu0 0.0
    %8118 = vmatpush1.msra.mxu0 0.0
    %8119 = vmatprep.subr.mxu0 0.0
    %8120 = vmatpush1.msra.mxu0 0.0
    %8121 = vmatprep.subr.mxu0 0.0
    %8122 = vmatpush1.msra.mxu0 0.0
    %8123 = vmatprep.subr.mxu0 0.0
    %8124 = vmatpush1.msra.mxu0 0.0
    %8125 = vmatprep.subr.mxu0 0.0
    %8126 = vmatpush1.msra.mxu0 0.0
    %8127 = vmatprep.subr.mxu0 0.0
    %8128 = vmatpush1.msra.mxu0 0.0
    %8129 = vmatprep.subr.mxu0 0.0
    %8130 = vmatpush1.msra.mxu0 0.0
    %8131 = vmatprep.subr.mxu0 0.0
    %8132 = vmatpush1.msra.mxu0 0.0
    %8133 = vmatprep.subr.mxu0 0.0
    %8134 = vmatpush1.msra.mxu0 0.0
    %8135 = vmatprep.subr.mxu0 0.0
    %8136 = vmatpush1.msra.mxu0 0.0
    %8137 = vmatprep.subr.mxu0 0.0
    %8138 = vmatpush1.msra.mxu0 0.0
    %8139 = vmatprep.subr.mxu0 0.0
    %8140 = vmatpush1.msra.mxu0 0.0
    %8141 = vmatprep.mubr.f32.mxu0 0.0
    %8142 = vmatmul.mubr.f32.gmra.mrb[0].mxu0 %v5884
    %v8143 = vpop.f32.mrb[0].mxu0
    %v8144 = vadd.f32 0.0, %v8143
    %v8145 = vpop.f32.mrb[0].mxu0
    %8146 = vmatprep.mubr.f32.mxu0 0.0
    %8147 = vmatmul.mubr.f32.gmra.mrb[0].mxu0 %v5886
    %v8148 = vpop.f32.mrb[0].mxu0
    %v8149 = vadd.f32 0.0, %v8148
    %v8150 = vpop.f32.mrb[0].mxu0
    %8151 = vmatprep.mubr.f32.mxu0 0.0
    %8152 = vmatmul.mubr.f32.gmra.mrb[0].mxu0 %v5889
    %v8153 = vpop.f32.mrb[0].mxu0
    %v8154 = vadd.f32 0.0, %v8153
    %v8155 = vpop.f32.mrb[0].mxu0
    %8156 = vmatprep.mubr.f32.mxu0 0.0
    %8157 = vmatmul.mubr.f32.gmra.mrb[0].mxu0 %v5891
    %v8158 = vpop.f32.mrb[0].mxu0
    %v8159 = vadd.f32 0.0, %v8158
    %v8160 = vpop.f32.mrb[0].mxu0
    %8161 = vmatprep.mubr.f32.mxu0 0.0
    %8162 = vmatmul.mubr.f32.gmra.mrb[0].mxu0 %v5894
    %v8163 = vpop.f32.mrb[0].mxu0
    %v8164 = vadd.f32 0.0, %v8163
    %v8165 = vpop.f32.mrb[0].mxu0
    %8166 = vmatprep.mubr.f32.mxu0 0.0
    %8167 = vmatmul.mubr.f32.gmra.mrb[0].mxu0 %v5896
    %v8168 = vpop.f32.mrb[0].mxu0
    %v8169 = vadd.f32 0.0, %v8168
    %v8170 = vpop.f32.mrb[0].mxu0
    %8171 = vmatprep.mubr.f32.mxu0 0.0
    %8172 = vmatmul.mubr.f32.gmra.mrb[0].mxu0 %v5899
    %v8173 = vpop.f32.mrb[0].mxu0
    %v8174 = vadd.f32 0.0, %v8173
    %v8175 = vpop.f32.mrb[0].mxu0
    %8176 = vmatprep.mubr.f32.mxu0 0.0
    %8177 = vmatmul.mubr.f32.gmra.mrb[0].mxu0 %v5901
    %v8178 = vpop.f32.mrb[0].mxu0
    %v8179 = vadd.f32 0.0, %v8178
    %v8180 = vpop.f32.mrb[0].mxu0
    %8181 = vmatprep.mubr.f32.mxu0 0.0
    %8182 = vmatmul.mubr.f32.gmra.mrb[0].mxu0 %v5904
    %v8183 = vpop.f32.mrb[0].mxu0
    %v8184 = vadd.f32 0.0, %v8183
    %v8185 = vpop.f32.mrb[0].mxu0
    %8186 = vmatprep.mubr.f32.mxu0 0.0
    %8187 = vmatmul.mubr.f32.gmra.mrb[0].mxu0 %v5906
    %v8188 = vpop.f32.mrb[0].mxu0
    %v8189 = vadd.f32 0.0, %v8188
    %v8190 = vpop.f32.mrb[0].mxu0
    %8191 = vmatprep.mubr.f32.mxu0 0.0
    %8192 = vmatmul.mubr.f32.gmra.mrb[0].mxu0 %v5909
    %v8193 = vpop.f32.mrb[0].mxu0
    %v8194 = vadd.f32 0.0, %v8193
    %v8195 = vpop.f32.mrb[0].mxu0
    %8196 = vmatprep.mubr.f32.mxu0 0.0
    %8197 = vmatmul.mubr.f32.gmra.mrb[0].mxu0 %v5911
    %v8198 = vpop.f32.mrb[0].mxu0
    %v8199 = vadd.f32 0.0, %v8198
    %v8200 = vpop.f32.mrb[0].mxu0
    %8201 = vmatprep.mubr.f32.mxu0 0.0
    %8202 = vmatmul.mubr.f32.gmra.mrb[0].mxu0 %v5914
    %v8203 = vpop.f32.mrb[0].mxu0
    %v8204 = vadd.f32 0.0, %v8203
    %v8205 = vpop.f32.mrb[0].mxu0
    %8206 = vmatprep.mubr.f32.mxu0 0.0
    %8207 = vmatmul.mubr.f32.gmra.mrb[0].mxu0 %v5916
    %v8208 = vpop.f32.mrb[0].mxu0
    %v8209 = vadd.f32 0.0, %v8208
    %v8210 = vpop.f32.mrb[0].mxu0
    %8211 = vmatprep.mubr.f32.mxu0 0.0
    %8212 = vmatmul.mubr.f32.gmra.mrb[0].mxu0 %v5919
    %v8213 = vpop.f32.mrb[0].mxu0
    %v8214 = vadd.f32 0.0, %v8213
    %v8215 = vpop.f32.mrb[0].mxu0
    %8216 = vmatprep.mubr.f32.mxu0 0.0
    %8217 = vmatmul.mubr.f32.gmra.mrb[0].mxu0 %v5921
    %v8218 = vpop.f32.mrb[0].mxu0
    %v8219 = vadd.f32 0.0, %v8218
    %v8220 = vpop.f32.mrb[0].mxu0
    %8221 = vmatprep.mubr.f32.mxu0 0.0
    %8222 = vmatmul.mubr.f32.gmra.mrb[0].mxu0 %v5924
    %v8223 = vpop.f32.mrb[0].mxu0
    %v8224 = vadd.f32 0.0, %v8223
    %v8225 = vpop.f32.mrb[0].mxu0
    %8226 = vmatprep.mubr.f32.mxu0 0.0
    %8227 = vmatmul.mubr.f32.gmra.mrb[0].mxu0 %v5926
    %v8228 = vpop.f32.mrb[0].mxu0
    %v8229 = vadd.f32 0.0, %v8228
    %v8230 = vpop.f32.mrb[0].mxu0
    %8231 = vmatprep.mubr.f32.mxu0 0.0
    %8232 = vmatmul.mubr.f32.gmra.mrb[0].mxu0 %v5929
    %v8233 = vpop.f32.mrb[0].mxu0
    %v8234 = vadd.f32 0.0, %v8233
    %v8235 = vpop.f32.mrb[0].mxu0
    %8236 = vmatprep.mubr.f32.mxu0 0.0
    %8237 = vmatmul.mubr.f32.gmra.mrb[0].mxu0 %v5931
    %v8238 = vpop.f32.mrb[0].mxu0
    %v8239 = vadd.f32 0.0, %v8238
    %v8240 = vpop.f32.mrb[0].mxu0
    %8241 = vmatprep.mubr.f32.mxu0 0.0
    %8242 = vmatmul.mubr.f32.gmra.mrb[0].mxu0 %v5934
    %v8243 = vpop.f32.mrb[0].mxu0
    %v8244 = vadd.f32 0.0, %v8243
    %v8245 = vpop.f32.mrb[0].mxu0
    %8246 = vmatprep.mubr.f32.mxu0 0.0
    %8247 = vmatmul.mubr.f32.gmra.mrb[0].mxu0 %v5936
    %v8248 = vpop.f32.mrb[0].mxu0
    %v8249 = vadd.f32 0.0, %v8248
    %v8250 = vpop.f32.mrb[0].mxu0
    %8251 = vmatprep.mubr.f32.mxu0 0.0
    %8252 = vmatmul.mubr.f32.gmra.mrb[0].mxu0 %v5939
    %v8253 = vpop.f32.mrb[0].mxu0
    %v8254 = vadd.f32 0.0, %v8253
    %v8255 = vpop.f32.mrb[0].mxu0
    %8256 = vmatprep.mubr.f32.mxu0 0.0
    %8257 = vmatmul.mubr.f32.gmra.mrb[0].mxu0 %v5941
    %v8258 = vpop.f32.mrb[0].mxu0
    %v8259 = vadd.f32 0.0, %v8258
    %v8260 = vpop.f32.mrb[0].mxu0
    %8261 = vmatprep.mubr.f32.mxu0 0.0
    %8262 = vmatmul.mubr.f32.gmra.mrb[0].mxu0 %v5944
    %v8263 = vpop.f32.mrb[0].mxu0
    %v8264 = vadd.f32 0.0, %v8263
    %v8265 = vpop.f32.mrb[0].mxu0
    %8266 = vmatprep.mubr.f32.mxu0 0.0
    %8267 = vmatmul.mubr.f32.gmra.mrb[0].mxu0 %v5946
    %v8268 = vpop.f32.mrb[0].mxu0
    %v8269 = vadd.f32 0.0, %v8268
    %v8270 = vpop.f32.mrb[0].mxu0
    %8271 = vmatprep.mubr.f32.mxu0 0.0
    %8272 = vmatmul.mubr.f32.gmra.mrb[0].mxu0 %v5949
    %v8273 = vpop.f32.mrb[0].mxu0
    %v8274 = vadd.f32 0.0, %v8273
    %v8275 = vpop.f32.mrb[0].mxu0
    %8276 = vmatprep.mubr.f32.mxu0 0.0
    %8277 = vmatmul.mubr.f32.gmra.mrb[0].mxu0 %v5951
    %v8278 = vpop.f32.mrb[0].mxu0
    %v8279 = vadd.f32 0.0, %v8278
    %v8280 = vpop.f32.mrb[0].mxu0
    %8281 = vmatprep.mubr.f32.mxu0 0.0
    %8282 = vmatmul.mubr.f32.gmra.mrb[0].mxu0 %v5954
    %v8283 = vpop.f32.mrb[0].mxu0
    %v8284 = vadd.f32 0.0, %v8283
    %v8285 = vpop.f32.mrb[0].mxu0
    %8286 = vmatprep.mubr.f32.mxu0 0.0
    %8287 = vmatmul.mubr.f32.gmra.mrb[0].mxu0 %v5956
    %v8288 = vpop.f32.mrb[0].mxu0
    %v8289 = vadd.f32 0.0, %v8288
    %v8290 = vpop.f32.mrb[0].mxu0
    %8291 = vmatprep.mubr.f32.mxu0 0.0
    %8292 = vmatmul.mubr.f32.gmra.mrb[0].mxu0 %v8049
    %v8293 = vpop.f32.mrb[0].mxu0
    %v8294 = vadd.f32 0.0, %v8293
    %v8295 = vpop.f32.mrb[0].mxu0
    %8296 = vmatprep.mubr.f32.mxu0 0.0
    %8297 = vmatmul.mubr.f32.gmra.mrb[0].mxu0 %v8051
    %v8298 = vpop.f32.mrb[0].mxu0
    %v8299 = vadd.f32 0.0, %v8298
    %v8300 = vpop.f32.mrb[0].mxu0
    %8301 = vmatprep.mubr.f32.mxu0 0.0
    %8302 = vmatmul.mubr.f32.gmra.mrb[0].mxu0 %v5964
    %v8303 = vpop.f32.mrb[0].mxu0
    %v8304 = vadd.f32 0.0, %v8303
    %v8305 = vpop.f32.mrb[0].mxu0
    %8306 = vmatprep.mubr.f32.mxu0 0.0
    %8307 = vmatmul.mubr.f32.gmra.mrb[0].mxu0 %v5966
    %v8308 = vpop.f32.mrb[0].mxu0
    %v8309 = vadd.f32 0.0, %v8308
    %v8310 = vpop.f32.mrb[0].mxu0
    %8311 = vmatprep.mubr.f32.mxu0 0.0
    %8312 = vmatmul.mubr.f32.gmra.mrb[0].mxu0 %v5969
    %v8313 = vpop.f32.mrb[0].mxu0
    %v8314 = vadd.f32 0.0, %v8313
    %v8315 = vpop.f32.mrb[0].mxu0
    %8316 = vmatprep.mubr.f32.mxu0 0.0
    %8317 = vmatmul.mubr.f32.gmra.mrb[0].mxu0 %v5971
    %v8318 = vpop.f32.mrb[0].mxu0
    %v8319 = vadd.f32 0.0, %v8318
    %v8320 = vpop.f32.mrb[0].mxu0
    %8321 = vmatprep.mubr.f32.mxu0 0.0
    %8322 = vmatmul.mubr.f32.gmra.mrb[0].mxu0 %v5974
    %v8323 = vpop.f32.mrb[0].mxu0
    %v8324 = vadd.f32 0.0, %v8323
    %v8325 = vpop.f32.mrb[0].mxu0
    %8326 = vmatprep.mubr.f32.mxu0 0.0
    %8327 = vmatmul.mubr.f32.gmra.mrb[0].mxu0 %v5976
    %v8328 = vpop.f32.mrb[0].mxu0
    %v8329 = vadd.f32 0.0, %v8328
    %v8330 = vpop.f32.mrb[0].mxu0
    %8331 = vmatprep.mubr.f32.mxu0 0.0
    %8332 = vmatmul.mubr.f32.gmra.mrb[0].mxu0 %v5979
    %v8333 = vpop.f32.mrb[0].mxu0
    %v8334 = vadd.f32 0.0, %v8333
    %v8335 = vpop.f32.mrb[0].mxu0
    %8336 = vmatprep.mubr.f32.mxu0 0.0
    %8337 = vmatmul.mubr.f32.gmra.mrb[0].mxu0 %v5981
    %v8338 = vpop.f32.mrb[0].mxu0
    %v8339 = vadd.f32 0.0, %v8338
    %v8340 = vpop.f32.mrb[0].mxu0
    %8341 = vmatprep.mubr.f32.mxu0 0.0
    %8342 = vmatmul.mubr.f32.gmra.mrb[0].mxu0 %v5984
    %v8343 = vpop.f32.mrb[0].mxu0
    %v8344 = vadd.f32 0.0, %v8343
    %v8345 = vpop.f32.mrb[0].mxu0
    %8346 = vmatprep.mubr.f32.mxu0 0.0
    %8347 = vmatmul.mubr.f32.gmra.mrb[0].mxu0 %v5986
    %v8348 = vpop.f32.mrb[0].mxu0
    %v8349 = vadd.f32 0.0, %v8348
    %v8350 = vpop.f32.mrb[0].mxu0
    %8351 = vmatprep.mubr.f32.mxu0 0.0
    %8352 = vmatmul.mubr.f32.gmra.mrb[0].mxu0 %v5989
    %v8353 = vpop.f32.mrb[0].mxu0
    %v8354 = vadd.f32 0.0, %v8353
    %v8355 = vpop.f32.mrb[0].mxu0
    %8356 = vmatprep.mubr.f32.mxu0 0.0
    %8357 = vmatmul.mubr.f32.gmra.mrb[0].mxu0 %v5991
    %v8358 = vpop.f32.mrb[0].mxu0
    %v8359 = vadd.f32 0.0, %v8358
    %v8360 = vpop.f32.mrb[0].mxu0
    %8361 = vmatprep.mubr.f32.mxu0 0.0
    %8362 = vmatmul.mubr.f32.gmra.mrb[0].mxu0 %v5994
    %v8363 = vpop.f32.mrb[0].mxu0
    %v8364 = vadd.f32 0.0, %v8363
    %v8365 = vpop.f32.mrb[0].mxu0
    %8366 = vmatprep.mubr.f32.mxu0 0.0
    %8367 = vmatmul.mubr.f32.gmra.mrb[0].mxu0 %v5996
    %v8368 = vpop.f32.mrb[0].mxu0
    %v8369 = vadd.f32 0.0, %v8368
    %v8370 = vpop.f32.mrb[0].mxu0
    %8371 = vmatprep.mubr.f32.mxu0 0.0
    %8372 = vmatmul.mubr.f32.gmra.mrb[0].mxu0 %v5999
    %v8373 = vpop.f32.mrb[0].mxu0
    %v8374 = vadd.f32 0.0, %v8373
    %v8375 = vpop.f32.mrb[0].mxu0
    %8376 = vmatprep.mubr.f32.mxu0 0.0
    %8377 = vmatmul.mubr.f32.gmra.mrb[0].mxu0 %v6001
    %v8378 = vpop.f32.mrb[0].mxu0
    %v8379 = vadd.f32 0.0, %v8378
    %v8380 = vpop.f32.mrb[0].mxu0
    %8381 = vmatprep.mubr.f32.mxu0 0.0
    %8382 = vmatmul.mubr.f32.gmra.mrb[0].mxu0 %v6004
    %v8383 = vpop.f32.mrb[0].mxu0
    %v8384 = vadd.f32 0.0, %v8383
    %v8385 = vpop.f32.mrb[0].mxu0
    %8386 = vmatprep.mubr.f32.mxu0 0.0
    %8387 = vmatmul.mubr.f32.gmra.mrb[0].mxu0 %v6006
    %v8388 = vpop.f32.mrb[0].mxu0
    %v8389 = vadd.f32 0.0, %v8388
    %v8390 = vpop.f32.mrb[0].mxu0
    %8391 = vmatprep.mubr.f32.mxu0 0.0
    %8392 = vmatmul.mubr.f32.gmra.mrb[0].mxu0 %v6009
    %v8393 = vpop.f32.mrb[0].mxu0
    %v8394 = vadd.f32 0.0, %v8393
    %v8395 = vpop.f32.mrb[0].mxu0
    %8396 = vmatprep.mubr.f32.mxu0 0.0
    %8397 = vmatmul.mubr.f32.gmra.mrb[0].mxu0 %v6011
    %v8398 = vpop.f32.mrb[0].mxu0
    %v8399 = vadd.f32 0.0, %v8398
    %v8400 = vpop.f32.mrb[0].mxu0
    %8401 = vmatprep.mubr.f32.mxu0 0.0
    %8402 = vmatmul.mubr.f32.gmra.mrb[0].mxu0 %v6014
    %v8403 = vpop.f32.mrb[0].mxu0
    %v8404 = vadd.f32 0.0, %v8403
    %v8405 = vpop.f32.mrb[0].mxu0
    %8406 = vmatprep.mubr.f32.mxu0 0.0
    %8407 = vmatmul.mubr.f32.gmra.mrb[0].mxu0 %v6016
    %v8408 = vpop.f32.mrb[0].mxu0
    %v8409 = vadd.f32 0.0, %v8408
    %v8410 = vpop.f32.mrb[0].mxu0
    %8411 = vmatprep.mubr.f32.mxu0 0.0
    %8412 = vmatmul.mubr.f32.gmra.mrb[0].mxu0 %v6019
    %v8413 = vpop.f32.mrb[0].mxu0
    %v8414 = vadd.f32 0.0, %v8413
    %v8415 = vpop.f32.mrb[0].mxu0
    %8416 = vmatprep.mubr.f32.mxu0 0.0
    %8417 = vmatmul.mubr.f32.gmra.mrb[0].mxu0 %v6021
    %v8418 = vpop.f32.mrb[0].mxu0
    %v8419 = vadd.f32 0.0, %v8418
    %v8420 = vpop.f32.mrb[0].mxu0
    %8421 = vmatprep.mubr.f32.mxu0 0.0
    %8422 = vmatmul.mubr.f32.gmra.mrb[0].mxu0 %v6024
    %v8423 = vpop.f32.mrb[0].mxu0
    %v8424 = vadd.f32 0.0, %v8423
    %v8425 = vpop.f32.mrb[0].mxu0
    %8426 = vmatprep.mubr.f32.mxu0 0.0
    %8427 = vmatmul.mubr.f32.gmra.mrb[0].mxu0 %v6026
    %v8428 = vpop.f32.mrb[0].mxu0
    %v8429 = vadd.f32 0.0, %v8428
    %v8430 = vpop.f32.mrb[0].mxu0
    %8431 = vmatprep.mubr.f32.mxu0 0.0
    %8432 = vmatmul.mubr.f32.gmra.mrb[0].mxu0 %v6029
    %v8433 = vpop.f32.mrb[0].mxu0
    %v8434 = vadd.f32 0.0, %v8433
    %v8435 = vpop.f32.mrb[0].mxu0
    %8436 = vmatprep.mubr.f32.mxu0 0.0
    %8437 = vmatmul.mubr.f32.gmra.mrb[0].mxu0 %v6031
    %v8438 = vpop.f32.mrb[0].mxu0
    %v8439 = vadd.f32 0.0, %v8438
    %v8440 = vpop.f32.mrb[0].mxu0
    %8441 = vmatprep.mubr.f32.mxu0 0.0
    %8442 = vmatmul.mubr.f32.gmra.mrb[0].mxu0 %v6034
    %v8443 = vpop.f32.mrb[0].mxu0
    %v8444 = vadd.f32 0.0, %v8443
    %v8445 = vpop.f32.mrb[0].mxu0
    %8446 = vmatprep.mubr.f32.mxu0 0.0
    %8447 = vmatmul.mubr.f32.gmra.mrb[0].mxu0 %v6036
    %v8448 = vpop.f32.mrb[0].mxu0
    %v8449 = vadd.f32 0.0, %v8448
    %v8450 = vpop.f32.mrb[0].mxu0
    %8451 = vmatprep.mubr.f32.mxu0 0.0
    %8452 = vmatmul.mubr.f32.gmra.mrb[0].mxu0 %v8054
    %v8453 = vpop.f32.mrb[0].mxu0
    %v8454 = vadd.f32 0.0, %v8453
    %v8455 = vpop.f32.mrb[0].mxu0
    %8456 = vmatprep.mubr.f32.mxu0 0.0
    %8457 = vmatmul.mubr.f32.gmra.mrb[0].mxu0 %v8056
    %v8458 = vpop.f32.mrb[0].mxu0
    %v8459 = vadd.f32 0.0, %v8458
    %v8460 = vpop.f32.mrb[0].mxu0
    %8461 = vdwg.mxu0
    %v8462 = vadd.f32 %v7977, %v8144
    %v8463 = vadd.f32 %v7978, %v8149
    %v8464 = vadd.f32 %v7979, %v8154
    %v8465 = vadd.f32 %v7980, %v8159
    %v8466 = vadd.f32 %v7981, %v8164
    %v8467 = vadd.f32 %v7982, %v8169
    %v8468 = vadd.f32 %v7983, %v8174
    %v8469 = vadd.f32 %v7984, %v8179
    %v8470 = vadd.f32 %v7985, %v8184
    %v8471 = vadd.f32 %v7986, %v8189
    %v8472 = vadd.f32 %v7987, %v8194
    %v8473 = vadd.f32 %v7988, %v8199
    %v8474 = vadd.f32 %v7989, %v8204
    %v8475 = vadd.f32 %v7990, %v8209
    %v8476 = vadd.f32 %v7991, %v8214
    %v8477 = vadd.f32 %v7992, %v8219
    %v8478 = vadd.f32 %v7993, %v8224
    %v8479 = vadd.f32 %v7994, %v8229
    %v8480 = vadd.f32 %v7995, %v8234
    %v8481 = vadd.f32 %v7996, %v8239
    %v8482 = vadd.f32 %v7997, %v8244
    %v8483 = vadd.f32 %v7998, %v8249
    %v8484 = vadd.f32 %v7999, %v8254
    %v8485 = vadd.f32 %v8000, %v8259
    %v8486 = vadd.f32 %v8001, %v8264
    %v8487 = vadd.f32 %v8002, %v8269
    %v8488 = vadd.f32 %v8003, %v8274
    %v8489 = vadd.f32 %v8004, %v8279
    %v8490 = vadd.f32 %v8005, %v8284
    %v8491 = vadd.f32 %v8006, %v8289
    %v8492 = vadd.f32 %v8007, %v8294
    %v8493 = vadd.f32 %v8008, %v8299
    %v8494 = vadd.f32 %v8009, %v8304
    %v8495 = vadd.f32 %v8010, %v8309
    %v8496 = vadd.f32 %v8011, %v8314
    %v8497 = vadd.f32 %v8012, %v8319
    %v8498 = vadd.f32 %v8013, %v8324
    %v8499 = vadd.f32 %v8014, %v8329
    %v8500 = vadd.f32 %v8015, %v8334
    %v8501 = vadd.f32 %v8016, %v8339
    %v8502 = vadd.f32 %v8017, %v8344
    %v8503 = vadd.f32 %v8018, %v8349
    %v8504 = vadd.f32 %v8019, %v8354
    %v8505 = vadd.f32 %v8020, %v8359
    %v8506 = vadd.f32 %v8021, %v8364
    %v8507 = vadd.f32 %v8022, %v8369
    %v8508 = vadd.f32 %v8023, %v8374
    %v8509 = vadd.f32 %v8024, %v8379
    %v8510 = vadd.f32 %v8025, %v8384
    %v8511 = vadd.f32 %v8026, %v8389
    %v8512 = vadd.f32 %v8027, %v8394
    %v8513 = vadd.f32 %v8028, %v8399
    %v8514 = vadd.f32 %v8029, %v8404
    %v8515 = vadd.f32 %v8030, %v8409
    %v8516 = vadd.f32 %v8031, %v8414
    %v8517 = vadd.f32 %v8032, %v8419
    %v8518 = vadd.f32 %v8033, %v8424
    %v8519 = vadd.f32 %v8034, %v8429
    %v8520 = vadd.f32 %v8035, %v8434
    %v8521 = vadd.f32 %v8036, %v8439
    %v8522 = vadd.f32 %v8037, %v8444
    %v8523 = vadd.f32 %v8038, %v8449
    %v8524 = vadd.f32 %v8039, %v8454
    %v8525 = vadd.f32 %v8040, %v8459
    %v8526 = vrot.slane %v5705, 2
    %v8527 = vrot.slane %v5706, 2
    %v8528 = vsel %vm1582, %v8526, %v8527
    %v8529 = vrot.slane %v5707, 2
    %v8530 = vsel %vm1582, %v8527, %v8529
    %v8531 = vrot.slane %v5759, 2
    %v8532 = vrot.slane %v5760, 2
    %v8533 = vsel %vm1582, %v8531, %v8532
    %v8534 = vrot.slane %v5761, 2
    %v8535 = vsel %vm1582, %v8532, %v8534
    %v8540 = vld [vmem:[#allocation12 + $0x280] sm:$0xff]
    %v8541 = vld [vmem:[#allocation12 + $0x288] sm:$0xff]
    %v8542 = vld [vmem:[#allocation12 + $0x290] sm:$0xff]
    %v8543 = vld [vmem:[#allocation12 + $0x298] sm:$0xff]
    %v8544 = vld [vmem:[#allocation12 + $0x2a0] sm:$0xff]
    %v8545 = vld [vmem:[#allocation12 + $0x2a8] sm:$0xff]
    %v8546 = vld [vmem:[#allocation12 + $0x2b0] sm:$0xff]
    %v8547 = vld [vmem:[#allocation12 + $0x2b8] sm:$0xff]
    %v8548 = vld [vmem:[#allocation12 + $0x2c0] sm:$0xff]
    %v8549 = vld [vmem:[#allocation12 + $0x2c8] sm:$0xff]
    %v8550 = vld [vmem:[#allocation12 + $0x2d0] sm:$0xff]
    %v8551 = vld [vmem:[#allocation12 + $0x2d8] sm:$0xff]
    %v8552 = vld [vmem:[#allocation12 + $0x2e0] sm:$0xff]
    %v8553 = vld [vmem:[#allocation12 + $0x2e8] sm:$0xff]
    %v8554 = vld [vmem:[#allocation12 + $0x2f0] sm:$0xff]
    %v8555 = vld [vmem:[#allocation12 + $0x2f8] sm:$0xff]
    %8556 = vmatprep.subr.mxu0 0.0
    %8557 = vmatpush1.msra.mxu0 %v8540
    %8558 = vmatprep.subr.mxu0 0.0
    %8559 = vmatpush1.msra.mxu0 %v8541
    %8560 = vmatprep.subr.mxu0 0.0
    %8561 = vmatpush1.msra.mxu0 %v8542
    %8562 = vmatprep.subr.mxu0 0.0
    %8563 = vmatpush1.msra.mxu0 %v8543
    %8564 = vmatprep.subr.mxu0 0.0
    %8565 = vmatpush1.msra.mxu0 %v8544
    %8566 = vmatprep.subr.mxu0 0.0
    %8567 = vmatpush1.msra.mxu0 %v8545
    %8568 = vmatprep.subr.mxu0 0.0
    %8569 = vmatpush1.msra.mxu0 %v8546
    %8570 = vmatprep.subr.mxu0 0.0
    %8571 = vmatpush1.msra.mxu0 %v8547
    %8572 = vmatprep.subr.mxu0 0.0
    %8573 = vmatpush1.msra.mxu0 %v8548
    %8574 = vmatprep.subr.mxu0 0.0
    %8575 = vmatpush1.msra.mxu0 %v8549
    %8576 = vmatprep.subr.mxu0 0.0
    %8577 = vmatpush1.msra.mxu0 %v8550
    %8578 = vmatprep.subr.mxu0 0.0
    %8579 = vmatpush1.msra.mxu0 %v8551
    %8580 = vmatprep.subr.mxu0 0.0
    %8581 = vmatpush1.msra.mxu0 %v8552
    %8582 = vmatprep.subr.mxu0 0.0
    %8583 = vmatpush1.msra.mxu0 %v8553
    %8584 = vmatprep.subr.mxu0 0.0
    %8585 = vmatpush1.msra.mxu0 %v8554
    %8586 = vmatprep.subr.mxu0 0.0
    %8587 = vmatpush1.msra.mxu0 %v8555
    %8588 = vmatprep.subr.mxu0 0.0
    %8589 = vmatpush1.msra.mxu0 0.0
    %8590 = vmatprep.subr.mxu0 0.0
    %8591 = vmatpush1.msra.mxu0 0.0
    %8592 = vmatprep.subr.mxu0 0.0
    %8593 = vmatpush1.msra.mxu0 0.0
    %8594 = vmatprep.subr.mxu0 0.0
    %8595 = vmatpush1.msra.mxu0 0.0
    %8596 = vmatprep.subr.mxu0 0.0
    %8597 = vmatpush1.msra.mxu0 0.0
    %8598 = vmatprep.subr.mxu0 0.0
    %8599 = vmatpush1.msra.mxu0 0.0
    %8600 = vmatprep.subr.mxu0 0.0
    %8601 = vmatpush1.msra.mxu0 0.0
    %8602 = vmatprep.subr.mxu0 0.0
    %8603 = vmatpush1.msra.mxu0 0.0
    %8604 = vmatprep.subr.mxu0 0.0
    %8605 = vmatpush1.msra.mxu0 0.0
    %8606 = vmatprep.subr.mxu0 0.0
    %8607 = vmatpush1.msra.mxu0 0.0
    %8608 = vmatprep.subr.mxu0 0.0
    %8609 = vmatpush1.msra.mxu0 0.0
    %8610 = vmatprep.subr.mxu0 0.0
    %8611 = vmatpush1.msra.mxu0 0.0
    %8612 = vmatprep.subr.mxu0 0.0
    %8613 = vmatpush1.msra.mxu0 0.0
    %8614 = vmatprep.subr.mxu0 0.0
    %8615 = vmatpush1.msra.mxu0 0.0
    %8616 = vmatprep.subr.mxu0 0.0
    %8617 = vmatpush1.msra.mxu0 0.0
    %8618 = vmatprep.subr.mxu0 0.0
    %8619 = vmatpush1.msra.mxu0 0.0
    %8620 = vmatprep.mubr.f32.mxu0 0.0
    %8621 = vmatmul.mubr.f32.gmra.mrb[0].mxu0 %v6894
    %v8622 = vpop.f32.mrb[0].mxu0
    %v8623 = vadd.f32 0.0, %v8622
    %v8624 = vpop.f32.mrb[0].mxu0
    %8625 = vmatprep.mubr.f32.mxu0 0.0
    %8626 = vmatmul.mubr.f32.gmra.mrb[0].mxu0 %v6896
    %v8627 = vpop.f32.mrb[0].mxu0
    %v8628 = vadd.f32 0.0, %v8627
    %v8629 = vpop.f32.mrb[0].mxu0
    %8630 = vmatprep.mubr.f32.mxu0 0.0
    %8631 = vmatmul.mubr.f32.gmra.mrb[0].mxu0 %v6899
    %v8632 = vpop.f32.mrb[0].mxu0
    %v8633 = vadd.f32 0.0, %v8632
    %v8634 = vpop.f32.mrb[0].mxu0
    %8635 = vmatprep.mubr.f32.mxu0 0.0
    %8636 = vmatmul.mubr.f32.gmra.mrb[0].mxu0 %v6901
    %v8637 = vpop.f32.mrb[0].mxu0
    %v8638 = vadd.f32 0.0, %v8637
    %v8639 = vpop.f32.mrb[0].mxu0
    %8640 = vmatprep.mubr.f32.mxu0 0.0
    %8641 = vmatmul.mubr.f32.gmra.mrb[0].mxu0 %v6904
    %v8642 = vpop.f32.mrb[0].mxu0
    %v8643 = vadd.f32 0.0, %v8642
    %v8644 = vpop.f32.mrb[0].mxu0
    %8645 = vmatprep.mubr.f32.mxu0 0.0
    %8646 = vmatmul.mubr.f32.gmra.mrb[0].mxu0 %v6906
    %v8647 = vpop.f32.mrb[0].mxu0
    %v8648 = vadd.f32 0.0, %v8647
    %v8649 = vpop.f32.mrb[0].mxu0
    %8650 = vmatprep.mubr.f32.mxu0 0.0
    %8651 = vmatmul.mubr.f32.gmra.mrb[0].mxu0 %v6909
    %v8652 = vpop.f32.mrb[0].mxu0
    %v8653 = vadd.f32 0.0, %v8652
    %v8654 = vpop.f32.mrb[0].mxu0
    %8655 = vmatprep.mubr.f32.mxu0 0.0
    %8656 = vmatmul.mubr.f32.gmra.mrb[0].mxu0 %v6911
    %v8657 = vpop.f32.mrb[0].mxu0
    %v8658 = vadd.f32 0.0, %v8657
    %v8659 = vpop.f32.mrb[0].mxu0
    %8660 = vmatprep.mubr.f32.mxu0 0.0
    %8661 = vmatmul.mubr.f32.gmra.mrb[0].mxu0 %v6914
    %v8662 = vpop.f32.mrb[0].mxu0
    %v8663 = vadd.f32 0.0, %v8662
    %v8664 = vpop.f32.mrb[0].mxu0
    %8665 = vmatprep.mubr.f32.mxu0 0.0
    %8666 = vmatmul.mubr.f32.gmra.mrb[0].mxu0 %v6916
    %v8667 = vpop.f32.mrb[0].mxu0
    %v8668 = vadd.f32 0.0, %v8667
    %v8669 = vpop.f32.mrb[0].mxu0
    %8670 = vmatprep.mubr.f32.mxu0 0.0
    %8671 = vmatmul.mubr.f32.gmra.mrb[0].mxu0 %v6919
    %v8672 = vpop.f32.mrb[0].mxu0
    %v8673 = vadd.f32 0.0, %v8672
    %v8674 = vpop.f32.mrb[0].mxu0
    %8675 = vmatprep.mubr.f32.mxu0 0.0
    %8676 = vmatmul.mubr.f32.gmra.mrb[0].mxu0 %v6921
    %v8677 = vpop.f32.mrb[0].mxu0
    %v8678 = vadd.f32 0.0, %v8677
    %v8679 = vpop.f32.mrb[0].mxu0
    %8680 = vmatprep.mubr.f32.mxu0 0.0
    %8681 = vmatmul.mubr.f32.gmra.mrb[0].mxu0 %v6924
    %v8682 = vpop.f32.mrb[0].mxu0
    %v8683 = vadd.f32 0.0, %v8682
    %v8684 = vpop.f32.mrb[0].mxu0
    %8685 = vmatprep.mubr.f32.mxu0 0.0
    %8686 = vmatmul.mubr.f32.gmra.mrb[0].mxu0 %v6926
    %v8687 = vpop.f32.mrb[0].mxu0
    %v8688 = vadd.f32 0.0, %v8687
    %v8689 = vpop.f32.mrb[0].mxu0
    %8690 = vmatprep.mubr.f32.mxu0 0.0
    %8691 = vmatmul.mubr.f32.gmra.mrb[0].mxu0 %v6929
    %v8692 = vpop.f32.mrb[0].mxu0
    %v8693 = vadd.f32 0.0, %v8692
    %v8694 = vpop.f32.mrb[0].mxu0
    %8695 = vmatprep.mubr.f32.mxu0 0.0
    %8696 = vmatmul.mubr.f32.gmra.mrb[0].mxu0 %v6931
    %v8697 = vpop.f32.mrb[0].mxu0
    %v8698 = vadd.f32 0.0, %v8697
    %v8699 = vpop.f32.mrb[0].mxu0
    %8700 = vmatprep.mubr.f32.mxu0 0.0
    %8701 = vmatmul.mubr.f32.gmra.mrb[0].mxu0 %v6934
    %v8702 = vpop.f32.mrb[0].mxu0
    %v8703 = vadd.f32 0.0, %v8702
    %v8704 = vpop.f32.mrb[0].mxu0
    %8705 = vmatprep.mubr.f32.mxu0 0.0
    %8706 = vmatmul.mubr.f32.gmra.mrb[0].mxu0 %v6936
    %v8707 = vpop.f32.mrb[0].mxu0
    %v8708 = vadd.f32 0.0, %v8707
    %v8709 = vpop.f32.mrb[0].mxu0
    %8710 = vmatprep.mubr.f32.mxu0 0.0
    %8711 = vmatmul.mubr.f32.gmra.mrb[0].mxu0 %v6939
    %v8712 = vpop.f32.mrb[0].mxu0
    %v8713 = vadd.f32 0.0, %v8712
    %v8714 = vpop.f32.mrb[0].mxu0
    %8715 = vmatprep.mubr.f32.mxu0 0.0
    %8716 = vmatmul.mubr.f32.gmra.mrb[0].mxu0 %v6941
    %v8717 = vpop.f32.mrb[0].mxu0
    %v8718 = vadd.f32 0.0, %v8717
    %v8719 = vpop.f32.mrb[0].mxu0
    %8720 = vmatprep.mubr.f32.mxu0 0.0
    %8721 = vmatmul.mubr.f32.gmra.mrb[0].mxu0 %v6944
    %v8722 = vpop.f32.mrb[0].mxu0
    %v8723 = vadd.f32 0.0, %v8722
    %v8724 = vpop.f32.mrb[0].mxu0
    %8725 = vmatprep.mubr.f32.mxu0 0.0
    %8726 = vmatmul.mubr.f32.gmra.mrb[0].mxu0 %v6946
    %v8727 = vpop.f32.mrb[0].mxu0
    %v8728 = vadd.f32 0.0, %v8727
    %v8729 = vpop.f32.mrb[0].mxu0
    %8730 = vmatprep.mubr.f32.mxu0 0.0
    %8731 = vmatmul.mubr.f32.gmra.mrb[0].mxu0 %v6949
    %v8732 = vpop.f32.mrb[0].mxu0
    %v8733 = vadd.f32 0.0, %v8732
    %v8734 = vpop.f32.mrb[0].mxu0
    %8735 = vmatprep.mubr.f32.mxu0 0.0
    %8736 = vmatmul.mubr.f32.gmra.mrb[0].mxu0 %v6951
    %v8737 = vpop.f32.mrb[0].mxu0
    %v8738 = vadd.f32 0.0, %v8737
    %v8739 = vpop.f32.mrb[0].mxu0
    %8740 = vmatprep.mubr.f32.mxu0 0.0
    %8741 = vmatmul.mubr.f32.gmra.mrb[0].mxu0 %v6954
    %v8742 = vpop.f32.mrb[0].mxu0
    %v8743 = vadd.f32 0.0, %v8742
    %v8744 = vpop.f32.mrb[0].mxu0
    %8745 = vmatprep.mubr.f32.mxu0 0.0
    %8746 = vmatmul.mubr.f32.gmra.mrb[0].mxu0 %v6956
    %v8747 = vpop.f32.mrb[0].mxu0
    %v8748 = vadd.f32 0.0, %v8747
    %v8749 = vpop.f32.mrb[0].mxu0
    %8750 = vmatprep.mubr.f32.mxu0 0.0
    %8751 = vmatmul.mubr.f32.gmra.mrb[0].mxu0 %v6959
    %v8752 = vpop.f32.mrb[0].mxu0
    %v8753 = vadd.f32 0.0, %v8752
    %v8754 = vpop.f32.mrb[0].mxu0
    %8755 = vmatprep.mubr.f32.mxu0 0.0
    %8756 = vmatmul.mubr.f32.gmra.mrb[0].mxu0 %v6961
    %v8757 = vpop.f32.mrb[0].mxu0
    %v8758 = vadd.f32 0.0, %v8757
    %v8759 = vpop.f32.mrb[0].mxu0
    %8760 = vmatprep.mubr.f32.mxu0 0.0
    %8761 = vmatmul.mubr.f32.gmra.mrb[0].mxu0 %v6964
    %v8762 = vpop.f32.mrb[0].mxu0
    %v8763 = vadd.f32 0.0, %v8762
    %v8764 = vpop.f32.mrb[0].mxu0
    %8765 = vmatprep.mubr.f32.mxu0 0.0
    %8766 = vmatmul.mubr.f32.gmra.mrb[0].mxu0 %v6966
    %v8767 = vpop.f32.mrb[0].mxu0
    %v8768 = vadd.f32 0.0, %v8767
    %v8769 = vpop.f32.mrb[0].mxu0
    %8770 = vmatprep.mubr.f32.mxu0 0.0
    %8771 = vmatmul.mubr.f32.gmra.mrb[0].mxu0 %v8528
    %v8772 = vpop.f32.mrb[0].mxu0
    %v8773 = vadd.f32 0.0, %v8772
    %v8774 = vpop.f32.mrb[0].mxu0
    %8775 = vmatprep.mubr.f32.mxu0 0.0
    %8776 = vmatmul.mubr.f32.gmra.mrb[0].mxu0 %v8530
    %v8777 = vpop.f32.mrb[0].mxu0
    %v8778 = vadd.f32 0.0, %v8777
    %v8779 = vpop.f32.mrb[0].mxu0
    %8780 = vmatprep.mubr.f32.mxu0 0.0
    %8781 = vmatmul.mubr.f32.gmra.mrb[0].mxu0 %v6974
    %v8782 = vpop.f32.mrb[0].mxu0
    %v8783 = vadd.f32 0.0, %v8782
    %v8784 = vpop.f32.mrb[0].mxu0
    %8785 = vmatprep.mubr.f32.mxu0 0.0
    %8786 = vmatmul.mubr.f32.gmra.mrb[0].mxu0 %v6976
    %v8787 = vpop.f32.mrb[0].mxu0
    %v8788 = vadd.f32 0.0, %v8787
    %v8789 = vpop.f32.mrb[0].mxu0
    %8790 = vmatprep.mubr.f32.mxu0 0.0
    %8791 = vmatmul.mubr.f32.gmra.mrb[0].mxu0 %v6979
    %v8792 = vpop.f32.mrb[0].mxu0
    %v8793 = vadd.f32 0.0, %v8792
    %v8794 = vpop.f32.mrb[0].mxu0
    %8795 = vmatprep.mubr.f32.mxu0 0.0
    %8796 = vmatmul.mubr.f32.gmra.mrb[0].mxu0 %v6981
    %v8797 = vpop.f32.mrb[0].mxu0
    %v8798 = vadd.f32 0.0, %v8797
    %v8799 = vpop.f32.mrb[0].mxu0
    %8800 = vmatprep.mubr.f32.mxu0 0.0
    %8801 = vmatmul.mubr.f32.gmra.mrb[0].mxu0 %v6984
    %v8802 = vpop.f32.mrb[0].mxu0
    %v8803 = vadd.f32 0.0, %v8802
    %v8804 = vpop.f32.mrb[0].mxu0
    %8805 = vmatprep.mubr.f32.mxu0 0.0
    %8806 = vmatmul.mubr.f32.gmra.mrb[0].mxu0 %v6986
    %v8807 = vpop.f32.mrb[0].mxu0
    %v8808 = vadd.f32 0.0, %v8807
    %v8809 = vpop.f32.mrb[0].mxu0
    %8810 = vmatprep.mubr.f32.mxu0 0.0
    %8811 = vmatmul.mubr.f32.gmra.mrb[0].mxu0 %v6989
    %v8812 = vpop.f32.mrb[0].mxu0
    %v8813 = vadd.f32 0.0, %v8812
    %v8814 = vpop.f32.mrb[0].mxu0
    %8815 = vmatprep.mubr.f32.mxu0 0.0
    %8816 = vmatmul.mubr.f32.gmra.mrb[0].mxu0 %v6991
    %v8817 = vpop.f32.mrb[0].mxu0
    %v8818 = vadd.f32 0.0, %v8817
    %v8819 = vpop.f32.mrb[0].mxu0
    %8820 = vmatprep.mubr.f32.mxu0 0.0
    %8821 = vmatmul.mubr.f32.gmra.mrb[0].mxu0 %v6994
    %v8822 = vpop.f32.mrb[0].mxu0
    %v8823 = vadd.f32 0.0, %v8822
    %v8824 = vpop.f32.mrb[0].mxu0
    %8825 = vmatprep.mubr.f32.mxu0 0.0
    %8826 = vmatmul.mubr.f32.gmra.mrb[0].mxu0 %v6996
    %v8827 = vpop.f32.mrb[0].mxu0
    %v8828 = vadd.f32 0.0, %v8827
    %v8829 = vpop.f32.mrb[0].mxu0
    %8830 = vmatprep.mubr.f32.mxu0 0.0
    %8831 = vmatmul.mubr.f32.gmra.mrb[0].mxu0 %v6999
    %v8832 = vpop.f32.mrb[0].mxu0
    %v8833 = vadd.f32 0.0, %v8832
    %v8834 = vpop.f32.mrb[0].mxu0
    %8835 = vmatprep.mubr.f32.mxu0 0.0
    %8836 = vmatmul.mubr.f32.gmra.mrb[0].mxu0 %v7001
    %v8837 = vpop.f32.mrb[0].mxu0
    %v8838 = vadd.f32 0.0, %v8837
    %v8839 = vpop.f32.mrb[0].mxu0
    %8840 = vmatprep.mubr.f32.mxu0 0.0
    %8841 = vmatmul.mubr.f32.gmra.mrb[0].mxu0 %v7004
    %v8842 = vpop.f32.mrb[0].mxu0
    %v8843 = vadd.f32 0.0, %v8842
    %v8844 = vpop.f32.mrb[0].mxu0
    %8845 = vmatprep.mubr.f32.mxu0 0.0
    %8846 = vmatmul.mubr.f32.gmra.mrb[0].mxu0 %v7006
    %v8847 = vpop.f32.mrb[0].mxu0
    %v8848 = vadd.f32 0.0, %v8847
    %v8849 = vpop.f32.mrb[0].mxu0
    %8850 = vmatprep.mubr.f32.mxu0 0.0
    %8851 = vmatmul.mubr.f32.gmra.mrb[0].mxu0 %v7009
    %v8852 = vpop.f32.mrb[0].mxu0
    %v8853 = vadd.f32 0.0, %v8852
    %v8854 = vpop.f32.mrb[0].mxu0
    %8855 = vmatprep.mubr.f32.mxu0 0.0
    %8856 = vmatmul.mubr.f32.gmra.mrb[0].mxu0 %v7011
    %v8857 = vpop.f32.mrb[0].mxu0
    %v8858 = vadd.f32 0.0, %v8857
    %v8859 = vpop.f32.mrb[0].mxu0
    %8860 = vmatprep.mubr.f32.mxu0 0.0
    %8861 = vmatmul.mubr.f32.gmra.mrb[0].mxu0 %v7014
    %v8862 = vpop.f32.mrb[0].mxu0
    %v8863 = vadd.f32 0.0, %v8862
    %v8864 = vpop.f32.mrb[0].mxu0
    %8865 = vmatprep.mubr.f32.mxu0 0.0
    %8866 = vmatmul.mubr.f32.gmra.mrb[0].mxu0 %v7016
    %v8867 = vpop.f32.mrb[0].mxu0
    %v8868 = vadd.f32 0.0, %v8867
    %v8869 = vpop.f32.mrb[0].mxu0
    %8870 = vmatprep.mubr.f32.mxu0 0.0
    %8871 = vmatmul.mubr.f32.gmra.mrb[0].mxu0 %v7019
    %v8872 = vpop.f32.mrb[0].mxu0
    %v8873 = vadd.f32 0.0, %v8872
    %v8874 = vpop.f32.mrb[0].mxu0
    %8875 = vmatprep.mubr.f32.mxu0 0.0
    %8876 = vmatmul.mubr.f32.gmra.mrb[0].mxu0 %v7021
    %v8877 = vpop.f32.mrb[0].mxu0
    %v8878 = vadd.f32 0.0, %v8877
    %v8879 = vpop.f32.mrb[0].mxu0
    %8880 = vmatprep.mubr.f32.mxu0 0.0
    %8881 = vmatmul.mubr.f32.gmra.mrb[0].mxu0 %v7024
    %v8882 = vpop.f32.mrb[0].mxu0
    %v8883 = vadd.f32 0.0, %v8882
    %v8884 = vpop.f32.mrb[0].mxu0
    %8885 = vmatprep.mubr.f32.mxu0 0.0
    %8886 = vmatmul.mubr.f32.gmra.mrb[0].mxu0 %v7026
    %v8887 = vpop.f32.mrb[0].mxu0
    %v8888 = vadd.f32 0.0, %v8887
    %v8889 = vpop.f32.mrb[0].mxu0
    %8890 = vmatprep.mubr.f32.mxu0 0.0
    %8891 = vmatmul.mubr.f32.gmra.mrb[0].mxu0 %v7029
    %v8892 = vpop.f32.mrb[0].mxu0
    %v8893 = vadd.f32 0.0, %v8892
    %v8894 = vpop.f32.mrb[0].mxu0
    %8895 = vmatprep.mubr.f32.mxu0 0.0
    %8896 = vmatmul.mubr.f32.gmra.mrb[0].mxu0 %v7031
    %v8897 = vpop.f32.mrb[0].mxu0
    %v8898 = vadd.f32 0.0, %v8897
    %v8899 = vpop.f32.mrb[0].mxu0
    %8900 = vmatprep.mubr.f32.mxu0 0.0
    %8901 = vmatmul.mubr.f32.gmra.mrb[0].mxu0 %v7034
    %v8902 = vpop.f32.mrb[0].mxu0
    %v8903 = vadd.f32 0.0, %v8902
    %v8904 = vpop.f32.mrb[0].mxu0
    %8905 = vmatprep.mubr.f32.mxu0 0.0
    %8906 = vmatmul.mubr.f32.gmra.mrb[0].mxu0 %v7036
    %v8907 = vpop.f32.mrb[0].mxu0
    %v8908 = vadd.f32 0.0, %v8907
    %v8909 = vpop.f32.mrb[0].mxu0
    %8910 = vmatprep.mubr.f32.mxu0 0.0
    %8911 = vmatmul.mubr.f32.gmra.mrb[0].mxu0 %v7039
    %v8912 = vpop.f32.mrb[0].mxu0
    %v8913 = vadd.f32 0.0, %v8912
    %v8914 = vpop.f32.mrb[0].mxu0
    %8915 = vmatprep.mubr.f32.mxu0 0.0
    %8916 = vmatmul.mubr.f32.gmra.mrb[0].mxu0 %v7041
    %v8917 = vpop.f32.mrb[0].mxu0
    %v8918 = vadd.f32 0.0, %v8917
    %v8919 = vpop.f32.mrb[0].mxu0
    %8920 = vmatprep.mubr.f32.mxu0 0.0
    %8921 = vmatmul.mubr.f32.gmra.mrb[0].mxu0 %v7044
    %v8922 = vpop.f32.mrb[0].mxu0
    %v8923 = vadd.f32 0.0, %v8922
    %v8924 = vpop.f32.mrb[0].mxu0
    %8925 = vmatprep.mubr.f32.mxu0 0.0
    %8926 = vmatmul.mubr.f32.gmra.mrb[0].mxu0 %v7046
    %v8927 = vpop.f32.mrb[0].mxu0
    %v8928 = vadd.f32 0.0, %v8927
    %v8929 = vpop.f32.mrb[0].mxu0
    %8930 = vmatprep.mubr.f32.mxu0 0.0
    %8931 = vmatmul.mubr.f32.gmra.mrb[0].mxu0 %v8533
    %v8932 = vpop.f32.mrb[0].mxu0
    %v8933 = vadd.f32 0.0, %v8932
    %v8934 = vpop.f32.mrb[0].mxu0
    %8935 = vmatprep.mubr.f32.mxu0 0.0
    %8936 = vmatmul.mubr.f32.gmra.mrb[0].mxu0 %v8535
    %v8937 = vpop.f32.mrb[0].mxu0
    %v8938 = vadd.f32 0.0, %v8937
    %v8939 = vpop.f32.mrb[0].mxu0
    %8940 = vdwg.mxu0
    %v8941 = vadd.f32 %v8462, %v8623
    %v8942 = vadd.f32 %v8463, %v8628
    %v8943 = vadd.f32 %v8464, %v8633
    %v8944 = vadd.f32 %v8465, %v8638
    %v8945 = vadd.f32 %v8466, %v8643
    %v8946 = vadd.f32 %v8467, %v8648
    %v8947 = vadd.f32 %v8468, %v8653
    %v8948 = vadd.f32 %v8469, %v8658
    %v8949 = vadd.f32 %v8470, %v8663
    %v8950 = vadd.f32 %v8471, %v8668
    %v8951 = vadd.f32 %v8472, %v8673
    %v8952 = vadd.f32 %v8473, %v8678
    %v8953 = vadd.f32 %v8474, %v8683
    %v8954 = vadd.f32 %v8475, %v8688
    %v8955 = vadd.f32 %v8476, %v8693
    %v8956 = vadd.f32 %v8477, %v8698
    %v8957 = vadd.f32 %v8478, %v8703
    %v8958 = vadd.f32 %v8479, %v8708
    %v8959 = vadd.f32 %v8480, %v8713
    %v8960 = vadd.f32 %v8481, %v8718
    %v8961 = vadd.f32 %v8482, %v8723
    %v8962 = vadd.f32 %v8483, %v8728
    %v8963 = vadd.f32 %v8484, %v8733
    %v8964 = vadd.f32 %v8485, %v8738
    %v8965 = vadd.f32 %v8486, %v8743
    %v8966 = vadd.f32 %v8487, %v8748
    %v8967 = vadd.f32 %v8488, %v8753
    %v8968 = vadd.f32 %v8489, %v8758
    %v8969 = vadd.f32 %v8490, %v8763
    %v8970 = vadd.f32 %v8491, %v8768
    %v8971 = vadd.f32 %v8492, %v8773
    %v8972 = vadd.f32 %v8493, %v8778
    %v8973 = vadd.f32 %v8494, %v8783
    %v8974 = vadd.f32 %v8495, %v8788
    %v8975 = vadd.f32 %v8496, %v8793
    %v8976 = vadd.f32 %v8497, %v8798
    %v8977 = vadd.f32 %v8498, %v8803
    %v8978 = vadd.f32 %v8499, %v8808
    %v8979 = vadd.f32 %v8500, %v8813
    %v8980 = vadd.f32 %v8501, %v8818
    %v8981 = vadd.f32 %v8502, %v8823
    %v8982 = vadd.f32 %v8503, %v8828
    %v8983 = vadd.f32 %v8504, %v8833
    %v8984 = vadd.f32 %v8505, %v8838
    %v8985 = vadd.f32 %v8506, %v8843
    %v8986 = vadd.f32 %v8507, %v8848
    %v8987 = vadd.f32 %v8508, %v8853
    %v8988 = vadd.f32 %v8509, %v8858
    %v8989 = vadd.f32 %v8510, %v8863
    %v8990 = vadd.f32 %v8511, %v8868
    %v8991 = vadd.f32 %v8512, %v8873
    %v8992 = vadd.f32 %v8513, %v8878
    %v8993 = vadd.f32 %v8514, %v8883
    %v8994 = vadd.f32 %v8515, %v8888
    %v8995 = vadd.f32 %v8516, %v8893
    %v8996 = vadd.f32 %v8517, %v8898
    %v8997 = vadd.f32 %v8518, %v8903
    %v8998 = vadd.f32 %v8519, %v8908
    %v8999 = vadd.f32 %v8520, %v8913
    %v9000 = vadd.f32 %v8521, %v8918
    %v9001 = vadd.f32 %v8522, %v8923
    %v9002 = vadd.f32 %v8523, %v8928
    %v9003 = vadd.f32 %v8524, %v8933
    %v9004 = vadd.f32 %v8525, %v8938
    %v9005 = vld [vmem:[#allocation12 + $0x300] sm:$0xff]
    %v9006 = vld [vmem:[#allocation12 + $0x308] sm:$0xff]
    %v9007 = vld [vmem:[#allocation12 + $0x310] sm:$0xff]
    %v9008 = vld [vmem:[#allocation12 + $0x318] sm:$0xff]
    %v9009 = vld [vmem:[#allocation12 + $0x320] sm:$0xff]
    %v9010 = vld [vmem:[#allocation12 + $0x328] sm:$0xff]
    %v9011 = vld [vmem:[#allocation12 + $0x330] sm:$0xff]
    %v9012 = vld [vmem:[#allocation12 + $0x338] sm:$0xff]
    %v9013 = vld [vmem:[#allocation12 + $0x340] sm:$0xff]
    %v9014 = vld [vmem:[#allocation12 + $0x348] sm:$0xff]
    %v9015 = vld [vmem:[#allocation12 + $0x350] sm:$0xff]
    %v9016 = vld [vmem:[#allocation12 + $0x358] sm:$0xff]
    %v9017 = vld [vmem:[#allocation12 + $0x360] sm:$0xff]
    %v9018 = vld [vmem:[#allocation12 + $0x368] sm:$0xff]
    %v9019 = vld [vmem:[#allocation12 + $0x370] sm:$0xff]
    %v9020 = vld [vmem:[#allocation12 + $0x378] sm:$0xff]
    %9021 = vmatprep.subr.mxu0 0.0
    %9022 = vmatpush1.msra.mxu0 %v9005
    %9023 = vmatprep.subr.mxu0 0.0
    %9024 = vmatpush1.msra.mxu0 %v9006
    %9025 = vmatprep.subr.mxu0 0.0
    %9026 = vmatpush1.msra.mxu0 %v9007
    %9027 = vmatprep.subr.mxu0 0.0
    %9028 = vmatpush1.msra.mxu0 %v9008
    %9029 = vmatprep.subr.mxu0 0.0
    %9030 = vmatpush1.msra.mxu0 %v9009
    %9031 = vmatprep.subr.mxu0 0.0
    %9032 = vmatpush1.msra.mxu0 %v9010
    %9033 = vmatprep.subr.mxu0 0.0
    %9034 = vmatpush1.msra.mxu0 %v9011
    %9035 = vmatprep.subr.mxu0 0.0
    %9036 = vmatpush1.msra.mxu0 %v9012
    %9037 = vmatprep.subr.mxu0 0.0
    %9038 = vmatpush1.msra.mxu0 %v9013
    %9039 = vmatprep.subr.mxu0 0.0
    %9040 = vmatpush1.msra.mxu0 %v9014
    %9041 = vmatprep.subr.mxu0 0.0
    %9042 = vmatpush1.msra.mxu0 %v9015
    %9043 = vmatprep.subr.mxu0 0.0
    %9044 = vmatpush1.msra.mxu0 %v9016
    %9045 = vmatprep.subr.mxu0 0.0
    %9046 = vmatpush1.msra.mxu0 %v9017
    %9047 = vmatprep.subr.mxu0 0.0
    %9048 = vmatpush1.msra.mxu0 %v9018
    %9049 = vmatprep.subr.mxu0 0.0
    %9050 = vmatpush1.msra.mxu0 %v9019
    %9051 = vmatprep.subr.mxu0 0.0
    %9052 = vmatpush1.msra.mxu0 %v9020
    %9053 = vmatprep.subr.mxu0 0.0
    %9054 = vmatpush1.msra.mxu0 0.0
    %9055 = vmatprep.subr.mxu0 0.0
    %9056 = vmatpush1.msra.mxu0 0.0
    %9057 = vmatprep.subr.mxu0 0.0
    %9058 = vmatpush1.msra.mxu0 0.0
    %9059 = vmatprep.subr.mxu0 0.0
    %9060 = vmatpush1.msra.mxu0 0.0
    %9061 = vmatprep.subr.mxu0 0.0
    %9062 = vmatpush1.msra.mxu0 0.0
    %9063 = vmatprep.subr.mxu0 0.0
    %9064 = vmatpush1.msra.mxu0 0.0
    %9065 = vmatprep.subr.mxu0 0.0
    %9066 = vmatpush1.msra.mxu0 0.0
    %9067 = vmatprep.subr.mxu0 0.0
    %9068 = vmatpush1.msra.mxu0 0.0
    %9069 = vmatprep.subr.mxu0 0.0
    %9070 = vmatpush1.msra.mxu0 0.0
    %9071 = vmatprep.subr.mxu0 0.0
    %9072 = vmatpush1.msra.mxu0 0.0
    %9073 = vmatprep.subr.mxu0 0.0
    %9074 = vmatpush1.msra.mxu0 0.0
    %9075 = vmatprep.subr.mxu0 0.0
    %9076 = vmatpush1.msra.mxu0 0.0
    %9077 = vmatprep.subr.mxu0 0.0
    %9078 = vmatpush1.msra.mxu0 0.0
    %9079 = vmatprep.subr.mxu0 0.0
    %9080 = vmatpush1.msra.mxu0 0.0
    %9081 = vmatprep.subr.mxu0 0.0
    %9082 = vmatpush1.msra.mxu0 0.0
    %9083 = vmatprep.subr.mxu0 0.0
    %9084 = vmatpush1.msra.mxu0 0.0
    %9085 = vmatprep.mubr.f32.mxu0 0.0
    %9086 = vmatmul.mubr.f32.gmra.mrb[0].mxu0 %v5663
    %v9087 = vpop.f32.mrb[0].mxu0
    %v9088 = vadd.f32 0.0, %v9087
    %v9089 = vpop.f32.mrb[0].mxu0
    %9090 = vmatprep.mubr.f32.mxu0 0.0
    %9091 = vmatmul.mubr.f32.gmra.mrb[0].mxu0 %v5664
    %v9092 = vpop.f32.mrb[0].mxu0
    %v9093 = vadd.f32 0.0, %v9092
    %v9094 = vpop.f32.mrb[0].mxu0
    %9095 = vmatprep.mubr.f32.mxu0 0.0
    %9096 = vmatmul.mubr.f32.gmra.mrb[0].mxu0 %v5666
    %v9097 = vpop.f32.mrb[0].mxu0
    %v9098 = vadd.f32 0.0, %v9097
    %v9099 = vpop.f32.mrb[0].mxu0
    %9100 = vmatprep.mubr.f32.mxu0 0.0
    %9101 = vmatmul.mubr.f32.gmra.mrb[0].mxu0 %v5667
    %v9102 = vpop.f32.mrb[0].mxu0
    %v9103 = vadd.f32 0.0, %v9102
    %v9104 = vpop.f32.mrb[0].mxu0
    %9105 = vmatprep.mubr.f32.mxu0 0.0
    %9106 = vmatmul.mubr.f32.gmra.mrb[0].mxu0 %v5669
    %v9107 = vpop.f32.mrb[0].mxu0
    %v9108 = vadd.f32 0.0, %v9107
    %v9109 = vpop.f32.mrb[0].mxu0
    %9110 = vmatprep.mubr.f32.mxu0 0.0
    %9111 = vmatmul.mubr.f32.gmra.mrb[0].mxu0 %v5670
    %v9112 = vpop.f32.mrb[0].mxu0
    %v9113 = vadd.f32 0.0, %v9112
    %v9114 = vpop.f32.mrb[0].mxu0
    %9115 = vmatprep.mubr.f32.mxu0 0.0
    %9116 = vmatmul.mubr.f32.gmra.mrb[0].mxu0 %v5672
    %v9117 = vpop.f32.mrb[0].mxu0
    %v9118 = vadd.f32 0.0, %v9117
    %v9119 = vpop.f32.mrb[0].mxu0
    %9120 = vmatprep.mubr.f32.mxu0 0.0
    %9121 = vmatmul.mubr.f32.gmra.mrb[0].mxu0 %v5673
    %v9122 = vpop.f32.mrb[0].mxu0
    %v9123 = vadd.f32 0.0, %v9122
    %v9124 = vpop.f32.mrb[0].mxu0
    %9125 = vmatprep.mubr.f32.mxu0 0.0
    %9126 = vmatmul.mubr.f32.gmra.mrb[0].mxu0 %v5675
    %v9127 = vpop.f32.mrb[0].mxu0
    %v9128 = vadd.f32 0.0, %v9127
    %v9129 = vpop.f32.mrb[0].mxu0
    %9130 = vmatprep.mubr.f32.mxu0 0.0
    %9131 = vmatmul.mubr.f32.gmra.mrb[0].mxu0 %v5676
    %v9132 = vpop.f32.mrb[0].mxu0
    %v9133 = vadd.f32 0.0, %v9132
    %v9134 = vpop.f32.mrb[0].mxu0
    %9135 = vmatprep.mubr.f32.mxu0 0.0
    %9136 = vmatmul.mubr.f32.gmra.mrb[0].mxu0 %v5678
    %v9137 = vpop.f32.mrb[0].mxu0
    %v9138 = vadd.f32 0.0, %v9137
    %v9139 = vpop.f32.mrb[0].mxu0
    %9140 = vmatprep.mubr.f32.mxu0 0.0
    %9141 = vmatmul.mubr.f32.gmra.mrb[0].mxu0 %v5679
    %v9142 = vpop.f32.mrb[0].mxu0
    %v9143 = vadd.f32 0.0, %v9142
    %v9144 = vpop.f32.mrb[0].mxu0
    %9145 = vmatprep.mubr.f32.mxu0 0.0
    %9146 = vmatmul.mubr.f32.gmra.mrb[0].mxu0 %v5681
    %v9147 = vpop.f32.mrb[0].mxu0
    %v9148 = vadd.f32 0.0, %v9147
    %v9149 = vpop.f32.mrb[0].mxu0
    %9150 = vmatprep.mubr.f32.mxu0 0.0
    %9151 = vmatmul.mubr.f32.gmra.mrb[0].mxu0 %v5682
    %v9152 = vpop.f32.mrb[0].mxu0
    %v9153 = vadd.f32 0.0, %v9152
    %v9154 = vpop.f32.mrb[0].mxu0
    %9155 = vmatprep.mubr.f32.mxu0 0.0
    %9156 = vmatmul.mubr.f32.gmra.mrb[0].mxu0 %v5684
    %v9157 = vpop.f32.mrb[0].mxu0
    %v9158 = vadd.f32 0.0, %v9157
    %v9159 = vpop.f32.mrb[0].mxu0
    %9160 = vmatprep.mubr.f32.mxu0 0.0
    %9161 = vmatmul.mubr.f32.gmra.mrb[0].mxu0 %v5685
    %v9162 = vpop.f32.mrb[0].mxu0
    %v9163 = vadd.f32 0.0, %v9162
    %v9164 = vpop.f32.mrb[0].mxu0
    %9165 = vmatprep.mubr.f32.mxu0 0.0
    %9166 = vmatmul.mubr.f32.gmra.mrb[0].mxu0 %v5687
    %v9167 = vpop.f32.mrb[0].mxu0
    %v9168 = vadd.f32 0.0, %v9167
    %v9169 = vpop.f32.mrb[0].mxu0
    %9170 = vmatprep.mubr.f32.mxu0 0.0
    %9171 = vmatmul.mubr.f32.gmra.mrb[0].mxu0 %v5688
    %v9172 = vpop.f32.mrb[0].mxu0
    %v9173 = vadd.f32 0.0, %v9172
    %v9174 = vpop.f32.mrb[0].mxu0
    %9175 = vmatprep.mubr.f32.mxu0 0.0
    %9176 = vmatmul.mubr.f32.gmra.mrb[0].mxu0 %v5690
    %v9177 = vpop.f32.mrb[0].mxu0
    %v9178 = vadd.f32 0.0, %v9177
    %v9179 = vpop.f32.mrb[0].mxu0
    %9180 = vmatprep.mubr.f32.mxu0 0.0
    %9181 = vmatmul.mubr.f32.gmra.mrb[0].mxu0 %v5691
    %v9182 = vpop.f32.mrb[0].mxu0
    %v9183 = vadd.f32 0.0, %v9182
    %v9184 = vpop.f32.mrb[0].mxu0
    %9185 = vmatprep.mubr.f32.mxu0 0.0
    %9186 = vmatmul.mubr.f32.gmra.mrb[0].mxu0 %v5693
    %v9187 = vpop.f32.mrb[0].mxu0
    %v9188 = vadd.f32 0.0, %v9187
    %v9189 = vpop.f32.mrb[0].mxu0
    %9190 = vmatprep.mubr.f32.mxu0 0.0
    %9191 = vmatmul.mubr.f32.gmra.mrb[0].mxu0 %v5694
    %v9192 = vpop.f32.mrb[0].mxu0
    %v9193 = vadd.f32 0.0, %v9192
    %v9194 = vpop.f32.mrb[0].mxu0
    %9195 = vmatprep.mubr.f32.mxu0 0.0
    %9196 = vmatmul.mubr.f32.gmra.mrb[0].mxu0 %v5696
    %v9197 = vpop.f32.mrb[0].mxu0
    %v9198 = vadd.f32 0.0, %v9197
    %v9199 = vpop.f32.mrb[0].mxu0
    %9200 = vmatprep.mubr.f32.mxu0 0.0
    %9201 = vmatmul.mubr.f32.gmra.mrb[0].mxu0 %v5697
    %v9202 = vpop.f32.mrb[0].mxu0
    %v9203 = vadd.f32 0.0, %v9202
    %v9204 = vpop.f32.mrb[0].mxu0
    %9205 = vmatprep.mubr.f32.mxu0 0.0
    %9206 = vmatmul.mubr.f32.gmra.mrb[0].mxu0 %v5699
    %v9207 = vpop.f32.mrb[0].mxu0
    %v9208 = vadd.f32 0.0, %v9207
    %v9209 = vpop.f32.mrb[0].mxu0
    %9210 = vmatprep.mubr.f32.mxu0 0.0
    %9211 = vmatmul.mubr.f32.gmra.mrb[0].mxu0 %v5700
    %v9212 = vpop.f32.mrb[0].mxu0
    %v9213 = vadd.f32 0.0, %v9212
    %v9214 = vpop.f32.mrb[0].mxu0
    %9215 = vmatprep.mubr.f32.mxu0 0.0
    %9216 = vmatmul.mubr.f32.gmra.mrb[0].mxu0 %v5702
    %v9217 = vpop.f32.mrb[0].mxu0
    %v9218 = vadd.f32 0.0, %v9217
    %v9219 = vpop.f32.mrb[0].mxu0
    %9220 = vmatprep.mubr.f32.mxu0 0.0
    %9221 = vmatmul.mubr.f32.gmra.mrb[0].mxu0 %v5703
    %v9222 = vpop.f32.mrb[0].mxu0
    %v9223 = vadd.f32 0.0, %v9222
    %v9224 = vpop.f32.mrb[0].mxu0
    %9225 = vmatprep.mubr.f32.mxu0 0.0
    %9226 = vmatmul.mubr.f32.gmra.mrb[0].mxu0 %v5705
    %v9227 = vpop.f32.mrb[0].mxu0
    %v9228 = vadd.f32 0.0, %v9227
    %v9229 = vpop.f32.mrb[0].mxu0
    %9230 = vmatprep.mubr.f32.mxu0 0.0
    %9231 = vmatmul.mubr.f32.gmra.mrb[0].mxu0 %v5706
    %v9232 = vpop.f32.mrb[0].mxu0
    %v9233 = vadd.f32 0.0, %v9232
    %v9234 = vpop.f32.mrb[0].mxu0
    %9235 = vmatprep.mubr.f32.mxu0 0.0
    %9236 = vmatmul.mubr.f32.gmra.mrb[0].mxu0 %v5708
    %v9237 = vpop.f32.mrb[0].mxu0
    %v9238 = vadd.f32 0.0, %v9237
    %v9239 = vpop.f32.mrb[0].mxu0
    %9240 = vmatprep.mubr.f32.mxu0 0.0
    %9241 = vmatmul.mubr.f32.gmra.mrb[0].mxu0 %v5709
    %v9242 = vpop.f32.mrb[0].mxu0
    %v9243 = vadd.f32 0.0, %v9242
    %v9244 = vpop.f32.mrb[0].mxu0
    %9245 = vmatprep.mubr.f32.mxu0 0.0
    %9246 = vmatmul.mubr.f32.gmra.mrb[0].mxu0 %v5717
    %v9247 = vpop.f32.mrb[0].mxu0
    %v9248 = vadd.f32 0.0, %v9247
    %v9249 = vpop.f32.mrb[0].mxu0
    %9250 = vmatprep.mubr.f32.mxu0 0.0
    %9251 = vmatmul.mubr.f32.gmra.mrb[0].mxu0 %v5718
    %v9252 = vpop.f32.mrb[0].mxu0
    %v9253 = vadd.f32 0.0, %v9252
    %v9254 = vpop.f32.mrb[0].mxu0
    %9255 = vmatprep.mubr.f32.mxu0 0.0
    %9256 = vmatmul.mubr.f32.gmra.mrb[0].mxu0 %v5720
    %v9257 = vpop.f32.mrb[0].mxu0
    %v9258 = vadd.f32 0.0, %v9257
    %v9259 = vpop.f32.mrb[0].mxu0
    %9260 = vmatprep.mubr.f32.mxu0 0.0
    %9261 = vmatmul.mubr.f32.gmra.mrb[0].mxu0 %v5721
    %v9262 = vpop.f32.mrb[0].mxu0
    %v9263 = vadd.f32 0.0, %v9262
    %v9264 = vpop.f32.mrb[0].mxu0
    %9265 = vmatprep.mubr.f32.mxu0 0.0
    %9266 = vmatmul.mubr.f32.gmra.mrb[0].mxu0 %v5723
    %v9267 = vpop.f32.mrb[0].mxu0
    %v9268 = vadd.f32 0.0, %v9267
    %v9269 = vpop.f32.mrb[0].mxu0
    %9270 = vmatprep.mubr.f32.mxu0 0.0
    %9271 = vmatmul.mubr.f32.gmra.mrb[0].mxu0 %v5724
    %v9272 = vpop.f32.mrb[0].mxu0
    %v9273 = vadd.f32 0.0, %v9272
    %v9274 = vpop.f32.mrb[0].mxu0
    %9275 = vmatprep.mubr.f32.mxu0 0.0
    %9276 = vmatmul.mubr.f32.gmra.mrb[0].mxu0 %v5726
    %v9277 = vpop.f32.mrb[0].mxu0
    %v9278 = vadd.f32 0.0, %v9277
    %v9279 = vpop.f32.mrb[0].mxu0
    %9280 = vmatprep.mubr.f32.mxu0 0.0
    %9281 = vmatmul.mubr.f32.gmra.mrb[0].mxu0 %v5727
    %v9282 = vpop.f32.mrb[0].mxu0
    %v9283 = vadd.f32 0.0, %v9282
    %v9284 = vpop.f32.mrb[0].mxu0
    %9285 = vmatprep.mubr.f32.mxu0 0.0
    %9286 = vmatmul.mubr.f32.gmra.mrb[0].mxu0 %v5729
    %v9287 = vpop.f32.mrb[0].mxu0
    %v9288 = vadd.f32 0.0, %v9287
    %v9289 = vpop.f32.mrb[0].mxu0
    %9290 = vmatprep.mubr.f32.mxu0 0.0
    %9291 = vmatmul.mubr.f32.gmra.mrb[0].mxu0 %v5730
    %v9292 = vpop.f32.mrb[0].mxu0
    %v9293 = vadd.f32 0.0, %v9292
    %v9294 = vpop.f32.mrb[0].mxu0
    %9295 = vmatprep.mubr.f32.mxu0 0.0
    %9296 = vmatmul.mubr.f32.gmra.mrb[0].mxu0 %v5732
    %v9297 = vpop.f32.mrb[0].mxu0
    %v9298 = vadd.f32 0.0, %v9297
    %v9299 = vpop.f32.mrb[0].mxu0
    %9300 = vmatprep.mubr.f32.mxu0 0.0
    %9301 = vmatmul.mubr.f32.gmra.mrb[0].mxu0 %v5733
    %v9302 = vpop.f32.mrb[0].mxu0
    %v9303 = vadd.f32 0.0, %v9302
    %v9304 = vpop.f32.mrb[0].mxu0
    %9305 = vmatprep.mubr.f32.mxu0 0.0
    %9306 = vmatmul.mubr.f32.gmra.mrb[0].mxu0 %v5735
    %v9307 = vpop.f32.mrb[0].mxu0
    %v9308 = vadd.f32 0.0, %v9307
    %v9309 = vpop.f32.mrb[0].mxu0
    %9310 = vmatprep.mubr.f32.mxu0 0.0
    %9311 = vmatmul.mubr.f32.gmra.mrb[0].mxu0 %v5736
    %v9312 = vpop.f32.mrb[0].mxu0
    %v9313 = vadd.f32 0.0, %v9312
    %v9314 = vpop.f32.mrb[0].mxu0
    %9315 = vmatprep.mubr.f32.mxu0 0.0
    %9316 = vmatmul.mubr.f32.gmra.mrb[0].mxu0 %v5738
    %v9317 = vpop.f32.mrb[0].mxu0
    %v9318 = vadd.f32 0.0, %v9317
    %v9319 = vpop.f32.mrb[0].mxu0
    %9320 = vmatprep.mubr.f32.mxu0 0.0
    %9321 = vmatmul.mubr.f32.gmra.mrb[0].mxu0 %v5739
    %v9322 = vpop.f32.mrb[0].mxu0
    %v9323 = vadd.f32 0.0, %v9322
    %v9324 = vpop.f32.mrb[0].mxu0
    %9325 = vmatprep.mubr.f32.mxu0 0.0
    %9326 = vmatmul.mubr.f32.gmra.mrb[0].mxu0 %v5741
    %v9327 = vpop.f32.mrb[0].mxu0
    %v9328 = vadd.f32 0.0, %v9327
    %v9329 = vpop.f32.mrb[0].mxu0
    %9330 = vmatprep.mubr.f32.mxu0 0.0
    %9331 = vmatmul.mubr.f32.gmra.mrb[0].mxu0 %v5742
    %v9332 = vpop.f32.mrb[0].mxu0
    %v9333 = vadd.f32 0.0, %v9332
    %v9334 = vpop.f32.mrb[0].mxu0
    %9335 = vmatprep.mubr.f32.mxu0 0.0
    %9336 = vmatmul.mubr.f32.gmra.mrb[0].mxu0 %v5744
    %v9337 = vpop.f32.mrb[0].mxu0
    %v9338 = vadd.f32 0.0, %v9337
    %v9339 = vpop.f32.mrb[0].mxu0
    %9340 = vmatprep.mubr.f32.mxu0 0.0
    %9341 = vmatmul.mubr.f32.gmra.mrb[0].mxu0 %v5745
    %v9342 = vpop.f32.mrb[0].mxu0
    %v9343 = vadd.f32 0.0, %v9342
    %v9344 = vpop.f32.mrb[0].mxu0
    %9345 = vmatprep.mubr.f32.mxu0 0.0
    %9346 = vmatmul.mubr.f32.gmra.mrb[0].mxu0 %v5747
    %v9347 = vpop.f32.mrb[0].mxu0
    %v9348 = vadd.f32 0.0, %v9347
    %v9349 = vpop.f32.mrb[0].mxu0
    %9350 = vmatprep.mubr.f32.mxu0 0.0
    %9351 = vmatmul.mubr.f32.gmra.mrb[0].mxu0 %v5748
    %v9352 = vpop.f32.mrb[0].mxu0
    %v9353 = vadd.f32 0.0, %v9352
    %v9354 = vpop.f32.mrb[0].mxu0
    %9355 = vmatprep.mubr.f32.mxu0 0.0
    %9356 = vmatmul.mubr.f32.gmra.mrb[0].mxu0 %v5750
    %v9357 = vpop.f32.mrb[0].mxu0
    %v9358 = vadd.f32 0.0, %v9357
    %v9359 = vpop.f32.mrb[0].mxu0
    %9360 = vmatprep.mubr.f32.mxu0 0.0
    %9361 = vmatmul.mubr.f32.gmra.mrb[0].mxu0 %v5751
    %v9362 = vpop.f32.mrb[0].mxu0
    %v9363 = vadd.f32 0.0, %v9362
    %v9364 = vpop.f32.mrb[0].mxu0
    %9365 = vmatprep.mubr.f32.mxu0 0.0
    %9366 = vmatmul.mubr.f32.gmra.mrb[0].mxu0 %v5753
    %v9367 = vpop.f32.mrb[0].mxu0
    %v9368 = vadd.f32 0.0, %v9367
    %v9369 = vpop.f32.mrb[0].mxu0
    %9370 = vmatprep.mubr.f32.mxu0 0.0
    %9371 = vmatmul.mubr.f32.gmra.mrb[0].mxu0 %v5754
    %v9372 = vpop.f32.mrb[0].mxu0
    %v9373 = vadd.f32 0.0, %v9372
    %v9374 = vpop.f32.mrb[0].mxu0
    %9375 = vmatprep.mubr.f32.mxu0 0.0
    %9376 = vmatmul.mubr.f32.gmra.mrb[0].mxu0 %v5756
    %v9377 = vpop.f32.mrb[0].mxu0
    %v9378 = vadd.f32 0.0, %v9377
    %v9379 = vpop.f32.mrb[0].mxu0
    %9380 = vmatprep.mubr.f32.mxu0 0.0
    %9381 = vmatmul.mubr.f32.gmra.mrb[0].mxu0 %v5757
    %v9382 = vpop.f32.mrb[0].mxu0
    %v9383 = vadd.f32 0.0, %v9382
    %v9384 = vpop.f32.mrb[0].mxu0
    %9385 = vmatprep.mubr.f32.mxu0 0.0
    %9386 = vmatmul.mubr.f32.gmra.mrb[0].mxu0 %v5759
    %v9387 = vpop.f32.mrb[0].mxu0
    %v9388 = vadd.f32 0.0, %v9387
    %v9389 = vpop.f32.mrb[0].mxu0
    %9390 = vmatprep.mubr.f32.mxu0 0.0
    %9391 = vmatmul.mubr.f32.gmra.mrb[0].mxu0 %v5760
    %v9392 = vpop.f32.mrb[0].mxu0
    %v9393 = vadd.f32 0.0, %v9392
    %v9394 = vpop.f32.mrb[0].mxu0
    %9395 = vmatprep.mubr.f32.mxu0 0.0
    %9396 = vmatmul.mubr.f32.gmra.mrb[0].mxu0 %v5762
    %v9397 = vpop.f32.mrb[0].mxu0
    %v9398 = vadd.f32 0.0, %v9397
    %v9399 = vpop.f32.mrb[0].mxu0
    %9400 = vmatprep.mubr.f32.mxu0 0.0
    %9401 = vmatmul.mubr.f32.gmra.mrb[0].mxu0 %v5763
    %v9402 = vpop.f32.mrb[0].mxu0
    %v9403 = vadd.f32 0.0, %v9402
    %v9404 = vpop.f32.mrb[0].mxu0
    %9405 = vdwg.mxu0
    %v9406 = vadd.f32 %v8941, %v9088
    %v9407 = vadd.f32 %v8942, %v9093
    %v9408 = vadd.f32 %v8943, %v9098
    %v9409 = vadd.f32 %v8944, %v9103
    %v9410 = vadd.f32 %v8945, %v9108
    %v9411 = vadd.f32 %v8946, %v9113
    %v9412 = vadd.f32 %v8947, %v9118
    %v9413 = vadd.f32 %v8948, %v9123
    %v9414 = vadd.f32 %v8949, %v9128
    %v9415 = vadd.f32 %v8950, %v9133
    %v9416 = vadd.f32 %v8951, %v9138
    %v9417 = vadd.f32 %v8952, %v9143
    %v9418 = vadd.f32 %v8953, %v9148
    %v9419 = vadd.f32 %v8954, %v9153
    %v9420 = vadd.f32 %v8955, %v9158
    %v9421 = vadd.f32 %v8956, %v9163
    %v9422 = vadd.f32 %v8957, %v9168
    %v9423 = vadd.f32 %v8958, %v9173
    %v9424 = vadd.f32 %v8959, %v9178
    %v9425 = vadd.f32 %v8960, %v9183
    %v9426 = vadd.f32 %v8961, %v9188
    %v9427 = vadd.f32 %v8962, %v9193
    %v9428 = vadd.f32 %v8963, %v9198
    %v9429 = vadd.f32 %v8964, %v9203
    %v9430 = vadd.f32 %v8965, %v9208
    %v9431 = vadd.f32 %v8966, %v9213
    %v9432 = vadd.f32 %v8967, %v9218
    %v9433 = vadd.f32 %v8968, %v9223
    %v9434 = vadd.f32 %v8969, %v9228
    %v9435 = vadd.f32 %v8970, %v9233
    %v9436 = vadd.f32 %v8971, %v9238
    %v9437 = vadd.f32 %v8972, %v9243
    %v9438 = vadd.f32 %v8973, %v9248
    %v9439 = vadd.f32 %v8974, %v9253
    %v9440 = vadd.f32 %v8975, %v9258
    %v9441 = vadd.f32 %v8976, %v9263
    %v9442 = vadd.f32 %v8977, %v9268
    %v9443 = vadd.f32 %v8978, %v9273
    %v9444 = vadd.f32 %v8979, %v9278
    %v9445 = vadd.f32 %v8980, %v9283
    %v9446 = vadd.f32 %v8981, %v9288
    %v9447 = vadd.f32 %v8982, %v9293
    %v9448 = vadd.f32 %v8983, %v9298
    %v9449 = vadd.f32 %v8984, %v9303
    %v9450 = vadd.f32 %v8985, %v9308
    %v9451 = vadd.f32 %v8986, %v9313
    %v9452 = vadd.f32 %v8987, %v9318
    %v9453 = vadd.f32 %v8988, %v9323
    %v9454 = vadd.f32 %v8989, %v9328
    %v9455 = vadd.f32 %v8990, %v9333
    %v9456 = vadd.f32 %v8991, %v9338
    %v9457 = vadd.f32 %v8992, %v9343
    %v9458 = vadd.f32 %v8993, %v9348
    %v9459 = vadd.f32 %v8994, %v9353
    %v9460 = vadd.f32 %v8995, %v9358
    %v9461 = vadd.f32 %v8996, %v9363
    %v9462 = vadd.f32 %v8997, %v9368
    %v9463 = vadd.f32 %v8998, %v9373
    %v9464 = vadd.f32 %v8999, %v9378
    %v9465 = vadd.f32 %v9000, %v9383
    %v9466 = vadd.f32 %v9001, %v9388
    %v9467 = vadd.f32 %v9002, %v9393
    %v9468 = vadd.f32 %v9003, %v9398
    %v9469 = vadd.f32 %v9004, %v9403
    %v9476 = vrot.slane %v5708, 1
    %v9477 = vrot.slane %v5709, 1
    %v9478 = vsel %vm571, %v9476, %v9477
    %v9479 = vrot.slane %v5710, 1
    %v9480 = vsel %vm571, %v9477, %v9479
    %v9481 = vrot.slane %v5762, 1
    %v9482 = vrot.slane %v5763, 1
    %v9483 = vsel %vm571, %v9481, %v9482
    %v9484 = vrot.slane %v5764, 1
    %v9485 = vsel %vm571, %v9482, %v9484
    %v9490 = vld [vmem:[#allocation12 + $0x380] sm:$0xff]
    %v9491 = vld [vmem:[#allocation12 + $0x388] sm:$0xff]
    %v9492 = vld [vmem:[#allocation12 + $0x390] sm:$0xff]
    %v9493 = vld [vmem:[#allocation12 + $0x398] sm:$0xff]
    %v9494 = vld [vmem:[#allocation12 + $0x3a0] sm:$0xff]
    %v9495 = vld [vmem:[#allocation12 + $0x3a8] sm:$0xff]
    %v9496 = vld [vmem:[#allocation12 + $0x3b0] sm:$0xff]
    %v9497 = vld [vmem:[#allocation12 + $0x3b8] sm:$0xff]
    %v9498 = vld [vmem:[#allocation12 + $0x3c0] sm:$0xff]
    %v9499 = vld [vmem:[#allocation12 + $0x3c8] sm:$0xff]
    %v9500 = vld [vmem:[#allocation12 + $0x3d0] sm:$0xff]
    %v9501 = vld [vmem:[#allocation12 + $0x3d8] sm:$0xff]
    %v9502 = vld [vmem:[#allocation12 + $0x3e0] sm:$0xff]
    %v9503 = vld [vmem:[#allocation12 + $0x3e8] sm:$0xff]
    %v9504 = vld [vmem:[#allocation12 + $0x3f0] sm:$0xff]
    %v9505 = vld [vmem:[#allocation12 + $0x3f8] sm:$0xff]
    %9506 = vmatprep.subr.mxu0 0.0
    %9507 = vmatpush1.msra.mxu0 %v9490
    %9508 = vmatprep.subr.mxu0 0.0
    %9509 = vmatpush1.msra.mxu0 %v9491
    %9510 = vmatprep.subr.mxu0 0.0
    %9511 = vmatpush1.msra.mxu0 %v9492
    %9512 = vmatprep.subr.mxu0 0.0
    %9513 = vmatpush1.msra.mxu0 %v9493
    %9514 = vmatprep.subr.mxu0 0.0
    %9515 = vmatpush1.msra.mxu0 %v9494
    %9516 = vmatprep.subr.mxu0 0.0
    %9517 = vmatpush1.msra.mxu0 %v9495
    %9518 = vmatprep.subr.mxu0 0.0
    %9519 = vmatpush1.msra.mxu0 %v9496
    %9520 = vmatprep.subr.mxu0 0.0
    %9521 = vmatpush1.msra.mxu0 %v9497
    %9522 = vmatprep.subr.mxu0 0.0
    %9523 = vmatpush1.msra.mxu0 %v9498
    %9524 = vmatprep.subr.mxu0 0.0
    %9525 = vmatpush1.msra.mxu0 %v9499
    %9526 = vmatprep.subr.mxu0 0.0
    %9527 = vmatpush1.msra.mxu0 %v9500
    %9528 = vmatprep.subr.mxu0 0.0
    %9529 = vmatpush1.msra.mxu0 %v9501
    %9530 = vmatprep.subr.mxu0 0.0
    %9531 = vmatpush1.msra.mxu0 %v9502
    %9532 = vmatprep.subr.mxu0 0.0
    %9533 = vmatpush1.msra.mxu0 %v9503
    %9534 = vmatprep.subr.mxu0 0.0
    %9535 = vmatpush1.msra.mxu0 %v9504
    %9536 = vmatprep.subr.mxu0 0.0
    %9537 = vmatpush1.msra.mxu0 %v9505
    %9538 = vmatprep.subr.mxu0 0.0
    %9539 = vmatpush1.msra.mxu0 0.0
    %9540 = vmatprep.subr.mxu0 0.0
    %9541 = vmatpush1.msra.mxu0 0.0
    %9542 = vmatprep.subr.mxu0 0.0
    %9543 = vmatpush1.msra.mxu0 0.0
    %9544 = vmatprep.subr.mxu0 0.0
    %9545 = vmatpush1.msra.mxu0 0.0
    %9546 = vmatprep.subr.mxu0 0.0
    %9547 = vmatpush1.msra.mxu0 0.0
    %9548 = vmatprep.subr.mxu0 0.0
    %9549 = vmatpush1.msra.mxu0 0.0
    %9550 = vmatprep.subr.mxu0 0.0
    %9551 = vmatpush1.msra.mxu0 0.0
    %9552 = vmatprep.subr.mxu0 0.0
    %9553 = vmatpush1.msra.mxu0 0.0
    %9554 = vmatprep.subr.mxu0 0.0
    %9555 = vmatpush1.msra.mxu0 0.0
    %9556 = vmatprep.subr.mxu0 0.0
    %9557 = vmatpush1.msra.mxu0 0.0
    %9558 = vmatprep.subr.mxu0 0.0
    %9559 = vmatpush1.msra.mxu0 0.0
    %9560 = vmatprep.subr.mxu0 0.0
    %9561 = vmatpush1.msra.mxu0 0.0
    %9562 = vmatprep.subr.mxu0 0.0
    %9563 = vmatpush1.msra.mxu0 0.0
    %9564 = vmatprep.subr.mxu0 0.0
    %9565 = vmatpush1.msra.mxu0 0.0
    %9566 = vmatprep.subr.mxu0 0.0
    %9567 = vmatpush1.msra.mxu0 0.0
    %9568 = vmatprep.subr.mxu0 0.0
    %9569 = vmatpush1.msra.mxu0 0.0
    %9570 = vmatprep.mubr.f32.mxu0 0.0
    %9571 = vmatmul.mubr.f32.gmra.mrb[0].mxu0 %v5889
    %v9572 = vpop.f32.mrb[0].mxu0
    %v9573 = vadd.f32 0.0, %v9572
    %v9574 = vpop.f32.mrb[0].mxu0
    %9575 = vmatprep.mubr.f32.mxu0 0.0
    %9576 = vmatmul.mubr.f32.gmra.mrb[0].mxu0 %v5891
    %v9577 = vpop.f32.mrb[0].mxu0
    %v9578 = vadd.f32 0.0, %v9577
    %v9579 = vpop.f32.mrb[0].mxu0
    %9580 = vmatprep.mubr.f32.mxu0 0.0
    %9581 = vmatmul.mubr.f32.gmra.mrb[0].mxu0 %v5894
    %v9582 = vpop.f32.mrb[0].mxu0
    %v9583 = vadd.f32 0.0, %v9582
    %v9584 = vpop.f32.mrb[0].mxu0
    %9585 = vmatprep.mubr.f32.mxu0 0.0
    %9586 = vmatmul.mubr.f32.gmra.mrb[0].mxu0 %v5896
    %v9587 = vpop.f32.mrb[0].mxu0
    %v9588 = vadd.f32 0.0, %v9587
    %v9589 = vpop.f32.mrb[0].mxu0
    %9590 = vmatprep.mubr.f32.mxu0 0.0
    %9591 = vmatmul.mubr.f32.gmra.mrb[0].mxu0 %v5899
    %v9592 = vpop.f32.mrb[0].mxu0
    %v9593 = vadd.f32 0.0, %v9592
    %v9594 = vpop.f32.mrb[0].mxu0
    %9595 = vmatprep.mubr.f32.mxu0 0.0
    %9596 = vmatmul.mubr.f32.gmra.mrb[0].mxu0 %v5901
    %v9597 = vpop.f32.mrb[0].mxu0
    %v9598 = vadd.f32 0.0, %v9597
    %v9599 = vpop.f32.mrb[0].mxu0
    %9600 = vmatprep.mubr.f32.mxu0 0.0
    %9601 = vmatmul.mubr.f32.gmra.mrb[0].mxu0 %v5904
    %v9602 = vpop.f32.mrb[0].mxu0
    %v9603 = vadd.f32 0.0, %v9602
    %v9604 = vpop.f32.mrb[0].mxu0
    %9605 = vmatprep.mubr.f32.mxu0 0.0
    %9606 = vmatmul.mubr.f32.gmra.mrb[0].mxu0 %v5906
    %v9607 = vpop.f32.mrb[0].mxu0
    %v9608 = vadd.f32 0.0, %v9607
    %v9609 = vpop.f32.mrb[0].mxu0
    %9610 = vmatprep.mubr.f32.mxu0 0.0
    %9611 = vmatmul.mubr.f32.gmra.mrb[0].mxu0 %v5909
    %v9612 = vpop.f32.mrb[0].mxu0
    %v9613 = vadd.f32 0.0, %v9612
    %v9614 = vpop.f32.mrb[0].mxu0
    %9615 = vmatprep.mubr.f32.mxu0 0.0
    %9616 = vmatmul.mubr.f32.gmra.mrb[0].mxu0 %v5911
    %v9617 = vpop.f32.mrb[0].mxu0
    %v9618 = vadd.f32 0.0, %v9617
    %v9619 = vpop.f32.mrb[0].mxu0
    %9620 = vmatprep.mubr.f32.mxu0 0.0
    %9621 = vmatmul.mubr.f32.gmra.mrb[0].mxu0 %v5914
    %v9622 = vpop.f32.mrb[0].mxu0
    %v9623 = vadd.f32 0.0, %v9622
    %v9624 = vpop.f32.mrb[0].mxu0
    %9625 = vmatprep.mubr.f32.mxu0 0.0
    %9626 = vmatmul.mubr.f32.gmra.mrb[0].mxu0 %v5916
    %v9627 = vpop.f32.mrb[0].mxu0
    %v9628 = vadd.f32 0.0, %v9627
    %v9629 = vpop.f32.mrb[0].mxu0
    %9630 = vmatprep.mubr.f32.mxu0 0.0
    %9631 = vmatmul.mubr.f32.gmra.mrb[0].mxu0 %v5919
    %v9632 = vpop.f32.mrb[0].mxu0
    %v9633 = vadd.f32 0.0, %v9632
    %v9634 = vpop.f32.mrb[0].mxu0
    %9635 = vmatprep.mubr.f32.mxu0 0.0
    %9636 = vmatmul.mubr.f32.gmra.mrb[0].mxu0 %v5921
    %v9637 = vpop.f32.mrb[0].mxu0
    %v9638 = vadd.f32 0.0, %v9637
    %v9639 = vpop.f32.mrb[0].mxu0
    %9640 = vmatprep.mubr.f32.mxu0 0.0
    %9641 = vmatmul.mubr.f32.gmra.mrb[0].mxu0 %v5924
    %v9642 = vpop.f32.mrb[0].mxu0
    %v9643 = vadd.f32 0.0, %v9642
    %v9644 = vpop.f32.mrb[0].mxu0
    %9645 = vmatprep.mubr.f32.mxu0 0.0
    %9646 = vmatmul.mubr.f32.gmra.mrb[0].mxu0 %v5926
    %v9647 = vpop.f32.mrb[0].mxu0
    %v9648 = vadd.f32 0.0, %v9647
    %v9649 = vpop.f32.mrb[0].mxu0
    %9650 = vmatprep.mubr.f32.mxu0 0.0
    %9651 = vmatmul.mubr.f32.gmra.mrb[0].mxu0 %v5929
    %v9652 = vpop.f32.mrb[0].mxu0
    %v9653 = vadd.f32 0.0, %v9652
    %v9654 = vpop.f32.mrb[0].mxu0
    %9655 = vmatprep.mubr.f32.mxu0 0.0
    %9656 = vmatmul.mubr.f32.gmra.mrb[0].mxu0 %v5931
    %v9657 = vpop.f32.mrb[0].mxu0
    %v9658 = vadd.f32 0.0, %v9657
    %v9659 = vpop.f32.mrb[0].mxu0
    %9660 = vmatprep.mubr.f32.mxu0 0.0
    %9661 = vmatmul.mubr.f32.gmra.mrb[0].mxu0 %v5934
    %v9662 = vpop.f32.mrb[0].mxu0
    %v9663 = vadd.f32 0.0, %v9662
    %v9664 = vpop.f32.mrb[0].mxu0
    %9665 = vmatprep.mubr.f32.mxu0 0.0
    %9666 = vmatmul.mubr.f32.gmra.mrb[0].mxu0 %v5936
    %v9667 = vpop.f32.mrb[0].mxu0
    %v9668 = vadd.f32 0.0, %v9667
    %v9669 = vpop.f32.mrb[0].mxu0
    %9670 = vmatprep.mubr.f32.mxu0 0.0
    %9671 = vmatmul.mubr.f32.gmra.mrb[0].mxu0 %v5939
    %v9672 = vpop.f32.mrb[0].mxu0
    %v9673 = vadd.f32 0.0, %v9672
    %v9674 = vpop.f32.mrb[0].mxu0
    %9675 = vmatprep.mubr.f32.mxu0 0.0
    %9676 = vmatmul.mubr.f32.gmra.mrb[0].mxu0 %v5941
    %v9677 = vpop.f32.mrb[0].mxu0
    %v9678 = vadd.f32 0.0, %v9677
    %v9679 = vpop.f32.mrb[0].mxu0
    %9680 = vmatprep.mubr.f32.mxu0 0.0
    %9681 = vmatmul.mubr.f32.gmra.mrb[0].mxu0 %v5944
    %v9682 = vpop.f32.mrb[0].mxu0
    %v9683 = vadd.f32 0.0, %v9682
    %v9684 = vpop.f32.mrb[0].mxu0
    %9685 = vmatprep.mubr.f32.mxu0 0.0
    %9686 = vmatmul.mubr.f32.gmra.mrb[0].mxu0 %v5946
    %v9687 = vpop.f32.mrb[0].mxu0
    %v9688 = vadd.f32 0.0, %v9687
    %v9689 = vpop.f32.mrb[0].mxu0
    %9690 = vmatprep.mubr.f32.mxu0 0.0
    %9691 = vmatmul.mubr.f32.gmra.mrb[0].mxu0 %v5949
    %v9692 = vpop.f32.mrb[0].mxu0
    %v9693 = vadd.f32 0.0, %v9692
    %v9694 = vpop.f32.mrb[0].mxu0
    %9695 = vmatprep.mubr.f32.mxu0 0.0
    %9696 = vmatmul.mubr.f32.gmra.mrb[0].mxu0 %v5951
    %v9697 = vpop.f32.mrb[0].mxu0
    %v9698 = vadd.f32 0.0, %v9697
    %v9699 = vpop.f32.mrb[0].mxu0
    %9700 = vmatprep.mubr.f32.mxu0 0.0
    %9701 = vmatmul.mubr.f32.gmra.mrb[0].mxu0 %v5954
    %v9702 = vpop.f32.mrb[0].mxu0
    %v9703 = vadd.f32 0.0, %v9702
    %v9704 = vpop.f32.mrb[0].mxu0
    %9705 = vmatprep.mubr.f32.mxu0 0.0
    %9706 = vmatmul.mubr.f32.gmra.mrb[0].mxu0 %v5956
    %v9707 = vpop.f32.mrb[0].mxu0
    %v9708 = vadd.f32 0.0, %v9707
    %v9709 = vpop.f32.mrb[0].mxu0
    %9710 = vmatprep.mubr.f32.mxu0 0.0
    %9711 = vmatmul.mubr.f32.gmra.mrb[0].mxu0 %v8049
    %v9712 = vpop.f32.mrb[0].mxu0
    %v9713 = vadd.f32 0.0, %v9712
    %v9714 = vpop.f32.mrb[0].mxu0
    %9715 = vmatprep.mubr.f32.mxu0 0.0
    %9716 = vmatmul.mubr.f32.gmra.mrb[0].mxu0 %v8051
    %v9717 = vpop.f32.mrb[0].mxu0
    %v9718 = vadd.f32 0.0, %v9717
    %v9719 = vpop.f32.mrb[0].mxu0
    %9720 = vmatprep.mubr.f32.mxu0 0.0
    %9721 = vmatmul.mubr.f32.gmra.mrb[0].mxu0 %v9478
    %v9722 = vpop.f32.mrb[0].mxu0
    %v9723 = vadd.f32 0.0, %v9722
    %v9724 = vpop.f32.mrb[0].mxu0
    %9725 = vmatprep.mubr.f32.mxu0 0.0
    %9726 = vmatmul.mubr.f32.gmra.mrb[0].mxu0 %v9480
    %v9727 = vpop.f32.mrb[0].mxu0
    %v9728 = vadd.f32 0.0, %v9727
    %v9729 = vpop.f32.mrb[0].mxu0
    %9730 = vmatprep.mubr.f32.mxu0 0.0
    %9731 = vmatmul.mubr.f32.gmra.mrb[0].mxu0 %v5969
    %v9732 = vpop.f32.mrb[0].mxu0
    %v9733 = vadd.f32 0.0, %v9732
    %v9734 = vpop.f32.mrb[0].mxu0
    %9735 = vmatprep.mubr.f32.mxu0 0.0
    %9736 = vmatmul.mubr.f32.gmra.mrb[0].mxu0 %v5971
    %v9737 = vpop.f32.mrb[0].mxu0
    %v9738 = vadd.f32 0.0, %v9737
    %v9739 = vpop.f32.mrb[0].mxu0
    %9740 = vmatprep.mubr.f32.mxu0 0.0
    %9741 = vmatmul.mubr.f32.gmra.mrb[0].mxu0 %v5974
    %v9742 = vpop.f32.mrb[0].mxu0
    %v9743 = vadd.f32 0.0, %v9742
    %v9744 = vpop.f32.mrb[0].mxu0
    %9745 = vmatprep.mubr.f32.mxu0 0.0
    %9746 = vmatmul.mubr.f32.gmra.mrb[0].mxu0 %v5976
    %v9747 = vpop.f32.mrb[0].mxu0
    %v9748 = vadd.f32 0.0, %v9747
    %v9749 = vpop.f32.mrb[0].mxu0
    %9750 = vmatprep.mubr.f32.mxu0 0.0
    %9751 = vmatmul.mubr.f32.gmra.mrb[0].mxu0 %v5979
    %v9752 = vpop.f32.mrb[0].mxu0
    %v9753 = vadd.f32 0.0, %v9752
    %v9754 = vpop.f32.mrb[0].mxu0
    %9755 = vmatprep.mubr.f32.mxu0 0.0
    %9756 = vmatmul.mubr.f32.gmra.mrb[0].mxu0 %v5981
    %v9757 = vpop.f32.mrb[0].mxu0
    %v9758 = vadd.f32 0.0, %v9757
    %v9759 = vpop.f32.mrb[0].mxu0
    %9760 = vmatprep.mubr.f32.mxu0 0.0
    %9761 = vmatmul.mubr.f32.gmra.mrb[0].mxu0 %v5984
    %v9762 = vpop.f32.mrb[0].mxu0
    %v9763 = vadd.f32 0.0, %v9762
    %v9764 = vpop.f32.mrb[0].mxu0
    %9765 = vmatprep.mubr.f32.mxu0 0.0
    %9766 = vmatmul.mubr.f32.gmra.mrb[0].mxu0 %v5986
    %v9767 = vpop.f32.mrb[0].mxu0
    %v9768 = vadd.f32 0.0, %v9767
    %v9769 = vpop.f32.mrb[0].mxu0
    %9770 = vmatprep.mubr.f32.mxu0 0.0
    %9771 = vmatmul.mubr.f32.gmra.mrb[0].mxu0 %v5989
    %v9772 = vpop.f32.mrb[0].mxu0
    %v9773 = vadd.f32 0.0, %v9772
    %v9774 = vpop.f32.mrb[0].mxu0
    %9775 = vmatprep.mubr.f32.mxu0 0.0
    %9776 = vmatmul.mubr.f32.gmra.mrb[0].mxu0 %v5991
    %v9777 = vpop.f32.mrb[0].mxu0
    %v9778 = vadd.f32 0.0, %v9777
    %v9779 = vpop.f32.mrb[0].mxu0
    %9780 = vmatprep.mubr.f32.mxu0 0.0
    %9781 = vmatmul.mubr.f32.gmra.mrb[0].mxu0 %v5994
    %v9782 = vpop.f32.mrb[0].mxu0
    %v9783 = vadd.f32 0.0, %v9782
    %v9784 = vpop.f32.mrb[0].mxu0
    %9785 = vmatprep.mubr.f32.mxu0 0.0
    %9786 = vmatmul.mubr.f32.gmra.mrb[0].mxu0 %v5996
    %v9787 = vpop.f32.mrb[0].mxu0
    %v9788 = vadd.f32 0.0, %v9787
    %v9789 = vpop.f32.mrb[0].mxu0
    %9790 = vmatprep.mubr.f32.mxu0 0.0
    %9791 = vmatmul.mubr.f32.gmra.mrb[0].mxu0 %v5999
    %v9792 = vpop.f32.mrb[0].mxu0
    %v9793 = vadd.f32 0.0, %v9792
    %v9794 = vpop.f32.mrb[0].mxu0
    %9795 = vmatprep.mubr.f32.mxu0 0.0
    %9796 = vmatmul.mubr.f32.gmra.mrb[0].mxu0 %v6001
    %v9797 = vpop.f32.mrb[0].mxu0
    %v9798 = vadd.f32 0.0, %v9797
    %v9799 = vpop.f32.mrb[0].mxu0
    %9800 = vmatprep.mubr.f32.mxu0 0.0
    %9801 = vmatmul.mubr.f32.gmra.mrb[0].mxu0 %v6004
    %v9802 = vpop.f32.mrb[0].mxu0
    %v9803 = vadd.f32 0.0, %v9802
    %v9804 = vpop.f32.mrb[0].mxu0
    %9805 = vmatprep.mubr.f32.mxu0 0.0
    %9806 = vmatmul.mubr.f32.gmra.mrb[0].mxu0 %v6006
    %v9807 = vpop.f32.mrb[0].mxu0
    %v9808 = vadd.f32 0.0, %v9807
    %v9809 = vpop.f32.mrb[0].mxu0
    %9810 = vmatprep.mubr.f32.mxu0 0.0
    %9811 = vmatmul.mubr.f32.gmra.mrb[0].mxu0 %v6009
    %v9812 = vpop.f32.mrb[0].mxu0
    %v9813 = vadd.f32 0.0, %v9812
    %v9814 = vpop.f32.mrb[0].mxu0
    %9815 = vmatprep.mubr.f32.mxu0 0.0
    %9816 = vmatmul.mubr.f32.gmra.mrb[0].mxu0 %v6011
    %v9817 = vpop.f32.mrb[0].mxu0
    %v9818 = vadd.f32 0.0, %v9817
    %v9819 = vpop.f32.mrb[0].mxu0
    %9820 = vmatprep.mubr.f32.mxu0 0.0
    %9821 = vmatmul.mubr.f32.gmra.mrb[0].mxu0 %v6014
    %v9822 = vpop.f32.mrb[0].mxu0
    %v9823 = vadd.f32 0.0, %v9822
    %v9824 = vpop.f32.mrb[0].mxu0
    %9825 = vmatprep.mubr.f32.mxu0 0.0
    %9826 = vmatmul.mubr.f32.gmra.mrb[0].mxu0 %v6016
    %v9827 = vpop.f32.mrb[0].mxu0
    %v9828 = vadd.f32 0.0, %v9827
    %v9829 = vpop.f32.mrb[0].mxu0
    %9830 = vmatprep.mubr.f32.mxu0 0.0
    %9831 = vmatmul.mubr.f32.gmra.mrb[0].mxu0 %v6019
    %v9832 = vpop.f32.mrb[0].mxu0
    %v9833 = vadd.f32 0.0, %v9832
    %v9834 = vpop.f32.mrb[0].mxu0
    %9835 = vmatprep.mubr.f32.mxu0 0.0
    %9836 = vmatmul.mubr.f32.gmra.mrb[0].mxu0 %v6021
    %v9837 = vpop.f32.mrb[0].mxu0
    %v9838 = vadd.f32 0.0, %v9837
    %v9839 = vpop.f32.mrb[0].mxu0
    %9840 = vmatprep.mubr.f32.mxu0 0.0
    %9841 = vmatmul.mubr.f32.gmra.mrb[0].mxu0 %v6024
    %v9842 = vpop.f32.mrb[0].mxu0
    %v9843 = vadd.f32 0.0, %v9842
    %v9844 = vpop.f32.mrb[0].mxu0
    %9845 = vmatprep.mubr.f32.mxu0 0.0
    %9846 = vmatmul.mubr.f32.gmra.mrb[0].mxu0 %v6026
    %v9847 = vpop.f32.mrb[0].mxu0
    %v9848 = vadd.f32 0.0, %v9847
    %v9849 = vpop.f32.mrb[0].mxu0
    %9850 = vmatprep.mubr.f32.mxu0 0.0
    %9851 = vmatmul.mubr.f32.gmra.mrb[0].mxu0 %v6029
    %v9852 = vpop.f32.mrb[0].mxu0
    %v9853 = vadd.f32 0.0, %v9852
    %v9854 = vpop.f32.mrb[0].mxu0
    %9855 = vmatprep.mubr.f32.mxu0 0.0
    %9856 = vmatmul.mubr.f32.gmra.mrb[0].mxu0 %v6031
    %v9857 = vpop.f32.mrb[0].mxu0
    %v9858 = vadd.f32 0.0, %v9857
    %v9859 = vpop.f32.mrb[0].mxu0
    %9860 = vmatprep.mubr.f32.mxu0 0.0
    %9861 = vmatmul.mubr.f32.gmra.mrb[0].mxu0 %v6034
    %v9862 = vpop.f32.mrb[0].mxu0
    %v9863 = vadd.f32 0.0, %v9862
    %v9864 = vpop.f32.mrb[0].mxu0
    %9865 = vmatprep.mubr.f32.mxu0 0.0
    %9866 = vmatmul.mubr.f32.gmra.mrb[0].mxu0 %v6036
    %v9867 = vpop.f32.mrb[0].mxu0
    %v9868 = vadd.f32 0.0, %v9867
    %v9869 = vpop.f32.mrb[0].mxu0
    %9870 = vmatprep.mubr.f32.mxu0 0.0
    %9871 = vmatmul.mubr.f32.gmra.mrb[0].mxu0 %v8054
    %v9872 = vpop.f32.mrb[0].mxu0
    %v9873 = vadd.f32 0.0, %v9872
    %v9874 = vpop.f32.mrb[0].mxu0
    %9875 = vmatprep.mubr.f32.mxu0 0.0
    %9876 = vmatmul.mubr.f32.gmra.mrb[0].mxu0 %v8056
    %v9877 = vpop.f32.mrb[0].mxu0
    %v9878 = vadd.f32 0.0, %v9877
    %v9879 = vpop.f32.mrb[0].mxu0
    %9880 = vmatprep.mubr.f32.mxu0 0.0
    %9881 = vmatmul.mubr.f32.gmra.mrb[0].mxu0 %v9483
    %v9882 = vpop.f32.mrb[0].mxu0
    %v9883 = vadd.f32 0.0, %v9882
    %v9884 = vpop.f32.mrb[0].mxu0
    %9885 = vmatprep.mubr.f32.mxu0 0.0
    %9886 = vmatmul.mubr.f32.gmra.mrb[0].mxu0 %v9485
    %v9887 = vpop.f32.mrb[0].mxu0
    %v9888 = vadd.f32 0.0, %v9887
    %v9889 = vpop.f32.mrb[0].mxu0
    %9890 = vdwg.mxu0
    %v9891 = vadd.f32 %v9406, %v9573
    %v9892 = vadd.f32 %v9407, %v9578
    %v9893 = vadd.f32 %v9408, %v9583
    %v9894 = vadd.f32 %v9409, %v9588
    %v9895 = vadd.f32 %v9410, %v9593
    %v9896 = vadd.f32 %v9411, %v9598
    %v9897 = vadd.f32 %v9412, %v9603
    %v9898 = vadd.f32 %v9413, %v9608
    %v9899 = vadd.f32 %v9414, %v9613
    %v9900 = vadd.f32 %v9415, %v9618
    %v9901 = vadd.f32 %v9416, %v9623
    %v9902 = vadd.f32 %v9417, %v9628
    %v9903 = vadd.f32 %v9418, %v9633
    %v9904 = vadd.f32 %v9419, %v9638
    %v9905 = vadd.f32 %v9420, %v9643
    %v9906 = vadd.f32 %v9421, %v9648
    %v9907 = vadd.f32 %v9422, %v9653
    %v9908 = vadd.f32 %v9423, %v9658
    %v9909 = vadd.f32 %v9424, %v9663
    %v9910 = vadd.f32 %v9425, %v9668
    %v9911 = vadd.f32 %v9426, %v9673
    %v9912 = vadd.f32 %v9427, %v9678
    %v9913 = vadd.f32 %v9428, %v9683
    %v9914 = vadd.f32 %v9429, %v9688
    %v9915 = vadd.f32 %v9430, %v9693
    %v9916 = vadd.f32 %v9431, %v9698
    %v9917 = vadd.f32 %v9432, %v9703
    %v9918 = vadd.f32 %v9433, %v9708
    %v9919 = vadd.f32 %v9434, %v9713
    %v9920 = vadd.f32 %v9435, %v9718
    %v9921 = vadd.f32 %v9436, %v9723
    %v9922 = vadd.f32 %v9437, %v9728
    %v9923 = vadd.f32 %v9438, %v9733
    %v9924 = vadd.f32 %v9439, %v9738
    %v9925 = vadd.f32 %v9440, %v9743
    %v9926 = vadd.f32 %v9441, %v9748
    %v9927 = vadd.f32 %v9442, %v9753
    %v9928 = vadd.f32 %v9443, %v9758
    %v9929 = vadd.f32 %v9444, %v9763
    %v9930 = vadd.f32 %v9445, %v9768
    %v9931 = vadd.f32 %v9446, %v9773
    %v9932 = vadd.f32 %v9447, %v9778
    %v9933 = vadd.f32 %v9448, %v9783
    %v9934 = vadd.f32 %v9449, %v9788
    %v9935 = vadd.f32 %v9450, %v9793
    %v9936 = vadd.f32 %v9451, %v9798
    %v9937 = vadd.f32 %v9452, %v9803
    %v9938 = vadd.f32 %v9453, %v9808
    %v9939 = vadd.f32 %v9454, %v9813
    %v9940 = vadd.f32 %v9455, %v9818
    %v9941 = vadd.f32 %v9456, %v9823
    %v9942 = vadd.f32 %v9457, %v9828
    %v9943 = vadd.f32 %v9458, %v9833
    %v9944 = vadd.f32 %v9459, %v9838
    %v9945 = vadd.f32 %v9460, %v9843
    %v9946 = vadd.f32 %v9461, %v9848
    %v9947 = vadd.f32 %v9462, %v9853
    %v9948 = vadd.f32 %v9463, %v9858
    %v9949 = vadd.f32 %v9464, %v9863
    %v9950 = vadd.f32 %v9465, %v9868
    %v9951 = vadd.f32 %v9466, %v9873
    %v9952 = vadd.f32 %v9467, %v9878
    %v9953 = vadd.f32 %v9468, %v9883
    %v9954 = vadd.f32 %v9469, %v9888
    %v9955 = vrot.slane %v5708, 2
    %v9956 = vrot.slane %v5709, 2
    %v9957 = vsel %vm1582, %v9955, %v9956
    %v9958 = vrot.slane %v5710, 2
    %v9959 = vsel %vm1582, %v9956, %v9958
    %v9960 = vrot.slane %v5762, 2
    %v9961 = vrot.slane %v5763, 2
    %v9962 = vsel %vm1582, %v9960, %v9961
    %v9963 = vrot.slane %v5764, 2
    %v9964 = vsel %vm1582, %v9961, %v9963
    %v9969 = vld [vmem:[#allocation12 + $0x400] sm:$0xff]
    %v9970 = vld [vmem:[#allocation12 + $0x408] sm:$0xff]
    %v9971 = vld [vmem:[#allocation12 + $0x410] sm:$0xff]
    %v9972 = vld [vmem:[#allocation12 + $0x418] sm:$0xff]
    %v9973 = vld [vmem:[#allocation12 + $0x420] sm:$0xff]
    %v9974 = vld [vmem:[#allocation12 + $0x428] sm:$0xff]
    %v9975 = vld [vmem:[#allocation12 + $0x430] sm:$0xff]
    %v9976 = vld [vmem:[#allocation12 + $0x438] sm:$0xff]
    %v9977 = vld [vmem:[#allocation12 + $0x440] sm:$0xff]
    %v9978 = vld [vmem:[#allocation12 + $0x448] sm:$0xff]
    %v9979 = vld [vmem:[#allocation12 + $0x450] sm:$0xff]
    %v9980 = vld [vmem:[#allocation12 + $0x458] sm:$0xff]
    %v9981 = vld [vmem:[#allocation12 + $0x460] sm:$0xff]
    %v9982 = vld [vmem:[#allocation12 + $0x468] sm:$0xff]
    %v9983 = vld [vmem:[#allocation12 + $0x470] sm:$0xff]
    %v9984 = vld [vmem:[#allocation12 + $0x478] sm:$0xff]
    %9985 = vmatprep.subr.mxu0 0.0
    %9986 = vmatpush1.msra.mxu0 %v9969
    %9987 = vmatprep.subr.mxu0 0.0
    %9988 = vmatpush1.msra.mxu0 %v9970
    %9989 = vmatprep.subr.mxu0 0.0
    %9990 = vmatpush1.msra.mxu0 %v9971
    %9991 = vmatprep.subr.mxu0 0.0
    %9992 = vmatpush1.msra.mxu0 %v9972
    %9993 = vmatprep.subr.mxu0 0.0
    %9994 = vmatpush1.msra.mxu0 %v9973
    %9995 = vmatprep.subr.mxu0 0.0
    %9996 = vmatpush1.msra.mxu0 %v9974
    %9997 = vmatprep.subr.mxu0 0.0
    %9998 = vmatpush1.msra.mxu0 %v9975
    %9999 = vmatprep.subr.mxu0 0.0
    %10000 = vmatpush1.msra.mxu0 %v9976
    %10001 = vmatprep.subr.mxu0 0.0
    %10002 = vmatpush1.msra.mxu0 %v9977
    %10003 = vmatprep.subr.mxu0 0.0
    %10004 = vmatpush1.msra.mxu0 %v9978
    %10005 = vmatprep.subr.mxu0 0.0
    %10006 = vmatpush1.msra.mxu0 %v9979
    %10007 = vmatprep.subr.mxu0 0.0
    %10008 = vmatpush1.msra.mxu0 %v9980
    %10009 = vmatprep.subr.mxu0 0.0
    %10010 = vmatpush1.msra.mxu0 %v9981
    %10011 = vmatprep.subr.mxu0 0.0
    %10012 = vmatpush1.msra.mxu0 %v9982
    %10013 = vmatprep.subr.mxu0 0.0
    %10014 = vmatpush1.msra.mxu0 %v9983
    %10015 = vmatprep.subr.mxu0 0.0
    %10016 = vmatpush1.msra.mxu0 %v9984
    %10017 = vmatprep.subr.mxu0 0.0
    %10018 = vmatpush1.msra.mxu0 0.0
    %10019 = vmatprep.subr.mxu0 0.0
    %10020 = vmatpush1.msra.mxu0 0.0
    %10021 = vmatprep.subr.mxu0 0.0
    %10022 = vmatpush1.msra.mxu0 0.0
    %10023 = vmatprep.subr.mxu0 0.0
    %10024 = vmatpush1.msra.mxu0 0.0
    %10025 = vmatprep.subr.mxu0 0.0
    %10026 = vmatpush1.msra.mxu0 0.0
    %10027 = vmatprep.subr.mxu0 0.0
    %10028 = vmatpush1.msra.mxu0 0.0
    %10029 = vmatprep.subr.mxu0 0.0
    %10030 = vmatpush1.msra.mxu0 0.0
    %10031 = vmatprep.subr.mxu0 0.0
    %10032 = vmatpush1.msra.mxu0 0.0
    %10033 = vmatprep.subr.mxu0 0.0
    %10034 = vmatpush1.msra.mxu0 0.0
    %10035 = vmatprep.subr.mxu0 0.0
    %10036 = vmatpush1.msra.mxu0 0.0
    %10037 = vmatprep.subr.mxu0 0.0
    %10038 = vmatpush1.msra.mxu0 0.0
    %10039 = vmatprep.subr.mxu0 0.0
    %10040 = vmatpush1.msra.mxu0 0.0
    %10041 = vmatprep.subr.mxu0 0.0
    %10042 = vmatpush1.msra.mxu0 0.0
    %10043 = vmatprep.subr.mxu0 0.0
    %10044 = vmatpush1.msra.mxu0 0.0
    %10045 = vmatprep.subr.mxu0 0.0
    %10046 = vmatpush1.msra.mxu0 0.0
    %10047 = vmatprep.subr.mxu0 0.0
    %10048 = vmatpush1.msra.mxu0 0.0
    %10049 = vmatprep.mubr.f32.mxu0 0.0
    %10050 = vmatmul.mubr.f32.gmra.mrb[0].mxu0 %v6899
    %v10051 = vpop.f32.mrb[0].mxu0
    %v10052 = vadd.f32 0.0, %v10051
    %v10053 = vpop.f32.mrb[0].mxu0
    %10054 = vmatprep.mubr.f32.mxu0 0.0
    %10055 = vmatmul.mubr.f32.gmra.mrb[0].mxu0 %v6901
    %v10056 = vpop.f32.mrb[0].mxu0
    %v10057 = vadd.f32 0.0, %v10056
    %v10058 = vpop.f32.mrb[0].mxu0
    %10059 = vmatprep.mubr.f32.mxu0 0.0
    %10060 = vmatmul.mubr.f32.gmra.mrb[0].mxu0 %v6904
    %v10061 = vpop.f32.mrb[0].mxu0
    %v10062 = vadd.f32 0.0, %v10061
    %v10063 = vpop.f32.mrb[0].mxu0
    %10064 = vmatprep.mubr.f32.mxu0 0.0
    %10065 = vmatmul.mubr.f32.gmra.mrb[0].mxu0 %v6906
    %v10066 = vpop.f32.mrb[0].mxu0
    %v10067 = vadd.f32 0.0, %v10066
    %v10068 = vpop.f32.mrb[0].mxu0
    %10069 = vmatprep.mubr.f32.mxu0 0.0
    %10070 = vmatmul.mubr.f32.gmra.mrb[0].mxu0 %v6909
    %v10071 = vpop.f32.mrb[0].mxu0
    %v10072 = vadd.f32 0.0, %v10071
    %v10073 = vpop.f32.mrb[0].mxu0
    %10074 = vmatprep.mubr.f32.mxu0 0.0
    %10075 = vmatmul.mubr.f32.gmra.mrb[0].mxu0 %v6911
    %v10076 = vpop.f32.mrb[0].mxu0
    %v10077 = vadd.f32 0.0, %v10076
    %v10078 = vpop.f32.mrb[0].mxu0
    %10079 = vmatprep.mubr.f32.mxu0 0.0
    %10080 = vmatmul.mubr.f32.gmra.mrb[0].mxu0 %v6914
    %v10081 = vpop.f32.mrb[0].mxu0
    %v10082 = vadd.f32 0.0, %v10081
    %v10083 = vpop.f32.mrb[0].mxu0
    %10084 = vmatprep.mubr.f32.mxu0 0.0
    %10085 = vmatmul.mubr.f32.gmra.mrb[0].mxu0 %v6916
    %v10086 = vpop.f32.mrb[0].mxu0
    %v10087 = vadd.f32 0.0, %v10086
    %v10088 = vpop.f32.mrb[0].mxu0
    %10089 = vmatprep.mubr.f32.mxu0 0.0
    %10090 = vmatmul.mubr.f32.gmra.mrb[0].mxu0 %v6919
    %v10091 = vpop.f32.mrb[0].mxu0
    %v10092 = vadd.f32 0.0, %v10091
    %v10093 = vpop.f32.mrb[0].mxu0
    %10094 = vmatprep.mubr.f32.mxu0 0.0
    %10095 = vmatmul.mubr.f32.gmra.mrb[0].mxu0 %v6921
    %v10096 = vpop.f32.mrb[0].mxu0
    %v10097 = vadd.f32 0.0, %v10096
    %v10098 = vpop.f32.mrb[0].mxu0
    %10099 = vmatprep.mubr.f32.mxu0 0.0
    %10100 = vmatmul.mubr.f32.gmra.mrb[0].mxu0 %v6924
    %v10101 = vpop.f32.mrb[0].mxu0
    %v10102 = vadd.f32 0.0, %v10101
    %v10103 = vpop.f32.mrb[0].mxu0
    %10104 = vmatprep.mubr.f32.mxu0 0.0
    %10105 = vmatmul.mubr.f32.gmra.mrb[0].mxu0 %v6926
    %v10106 = vpop.f32.mrb[0].mxu0
    %v10107 = vadd.f32 0.0, %v10106
    %v10108 = vpop.f32.mrb[0].mxu0
    %10109 = vmatprep.mubr.f32.mxu0 0.0
    %10110 = vmatmul.mubr.f32.gmra.mrb[0].mxu0 %v6929
    %v10111 = vpop.f32.mrb[0].mxu0
    %v10112 = vadd.f32 0.0, %v10111
    %v10113 = vpop.f32.mrb[0].mxu0
    %10114 = vmatprep.mubr.f32.mxu0 0.0
    %10115 = vmatmul.mubr.f32.gmra.mrb[0].mxu0 %v6931
    %v10116 = vpop.f32.mrb[0].mxu0
    %v10117 = vadd.f32 0.0, %v10116
    %v10118 = vpop.f32.mrb[0].mxu0
    %10119 = vmatprep.mubr.f32.mxu0 0.0
    %10120 = vmatmul.mubr.f32.gmra.mrb[0].mxu0 %v6934
    %v10121 = vpop.f32.mrb[0].mxu0
    %v10122 = vadd.f32 0.0, %v10121
    %v10123 = vpop.f32.mrb[0].mxu0
    %10124 = vmatprep.mubr.f32.mxu0 0.0
    %10125 = vmatmul.mubr.f32.gmra.mrb[0].mxu0 %v6936
    %v10126 = vpop.f32.mrb[0].mxu0
    %v10127 = vadd.f32 0.0, %v10126
    %v10128 = vpop.f32.mrb[0].mxu0
    %10129 = vmatprep.mubr.f32.mxu0 0.0
    %10130 = vmatmul.mubr.f32.gmra.mrb[0].mxu0 %v6939
    %v10131 = vpop.f32.mrb[0].mxu0
    %v10132 = vadd.f32 0.0, %v10131
    %v10133 = vpop.f32.mrb[0].mxu0
    %10134 = vmatprep.mubr.f32.mxu0 0.0
    %10135 = vmatmul.mubr.f32.gmra.mrb[0].mxu0 %v6941
    %v10136 = vpop.f32.mrb[0].mxu0
    %v10137 = vadd.f32 0.0, %v10136
    %v10138 = vpop.f32.mrb[0].mxu0
    %10139 = vmatprep.mubr.f32.mxu0 0.0
    %10140 = vmatmul.mubr.f32.gmra.mrb[0].mxu0 %v6944
    %v10141 = vpop.f32.mrb[0].mxu0
    %v10142 = vadd.f32 0.0, %v10141
    %v10143 = vpop.f32.mrb[0].mxu0
    %10144 = vmatprep.mubr.f32.mxu0 0.0
    %10145 = vmatmul.mubr.f32.gmra.mrb[0].mxu0 %v6946
    %v10146 = vpop.f32.mrb[0].mxu0
    %v10147 = vadd.f32 0.0, %v10146
    %v10148 = vpop.f32.mrb[0].mxu0
    %10149 = vmatprep.mubr.f32.mxu0 0.0
    %10150 = vmatmul.mubr.f32.gmra.mrb[0].mxu0 %v6949
    %v10151 = vpop.f32.mrb[0].mxu0
    %v10152 = vadd.f32 0.0, %v10151
    %v10153 = vpop.f32.mrb[0].mxu0
    %10154 = vmatprep.mubr.f32.mxu0 0.0
    %10155 = vmatmul.mubr.f32.gmra.mrb[0].mxu0 %v6951
    %v10156 = vpop.f32.mrb[0].mxu0
    %v10157 = vadd.f32 0.0, %v10156
    %v10158 = vpop.f32.mrb[0].mxu0
    %10159 = vmatprep.mubr.f32.mxu0 0.0
    %10160 = vmatmul.mubr.f32.gmra.mrb[0].mxu0 %v6954
    %v10161 = vpop.f32.mrb[0].mxu0
    %v10162 = vadd.f32 0.0, %v10161
    %v10163 = vpop.f32.mrb[0].mxu0
    %10164 = vmatprep.mubr.f32.mxu0 0.0
    %10165 = vmatmul.mubr.f32.gmra.mrb[0].mxu0 %v6956
    %v10166 = vpop.f32.mrb[0].mxu0
    %v10167 = vadd.f32 0.0, %v10166
    %v10168 = vpop.f32.mrb[0].mxu0
    %10169 = vmatprep.mubr.f32.mxu0 0.0
    %10170 = vmatmul.mubr.f32.gmra.mrb[0].mxu0 %v6959
    %v10171 = vpop.f32.mrb[0].mxu0
    %v10172 = vadd.f32 0.0, %v10171
    %v10173 = vpop.f32.mrb[0].mxu0
    %10174 = vmatprep.mubr.f32.mxu0 0.0
    %10175 = vmatmul.mubr.f32.gmra.mrb[0].mxu0 %v6961
    %v10176 = vpop.f32.mrb[0].mxu0
    %v10177 = vadd.f32 0.0, %v10176
    %v10178 = vpop.f32.mrb[0].mxu0
    %10179 = vmatprep.mubr.f32.mxu0 0.0
    %10180 = vmatmul.mubr.f32.gmra.mrb[0].mxu0 %v6964
    %v10181 = vpop.f32.mrb[0].mxu0
    %v10182 = vadd.f32 0.0, %v10181
    %v10183 = vpop.f32.mrb[0].mxu0
    %10184 = vmatprep.mubr.f32.mxu0 0.0
    %10185 = vmatmul.mubr.f32.gmra.mrb[0].mxu0 %v6966
    %v10186 = vpop.f32.mrb[0].mxu0
    %v10187 = vadd.f32 0.0, %v10186
    %v10188 = vpop.f32.mrb[0].mxu0
    %10189 = vmatprep.mubr.f32.mxu0 0.0
    %10190 = vmatmul.mubr.f32.gmra.mrb[0].mxu0 %v8528
    %v10191 = vpop.f32.mrb[0].mxu0
    %v10192 = vadd.f32 0.0, %v10191
    %v10193 = vpop.f32.mrb[0].mxu0
    %10194 = vmatprep.mubr.f32.mxu0 0.0
    %10195 = vmatmul.mubr.f32.gmra.mrb[0].mxu0 %v8530
    %v10196 = vpop.f32.mrb[0].mxu0
    %v10197 = vadd.f32 0.0, %v10196
    %v10198 = vpop.f32.mrb[0].mxu0
    %10199 = vmatprep.mubr.f32.mxu0 0.0
    %10200 = vmatmul.mubr.f32.gmra.mrb[0].mxu0 %v9957
    %v10201 = vpop.f32.mrb[0].mxu0
    %v10202 = vadd.f32 0.0, %v10201
    %v10203 = vpop.f32.mrb[0].mxu0
    %10204 = vmatprep.mubr.f32.mxu0 0.0
    %10205 = vmatmul.mubr.f32.gmra.mrb[0].mxu0 %v9959
    %v10206 = vpop.f32.mrb[0].mxu0
    %v10207 = vadd.f32 0.0, %v10206
    %v10208 = vpop.f32.mrb[0].mxu0
    %10209 = vmatprep.mubr.f32.mxu0 0.0
    %10210 = vmatmul.mubr.f32.gmra.mrb[0].mxu0 %v6979
    %v10211 = vpop.f32.mrb[0].mxu0
    %v10212 = vadd.f32 0.0, %v10211
    %v10213 = vpop.f32.mrb[0].mxu0
    %10214 = vmatprep.mubr.f32.mxu0 0.0
    %10215 = vmatmul.mubr.f32.gmra.mrb[0].mxu0 %v6981
    %v10216 = vpop.f32.mrb[0].mxu0
    %v10217 = vadd.f32 0.0, %v10216
    %v10218 = vpop.f32.mrb[0].mxu0
    %10219 = vmatprep.mubr.f32.mxu0 0.0
    %10220 = vmatmul.mubr.f32.gmra.mrb[0].mxu0 %v6984
    %v10221 = vpop.f32.mrb[0].mxu0
    %v10222 = vadd.f32 0.0, %v10221
    %v10223 = vpop.f32.mrb[0].mxu0
    %10224 = vmatprep.mubr.f32.mxu0 0.0
    %10225 = vmatmul.mubr.f32.gmra.mrb[0].mxu0 %v6986
    %v10226 = vpop.f32.mrb[0].mxu0
    %v10227 = vadd.f32 0.0, %v10226
    %v10228 = vpop.f32.mrb[0].mxu0
    %10229 = vmatprep.mubr.f32.mxu0 0.0
    %10230 = vmatmul.mubr.f32.gmra.mrb[0].mxu0 %v6989
    %v10231 = vpop.f32.mrb[0].mxu0
    %v10232 = vadd.f32 0.0, %v10231
    %v10233 = vpop.f32.mrb[0].mxu0
    %10234 = vmatprep.mubr.f32.mxu0 0.0
    %10235 = vmatmul.mubr.f32.gmra.mrb[0].mxu0 %v6991
    %v10236 = vpop.f32.mrb[0].mxu0
    %v10237 = vadd.f32 0.0, %v10236
    %v10238 = vpop.f32.mrb[0].mxu0
    %10239 = vmatprep.mubr.f32.mxu0 0.0
    %10240 = vmatmul.mubr.f32.gmra.mrb[0].mxu0 %v6994
    %v10241 = vpop.f32.mrb[0].mxu0
    %v10242 = vadd.f32 0.0, %v10241
    %v10243 = vpop.f32.mrb[0].mxu0
    %10244 = vmatprep.mubr.f32.mxu0 0.0
    %10245 = vmatmul.mubr.f32.gmra.mrb[0].mxu0 %v6996
    %v10246 = vpop.f32.mrb[0].mxu0
    %v10247 = vadd.f32 0.0, %v10246
    %v10248 = vpop.f32.mrb[0].mxu0
    %10249 = vmatprep.mubr.f32.mxu0 0.0
    %10250 = vmatmul.mubr.f32.gmra.mrb[0].mxu0 %v6999
    %v10251 = vpop.f32.mrb[0].mxu0
    %v10252 = vadd.f32 0.0, %v10251
    %v10253 = vpop.f32.mrb[0].mxu0
    %10254 = vmatprep.mubr.f32.mxu0 0.0
    %10255 = vmatmul.mubr.f32.gmra.mrb[0].mxu0 %v7001
    %v10256 = vpop.f32.mrb[0].mxu0
    %v10257 = vadd.f32 0.0, %v10256
    %v10258 = vpop.f32.mrb[0].mxu0
    %10259 = vmatprep.mubr.f32.mxu0 0.0
    %10260 = vmatmul.mubr.f32.gmra.mrb[0].mxu0 %v7004
    %v10261 = vpop.f32.mrb[0].mxu0
    %v10262 = vadd.f32 0.0, %v10261
    %v10263 = vpop.f32.mrb[0].mxu0
    %10264 = vmatprep.mubr.f32.mxu0 0.0
    %10265 = vmatmul.mubr.f32.gmra.mrb[0].mxu0 %v7006
    %v10266 = vpop.f32.mrb[0].mxu0
    %v10267 = vadd.f32 0.0, %v10266
    %v10268 = vpop.f32.mrb[0].mxu0
    %10269 = vmatprep.mubr.f32.mxu0 0.0
    %10270 = vmatmul.mubr.f32.gmra.mrb[0].mxu0 %v7009
    %v10271 = vpop.f32.mrb[0].mxu0
    %v10272 = vadd.f32 0.0, %v10271
    %v10273 = vpop.f32.mrb[0].mxu0
    %10274 = vmatprep.mubr.f32.mxu0 0.0
    %10275 = vmatmul.mubr.f32.gmra.mrb[0].mxu0 %v7011
    %v10276 = vpop.f32.mrb[0].mxu0
    %v10277 = vadd.f32 0.0, %v10276
    %v10278 = vpop.f32.mrb[0].mxu0
    %10279 = vmatprep.mubr.f32.mxu0 0.0
    %10280 = vmatmul.mubr.f32.gmra.mrb[0].mxu0 %v7014
    %v10281 = vpop.f32.mrb[0].mxu0
    %v10282 = vadd.f32 0.0, %v10281
    %v10283 = vpop.f32.mrb[0].mxu0
    %10284 = vmatprep.mubr.f32.mxu0 0.0
    %10285 = vmatmul.mubr.f32.gmra.mrb[0].mxu0 %v7016
    %v10286 = vpop.f32.mrb[0].mxu0
    %v10287 = vadd.f32 0.0, %v10286
    %v10288 = vpop.f32.mrb[0].mxu0
    %10289 = vmatprep.mubr.f32.mxu0 0.0
    %10290 = vmatmul.mubr.f32.gmra.mrb[0].mxu0 %v7019
    %v10291 = vpop.f32.mrb[0].mxu0
    %v10292 = vadd.f32 0.0, %v10291
    %v10293 = vpop.f32.mrb[0].mxu0
    %10294 = vmatprep.mubr.f32.mxu0 0.0
    %10295 = vmatmul.mubr.f32.gmra.mrb[0].mxu0 %v7021
    %v10296 = vpop.f32.mrb[0].mxu0
    %v10297 = vadd.f32 0.0, %v10296
    %v10298 = vpop.f32.mrb[0].mxu0
    %10299 = vmatprep.mubr.f32.mxu0 0.0
    %10300 = vmatmul.mubr.f32.gmra.mrb[0].mxu0 %v7024
    %v10301 = vpop.f32.mrb[0].mxu0
    %v10302 = vadd.f32 0.0, %v10301
    %v10303 = vpop.f32.mrb[0].mxu0
    %10304 = vmatprep.mubr.f32.mxu0 0.0
    %10305 = vmatmul.mubr.f32.gmra.mrb[0].mxu0 %v7026
    %v10306 = vpop.f32.mrb[0].mxu0
    %v10307 = vadd.f32 0.0, %v10306
    %v10308 = vpop.f32.mrb[0].mxu0
    %10309 = vmatprep.mubr.f32.mxu0 0.0
    %10310 = vmatmul.mubr.f32.gmra.mrb[0].mxu0 %v7029
    %v10311 = vpop.f32.mrb[0].mxu0
    %v10312 = vadd.f32 0.0, %v10311
    %v10313 = vpop.f32.mrb[0].mxu0
    %10314 = vmatprep.mubr.f32.mxu0 0.0
    %10315 = vmatmul.mubr.f32.gmra.mrb[0].mxu0 %v7031
    %v10316 = vpop.f32.mrb[0].mxu0
    %v10317 = vadd.f32 0.0, %v10316
    %v10318 = vpop.f32.mrb[0].mxu0
    %10319 = vmatprep.mubr.f32.mxu0 0.0
    %10320 = vmatmul.mubr.f32.gmra.mrb[0].mxu0 %v7034
    %v10321 = vpop.f32.mrb[0].mxu0
    %v10322 = vadd.f32 0.0, %v10321
    %v10323 = vpop.f32.mrb[0].mxu0
    %10324 = vmatprep.mubr.f32.mxu0 0.0
    %10325 = vmatmul.mubr.f32.gmra.mrb[0].mxu0 %v7036
    %v10326 = vpop.f32.mrb[0].mxu0
    %v10327 = vadd.f32 0.0, %v10326
    %v10328 = vpop.f32.mrb[0].mxu0
    %10329 = vmatprep.mubr.f32.mxu0 0.0
    %10330 = vmatmul.mubr.f32.gmra.mrb[0].mxu0 %v7039
    %v10331 = vpop.f32.mrb[0].mxu0
    %v10332 = vadd.f32 0.0, %v10331
    %v10333 = vpop.f32.mrb[0].mxu0
    %10334 = vmatprep.mubr.f32.mxu0 0.0
    %10335 = vmatmul.mubr.f32.gmra.mrb[0].mxu0 %v7041
    %v10336 = vpop.f32.mrb[0].mxu0
    %v10337 = vadd.f32 0.0, %v10336
    %v10338 = vpop.f32.mrb[0].mxu0
    %10339 = vmatprep.mubr.f32.mxu0 0.0
    %10340 = vmatmul.mubr.f32.gmra.mrb[0].mxu0 %v7044
    %v10341 = vpop.f32.mrb[0].mxu0
    %v10342 = vadd.f32 0.0, %v10341
    %v10343 = vpop.f32.mrb[0].mxu0
    %10344 = vmatprep.mubr.f32.mxu0 0.0
    %10345 = vmatmul.mubr.f32.gmra.mrb[0].mxu0 %v7046
    %v10346 = vpop.f32.mrb[0].mxu0
    %v10347 = vadd.f32 0.0, %v10346
    %v10348 = vpop.f32.mrb[0].mxu0
    %10349 = vmatprep.mubr.f32.mxu0 0.0
    %10350 = vmatmul.mubr.f32.gmra.mrb[0].mxu0 %v8533
    %v10351 = vpop.f32.mrb[0].mxu0
    %v10352 = vadd.f32 0.0, %v10351
    %v10353 = vpop.f32.mrb[0].mxu0
    %10354 = vmatprep.mubr.f32.mxu0 0.0
    %10355 = vmatmul.mubr.f32.gmra.mrb[0].mxu0 %v8535
    %v10356 = vpop.f32.mrb[0].mxu0
    %v10357 = vadd.f32 0.0, %v10356
    %v10358 = vpop.f32.mrb[0].mxu0
    %10359 = vmatprep.mubr.f32.mxu0 0.0
    %10360 = vmatmul.mubr.f32.gmra.mrb[0].mxu0 %v9962
    %v10361 = vpop.f32.mrb[0].mxu0
    %v10362 = vadd.f32 0.0, %v10361
    %v10363 = vpop.f32.mrb[0].mxu0
    %10364 = vmatprep.mubr.f32.mxu0 0.0
    %10365 = vmatmul.mubr.f32.gmra.mrb[0].mxu0 %v9964
    %v10366 = vpop.f32.mrb[0].mxu0
    %v10367 = vadd.f32 0.0, %v10366
    %v10368 = vpop.f32.mrb[0].mxu0
    %10369 = vdwg.mxu0
    %v10370 = vadd.f32 %v9891, %v10052
    %v10371 = vadd.f32 %v9892, %v10057
    %v10372 = vadd.f32 %v9893, %v10062
    %v10373 = vadd.f32 %v9894, %v10067
    %v10374 = vadd.f32 %v9895, %v10072
    %v10375 = vadd.f32 %v9896, %v10077
    %v10376 = vadd.f32 %v9897, %v10082
    %v10377 = vadd.f32 %v9898, %v10087
    %v10378 = vadd.f32 %v9899, %v10092
    %v10379 = vadd.f32 %v9900, %v10097
    %v10380 = vadd.f32 %v9901, %v10102
    %v10381 = vadd.f32 %v9902, %v10107
    %v10382 = vadd.f32 %v9903, %v10112
    %v10383 = vadd.f32 %v9904, %v10117
    %v10384 = vadd.f32 %v9905, %v10122
    %v10385 = vadd.f32 %v9906, %v10127
    %v10386 = vadd.f32 %v9907, %v10132
    %v10387 = vadd.f32 %v9908, %v10137
    %v10388 = vadd.f32 %v9909, %v10142
    %v10389 = vadd.f32 %v9910, %v10147
    %v10390 = vadd.f32 %v9911, %v10152
    %v10391 = vadd.f32 %v9912, %v10157
    %v10392 = vadd.f32 %v9913, %v10162
    %v10393 = vadd.f32 %v9914, %v10167
    %v10394 = vadd.f32 %v9915, %v10172
    %v10395 = vadd.f32 %v9916, %v10177
    %v10396 = vadd.f32 %v9917, %v10182
    %v10397 = vadd.f32 %v9918, %v10187
    %v10398 = vadd.f32 %v9919, %v10192
    %v10399 = vadd.f32 %v9920, %v10197
    %v10400 = vadd.f32 %v9921, %v10202
    %v10401 = vadd.f32 %v9922, %v10207
    %v10402 = vadd.f32 %v9923, %v10212
    %v10403 = vadd.f32 %v9924, %v10217
    %v10404 = vadd.f32 %v9925, %v10222
    %v10405 = vadd.f32 %v9926, %v10227
    %v10406 = vadd.f32 %v9927, %v10232
    %v10407 = vadd.f32 %v9928, %v10237
    %v10408 = vadd.f32 %v9929, %v10242
    %v10409 = vadd.f32 %v9930, %v10247
    %v10410 = vadd.f32 %v9931, %v10252
    %v10411 = vadd.f32 %v9932, %v10257
    %v10412 = vadd.f32 %v9933, %v10262
    %v10413 = vadd.f32 %v9934, %v10267
    %v10414 = vadd.f32 %v9935, %v10272
    %v10415 = vadd.f32 %v9936, %v10277
    %v10416 = vadd.f32 %v9937, %v10282
    %v10417 = vadd.f32 %v9938, %v10287
    %v10418 = vadd.f32 %v9939, %v10292
    %v10419 = vadd.f32 %v9940, %v10297
    %v10420 = vadd.f32 %v9941, %v10302
    %v10421 = vadd.f32 %v9942, %v10307
    %v10422 = vadd.f32 %v9943, %v10312
    %v10423 = vadd.f32 %v9944, %v10317
    %v10424 = vadd.f32 %v9945, %v10322
    %v10425 = vadd.f32 %v9946, %v10327
    %v10426 = vadd.f32 %v9947, %v10332
    %v10427 = vadd.f32 %v9948, %v10337
    %v10428 = vadd.f32 %v9949, %v10342
    %v10429 = vadd.f32 %v9950, %v10347
    %v10430 = vadd.f32 %v9951, %v10352
    %v10431 = vadd.f32 %v9952, %v10357
    %v10432 = vadd.f32 %v9953, %v10362
    %v10433 = vadd.f32 %v9954, %v10367
    %v10434 = vld [vmem:[#allocation13] sm:$0x1]
    %v10435 = vld [vmem:[#allocation15] sm:$0x1]
    %v10436 = vadd.f32 %v10370, %v10371
    %v10437 = vadd.f32 %v10436, %v10372
    %v10438 = vadd.f32 %v10437, %v10373
    %v10439 = vadd.f32 %v10438, %v10374
    %v10440 = vadd.f32 %v10439, %v10375
    %v10441 = vadd.f32 %v10440, %v10376
    %v10442 = vadd.f32 %v10441, %v10377
    %v10443 = vadd.f32 %v10442, %v10378
    %v10444 = vadd.f32 %v10443, %v10379
    %v10445 = vadd.f32 %v10444, %v10380
    %v10446 = vadd.f32 %v10445, %v10381
    %v10447 = vadd.f32 %v10446, %v10382
    %v10448 = vadd.f32 %v10447, %v10383
    %v10449 = vadd.f32 %v10448, %v10384
    %v10450 = vadd.f32 %v10449, %v10385
    %v10451 = vadd.f32 %v10450, %v10386
    %v10452 = vadd.f32 %v10451, %v10387
    %v10453 = vadd.f32 %v10452, %v10388
    %v10454 = vadd.f32 %v10453, %v10389
    %v10455 = vadd.f32 %v10454, %v10390
    %v10456 = vadd.f32 %v10455, %v10391
    %v10457 = vadd.f32 %v10456, %v10392
    %v10458 = vadd.f32 %v10457, %v10393
    %v10459 = vadd.f32 %v10458, %v10394
    %v10460 = vadd.f32 %v10459, %v10395
    %v10461 = vadd.f32 %v10460, %v10396
    %v10462 = vadd.f32 %v10461, %v10397
    %v10463 = vadd.f32 %v10462, %v10398
    %v10464 = vadd.f32 %v10463, %v10399
    %v10465 = vadd.f32 %v10464, %v10400
    %v10466 = vadd.f32 %v10465, %v10401
    %v10467 = vadd.f32 %v10466, %v10402
    %v10468 = vadd.f32 %v10467, %v10403
    %v10469 = vadd.f32 %v10468, %v10404
    %v10470 = vadd.f32 %v10469, %v10405
    %v10471 = vadd.f32 %v10470, %v10406
    %v10472 = vadd.f32 %v10471, %v10407
    %v10473 = vadd.f32 %v10472, %v10408
    %v10474 = vadd.f32 %v10473, %v10409
    %v10475 = vadd.f32 %v10474, %v10410
    %v10476 = vadd.f32 %v10475, %v10411
    %v10477 = vadd.f32 %v10476, %v10412
    %v10478 = vadd.f32 %v10477, %v10413
    %v10479 = vadd.f32 %v10478, %v10414
    %v10480 = vadd.f32 %v10479, %v10415
    %v10481 = vadd.f32 %v10480, %v10416
    %v10482 = vadd.f32 %v10481, %v10417
    %v10483 = vadd.f32 %v10482, %v10418
    %v10484 = vadd.f32 %v10483, %v10419
    %v10485 = vadd.f32 %v10484, %v10420
    %v10486 = vadd.f32 %v10485, %v10421
    %v10487 = vadd.f32 %v10486, %v10422
    %v10488 = vadd.f32 %v10487, %v10423
    %v10489 = vadd.f32 %v10488, %v10424
    %v10490 = vadd.f32 %v10489, %v10425
    %v10491 = vadd.f32 %v10490, %v10426
    %v10492 = vadd.f32 %v10491, %v10427
    %v10493 = vadd.f32 %v10492, %v10428
    %v10494 = vadd.f32 %v10493, %v10429
    %v10495 = vadd.f32 %v10494, %v10430
    %v10496 = vadd.f32 %v10495, %v10431
    %v10497 = vadd.f32 %v10496, %v10432
    %v10498 = vadd.f32 %v10497, %v10433
    %v10499 = vrot.slane %v10498, 4
    %v10500 = vadd.f32 %v10498, %v10499
    %v10501 = vrot.slane %v10500, 2
    %v10502 = vadd.f32 %v10500, %v10501
    %v10503 = vrot.slane %v10502, 1
    %v10504 = vadd.f32 %v10502, %v10503
    %v10505 = vmul.f32 %v10370, %v10370
    %v10506 = vmul.f32 %v10371, %v10371
    %v10507 = vmul.f32 %v10372, %v10372
    %v10508 = vmul.f32 %v10373, %v10373
    %v10509 = vmul.f32 %v10374, %v10374
    %v10510 = vmul.f32 %v10375, %v10375
    %v10511 = vmul.f32 %v10376, %v10376
    %v10512 = vmul.f32 %v10377, %v10377
    %v10513 = vmul.f32 %v10378, %v10378
    %v10514 = vmul.f32 %v10379, %v10379
    %v10515 = vmul.f32 %v10380, %v10380
    %v10516 = vmul.f32 %v10381, %v10381
    %v10517 = vmul.f32 %v10382, %v10382
    %v10518 = vmul.f32 %v10383, %v10383
    %v10519 = vmul.f32 %v10384, %v10384
    %v10520 = vmul.f32 %v10385, %v10385
    %v10521 = vmul.f32 %v10386, %v10386
    %v10522 = vmul.f32 %v10387, %v10387
    %v10523 = vmul.f32 %v10388, %v10388
    %v10524 = vmul.f32 %v10389, %v10389
    %v10525 = vmul.f32 %v10390, %v10390
    %v10526 = vmul.f32 %v10391, %v10391
    %v10527 = vmul.f32 %v10392, %v10392
    %v10528 = vmul.f32 %v10393, %v10393
    %v10529 = vmul.f32 %v10394, %v10394
    %v10530 = vmul.f32 %v10395, %v10395
    %v10531 = vmul.f32 %v10396, %v10396
    %v10532 = vmul.f32 %v10397, %v10397
    %v10533 = vmul.f32 %v10398, %v10398
    %v10534 = vmul.f32 %v10399, %v10399
    %v10535 = vmul.f32 %v10400, %v10400
    %v10536 = vmul.f32 %v10401, %v10401
    %v10537 = vmul.f32 %v10402, %v10402
    %v10538 = vmul.f32 %v10403, %v10403
    %v10539 = vmul.f32 %v10404, %v10404
    %v10540 = vmul.f32 %v10405, %v10405
    %v10541 = vmul.f32 %v10406, %v10406
    %v10542 = vmul.f32 %v10407, %v10407
    %v10543 = vmul.f32 %v10408, %v10408
    %v10544 = vmul.f32 %v10409, %v10409
    %v10545 = vmul.f32 %v10410, %v10410
    %v10546 = vmul.f32 %v10411, %v10411
    %v10547 = vmul.f32 %v10412, %v10412
    %v10548 = vmul.f32 %v10413, %v10413
    %v10549 = vmul.f32 %v10414, %v10414
    %v10550 = vmul.f32 %v10415, %v10415
    %v10551 = vmul.f32 %v10416, %v10416
    %v10552 = vmul.f32 %v10417, %v10417
    %v10553 = vmul.f32 %v10418, %v10418
    %v10554 = vmul.f32 %v10419, %v10419
    %v10555 = vmul.f32 %v10420, %v10420
    %v10556 = vmul.f32 %v10421, %v10421
    %v10557 = vmul.f32 %v10422, %v10422
    %v10558 = vmul.f32 %v10423, %v10423
    %v10559 = vmul.f32 %v10424, %v10424
    %v10560 = vmul.f32 %v10425, %v10425
    %v10561 = vmul.f32 %v10426, %v10426
    %v10562 = vmul.f32 %v10427, %v10427
    %v10563 = vmul.f32 %v10428, %v10428
    %v10564 = vmul.f32 %v10429, %v10429
    %v10565 = vmul.f32 %v10430, %v10430
    %v10566 = vmul.f32 %v10431, %v10431
    %v10567 = vmul.f32 %v10432, %v10432
    %v10568 = vmul.f32 %v10433, %v10433
    %v10569 = vadd.f32 %v10505, %v10506
    %v10570 = vadd.f32 %v10569, %v10507
    %v10571 = vadd.f32 %v10570, %v10508
    %v10572 = vadd.f32 %v10571, %v10509
    %v10573 = vadd.f32 %v10572, %v10510
    %v10574 = vadd.f32 %v10573, %v10511
    %v10575 = vadd.f32 %v10574, %v10512
    %v10576 = vadd.f32 %v10575, %v10513
    %v10577 = vadd.f32 %v10576, %v10514
    %v10578 = vadd.f32 %v10577, %v10515
    %v10579 = vadd.f32 %v10578, %v10516
    %v10580 = vadd.f32 %v10579, %v10517
    %v10581 = vadd.f32 %v10580, %v10518
    %v10582 = vadd.f32 %v10581, %v10519
    %v10583 = vadd.f32 %v10582, %v10520
    %v10584 = vadd.f32 %v10583, %v10521
    %v10585 = vadd.f32 %v10584, %v10522
    %v10586 = vadd.f32 %v10585, %v10523
    %v10587 = vadd.f32 %v10586, %v10524
    %v10588 = vadd.f32 %v10587, %v10525
    %v10589 = vadd.f32 %v10588, %v10526
    %v10590 = vadd.f32 %v10589, %v10527
    %v10591 = vadd.f32 %v10590, %v10528
    %v10592 = vadd.f32 %v10591, %v10529
    %v10593 = vadd.f32 %v10592, %v10530
    %v10594 = vadd.f32 %v10593, %v10531
    %v10595 = vadd.f32 %v10594, %v10532
    %v10596 = vadd.f32 %v10595, %v10533
    %v10597 = vadd.f32 %v10596, %v10534
    %v10598 = vadd.f32 %v10597, %v10535
    %v10599 = vadd.f32 %v10598, %v10536
    %v10600 = vadd.f32 %v10599, %v10537
    %v10601 = vadd.f32 %v10600, %v10538
    %v10602 = vadd.f32 %v10601, %v10539
    %v10603 = vadd.f32 %v10602, %v10540
    %v10604 = vadd.f32 %v10603, %v10541
    %v10605 = vadd.f32 %v10604, %v10542
    %v10606 = vadd.f32 %v10605, %v10543
    %v10607 = vadd.f32 %v10606, %v10544
    %v10608 = vadd.f32 %v10607, %v10545
    %v10609 = vadd.f32 %v10608, %v10546
    %v10610 = vadd.f32 %v10609, %v10547
    %v10611 = vadd.f32 %v10610, %v10548
    %v10612 = vadd.f32 %v10611, %v10549
    %v10613 = vadd.f32 %v10612, %v10550
    %v10614 = vadd.f32 %v10613, %v10551
    %v10615 = vadd.f32 %v10614, %v10552
    %v10616 = vadd.f32 %v10615, %v10553
    %v10617 = vadd.f32 %v10616, %v10554
    %v10618 = vadd.f32 %v10617, %v10555
    %v10619 = vadd.f32 %v10618, %v10556
    %v10620 = vadd.f32 %v10619, %v10557
    %v10621 = vadd.f32 %v10620, %v10558
    %v10622 = vadd.f32 %v10621, %v10559
    %v10623 = vadd.f32 %v10622, %v10560
    %v10624 = vadd.f32 %v10623, %v10561
    %v10625 = vadd.f32 %v10624, %v10562
    %v10626 = vadd.f32 %v10625, %v10563
    %v10627 = vadd.f32 %v10626, %v10564
    %v10628 = vadd.f32 %v10627, %v10565
    %v10629 = vadd.f32 %v10628, %v10566
    %v10630 = vadd.f32 %v10629, %v10567
    %v10631 = vadd.f32 %v10630, %v10568
    %v10632 = vrot.slane %v10631, 4
    %v10633 = vadd.f32 %v10631, %v10632
    %v10634 = vrot.slane %v10633, 2
    %v10635 = vadd.f32 %v10633, %v10634
    %v10636 = vrot.slane %v10635, 1
    %v10637 = vadd.f32 %v10635, %v10636
    %v10638 = vmul.f32 %v10504, 0.001953125
    %v10639 = vmul.f32 %v10637, 0.001953125
    %v10640 = vmul.f32 %v10638, %v10638
    %v10641 = vsub.f32 %v10639, %v10640
    %v10642 = vmax.f32 %v10641, 0.0
    %v10643 = vadd.f32 %v10642, 1e-05
    %v10644 = vrsqrt.pop %v10643
    %v10645 = vmul.f32 %v10434, %v10644
    %v10646 = vmul.f32 %v10638, %v10645
    %v10647 = vsub.f32 %v10435, %v10646
    %v10649 = vlaneseq
    %v10650 = vshrl.u32 %v10649, 7
    %v10651 = vsub.s32 0, %v10650
    %v10652 = vrot.slane %v10645, %v10651
    %v10654 = vmul.f32 %v10370, %v10652
    %v10655 = vmul.f32 %v10371, %v10652
    %v10656 = vmul.f32 %v10372, %v10652
    %v10657 = vmul.f32 %v10373, %v10652
    %v10658 = vmul.f32 %v10374, %v10652
    %v10659 = vmul.f32 %v10375, %v10652
    %v10660 = vmul.f32 %v10376, %v10652
    %v10661 = vmul.f32 %v10377, %v10652
    %v10662 = vmul.f32 %v10378, %v10652
    %v10663 = vmul.f32 %v10379, %v10652
    %v10664 = vmul.f32 %v10380, %v10652
    %v10665 = vmul.f32 %v10381, %v10652
    %v10666 = vmul.f32 %v10382, %v10652
    %v10667 = vmul.f32 %v10383, %v10652
    %v10668 = vmul.f32 %v10384, %v10652
    %v10669 = vmul.f32 %v10385, %v10652
    %v10670 = vmul.f32 %v10386, %v10652
    %v10671 = vmul.f32 %v10387, %v10652
    %v10672 = vmul.f32 %v10388, %v10652
    %v10673 = vmul.f32 %v10389, %v10652
    %v10674 = vmul.f32 %v10390, %v10652
    %v10675 = vmul.f32 %v10391, %v10652
    %v10676 = vmul.f32 %v10392, %v10652
    %v10677 = vmul.f32 %v10393, %v10652
    %v10678 = vmul.f32 %v10394, %v10652
    %v10679 = vmul.f32 %v10395, %v10652
    %v10680 = vmul.f32 %v10396, %v10652
    %v10681 = vmul.f32 %v10397, %v10652
    %v10682 = vmul.f32 %v10398, %v10652
    %v10683 = vmul.f32 %v10399, %v10652
    %v10684 = vmul.f32 %v10400, %v10652
    %v10685 = vmul.f32 %v10401, %v10652
    %v10686 = vmul.f32 %v10402, %v10652
    %v10687 = vmul.f32 %v10403, %v10652
    %v10688 = vmul.f32 %v10404, %v10652
    %v10689 = vmul.f32 %v10405, %v10652
    %v10690 = vmul.f32 %v10406, %v10652
    %v10691 = vmul.f32 %v10407, %v10652
    %v10692 = vmul.f32 %v10408, %v10652
    %v10693 = vmul.f32 %v10409, %v10652
    %v10694 = vmul.f32 %v10410, %v10652
    %v10695 = vmul.f32 %v10411, %v10652
    %v10696 = vmul.f32 %v10412, %v10652
    %v10697 = vmul.f32 %v10413, %v10652
    %v10698 = vmul.f32 %v10414, %v10652
    %v10699 = vmul.f32 %v10415, %v10652
    %v10700 = vmul.f32 %v10416, %v10652
    %v10701 = vmul.f32 %v10417, %v10652
    %v10702 = vmul.f32 %v10418, %v10652
    %v10703 = vmul.f32 %v10419, %v10652
    %v10704 = vmul.f32 %v10420, %v10652
    %v10705 = vmul.f32 %v10421, %v10652
    %v10706 = vmul.f32 %v10422, %v10652
    %v10707 = vmul.f32 %v10423, %v10652
    %v10708 = vmul.f32 %v10424, %v10652
    %v10709 = vmul.f32 %v10425, %v10652
    %v10710 = vmul.f32 %v10426, %v10652
    %v10711 = vmul.f32 %v10427, %v10652
    %v10712 = vmul.f32 %v10428, %v10652
    %v10713 = vmul.f32 %v10429, %v10652
    %v10714 = vmul.f32 %v10430, %v10652
    %v10715 = vmul.f32 %v10431, %v10652
    %v10716 = vmul.f32 %v10432, %v10652
    %v10717 = vmul.f32 %v10433, %v10652
    %v10719 = vlaneseq
    %v10720 = vshrl.u32 %v10719, 7
    %v10721 = vsub.s32 0, %v10720
    %v10722 = vrot.slane %v10647, %v10721
    %v10724 = vadd.f32 %v10654, %v10722
    %v10725 = vadd.f32 %v10655, %v10722
    %v10726 = vadd.f32 %v10656, %v10722
    %v10727 = vadd.f32 %v10657, %v10722
    %v10728 = vadd.f32 %v10658, %v10722
    %v10729 = vadd.f32 %v10659, %v10722
    %v10730 = vadd.f32 %v10660, %v10722
    %v10731 = vadd.f32 %v10661, %v10722
    %v10732 = vadd.f32 %v10662, %v10722
    %v10733 = vadd.f32 %v10663, %v10722
    %v10734 = vadd.f32 %v10664, %v10722
    %v10735 = vadd.f32 %v10665, %v10722
    %v10736 = vadd.f32 %v10666, %v10722
    %v10737 = vadd.f32 %v10667, %v10722
    %v10738 = vadd.f32 %v10668, %v10722
    %v10739 = vadd.f32 %v10669, %v10722
    %v10740 = vadd.f32 %v10670, %v10722
    %v10741 = vadd.f32 %v10671, %v10722
    %v10742 = vadd.f32 %v10672, %v10722
    %v10743 = vadd.f32 %v10673, %v10722
    %v10744 = vadd.f32 %v10674, %v10722
    %v10745 = vadd.f32 %v10675, %v10722
    %v10746 = vadd.f32 %v10676, %v10722
    %v10747 = vadd.f32 %v10677, %v10722
    %v10748 = vadd.f32 %v10678, %v10722
    %v10749 = vadd.f32 %v10679, %v10722
    %v10750 = vadd.f32 %v10680, %v10722
    %v10751 = vadd.f32 %v10681, %v10722
    %v10752 = vadd.f32 %v10682, %v10722
    %v10753 = vadd.f32 %v10683, %v10722
    %v10754 = vadd.f32 %v10684, %v10722
    %v10755 = vadd.f32 %v10685, %v10722
    %v10756 = vadd.f32 %v10686, %v10722
    %v10757 = vadd.f32 %v10687, %v10722
    %v10758 = vadd.f32 %v10688, %v10722
    %v10759 = vadd.f32 %v10689, %v10722
    %v10760 = vadd.f32 %v10690, %v10722
    %v10761 = vadd.f32 %v10691, %v10722
    %v10762 = vadd.f32 %v10692, %v10722
    %v10763 = vadd.f32 %v10693, %v10722
    %v10764 = vadd.f32 %v10694, %v10722
    %v10765 = vadd.f32 %v10695, %v10722
    %v10766 = vadd.f32 %v10696, %v10722
    %v10767 = vadd.f32 %v10697, %v10722
    %v10768 = vadd.f32 %v10698, %v10722
    %v10769 = vadd.f32 %v10699, %v10722
    %v10770 = vadd.f32 %v10700, %v10722
    %v10771 = vadd.f32 %v10701, %v10722
    %v10772 = vadd.f32 %v10702, %v10722
    %v10773 = vadd.f32 %v10703, %v10722
    %v10774 = vadd.f32 %v10704, %v10722
    %v10775 = vadd.f32 %v10705, %v10722
    %v10776 = vadd.f32 %v10706, %v10722
    %v10777 = vadd.f32 %v10707, %v10722
    %v10778 = vadd.f32 %v10708, %v10722
    %v10779 = vadd.f32 %v10709, %v10722
    %v10780 = vadd.f32 %v10710, %v10722
    %v10781 = vadd.f32 %v10711, %v10722
    %v10782 = vadd.f32 %v10712, %v10722
    %v10783 = vadd.f32 %v10713, %v10722
    %v10784 = vadd.f32 %v10714, %v10722
    %v10785 = vadd.f32 %v10715, %v10722
    %v10786 = vadd.f32 %v10716, %v10722
    %v10787 = vadd.f32 %v10717, %v10722
    %v10788 = vmax.f32 %v10724, 0.0
    %v10789 = vmax.f32 %v10725, 0.0
    %v10790 = vmax.f32 %v10726, 0.0
    %v10791 = vmax.f32 %v10727, 0.0
    %v10792 = vmax.f32 %v10728, 0.0
    %v10793 = vmax.f32 %v10729, 0.0
    %v10794 = vmax.f32 %v10730, 0.0
    %v10795 = vmax.f32 %v10731, 0.0
    %v10796 = vmax.f32 %v10732, 0.0
    %v10797 = vmax.f32 %v10733, 0.0
    %v10798 = vmax.f32 %v10734, 0.0
    %v10799 = vmax.f32 %v10735, 0.0
    %v10800 = vmax.f32 %v10736, 0.0
    %v10801 = vmax.f32 %v10737, 0.0
    %v10802 = vmax.f32 %v10738, 0.0
    %v10803 = vmax.f32 %v10739, 0.0
    %v10804 = vmax.f32 %v10740, 0.0
    %v10805 = vmax.f32 %v10741, 0.0
    %v10806 = vmax.f32 %v10742, 0.0
    %v10807 = vmax.f32 %v10743, 0.0
    %v10808 = vmax.f32 %v10744, 0.0
    %v10809 = vmax.f32 %v10745, 0.0
    %v10810 = vmax.f32 %v10746, 0.0
    %v10811 = vmax.f32 %v10747, 0.0
    %v10812 = vmax.f32 %v10748, 0.0
    %v10813 = vmax.f32 %v10749, 0.0
    %v10814 = vmax.f32 %v10750, 0.0
    %v10815 = vmax.f32 %v10751, 0.0
    %v10816 = vmax.f32 %v10752, 0.0
    %v10817 = vmax.f32 %v10753, 0.0
    %v10818 = vmax.f32 %v10754, 0.0
    %v10819 = vmax.f32 %v10755, 0.0
    %v10820 = vmax.f32 %v10756, 0.0
    %v10821 = vmax.f32 %v10757, 0.0
    %v10822 = vmax.f32 %v10758, 0.0
    %v10823 = vmax.f32 %v10759, 0.0
    %v10824 = vmax.f32 %v10760, 0.0
    %v10825 = vmax.f32 %v10761, 0.0
    %v10826 = vmax.f32 %v10762, 0.0
    %v10827 = vmax.f32 %v10763, 0.0
    %v10828 = vmax.f32 %v10764, 0.0
    %v10829 = vmax.f32 %v10765, 0.0
    %v10830 = vmax.f32 %v10766, 0.0
    %v10831 = vmax.f32 %v10767, 0.0
    %v10832 = vmax.f32 %v10768, 0.0
    %v10833 = vmax.f32 %v10769, 0.0
    %v10834 = vmax.f32 %v10770, 0.0
    %v10835 = vmax.f32 %v10771, 0.0
    %v10836 = vmax.f32 %v10772, 0.0
    %v10837 = vmax.f32 %v10773, 0.0
    %v10838 = vmax.f32 %v10774, 0.0
    %v10839 = vmax.f32 %v10775, 0.0
    %v10840 = vmax.f32 %v10776, 0.0
    %v10841 = vmax.f32 %v10777, 0.0
    %v10842 = vmax.f32 %v10778, 0.0
    %v10843 = vmax.f32 %v10779, 0.0
    %v10844 = vmax.f32 %v10780, 0.0
    %v10845 = vmax.f32 %v10781, 0.0
    %v10846 = vmax.f32 %v10782, 0.0
    %v10847 = vmax.f32 %v10783, 0.0
    %v10848 = vmax.f32 %v10784, 0.0
    %v10849 = vmax.f32 %v10785, 0.0
    %v10850 = vmax.f32 %v10786, 0.0
    %v10851 = vmax.f32 %v10787, 0.0
    %v10852 = vadd.f32 %v10788, %v114
    %v10853 = vadd.f32 %v10789, %v115
    %v10854 = vadd.f32 %v10790, %v116
    %v10855 = vadd.f32 %v10791, %v117
    %v10856 = vadd.f32 %v10792, %v118
    %v10857 = vadd.f32 %v10793, %v119
    %v10858 = vadd.f32 %v10794, %v120
    %v10859 = vadd.f32 %v10795, %v121
    %v10860 = vadd.f32 %v10796, %v122
    %v10861 = vadd.f32 %v10797, %v123
    %v10862 = vadd.f32 %v10798, %v124
    %v10863 = vadd.f32 %v10799, %v125
    %v10864 = vadd.f32 %v10800, %v126
    %v10865 = vadd.f32 %v10801, %v127
    %v10866 = vadd.f32 %v10802, %v128
    %v10867 = vadd.f32 %v10803, %v129
    %v10868 = vadd.f32 %v10804, %v130
    %v10869 = vadd.f32 %v10805, %v131
    %v10870 = vadd.f32 %v10806, %v132
    %v10871 = vadd.f32 %v10807, %v133
    %v10872 = vadd.f32 %v10808, %v134
    %v10873 = vadd.f32 %v10809, %v135
    %v10874 = vadd.f32 %v10810, %v136
    %v10875 = vadd.f32 %v10811, %v137
    %v10876 = vadd.f32 %v10812, %v138
    %v10877 = vadd.f32 %v10813, %v139
    %v10878 = vadd.f32 %v10814, %v140
    %v10879 = vadd.f32 %v10815, %v141
    %v10880 = vadd.f32 %v10816, %v142
    %v10881 = vadd.f32 %v10817, %v143
    %v10882 = vadd.f32 %v10818, %v144
    %v10883 = vadd.f32 %v10819, %v145
    %v10884 = vadd.f32 %v10820, %v146
    %v10885 = vadd.f32 %v10821, %v147
    %v10886 = vadd.f32 %v10822, %v148
    %v10887 = vadd.f32 %v10823, %v149
    %v10888 = vadd.f32 %v10824, %v150
    %v10889 = vadd.f32 %v10825, %v151
    %v10890 = vadd.f32 %v10826, %v152
    %v10891 = vadd.f32 %v10827, %v153
    %v10892 = vadd.f32 %v10828, %v154
    %v10893 = vadd.f32 %v10829, %v155
    %v10894 = vadd.f32 %v10830, %v156
    %v10895 = vadd.f32 %v10831, %v157
    %v10896 = vadd.f32 %v10832, %v158
    %v10897 = vadd.f32 %v10833, %v159
    %v10898 = vadd.f32 %v10834, %v160
    %v10899 = vadd.f32 %v10835, %v161
    %v10900 = vadd.f32 %v10836, %v162
    %v10901 = vadd.f32 %v10837, %v163
    %v10902 = vadd.f32 %v10838, %v164
    %v10903 = vadd.f32 %v10839, %v165
    %v10904 = vadd.f32 %v10840, %v166
    %v10905 = vadd.f32 %v10841, %v167
    %v10906 = vadd.f32 %v10842, %v168
    %v10907 = vadd.f32 %v10843, %v169
    %v10908 = vadd.f32 %v10844, %v170
    %v10909 = vadd.f32 %v10845, %v171
    %v10910 = vadd.f32 %v10846, %v172
    %v10911 = vadd.f32 %v10847, %v173
    %v10912 = vadd.f32 %v10848, %v174
    %v10913 = vadd.f32 %v10849, %v175
    %v10914 = vadd.f32 %v10850, %v176
    %v10915 = vadd.f32 %v10851, %v177
    %v10916 = vmax.f32 %v10852, 0.0
    %v10917 = vmax.f32 %v10853, 0.0
    %v10918 = vmax.f32 %v10854, 0.0
    %v10919 = vmax.f32 %v10855, 0.0
    %v10920 = vmax.f32 %v10856, 0.0
    %v10921 = vmax.f32 %v10857, 0.0
    %v10922 = vmax.f32 %v10858, 0.0
    %v10923 = vmax.f32 %v10859, 0.0
    %v10924 = vmax.f32 %v10860, 0.0
    %v10925 = vmax.f32 %v10861, 0.0
    %v10926 = vmax.f32 %v10862, 0.0
    %v10927 = vmax.f32 %v10863, 0.0
    %v10928 = vmax.f32 %v10864, 0.0
    %v10929 = vmax.f32 %v10865, 0.0
    %v10930 = vmax.f32 %v10866, 0.0
    %v10931 = vmax.f32 %v10867, 0.0
    %v10932 = vmax.f32 %v10868, 0.0
    %v10933 = vmax.f32 %v10869, 0.0
    %v10934 = vmax.f32 %v10870, 0.0
    %v10935 = vmax.f32 %v10871, 0.0
    %v10936 = vmax.f32 %v10872, 0.0
    %v10937 = vmax.f32 %v10873, 0.0
    %v10938 = vmax.f32 %v10874, 0.0
    %v10939 = vmax.f32 %v10875, 0.0
    %v10940 = vmax.f32 %v10876, 0.0
    %v10941 = vmax.f32 %v10877, 0.0
    %v10942 = vmax.f32 %v10878, 0.0
    %v10943 = vmax.f32 %v10879, 0.0
    %v10944 = vmax.f32 %v10880, 0.0
    %v10945 = vmax.f32 %v10881, 0.0
    %v10946 = vmax.f32 %v10882, 0.0
    %v10947 = vmax.f32 %v10883, 0.0
    %v10948 = vmax.f32 %v10884, 0.0
    %v10949 = vmax.f32 %v10885, 0.0
    %v10950 = vmax.f32 %v10886, 0.0
    %v10951 = vmax.f32 %v10887, 0.0
    %v10952 = vmax.f32 %v10888, 0.0
    %v10953 = vmax.f32 %v10889, 0.0
    %v10954 = vmax.f32 %v10890, 0.0
    %v10955 = vmax.f32 %v10891, 0.0
    %v10956 = vmax.f32 %v10892, 0.0
    %v10957 = vmax.f32 %v10893, 0.0
    %v10958 = vmax.f32 %v10894, 0.0
    %v10959 = vmax.f32 %v10895, 0.0
    %v10960 = vmax.f32 %v10896, 0.0
    %v10961 = vmax.f32 %v10897, 0.0
    %v10962 = vmax.f32 %v10898, 0.0
    %v10963 = vmax.f32 %v10899, 0.0
    %v10964 = vmax.f32 %v10900, 0.0
    %v10965 = vmax.f32 %v10901, 0.0
    %v10966 = vmax.f32 %v10902, 0.0
    %v10967 = vmax.f32 %v10903, 0.0
    %v10968 = vmax.f32 %v10904, 0.0
    %v10969 = vmax.f32 %v10905, 0.0
    %v10970 = vmax.f32 %v10906, 0.0
    %v10971 = vmax.f32 %v10907, 0.0
    %v10972 = vmax.f32 %v10908, 0.0
    %v10973 = vmax.f32 %v10909, 0.0
    %v10974 = vmax.f32 %v10910, 0.0
    %v10975 = vmax.f32 %v10911, 0.0
    %v10976 = vmax.f32 %v10912, 0.0
    %v10977 = vmax.f32 %v10913, 0.0
    %v10978 = vmax.f32 %v10914, 0.0
    %v10979 = vmax.f32 %v10915, 0.0
    %10980 = vst [vmem:[#allocation16] sm:$0xff] %v10916
    %10981 = vst [vmem:[#allocation16 + $0x8] sm:$0xff] %v10917
    %10982 = vst [vmem:[#allocation16 + $0x10] sm:$0xff] %v10918
    %10983 = vst [vmem:[#allocation16 + $0x18] sm:$0xff] %v10919
    %10984 = vst [vmem:[#allocation16 + $0x20] sm:$0xff] %v10920
    %10985 = vst [vmem:[#allocation16 + $0x28] sm:$0xff] %v10921
    %10986 = vst [vmem:[#allocation16 + $0x30] sm:$0xff] %v10922
    %10987 = vst [vmem:[#allocation16 + $0x38] sm:$0xff] %v10923
    %10988 = vst [vmem:[#allocation16 + $0x40] sm:$0xff] %v10924
    %10989 = vst [vmem:[#allocation16 + $0x48] sm:$0xff] %v10925
    %10990 = vst [vmem:[#allocation16 + $0x50] sm:$0xff] %v10926
    %10991 = vst [vmem:[#allocation16 + $0x58] sm:$0xff] %v10927
    %10992 = vst [vmem:[#allocation16 + $0x60] sm:$0xff] %v10928
    %10993 = vst [vmem:[#allocation16 + $0x68] sm:$0xff] %v10929
    %10994 = vst [vmem:[#allocation16 + $0x70] sm:$0xff] %v10930
    %10995 = vst [vmem:[#allocation16 + $0x78] sm:$0xff] %v10931
    %10996 = vst [vmem:[#allocation16 + $0x80] sm:$0xff] %v10932
    %10997 = vst [vmem:[#allocation16 + $0x88] sm:$0xff] %v10933
    %10998 = vst [vmem:[#allocation16 + $0x90] sm:$0xff] %v10934
    %10999 = vst [vmem:[#allocation16 + $0x98] sm:$0xff] %v10935
    %11000 = vst [vmem:[#allocation16 + $0xa0] sm:$0xff] %v10936
    %11001 = vst [vmem:[#allocation16 + $0xa8] sm:$0xff] %v10937
    %11002 = vst [vmem:[#allocation16 + $0xb0] sm:$0xff] %v10938
    %11003 = vst [vmem:[#allocation16 + $0xb8] sm:$0xff] %v10939
    %11004 = vst [vmem:[#allocation16 + $0xc0] sm:$0xff] %v10940
    %11005 = vst [vmem:[#allocation16 + $0xc8] sm:$0xff] %v10941
    %11006 = vst [vmem:[#allocation16 + $0xd0] sm:$0xff] %v10942
    %11007 = vst [vmem:[#allocation16 + $0xd8] sm:$0xff] %v10943
    %11008 = vst [vmem:[#allocation16 + $0xe0] sm:$0xff] %v10944
    %11009 = vst [vmem:[#allocation16 + $0xe8] sm:$0xff] %v10945
    %11010 = vst [vmem:[#allocation16 + $0xf0] sm:$0xff] %v10946
    %11011 = vst [vmem:[#allocation16 + $0xf8] sm:$0xff] %v10947
    %11012 = vst [vmem:[#allocation16 + $0x100] sm:$0xff] %v10948
    %11013 = vst [vmem:[#allocation16 + $0x108] sm:$0xff] %v10949
    %11014 = vst [vmem:[#allocation16 + $0x110] sm:$0xff] %v10950
    %11015 = vst [vmem:[#allocation16 + $0x118] sm:$0xff] %v10951
    %11016 = vst [vmem:[#allocation16 + $0x120] sm:$0xff] %v10952
    %11017 = vst [vmem:[#allocation16 + $0x128] sm:$0xff] %v10953
    %11018 = vst [vmem:[#allocation16 + $0x130] sm:$0xff] %v10954
    %11019 = vst [vmem:[#allocation16 + $0x138] sm:$0xff] %v10955
    %11020 = vst [vmem:[#allocation16 + $0x140] sm:$0xff] %v10956
    %11021 = vst [vmem:[#allocation16 + $0x148] sm:$0xff] %v10957
    %11022 = vst [vmem:[#allocation16 + $0x150] sm:$0xff] %v10958
    %11023 = vst [vmem:[#allocation16 + $0x158] sm:$0xff] %v10959
    %11024 = vst [vmem:[#allocation16 + $0x160] sm:$0xff] %v10960
    %11025 = vst [vmem:[#allocation16 + $0x168] sm:$0xff] %v10961
    %11026 = vst [vmem:[#allocation16 + $0x170] sm:$0xff] %v10962
    %11027 = vst [vmem:[#allocation16 + $0x178] sm:$0xff] %v10963
    %11028 = vst [vmem:[#allocation16 + $0x180] sm:$0xff] %v10964
    %11029 = vst [vmem:[#allocation16 + $0x188] sm:$0xff] %v10965
    %11030 = vst [vmem:[#allocation16 + $0x190] sm:$0xff] %v10966
    %11031 = vst [vmem:[#allocation16 + $0x198] sm:$0xff] %v10967
    %11032 = vst [vmem:[#allocation16 + $0x1a0] sm:$0xff] %v10968
    %11033 = vst [vmem:[#allocation16 + $0x1a8] sm:$0xff] %v10969
    %11034 = vst [vmem:[#allocation16 + $0x1b0] sm:$0xff] %v10970
    %11035 = vst [vmem:[#allocation16 + $0x1b8] sm:$0xff] %v10971
    %11036 = vst [vmem:[#allocation16 + $0x1c0] sm:$0xff] %v10972
    %11037 = vst [vmem:[#allocation16 + $0x1c8] sm:$0xff] %v10973
    %11038 = vst [vmem:[#allocation16 + $0x1d0] sm:$0xff] %v10974
    %11039 = vst [vmem:[#allocation16 + $0x1d8] sm:$0xff] %v10975
    %11040 = vst [vmem:[#allocation16 + $0x1e0] sm:$0xff] %v10976
    %11041 = vst [vmem:[#allocation16 + $0x1e8] sm:$0xff] %v10977
    %11042 = vst [vmem:[#allocation16 + $0x1f0] sm:$0xff] %v10978
    %11043 = vst [vmem:[#allocation16 + $0x1f8] sm:$0xff] %v10979
    // Predicated region
    $region58: #{residual_block_forward.1} parent=1 // pred_check
      _
    $region59: #{residual_block_forward.1} parent=1 // pred_check_branch
      %11045 = sbr.rel (0) target = $region61
    $region60: #{residual_block_forward.1} parent=1 // pred_region
      %s11047 = ssub.s32 8192, 8192
      %11048 = vsyncadd [#allocation6], %s11047
      %s11049 = sshll.u32 [#allocation16], 4
      %s11050 = int_to_ptr.vmem [resolvable:$true] %s11049
      %11055 = dma.vmem_to_hbm [thread:$0]  %s11050, 8192, %s7, [#allocation6], 128, 128, 8
    $region61: #{residual_block_forward.1} parent=1 // pred_fallthru
      _
    // Predicated region
    $region62: #{residual_block_forward.1} parent=1 // pred_check
      _
    $region63: #{residual_block_forward.1} parent=1 // pred_check_branch
      %11057 = sbr.rel (0) target = $region65
    $region64: #{residual_block_forward.1} parent=1 // pred_region
      %11058 = dma.done [#allocation6], 8192
    $region65: #{residual_block_forward.1} parent=1 // pred_fallthru
      _
    %11059 = vsyncpa [#allocation5], 1
    %11060 = vsyncpa [#allocation8], 1
    %11061 = vsyncpa [#allocation11], 1
    %11062 = vsyncpa [#allocation14], 1
    %11063 = vsyncpa [#allocation6], 1

</llo_original>
